<compile_context>
chip_gen: v5e
topology: v5e:2x2
jax: 0.10.0
libtpu: 0.0.40
codegen_flags: <defaults>
</compile_context>

<pallas_src>
import functools

import jax
import jax.numpy as jnp
from jax import lax
from jax.experimental import pallas as pl
from jax.experimental.pallas import tpu as pltpu

_BN_EPS = 1e-5
_VMEM_LIMIT = 32 * 1024 * 1024  # fits v5e / v6e / v7x scoped-VMEM budgets


def _round_up(v, m):
    return ((v + m - 1) // m) * m


# ----------------------------------------------------------------------------
# Tiled matmul kernel: Y = X @ W + b (+ residual) (+ ReLU)
# ----------------------------------------------------------------------------
def _mm_kernel(*refs, relu, has_res):
    if has_res:
        x_ref, w_ref, b_ref, r_ref, o_ref, acc_ref = refs
    else:
        x_ref, w_ref, b_ref, o_ref, acc_ref = refs
        r_ref = None

    @pl.when(pl.program_id(2) == 0)
    def _():
        acc_ref[...] = jnp.zeros_like(acc_ref)

    acc_ref[...] += jnp.dot(x_ref[...], w_ref[...],
                            preferred_element_type=jnp.float32)

    @pl.when(pl.program_id(2) == pl.num_programs(2) - 1)
    def _():
        y = acc_ref[...] + b_ref[...]
        if has_res:
            y = y + r_ref[...]
        if relu:
            y = jnp.maximum(y, 0.0)
        o_ref[...] = y


def matmul_bias(x, w, b, *, relu=False, residual=None,
                tm_max=256, tn_max=256, tk_max=512):
    """Tiled, pipelined y = x @ w + b (+residual) (+ReLU).

    bf16 MXU operands with f32 accumulation/epilogue; N padded to a multiple
    of 128 for lane-dense stores; K reduced along the innermost grid axis
    into a VMEM f32 accumulator.
    """
    M, K = x.shape
    N = w.shape[1]
    tm = tm_max if M >= tm_max else _round_up(M, 16)
    tn = tn_max if N >= tn_max else _round_up(N, 128)
    tk = tk_max if K >= tk_max else _round_up(K, 128)
    Mp, Np, Kp = _round_up(M, tm), _round_up(N, tn), _round_up(K, tk)

    xp = jnp.pad(x.astype(jnp.bfloat16), ((0, Mp - M), (0, Kp - K)))
    wp = jnp.pad(w.astype(jnp.bfloat16), ((0, Kp - K), (0, Np - N)))
    bp = jnp.pad(b.reshape(1, N).astype(jnp.float32), ((0, 0), (0, Np - N)))

    args = [xp, wp, bp]
    in_specs = [
        pl.BlockSpec((tm, tk), lambda i, j, k: (i, k)),
        pl.BlockSpec((tk, tn), lambda i, j, k: (k, j)),
        pl.BlockSpec((1, tn), lambda i, j, k: (0, j)),
    ]
    has_res = residual is not None
    if has_res:
        rp = jnp.pad(residual.astype(jnp.float32), ((0, Mp - M), (0, Np - N)))
        args.append(rp)
        in_specs.append(pl.BlockSpec((tm, tn), lambda i, j, k: (i, j)))

    out = pl.pallas_call(
        functools.partial(_mm_kernel, relu=relu, has_res=has_res),
        out_shape=jax.ShapeDtypeStruct((Mp, Np), jnp.float32),
        grid_spec=pltpu.PrefetchScalarGridSpec(
            num_scalar_prefetch=0,
            grid=(Mp // tm, Np // tn, Kp // tk),
            in_specs=in_specs,
            out_specs=pl.BlockSpec((tm, tn), lambda i, j, k: (i, j)),
            scratch_shapes=[pltpu.VMEM((tm, tn), jnp.float32)]),
        compiler_params=pltpu.CompilerParams(
            dimension_semantics=("parallel", "parallel", "arbitrary"),
            vmem_limit_bytes=_VMEM_LIMIT),
    )(*args)
    return out[:M, :N]


# ----------------------------------------------------------------------------
# Bidirectional LSTM recurrence (input projection hoisted outside)
# ----------------------------------------------------------------------------
def _bilstm_kernel(gxf_ref, gxb_ref, whh_ref, of_ref, ob_ref, h_sc, c_sc,
                   *, tc, hidden):
    """One time-chunk of a bidirectional LSTM layer.

    gxf_ref: (tc, B, 4H)  x@W_ih_f + b_f for chunk s (forward time order)
    gxb_ref: (tc, B, 4H)  x@W_ih_b + b_b for chunk n-1-s
    whh_ref: (2H, 8H)     block-diag [[W_hh_f, 0], [0, W_hh_b]] (bf16)
    of_ref : (tc, B, H)   forward outputs for chunk s
    ob_ref : (tc, B, H)   backward outputs for chunk n-1-s
    h_sc/c_sc: (B, 2H)    [h_f | h_b], [c_f | c_b] carried across grid steps
    """
    H = hidden

    @pl.when(pl.program_id(0) == 0)
    def _():
        h_sc[...] = jnp.zeros_like(h_sc)
        c_sc[...] = jnp.zeros_like(c_sc)

    whh = whh_ref[...]

    def step(tt, carry):
        rt = tc - 1 - tt
        # Recurrent projection for BOTH directions in one dot (B,2H)x(2H,8H).
        gr = jnp.dot(h_sc[...].astype(jnp.bfloat16), whh,
                     preferred_element_type=jnp.float32)          # (B, 8H)

        # ---- forward direction, local time tt (global s*tc + tt) ----
        gates_f = gxf_ref[tt, :, :] + gr[:, :4 * H]               # (B, 4H)
        sg_f = jax.nn.sigmoid(gates_f)
        th_f = jnp.tanh(gates_f)
        c_f = (sg_f[:, H:2 * H] * c_sc[:, 0:H]
               + sg_f[:, 0:H] * th_f[:, 2 * H:3 * H])
        h_f = sg_f[:, 3 * H:4 * H] * jnp.tanh(c_f)

        # ---- backward direction, local time rt (global reversed order) ----
        gates_b = gxb_ref[rt, :, :] + gr[:, 4 * H:]
        sg_b = jax.nn.sigmoid(gates_b)
        th_b = jnp.tanh(gates_b)
        c_b = (sg_b[:, H:2 * H] * c_sc[:, H:2 * H]
               + sg_b[:, 0:H] * th_b[:, 2 * H:3 * H])
        h_b = sg_b[:, 3 * H:4 * H] * jnp.tanh(c_b)

        h_sc[:, 0:H] = h_f
        h_sc[:, H:2 * H] = h_b
        c_sc[:, 0:H] = c_f
        c_sc[:, H:2 * H] = c_b
        of_ref[tt, :, :] = h_f
        ob_ref[rt, :, :] = h_b
        return carry

    lax.fori_loop(0, tc, step, 0, unroll=True)


def _time_chunk(t, max_chunk=32):
    tc = min(t, max_chunk)
    while t % tc:
        tc -= 1
    return tc


def bilstm_layer(x_tbf, layer_p):
    """x_tbf: (T, B, I) -> (T, B, 2H), PyTorch bidirectional LSTM semantics."""
    T, B, I = x_tbf.shape
    H = layer_p["fwd"]["whh"].shape[0]

    # Hoisted input projection for both directions as one big MXU matmul.
    wih = jnp.concatenate([layer_p["fwd"]["wih"], layer_p["bwd"]["wih"]],
                          axis=1)                                 # (I, 8H)
    bias = jnp.concatenate([layer_p["fwd"]["b"], layer_p["bwd"]["b"]], axis=0)
    gx = matmul_bias(x_tbf.reshape(T * B, I), wih, bias)          # (T*B, 8H)
    gx = gx.reshape(T, B, 8 * H)
    gx_f = gx[:, :, :4 * H]
    gx_b = gx[:, :, 4 * H:]

    # Block-diagonal recurrent weight so both directions share one dot.
    wf = layer_p["fwd"]["whh"].astype(jnp.bfloat16)
    wb = layer_p["bwd"]["whh"].astype(jnp.bfloat16)
    z = jnp.zeros_like(wf)
    whh_blk = jnp.concatenate(
        [jnp.concatenate([wf, z], axis=1),
         jnp.concatenate([z, wb], axis=1)], axis=0)               # (2H, 8H)

    tc = _time_chunk(T)
    nchunks = T // tc
    out_f, out_b = pl.pallas_call(
        functools.partial(_bilstm_kernel, tc=tc, hidden=H),
        out_shape=(jax.ShapeDtypeStruct((T, B, H), jnp.float32),
                   jax.ShapeDtypeStruct((T, B, H), jnp.float32)),
        grid_spec=pltpu.PrefetchScalarGridSpec(
            num_scalar_prefetch=0,
            grid=(nchunks,),
            in_specs=[
                pl.BlockSpec((tc, B, 4 * H), lambda s: (s, 0, 0)),
                pl.BlockSpec((tc, B, 4 * H),
                             lambda s: (nchunks - 1 - s, 0, 0)),
                pl.BlockSpec((2 * H, 8 * H), lambda s: (0, 0)),
            ],
            out_specs=(
                pl.BlockSpec((tc, B, H), lambda s: (s, 0, 0)),
                pl.BlockSpec((tc, B, H), lambda s: (nchunks - 1 - s, 0, 0)),
            ),
            scratch_shapes=[pltpu.VMEM((B, 2 * H), jnp.float32),
                            pltpu.VMEM((B, 2 * H), jnp.float32)]),
        compiler_params=pltpu.CompilerParams(
            dimension_semantics=("arbitrary",),
            vmem_limit_bytes=_VMEM_LIMIT),
    )(gx_f, gx_b, whh_blk)
    return jnp.concatenate([out_f, out_b], axis=-1)               # (T, B, 2H)


# ----------------------------------------------------------------------------
# Conv / BN / pooling built on the Pallas matmul kernel
# ----------------------------------------------------------------------------
def _fold_bn(p):
    scale = p["gamma"] / jnp.sqrt(p["var"] + _BN_EPS)
    return p["w"] * scale, p["beta"] - p["mean"] * scale


def conv3x3_bn(x, p, *, relu, residual=None):
    """3x3 conv (stride 1, pad 1, no bias) + folded BN, with optional fused
    residual-add + ReLU epilogue."""
    B, H, W, Cin = x.shape
    Cout = p["w"].shape[-1]
    w_eff, bias = _fold_bn(p)
    w_mat = w_eff.reshape(9 * Cin, Cout)
    xp = jnp.pad(x, ((0, 0), (1, 1), (1, 1), (0, 0)))
    # TODO(synk): im2col materializes 9x the activation bytes in HBM; a
    # halo-tiled in-kernel tap accumulation would remove that traffic for
    # large images.
    patches = jnp.concatenate(
        [xp[:, kh:kh + H, kw:kw + W, :] for kh in range(3) for kw in range(3)],
        axis=-1).reshape(B * H * W, 9 * Cin)
    res = None if residual is None else residual.reshape(B * H * W, Cout)
    y = matmul_bias(patches, w_mat, bias, relu=relu, residual=res)
    return y.reshape(B, H, W, Cout)


def conv1x1_bn(x, p):
    B, H, W, Cin = x.shape
    Cout = p["w"].shape[-1]
    w_eff, bias = _fold_bn(p)
    y = matmul_bias(x.reshape(B * H * W, Cin), w_eff.reshape(Cin, Cout), bias)
    return y.reshape(B, H, W, Cout)


def residual_block(x, p):
    out = conv3x3_bn(x, p["conv1"], relu=True)
    sc = conv1x1_bn(x, p["short"]) if "short" in p else x
    # conv2 + BN + residual add + ReLU fused into one matmul epilogue.
    return conv3x3_bn(out, p["conv2"], relu=True, residual=sc)


def maxpool2(x):
    B, H, W, C = x.shape
    return x.reshape(B, H // 2, 2, W // 2, 2, C).max(axis=(2, 4))


# ----------------------------------------------------------------------------
# Full forward pass
# ----------------------------------------------------------------------------
def forward(x_nchw, params):
    x = jnp.transpose(x_nchw, (0, 2, 3, 1)).astype(jnp.float32)  # NCHW -> NHWC

    x = conv3x3_bn(x, params["stem"], relu=True)
    x = residual_block(x, params["rb1"])
    x = residual_block(x, params["rb2"])
    x = maxpool2(x)
    x = residual_block(x, params["rb3"])
    x = residual_block(x, params["rb4"])
    x = residual_block(x, params["rb5"])
    x = residual_block(x, params["rb6"])
    x = maxpool2(x)
    x = residual_block(x, params["rb7"])
    x = residual_block(x, params["rb8"])

    # torch: (B, C, H, W).permute(0, 3, 1, 2).view(B, W, C*H)
    B, H, W, C = x.shape
    x = jnp.transpose(x, (0, 2, 3, 1)).reshape(B, W, C * H)      # (B, W, C*H)
    x = jnp.transpose(x, (1, 0, 2))                              # (T=W, B, F)

    for layer in params["lstm"]:
        x = bilstm_layer(x, layer)                               # (T, B, 2*n_h)

    T, B_, F = x.shape
    logits = matmul_bias(x.reshape(T * B_, F), params["fc_w"], params["fc_b"])
    # torch returns (seq, batch, n_classes); we are already (T, B, n_classes).
    return logits.reshape(T, B_, -1)


# ----------------------------------------------------------------------------
# Deterministic parameter initialization
# ----------------------------------------------------------------------------
def init_conv_bn(key, ksize, cin, cout):
    k1, k2, k3, k4, k5 = jax.random.split(key, 5)
    std = (2.0 / (ksize * ksize * cin)) ** 0.5
    return dict(
        w=jax.random.normal(k1, (ksize, ksize, cin, cout), jnp.float32) * std,
        gamma=jax.random.uniform(k2, (cout,), jnp.float32, 0.8, 1.2),
        beta=jax.random.normal(k3, (cout,), jnp.float32) * 0.05,
        mean=jax.random.normal(k4, (cout,), jnp.float32) * 0.05,
        var=jax.random.uniform(k5, (cout,), jnp.float32, 0.8, 1.2),
    )


def init_resblock(key, cin, cout):
    k1, k2, k3 = jax.random.split(key, 3)
    p = dict(conv1=init_conv_bn(k1, 3, cin, cout),
             conv2=init_conv_bn(k2, 3, cout, cout))
    if cin != cout:                      # stride is always 1 in this model
        p["short"] = init_conv_bn(k3, 1, cin, cout)
    return p


def init_lstm_dir(key, in_size, hidden):
    k1, k2, k3 = jax.random.split(key, 3)
    s = 1.0 / (hidden ** 0.5)
    return dict(
        wih=jax.random.uniform(k1, (in_size, 4 * hidden), jnp.float32, -s, s),
        whh=jax.random.uniform(k2, (hidden, 4 * hidden), jnp.float32, -s, s),
        b=jax.random.uniform(k3, (4 * hidden,), jnp.float32, -s, s),  # b_ih+b_hh
    )


def init_params(key, num_channels, oc, img_height, n_h, n_classes,
                lstm_layers=2):
    keys = jax.random.split(key, 16)
    params = dict(
        stem=init_conv_bn(keys[0], 3, num_channels, oc),
        rb1=init_resblock(keys[1], oc, oc),
        rb2=init_resblock(keys[2], oc, oc),
        rb3=init_resblock(keys[3], oc, 2 * oc),
        rb4=init_resblock(keys[4], 2 * oc, 2 * oc),
        rb5=init_resblock(keys[5], 2 * oc, 4 * oc),
        rb6=init_resblock(keys[6], 4 * oc, 4 * oc),
        rb7=init_resblock(keys[7], 4 * oc, 8 * oc),
        rb8=init_resblock(keys[8], 8 * oc, 8 * oc),
    )
    lstm_in = 8 * oc * (img_height // 4)
    layers = []
    in_size = lstm_in
    for l in range(lstm_layers):
        layers.append(dict(fwd=init_lstm_dir(keys[9 + 2 * l], in_size, n_h),
                           bwd=init_lstm_dir(keys[10 + 2 * l], in_size, n_h)))
        in_size = 2 * n_h
    params["lstm"] = layers
    s = 1.0 / ((2 * n_h) ** 0.5)
    params["fc_w"] = jax.random.uniform(keys[13], (2 * n_h, n_classes),
                                        jnp.float32, -s, s)
    params["fc_b"] = jax.random.uniform(keys[14], (n_classes,),
                                        jnp.float32, -s, s)
    return params


# ----------------------------------------------------------------------------
if __name__ == "__main__":
    # Small shapes consistent with the module:
    # batch=2, num_channels=1, img 16x32, out_channels=4, n_h=32, n_classes=11
    # -> sequence length after the two 2x2 pools is W/4 = 8.
    B, C_IN, IMG_H, IMG_W = 2, 1, 16, 32
    OUT_CHANNELS, N_H, N_CLASSES = 4, 32, 11

    root = jax.random.PRNGKey(0)
    k_params, k_input = jax.random.split(root)

    params = init_params(k_params, C_IN, OUT_CHANNELS, IMG_H, N_H, N_CLASSES)
    x = jax.random.normal(k_input, (B, C_IN, IMG_H, IMG_W), jnp.float32)

    fwd = jax.jit(forward)
    out = fwd(x, params)
    out = jax.block_until_ready(out)

    expected = (IMG_W // 4, B, N_CLASSES)   # (seq_len, batch, n_classes)
    assert out.shape == expected, (out.shape, expected)
    assert out.dtype == jnp.float32
    assert bool(jnp.all(jnp.isfinite(out)))
    print("KERNEL_OK")
</pallas_src>

<mosaic_0001>
module attributes {stable_mosaic.version = 11 : i64} {
  func.func @_mm_kernel(%arg0: i32, %arg1: i32, %arg2: i32, %arg3: memref<256x128xbf16, #tpu.memory_space<vmem>>, %arg4: memref<128x128xbf16, #tpu.memory_space<vmem>>, %arg5: memref<1x128xf32, #tpu.memory_space<vmem>>, %arg6: memref<256x128xf32, #tpu.memory_space<vmem>>, %arg7: memref<256x128xf32, #tpu.memory_space<vmem>>) attributes {dimension_semantics = [#tpu.dimension_semantics<parallel>, #tpu.dimension_semantics<parallel>, #tpu.dimension_semantics<arbitrary>], iteration_bounds = array<i64: 4, 1, 1>, scalar_prefetch = 0 : i64, scratch_operands = 1 : i64, tpu.core_type = #tpu.core_type<tc>, window_params = [{transform_indices = @transform_0, window_bounds = array<i64: 256, 128>}, {transform_indices = @transform_1, window_bounds = array<i64: 128, 128>}, {transform_indices = @transform_2, window_bounds = array<i64: 1, 128>}, {transform_indices = @transform_3, window_bounds = array<i64: 256, 128>}]} {
    %c0_i32 = arith.constant 0 : i32
    %0 = arith.cmpi eq, %arg2, %c0_i32 : i32
    %1 = arith.extui %0 : i1 to i32
    %c0_i32_0 = arith.constant 0 : i32
    %2 = arith.cmpi ne, %1, %c0_i32_0 : i32
    scf.if %2 {
      %cst_10 = arith.constant 0.000000e+00 : f32
      %12 = vector.broadcast %cst_10 : f32 to vector<256x128xf32>
      %c0_11 = arith.constant 0 : index
      %c0_12 = arith.constant 0 : index
      %13 = vector.load %arg7[%c0_11, %c0_12] : memref<256x128xf32, #tpu.memory_space<vmem>>, vector<256x128xf32>
      tpu.vector_store %arg7[%c0_11, %c0_12], %12 {strides = array<i32>} : memref<256x128xf32, #tpu.memory_space<vmem>>, vector<256x128xf32>,
    } else {
    }
    %c0 = arith.constant 0 : index
    %c0_1 = arith.constant 0 : index
    %3 = vector.load %arg7[%c0, %c0_1] : memref<256x128xf32, #tpu.memory_space<vmem>>, vector<256x128xf32>
    %c0_2 = arith.constant 0 : index
    %c0_3 = arith.constant 0 : index
    %4 = vector.load %arg3[%c0_2, %c0_3] : memref<256x128xbf16, #tpu.memory_space<vmem>>, vector<256x128xbf16>
    %c0_4 = arith.constant 0 : index
    %c0_5 = arith.constant 0 : index
    %5 = vector.load %arg4[%c0_4, %c0_5] : memref<128x128xbf16, #tpu.memory_space<vmem>>, vector<128x128xbf16>
    %cst = arith.constant dense<0.000000e+00> : vector<256x128xf32>
    %6 = tpu.matmul %4, %5, %cst {dimension_numbers = #tpu.dot_dimension_numbers<[1], [0], [0], [1], [0, 0, 1, 1], [], []>} : vector<256x128xbf16>, vector<128x128xbf16>, vector<256x128xf32> -> vector<256x128xf32>
    %7 = arith.addf %3, %6 : vector<256x128xf32>
    %c0_6 = arith.constant 0 : index
    %c0_7 = arith.constant 0 : index
    %8 = vector.load %arg7[%c0_6, %c0_7] : memref<256x128xf32, #tpu.memory_space<vmem>>, vector<256x128xf32>
    tpu.vector_store %arg7[%c0_6, %c0_7], %7 {strides = array<i32>} : memref<256x128xf32, #tpu.memory_space<vmem>>, vector<256x128xf32>,
    %c0_i32_8 = arith.constant 0 : i32
    %9 = arith.cmpi eq, %arg2, %c0_i32_8 : i32
    %10 = arith.extui %9 : i1 to i32
    %c0_i32_9 = arith.constant 0 : i32
    %11 = arith.cmpi ne, %10, %c0_i32_9 : i32
    scf.if %11 {
      %c0_10 = arith.constant 0 : index
      %c0_11 = arith.constant 0 : index
      %12 = vector.load %arg7[%c0_10, %c0_11] : memref<256x128xf32, #tpu.memory_space<vmem>>, vector<256x128xf32>
      %c0_12 = arith.constant 0 : index
      %c0_13 = arith.constant 0 : index
      %13 = vector.load %arg5[%c0_12, %c0_13] : memref<1x128xf32, #tpu.memory_space<vmem>>, vector<1x128xf32>
      %14 = vector.broadcast %13 : vector<1x128xf32> to vector<256x128xf32>
      %15 = arith.addf %12, %14 : vector<256x128xf32>
      %cst_14 = arith.constant 0.000000e+00 : f32
      %16 = vector.broadcast %cst_14 : f32 to vector<256x128xf32>
      %17 = arith.maximumf %15, %16 : vector<256x128xf32>
      %c0_15 = arith.constant 0 : index
      %c0_16 = arith.constant 0 : index
      %18 = vector.load %arg6[%c0_15, %c0_16] : memref<256x128xf32, #tpu.memory_space<vmem>>, vector<256x128xf32>
      tpu.vector_store %arg6[%c0_15, %c0_16], %17 {strides = array<i32>} : memref<256x128xf32, #tpu.memory_space<vmem>>, vector<256x128xf32>,
    } else {
    }
    return
  }
  func.func @transform_0(%arg0: i32, %arg1: i32, %arg2: i32) -> (i32, i32) {
    %c0_i32 = arith.constant 0 : i32
    return %arg0, %arg2 : i32, i32
  }
  func.func @transform_1(%arg0: i32, %arg1: i32, %arg2: i32) -> (i32, i32) {
    %c0_i32 = arith.constant 0 : i32
    return %arg2, %arg1 : i32, i32
  }
  func.func @transform_2(%arg0: i32, %arg1: i32, %arg2: i32) -> (i32, i32) {
    %c0_i32 = arith.constant 0 : i32
    %c0_i32_0 = arith.constant 0 : i32
    return %c0_i32, %arg1 : i32, i32
  }
  func.func @transform_3(%arg0: i32, %arg1: i32, %arg2: i32) -> (i32, i32) {
    %c0_i32 = arith.constant 0 : i32
    return %arg0, %arg1 : i32, i32
  }
}

module attributes {stable_mosaic.version = 11 : i64} {
  func.func @_mm_kernel(%arg0: i32, %arg1: i32, %arg2: i32, %arg3: memref<256x128xbf16, #tpu.memory_space<vmem>>, %arg4: memref<128x128xbf16, #tpu.memory_space<vmem>>, %arg5: memref<1x128xf32, #tpu.memory_space<vmem>>, %arg6: memref<256x128xf32, #tpu.memory_space<vmem>>, %arg7: memref<256x128xf32, #tpu.memory_space<vmem>>, %arg8: memref<256x128xf32, #tpu.memory_space<vmem>>) attributes {dimension_semantics = [#tpu.dimension_semantics<parallel>, #tpu.dimension_semantics<parallel>, #tpu.dimension_semantics<arbitrary>], iteration_bounds = array<i64: 4, 1, 1>, scalar_prefetch = 0 : i64, scratch_operands = 1 : i64, tpu.core_type = #tpu.core_type<tc>, window_params = [{transform_indices = @transform_0, window_bounds = array<i64: 256, 128>}, {transform_indices = @transform_1, window_bounds = array<i64: 128, 128>}, {transform_indices = @transform_2, window_bounds = array<i64: 1, 128>}, {transform_indices = @transform_3, window_bounds = array<i64: 256, 128>}, {transform_indices = @transform_4, window_bounds = array<i64: 256, 128>}]} {
    %c0_i32 = arith.constant 0 : i32
    %0 = arith.cmpi eq, %arg2, %c0_i32 : i32
    %1 = arith.extui %0 : i1 to i32
    %c0_i32_0 = arith.constant 0 : i32
    %2 = arith.cmpi ne, %1, %c0_i32_0 : i32
    scf.if %2 {
      %cst_10 = arith.constant 0.000000e+00 : f32
      %12 = vector.broadcast %cst_10 : f32 to vector<256x128xf32>
      %c0_11 = arith.constant 0 : index
      %c0_12 = arith.constant 0 : index
      %13 = vector.load %arg8[%c0_11, %c0_12] : memref<256x128xf32, #tpu.memory_space<vmem>>, vector<256x128xf32>
      tpu.vector_store %arg8[%c0_11, %c0_12], %12 {strides = array<i32>} : memref<256x128xf32, #tpu.memory_space<vmem>>, vector<256x128xf32>,
    } else {
    }
    %c0 = arith.constant 0 : index
    %c0_1 = arith.constant 0 : index
    %3 = vector.load %arg8[%c0, %c0_1] : memref<256x128xf32, #tpu.memory_space<vmem>>, vector<256x128xf32>
    %c0_2 = arith.constant 0 : index
    %c0_3 = arith.constant 0 : index
    %4 = vector.load %arg3[%c0_2, %c0_3] : memref<256x128xbf16, #tpu.memory_space<vmem>>, vector<256x128xbf16>
    %c0_4 = arith.constant 0 : index
    %c0_5 = arith.constant 0 : index
    %5 = vector.load %arg4[%c0_4, %c0_5] : memref<128x128xbf16, #tpu.memory_space<vmem>>, vector<128x128xbf16>
    %cst = arith.constant dense<0.000000e+00> : vector<256x128xf32>
    %6 = tpu.matmul %4, %5, %cst {dimension_numbers = #tpu.dot_dimension_numbers<[1], [0], [0], [1], [0, 0, 1, 1], [], []>} : vector<256x128xbf16>, vector<128x128xbf16>, vector<256x128xf32> -> vector<256x128xf32>
    %7 = arith.addf %3, %6 : vector<256x128xf32>
    %c0_6 = arith.constant 0 : index
    %c0_7 = arith.constant 0 : index
    %8 = vector.load %arg8[%c0_6, %c0_7] : memref<256x128xf32, #tpu.memory_space<vmem>>, vector<256x128xf32>
    tpu.vector_store %arg8[%c0_6, %c0_7], %7 {strides = array<i32>} : memref<256x128xf32, #tpu.memory_space<vmem>>, vector<256x128xf32>,
    %c0_i32_8 = arith.constant 0 : i32
    %9 = arith.cmpi eq, %arg2, %c0_i32_8 : i32
    %10 = arith.extui %9 : i1 to i32
    %c0_i32_9 = arith.constant 0 : i32
    %11 = arith.cmpi ne, %10, %c0_i32_9 : i32
    scf.if %11 {
      %c0_10 = arith.constant 0 : index
      %c0_11 = arith.constant 0 : index
      %12 = vector.load %arg8[%c0_10, %c0_11] : memref<256x128xf32, #tpu.memory_space<vmem>>, vector<256x128xf32>
      %c0_12 = arith.constant 0 : index
      %c0_13 = arith.constant 0 : index
      %13 = vector.load %arg5[%c0_12, %c0_13] : memref<1x128xf32, #tpu.memory_space<vmem>>, vector<1x128xf32>
      %14 = vector.broadcast %13 : vector<1x128xf32> to vector<256x128xf32>
      %15 = arith.addf %12, %14 : vector<256x128xf32>
      %c0_14 = arith.constant 0 : index
      %c0_15 = arith.constant 0 : index
      %16 = vector.load %arg6[%c0_14, %c0_15] : memref<256x128xf32, #tpu.memory_space<vmem>>, vector<256x128xf32>
      %17 = arith.addf %15, %16 : vector<256x128xf32>
      %cst_16 = arith.constant 0.000000e+00 : f32
      %18 = vector.broadcast %cst_16 : f32 to vector<256x128xf32>
      %19 = arith.maximumf %17, %18 : vector<256x128xf32>
      %c0_17 = arith.constant 0 : index
      %c0_18 = arith.constant 0 : index
      %20 = vector.load %arg7[%c0_17, %c0_18] : memref<256x128xf32, #tpu.memory_space<vmem>>, vector<256x128xf32>
      tpu.vector_store %arg7[%c0_17, %c0_18], %19 {strides = array<i32>} : memref<256x128xf32, #tpu.memory_space<vmem>>, vector<256x128xf32>,
    } else {
    }
    return
  }
  func.func @transform_0(%arg0: i32, %arg1: i32, %arg2: i32) -> (i32, i32) {
    %c0_i32 = arith.constant 0 : i32
    return %arg0, %arg2 : i32, i32
  }
  func.func @transform_1(%arg0: i32, %arg1: i32, %arg2: i32) -> (i32, i32) {
    %c0_i32 = arith.constant 0 : i32
    return %arg2, %arg1 : i32, i32
  }
  func.func @transform_2(%arg0: i32, %arg1: i32, %arg2: i32) -> (i32, i32) {
    %c0_i32 = arith.constant 0 : i32
    %c0_i32_0 = arith.constant 0 : i32
    return %c0_i32, %arg1 : i32, i32
  }
  func.func @transform_3(%arg0: i32, %arg1: i32, %arg2: i32) -> (i32, i32) {
    %c0_i32 = arith.constant 0 : i32
    return %arg0, %arg1 : i32, i32
  }
  func.func @transform_4(%arg0: i32, %arg1: i32, %arg2: i32) -> (i32, i32) {
    %c0_i32 = arith.constant 0 : i32
    return %arg0, %arg1 : i32, i32
  }
}

module attributes {stable_mosaic.version = 11 : i64} {
  func.func @_mm_kernel(%arg0: i32, %arg1: i32, %arg2: i32, %arg3: memref<256x128xbf16, #tpu.memory_space<vmem>>, %arg4: memref<128x128xbf16, #tpu.memory_space<vmem>>, %arg5: memref<1x128xf32, #tpu.memory_space<vmem>>, %arg6: memref<256x128xf32, #tpu.memory_space<vmem>>, %arg7: memref<256x128xf32, #tpu.memory_space<vmem>>) attributes {dimension_semantics = [#tpu.dimension_semantics<parallel>, #tpu.dimension_semantics<parallel>, #tpu.dimension_semantics<arbitrary>], iteration_bounds = array<i64: 1, 1, 1>, scalar_prefetch = 0 : i64, scratch_operands = 1 : i64, tpu.core_type = #tpu.core_type<tc>, window_params = [{transform_indices = @transform_0, window_bounds = array<i64: 256, 128>}, {transform_indices = @transform_1, window_bounds = array<i64: 128, 128>}, {transform_indices = @transform_2, window_bounds = array<i64: 1, 128>}, {transform_indices = @transform_3, window_bounds = array<i64: 256, 128>}]} {
    %c0_i32 = arith.constant 0 : i32
    %0 = arith.cmpi eq, %arg2, %c0_i32 : i32
    %1 = arith.extui %0 : i1 to i32
    %c0_i32_0 = arith.constant 0 : i32
    %2 = arith.cmpi ne, %1, %c0_i32_0 : i32
    scf.if %2 {
      %cst_10 = arith.constant 0.000000e+00 : f32
      %12 = vector.broadcast %cst_10 : f32 to vector<256x128xf32>
      %c0_11 = arith.constant 0 : index
      %c0_12 = arith.constant 0 : index
      %13 = vector.load %arg7[%c0_11, %c0_12] : memref<256x128xf32, #tpu.memory_space<vmem>>, vector<256x128xf32>
      tpu.vector_store %arg7[%c0_11, %c0_12], %12 {strides = array<i32>} : memref<256x128xf32, #tpu.memory_space<vmem>>, vector<256x128xf32>,
    } else {
    }
    %c0 = arith.constant 0 : index
    %c0_1 = arith.constant 0 : index
    %3 = vector.load %arg7[%c0, %c0_1] : memref<256x128xf32, #tpu.memory_space<vmem>>, vector<256x128xf32>
    %c0_2 = arith.constant 0 : index
    %c0_3 = arith.constant 0 : index
    %4 = vector.load %arg3[%c0_2, %c0_3] : memref<256x128xbf16, #tpu.memory_space<vmem>>, vector<256x128xbf16>
    %c0_4 = arith.constant 0 : index
    %c0_5 = arith.constant 0 : index
    %5 = vector.load %arg4[%c0_4, %c0_5] : memref<128x128xbf16, #tpu.memory_space<vmem>>, vector<128x128xbf16>
    %cst = arith.constant dense<0.000000e+00> : vector<256x128xf32>
    %6 = tpu.matmul %4, %5, %cst {dimension_numbers = #tpu.dot_dimension_numbers<[1], [0], [0], [1], [0, 0, 1, 1], [], []>} : vector<256x128xbf16>, vector<128x128xbf16>, vector<256x128xf32> -> vector<256x128xf32>
    %7 = arith.addf %3, %6 : vector<256x128xf32>
    %c0_6 = arith.constant 0 : index
    %c0_7 = arith.constant 0 : index
    %8 = vector.load %arg7[%c0_6, %c0_7] : memref<256x128xf32, #tpu.memory_space<vmem>>, vector<256x128xf32>
    tpu.vector_store %arg7[%c0_6, %c0_7], %7 {strides = array<i32>} : memref<256x128xf32, #tpu.memory_space<vmem>>, vector<256x128xf32>,
    %c0_i32_8 = arith.constant 0 : i32
    %9 = arith.cmpi eq, %arg2, %c0_i32_8 : i32
    %10 = arith.extui %9 : i1 to i32
    %c0_i32_9 = arith.constant 0 : i32
    %11 = arith.cmpi ne, %10, %c0_i32_9 : i32
    scf.if %11 {
      %c0_10 = arith.constant 0 : index
      %c0_11 = arith.constant 0 : index
      %12 = vector.load %arg7[%c0_10, %c0_11] : memref<256x128xf32, #tpu.memory_space<vmem>>, vector<256x128xf32>
      %c0_12 = arith.constant 0 : index
      %c0_13 = arith.constant 0 : index
      %13 = vector.load %arg5[%c0_12, %c0_13] : memref<1x128xf32, #tpu.memory_space<vmem>>, vector<1x128xf32>
      %14 = vector.broadcast %13 : vector<1x128xf32> to vector<256x128xf32>
      %15 = arith.addf %12, %14 : vector<256x128xf32>
      %cst_14 = arith.constant 0.000000e+00 : f32
      %16 = vector.broadcast %cst_14 : f32 to vector<256x128xf32>
      %17 = arith.maximumf %15, %16 : vector<256x128xf32>
      %c0_15 = arith.constant 0 : index
      %c0_16 = arith.constant 0 : index
      %18 = vector.load %arg6[%c0_15, %c0_16] : memref<256x128xf32, #tpu.memory_space<vmem>>, vector<256x128xf32>
      tpu.vector_store %arg6[%c0_15, %c0_16], %17 {strides = array<i32>} : memref<256x128xf32, #tpu.memory_space<vmem>>, vector<256x128xf32>,
    } else {
    }
    return
  }
  func.func @transform_0(%arg0: i32, %arg1: i32, %arg2: i32) -> (i32, i32) {
    %c0_i32 = arith.constant 0 : i32
    return %arg0, %arg2 : i32, i32
  }
  func.func @transform_1(%arg0: i32, %arg1: i32, %arg2: i32) -> (i32, i32) {
    %c0_i32 = arith.constant 0 : i32
    return %arg2, %arg1 : i32, i32
  }
  func.func @transform_2(%arg0: i32, %arg1: i32, %arg2: i32) -> (i32, i32) {
    %c0_i32 = arith.constant 0 : i32
    %c0_i32_0 = arith.constant 0 : i32
    return %c0_i32, %arg1 : i32, i32
  }
  func.func @transform_3(%arg0: i32, %arg1: i32, %arg2: i32) -> (i32, i32) {
    %c0_i32 = arith.constant 0 : i32
    return %arg0, %arg1 : i32, i32
  }
}

module attributes {stable_mosaic.version = 11 : i64} {
  func.func @_mm_kernel(%arg0: i32, %arg1: i32, %arg2: i32, %arg3: memref<256x128xbf16, #tpu.memory_space<vmem>>, %arg4: memref<128x128xbf16, #tpu.memory_space<vmem>>, %arg5: memref<1x128xf32, #tpu.memory_space<vmem>>, %arg6: memref<256x128xf32, #tpu.memory_space<vmem>>, %arg7: memref<256x128xf32, #tpu.memory_space<vmem>>) attributes {dimension_semantics = [#tpu.dimension_semantics<parallel>, #tpu.dimension_semantics<parallel>, #tpu.dimension_semantics<arbitrary>], iteration_bounds = array<i64: 1, 1, 1>, scalar_prefetch = 0 : i64, scratch_operands = 1 : i64, tpu.core_type = #tpu.core_type<tc>, window_params = [{transform_indices = @transform_0, window_bounds = array<i64: 256, 128>}, {transform_indices = @transform_1, window_bounds = array<i64: 128, 128>}, {transform_indices = @transform_2, window_bounds = array<i64: 1, 128>}, {transform_indices = @transform_3, window_bounds = array<i64: 256, 128>}]} {
    %c0_i32 = arith.constant 0 : i32
    %0 = arith.cmpi eq, %arg2, %c0_i32 : i32
    %1 = arith.extui %0 : i1 to i32
    %c0_i32_0 = arith.constant 0 : i32
    %2 = arith.cmpi ne, %1, %c0_i32_0 : i32
    scf.if %2 {
      %cst_10 = arith.constant 0.000000e+00 : f32
      %12 = vector.broadcast %cst_10 : f32 to vector<256x128xf32>
      %c0_11 = arith.constant 0 : index
      %c0_12 = arith.constant 0 : index
      %13 = vector.load %arg7[%c0_11, %c0_12] : memref<256x128xf32, #tpu.memory_space<vmem>>, vector<256x128xf32>
      tpu.vector_store %arg7[%c0_11, %c0_12], %12 {strides = array<i32>} : memref<256x128xf32, #tpu.memory_space<vmem>>, vector<256x128xf32>,
    } else {
    }
    %c0 = arith.constant 0 : index
    %c0_1 = arith.constant 0 : index
    %3 = vector.load %arg7[%c0, %c0_1] : memref<256x128xf32, #tpu.memory_space<vmem>>, vector<256x128xf32>
    %c0_2 = arith.constant 0 : index
    %c0_3 = arith.constant 0 : index
    %4 = vector.load %arg3[%c0_2, %c0_3] : memref<256x128xbf16, #tpu.memory_space<vmem>>, vector<256x128xbf16>
    %c0_4 = arith.constant 0 : index
    %c0_5 = arith.constant 0 : index
    %5 = vector.load %arg4[%c0_4, %c0_5] : memref<128x128xbf16, #tpu.memory_space<vmem>>, vector<128x128xbf16>
    %cst = arith.constant dense<0.000000e+00> : vector<256x128xf32>
    %6 = tpu.matmul %4, %5, %cst {dimension_numbers = #tpu.dot_dimension_numbers<[1], [0], [0], [1], [0, 0, 1, 1], [], []>} : vector<256x128xbf16>, vector<128x128xbf16>, vector<256x128xf32> -> vector<256x128xf32>
    %7 = arith.addf %3, %6 : vector<256x128xf32>
    %c0_6 = arith.constant 0 : index
    %c0_7 = arith.constant 0 : index
    %8 = vector.load %arg7[%c0_6, %c0_7] : memref<256x128xf32, #tpu.memory_space<vmem>>, vector<256x128xf32>
    tpu.vector_store %arg7[%c0_6, %c0_7], %7 {strides = array<i32>} : memref<256x128xf32, #tpu.memory_space<vmem>>, vector<256x128xf32>,
    %c0_i32_8 = arith.constant 0 : i32
    %9 = arith.cmpi eq, %arg2, %c0_i32_8 : i32
    %10 = arith.extui %9 : i1 to i32
    %c0_i32_9 = arith.constant 0 : i32
    %11 = arith.cmpi ne, %10, %c0_i32_9 : i32
    scf.if %11 {
      %c0_10 = arith.constant 0 : index
      %c0_11 = arith.constant 0 : index
      %12 = vector.load %arg7[%c0_10, %c0_11] : memref<256x128xf32, #tpu.memory_space<vmem>>, vector<256x128xf32>
      %c0_12 = arith.constant 0 : index
      %c0_13 = arith.constant 0 : index
      %13 = vector.load %arg5[%c0_12, %c0_13] : memref<1x128xf32, #tpu.memory_space<vmem>>, vector<1x128xf32>
      %14 = vector.broadcast %13 : vector<1x128xf32> to vector<256x128xf32>
      %15 = arith.addf %12, %14 : vector<256x128xf32>
      %c0_14 = arith.constant 0 : index
      %c0_15 = arith.constant 0 : index
      %16 = vector.load %arg6[%c0_14, %c0_15] : memref<256x128xf32, #tpu.memory_space<vmem>>, vector<256x128xf32>
      tpu.vector_store %arg6[%c0_14, %c0_15], %15 {strides = array<i32>} : memref<256x128xf32, #tpu.memory_space<vmem>>, vector<256x128xf32>,
    } else {
    }
    return
  }
  func.func @transform_0(%arg0: i32, %arg1: i32, %arg2: i32) -> (i32, i32) {
    %c0_i32 = arith.constant 0 : i32
    return %arg0, %arg2 : i32, i32
  }
  func.func @transform_1(%arg0: i32, %arg1: i32, %arg2: i32) -> (i32, i32) {
    %c0_i32 = arith.constant 0 : i32
    return %arg2, %arg1 : i32, i32
  }
  func.func @transform_2(%arg0: i32, %arg1: i32, %arg2: i32) -> (i32, i32) {
    %c0_i32 = arith.constant 0 : i32
    %c0_i32_0 = arith.constant 0 : i32
    return %c0_i32, %arg1 : i32, i32
  }
  func.func @transform_3(%arg0: i32, %arg1: i32, %arg2: i32) -> (i32, i32) {
    %c0_i32 = arith.constant 0 : i32
    return %arg0, %arg1 : i32, i32
  }
}

module attributes {stable_mosaic.version = 11 : i64} {
  func.func @_mm_kernel(%arg0: i32, %arg1: i32, %arg2: i32, %arg3: memref<256x128xbf16, #tpu.memory_space<vmem>>, %arg4: memref<128x128xbf16, #tpu.memory_space<vmem>>, %arg5: memref<1x128xf32, #tpu.memory_space<vmem>>, %arg6: memref<256x128xf32, #tpu.memory_space<vmem>>, %arg7: memref<256x128xf32, #tpu.memory_space<vmem>>, %arg8: memref<256x128xf32, #tpu.memory_space<vmem>>) attributes {dimension_semantics = [#tpu.dimension_semantics<parallel>, #tpu.dimension_semantics<parallel>, #tpu.dimension_semantics<arbitrary>], iteration_bounds = array<i64: 1, 1, 1>, scalar_prefetch = 0 : i64, scratch_operands = 1 : i64, tpu.core_type = #tpu.core_type<tc>, window_params = [{transform_indices = @transform_0, window_bounds = array<i64: 256, 128>}, {transform_indices = @transform_1, window_bounds = array<i64: 128, 128>}, {transform_indices = @transform_2, window_bounds = array<i64: 1, 128>}, {transform_indices = @transform_3, window_bounds = array<i64: 256, 128>}, {transform_indices = @transform_4, window_bounds = array<i64: 256, 128>}]} {
    %c0_i32 = arith.constant 0 : i32
    %0 = arith.cmpi eq, %arg2, %c0_i32 : i32
    %1 = arith.extui %0 : i1 to i32
    %c0_i32_0 = arith.constant 0 : i32
    %2 = arith.cmpi ne, %1, %c0_i32_0 : i32
    scf.if %2 {
      %cst_10 = arith.constant 0.000000e+00 : f32
      %12 = vector.broadcast %cst_10 : f32 to vector<256x128xf32>
      %c0_11 = arith.constant 0 : index
      %c0_12 = arith.constant 0 : index
      %13 = vector.load %arg8[%c0_11, %c0_12] : memref<256x128xf32, #tpu.memory_space<vmem>>, vector<256x128xf32>
      tpu.vector_store %arg8[%c0_11, %c0_12], %12 {strides = array<i32>} : memref<256x128xf32, #tpu.memory_space<vmem>>, vector<256x128xf32>,
    } else {
    }
    %c0 = arith.constant 0 : index
    %c0_1 = arith.constant 0 : index
    %3 = vector.load %arg8[%c0, %c0_1] : memref<256x128xf32, #tpu.memory_space<vmem>>, vector<256x128xf32>
    %c0_2 = arith.constant 0 : index
    %c0_3 = arith.constant 0 : index
    %4 = vector.load %arg3[%c0_2, %c0_3] : memref<256x128xbf16, #tpu.memory_space<vmem>>, vector<256x128xbf16>
    %c0_4 = arith.constant 0 : index
    %c0_5 = arith.constant 0 : index
    %5 = vector.load %arg4[%c0_4, %c0_5] : memref<128x128xbf16, #tpu.memory_space<vmem>>, vector<128x128xbf16>
    %cst = arith.constant dense<0.000000e+00> : vector<256x128xf32>
    %6 = tpu.matmul %4, %5, %cst {dimension_numbers = #tpu.dot_dimension_numbers<[1], [0], [0], [1], [0, 0, 1, 1], [], []>} : vector<256x128xbf16>, vector<128x128xbf16>, vector<256x128xf32> -> vector<256x128xf32>
    %7 = arith.addf %3, %6 : vector<256x128xf32>
    %c0_6 = arith.constant 0 : index
    %c0_7 = arith.constant 0 : index
    %8 = vector.load %arg8[%c0_6, %c0_7] : memref<256x128xf32, #tpu.memory_space<vmem>>, vector<256x128xf32>
    tpu.vector_store %arg8[%c0_6, %c0_7], %7 {strides = array<i32>} : memref<256x128xf32, #tpu.memory_space<vmem>>, vector<256x128xf32>,
    %c0_i32_8 = arith.constant 0 : i32
    %9 = arith.cmpi eq, %arg2, %c0_i32_8 : i32
    %10 = arith.extui %9 : i1 to i32
    %c0_i32_9 = arith.constant 0 : i32
    %11 = arith.cmpi ne, %10, %c0_i32_9 : i32
    scf.if %11 {
      %c0_10 = arith.constant 0 : index
      %c0_11 = arith.constant 0 : index
      %12 = vector.load %arg8[%c0_10, %c0_11] : memref<256x128xf32, #tpu.memory_space<vmem>>, vector<256x128xf32>
      %c0_12 = arith.constant 0 : index
      %c0_13 = arith.constant 0 : index
      %13 = vector.load %arg5[%c0_12, %c0_13] : memref<1x128xf32, #tpu.memory_space<vmem>>, vector<1x128xf32>
      %14 = vector.broadcast %13 : vector<1x128xf32> to vector<256x128xf32>
      %15 = arith.addf %12, %14 : vector<256x128xf32>
      %c0_14 = arith.constant 0 : index
      %c0_15 = arith.constant 0 : index
      %16 = vector.load %arg6[%c0_14, %c0_15] : memref<256x128xf32, #tpu.memory_space<vmem>>, vector<256x128xf32>
      %17 = arith.addf %15, %16 : vector<256x128xf32>
      %cst_16 = arith.constant 0.000000e+00 : f32
      %18 = vector.broadcast %cst_16 : f32 to vector<256x128xf32>
      %19 = arith.maximumf %17, %18 : vector<256x128xf32>
      %c0_17 = arith.constant 0 : index
      %c0_18 = arith.constant 0 : index
      %20 = vector.load %arg7[%c0_17, %c0_18] : memref<256x128xf32, #tpu.memory_space<vmem>>, vector<256x128xf32>
      tpu.vector_store %arg7[%c0_17, %c0_18], %19 {strides = array<i32>} : memref<256x128xf32, #tpu.memory_space<vmem>>, vector<256x128xf32>,
    } else {
    }
    return
  }
  func.func @transform_0(%arg0: i32, %arg1: i32, %arg2: i32) -> (i32, i32) {
    %c0_i32 = arith.constant 0 : i32
    return %arg0, %arg2 : i32, i32
  }
  func.func @transform_1(%arg0: i32, %arg1: i32, %arg2: i32) -> (i32, i32) {
    %c0_i32 = arith.constant 0 : i32
    return %arg2, %arg1 : i32, i32
  }
  func.func @transform_2(%arg0: i32, %arg1: i32, %arg2: i32) -> (i32, i32) {
    %c0_i32 = arith.constant 0 : i32
    %c0_i32_0 = arith.constant 0 : i32
    return %c0_i32, %arg1 : i32, i32
  }
  func.func @transform_3(%arg0: i32, %arg1: i32, %arg2: i32) -> (i32, i32) {
    %c0_i32 = arith.constant 0 : i32
    return %arg0, %arg1 : i32, i32
  }
  func.func @transform_4(%arg0: i32, %arg1: i32, %arg2: i32) -> (i32, i32) {
    %c0_i32 = arith.constant 0 : i32
    return %arg0, %arg1 : i32, i32
  }
}

module attributes {stable_mosaic.version = 11 : i64} {
  func.func @_mm_kernel(%arg0: i32, %arg1: i32, %arg2: i32, %arg3: memref<256x256xbf16, #tpu.memory_space<vmem>>, %arg4: memref<256x128xbf16, #tpu.memory_space<vmem>>, %arg5: memref<1x128xf32, #tpu.memory_space<vmem>>, %arg6: memref<256x128xf32, #tpu.memory_space<vmem>>, %arg7: memref<256x128xf32, #tpu.memory_space<vmem>>) attributes {dimension_semantics = [#tpu.dimension_semantics<parallel>, #tpu.dimension_semantics<parallel>, #tpu.dimension_semantics<arbitrary>], iteration_bounds = array<i64: 1, 1, 1>, scalar_prefetch = 0 : i64, scratch_operands = 1 : i64, tpu.core_type = #tpu.core_type<tc>, window_params = [{transform_indices = @transform_0, window_bounds = array<i64: 256, 256>}, {transform_indices = @transform_1, window_bounds = array<i64: 256, 128>}, {transform_indices = @transform_2, window_bounds = array<i64: 1, 128>}, {transform_indices = @transform_3, window_bounds = array<i64: 256, 128>}]} {
    %c0_i32 = arith.constant 0 : i32
    %0 = arith.cmpi eq, %arg2, %c0_i32 : i32
    %1 = arith.extui %0 : i1 to i32
    %c0_i32_0 = arith.constant 0 : i32
    %2 = arith.cmpi ne, %1, %c0_i32_0 : i32
    scf.if %2 {
      %cst_10 = arith.constant 0.000000e+00 : f32
      %12 = vector.broadcast %cst_10 : f32 to vector<256x128xf32>
      %c0_11 = arith.constant 0 : index
      %c0_12 = arith.constant 0 : index
      %13 = vector.load %arg7[%c0_11, %c0_12] : memref<256x128xf32, #tpu.memory_space<vmem>>, vector<256x128xf32>
      tpu.vector_store %arg7[%c0_11, %c0_12], %12 {strides = array<i32>} : memref<256x128xf32, #tpu.memory_space<vmem>>, vector<256x128xf32>,
    } else {
    }
    %c0 = arith.constant 0 : index
    %c0_1 = arith.constant 0 : index
    %3 = vector.load %arg7[%c0, %c0_1] : memref<256x128xf32, #tpu.memory_space<vmem>>, vector<256x128xf32>
    %c0_2 = arith.constant 0 : index
    %c0_3 = arith.constant 0 : index
    %4 = vector.load %arg3[%c0_2, %c0_3] : memref<256x256xbf16, #tpu.memory_space<vmem>>, vector<256x256xbf16>
    %c0_4 = arith.constant 0 : index
    %c0_5 = arith.constant 0 : index
    %5 = vector.load %arg4[%c0_4, %c0_5] : memref<256x128xbf16, #tpu.memory_space<vmem>>, vector<256x128xbf16>
    %cst = arith.constant dense<0.000000e+00> : vector<256x128xf32>
    %6 = tpu.matmul %4, %5, %cst {dimension_numbers = #tpu.dot_dimension_numbers<[1], [0], [0], [1], [0, 0, 1, 1], [], []>} : vector<256x256xbf16>, vector<256x128xbf16>, vector<256x128xf32> -> vector<256x128xf32>
    %7 = arith.addf %3, %6 : vector<256x128xf32>
    %c0_6 = arith.constant 0 : index
    %c0_7 = arith.constant 0 : index
    %8 = vector.load %arg7[%c0_6, %c0_7] : memref<256x128xf32, #tpu.memory_space<vmem>>, vector<256x128xf32>
    tpu.vector_store %arg7[%c0_6, %c0_7], %7 {strides = array<i32>} : memref<256x128xf32, #tpu.memory_space<vmem>>, vector<256x128xf32>,
    %c0_i32_8 = arith.constant 0 : i32
    %9 = arith.cmpi eq, %arg2, %c0_i32_8 : i32
    %10 = arith.extui %9 : i1 to i32
    %c0_i32_9 = arith.constant 0 : i32
    %11 = arith.cmpi ne, %10, %c0_i32_9 : i32
    scf.if %11 {
      %c0_10 = arith.constant 0 : index
      %c0_11 = arith.constant 0 : index
      %12 = vector.load %arg7[%c0_10, %c0_11] : memref<256x128xf32, #tpu.memory_space<vmem>>, vector<256x128xf32>
      %c0_12 = arith.constant 0 : index
      %c0_13 = arith.constant 0 : index
      %13 = vector.load %arg5[%c0_12, %c0_13] : memref<1x128xf32, #tpu.memory_space<vmem>>, vector<1x128xf32>
      %14 = vector.broadcast %13 : vector<1x128xf32> to vector<256x128xf32>
      %15 = arith.addf %12, %14 : vector<256x128xf32>
      %cst_14 = arith.constant 0.000000e+00 : f32
      %16 = vector.broadcast %cst_14 : f32 to vector<256x128xf32>
      %17 = arith.maximumf %15, %16 : vector<256x128xf32>
      %c0_15 = arith.constant 0 : index
      %c0_16 = arith.constant 0 : index
      %18 = vector.load %arg6[%c0_15, %c0_16] : memref<256x128xf32, #tpu.memory_space<vmem>>, vector<256x128xf32>
      tpu.vector_store %arg6[%c0_15, %c0_16], %17 {strides = array<i32>} : memref<256x128xf32, #tpu.memory_space<vmem>>, vector<256x128xf32>,
    } else {
    }
    return
  }
  func.func @transform_0(%arg0: i32, %arg1: i32, %arg2: i32) -> (i32, i32) {
    %c0_i32 = arith.constant 0 : i32
    return %arg0, %arg2 : i32, i32
  }
  func.func @transform_1(%arg0: i32, %arg1: i32, %arg2: i32) -> (i32, i32) {
    %c0_i32 = arith.constant 0 : i32
    return %arg2, %arg1 : i32, i32
  }
  func.func @transform_2(%arg0: i32, %arg1: i32, %arg2: i32) -> (i32, i32) {
    %c0_i32 = arith.constant 0 : i32
    %c0_i32_0 = arith.constant 0 : i32
    return %c0_i32, %arg1 : i32, i32
  }
  func.func @transform_3(%arg0: i32, %arg1: i32, %arg2: i32) -> (i32, i32) {
    %c0_i32 = arith.constant 0 : i32
    return %arg0, %arg1 : i32, i32
  }
}

module attributes {stable_mosaic.version = 11 : i64} {
  func.func @_mm_kernel(%arg0: i32, %arg1: i32, %arg2: i32, %arg3: memref<256x256xbf16, #tpu.memory_space<vmem>>, %arg4: memref<256x128xbf16, #tpu.memory_space<vmem>>, %arg5: memref<1x128xf32, #tpu.memory_space<vmem>>, %arg6: memref<256x128xf32, #tpu.memory_space<vmem>>, %arg7: memref<256x128xf32, #tpu.memory_space<vmem>>, %arg8: memref<256x128xf32, #tpu.memory_space<vmem>>) attributes {dimension_semantics = [#tpu.dimension_semantics<parallel>, #tpu.dimension_semantics<parallel>, #tpu.dimension_semantics<arbitrary>], iteration_bounds = array<i64: 1, 1, 1>, scalar_prefetch = 0 : i64, scratch_operands = 1 : i64, tpu.core_type = #tpu.core_type<tc>, window_params = [{transform_indices = @transform_0, window_bounds = array<i64: 256, 256>}, {transform_indices = @transform_1, window_bounds = array<i64: 256, 128>}, {transform_indices = @transform_2, window_bounds = array<i64: 1, 128>}, {transform_indices = @transform_3, window_bounds = array<i64: 256, 128>}, {transform_indices = @transform_4, window_bounds = array<i64: 256, 128>}]} {
    %c0_i32 = arith.constant 0 : i32
    %0 = arith.cmpi eq, %arg2, %c0_i32 : i32
    %1 = arith.extui %0 : i1 to i32
    %c0_i32_0 = arith.constant 0 : i32
    %2 = arith.cmpi ne, %1, %c0_i32_0 : i32
    scf.if %2 {
      %cst_10 = arith.constant 0.000000e+00 : f32
      %12 = vector.broadcast %cst_10 : f32 to vector<256x128xf32>
      %c0_11 = arith.constant 0 : index
      %c0_12 = arith.constant 0 : index
      %13 = vector.load %arg8[%c0_11, %c0_12] : memref<256x128xf32, #tpu.memory_space<vmem>>, vector<256x128xf32>
      tpu.vector_store %arg8[%c0_11, %c0_12], %12 {strides = array<i32>} : memref<256x128xf32, #tpu.memory_space<vmem>>, vector<256x128xf32>,
    } else {
    }
    %c0 = arith.constant 0 : index
    %c0_1 = arith.constant 0 : index
    %3 = vector.load %arg8[%c0, %c0_1] : memref<256x128xf32, #tpu.memory_space<vmem>>, vector<256x128xf32>
    %c0_2 = arith.constant 0 : index
    %c0_3 = arith.constant 0 : index
    %4 = vector.load %arg3[%c0_2, %c0_3] : memref<256x256xbf16, #tpu.memory_space<vmem>>, vector<256x256xbf16>
    %c0_4 = arith.constant 0 : index
    %c0_5 = arith.constant 0 : index
    %5 = vector.load %arg4[%c0_4, %c0_5] : memref<256x128xbf16, #tpu.memory_space<vmem>>, vector<256x128xbf16>
    %cst = arith.constant dense<0.000000e+00> : vector<256x128xf32>
    %6 = tpu.matmul %4, %5, %cst {dimension_numbers = #tpu.dot_dimension_numbers<[1], [0], [0], [1], [0, 0, 1, 1], [], []>} : vector<256x256xbf16>, vector<256x128xbf16>, vector<256x128xf32> -> vector<256x128xf32>
    %7 = arith.addf %3, %6 : vector<256x128xf32>
    %c0_6 = arith.constant 0 : index
    %c0_7 = arith.constant 0 : index
    %8 = vector.load %arg8[%c0_6, %c0_7] : memref<256x128xf32, #tpu.memory_space<vmem>>, vector<256x128xf32>
    tpu.vector_store %arg8[%c0_6, %c0_7], %7 {strides = array<i32>} : memref<256x128xf32, #tpu.memory_space<vmem>>, vector<256x128xf32>,
    %c0_i32_8 = arith.constant 0 : i32
    %9 = arith.cmpi eq, %arg2, %c0_i32_8 : i32
    %10 = arith.extui %9 : i1 to i32
    %c0_i32_9 = arith.constant 0 : i32
    %11 = arith.cmpi ne, %10, %c0_i32_9 : i32
    scf.if %11 {
      %c0_10 = arith.constant 0 : index
      %c0_11 = arith.constant 0 : index
      %12 = vector.load %arg8[%c0_10, %c0_11] : memref<256x128xf32, #tpu.memory_space<vmem>>, vector<256x128xf32>
      %c0_12 = arith.constant 0 : index
      %c0_13 = arith.constant 0 : index
      %13 = vector.load %arg5[%c0_12, %c0_13] : memref<1x128xf32, #tpu.memory_space<vmem>>, vector<1x128xf32>
      %14 = vector.broadcast %13 : vector<1x128xf32> to vector<256x128xf32>
      %15 = arith.addf %12, %14 : vector<256x128xf32>
      %c0_14 = arith.constant 0 : index
      %c0_15 = arith.constant 0 : index
      %16 = vector.load %arg6[%c0_14, %c0_15] : memref<256x128xf32, #tpu.memory_space<vmem>>, vector<256x128xf32>
      %17 = arith.addf %15, %16 : vector<256x128xf32>
      %cst_16 = arith.constant 0.000000e+00 : f32
      %18 = vector.broadcast %cst_16 : f32 to vector<256x128xf32>
      %19 = arith.maximumf %17, %18 : vector<256x128xf32>
      %c0_17 = arith.constant 0 : index
      %c0_18 = arith.constant 0 : index
      %20 = vector.load %arg7[%c0_17, %c0_18] : memref<256x128xf32, #tpu.memory_space<vmem>>, vector<256x128xf32>
      tpu.vector_store %arg7[%c0_17, %c0_18], %19 {strides = array<i32>} : memref<256x128xf32, #tpu.memory_space<vmem>>, vector<256x128xf32>,
    } else {
    }
    return
  }
  func.func @transform_0(%arg0: i32, %arg1: i32, %arg2: i32) -> (i32, i32) {
    %c0_i32 = arith.constant 0 : i32
    return %arg0, %arg2 : i32, i32
  }
  func.func @transform_1(%arg0: i32, %arg1: i32, %arg2: i32) -> (i32, i32) {
    %c0_i32 = arith.constant 0 : i32
    return %arg2, %arg1 : i32, i32
  }
  func.func @transform_2(%arg0: i32, %arg1: i32, %arg2: i32) -> (i32, i32) {
    %c0_i32 = arith.constant 0 : i32
    %c0_i32_0 = arith.constant 0 : i32
    return %c0_i32, %arg1 : i32, i32
  }
  func.func @transform_3(%arg0: i32, %arg1: i32, %arg2: i32) -> (i32, i32) {
    %c0_i32 = arith.constant 0 : i32
    return %arg0, %arg1 : i32, i32
  }
  func.func @transform_4(%arg0: i32, %arg1: i32, %arg2: i32) -> (i32, i32) {
    %c0_i32 = arith.constant 0 : i32
    return %arg0, %arg1 : i32, i32
  }
}

module attributes {stable_mosaic.version = 11 : i64} {
  func.func @_mm_kernel(%arg0: i32, %arg1: i32, %arg2: i32, %arg3: memref<64x256xbf16, #tpu.memory_space<vmem>>, %arg4: memref<256x128xbf16, #tpu.memory_space<vmem>>, %arg5: memref<1x128xf32, #tpu.memory_space<vmem>>, %arg6: memref<64x128xf32, #tpu.memory_space<vmem>>, %arg7: memref<64x128xf32, #tpu.memory_space<vmem>>) attributes {dimension_semantics = [#tpu.dimension_semantics<parallel>, #tpu.dimension_semantics<parallel>, #tpu.dimension_semantics<arbitrary>], iteration_bounds = array<i64: 1, 1, 1>, scalar_prefetch = 0 : i64, scratch_operands = 1 : i64, tpu.core_type = #tpu.core_type<tc>, window_params = [{transform_indices = @transform_0, window_bounds = array<i64: 64, 256>}, {transform_indices = @transform_1, window_bounds = array<i64: 256, 128>}, {transform_indices = @transform_2, window_bounds = array<i64: 1, 128>}, {transform_indices = @transform_3, window_bounds = array<i64: 64, 128>}]} {
    %c0_i32 = arith.constant 0 : i32
    %0 = arith.cmpi eq, %arg2, %c0_i32 : i32
    %1 = arith.extui %0 : i1 to i32
    %c0_i32_0 = arith.constant 0 : i32
    %2 = arith.cmpi ne, %1, %c0_i32_0 : i32
    scf.if %2 {
      %cst_10 = arith.constant 0.000000e+00 : f32
      %12 = vector.broadcast %cst_10 : f32 to vector<64x128xf32>
      %c0_11 = arith.constant 0 : index
      %c0_12 = arith.constant 0 : index
      %13 = vector.load %arg7[%c0_11, %c0_12] : memref<64x128xf32, #tpu.memory_space<vmem>>, vector<64x128xf32>
      tpu.vector_store %arg7[%c0_11, %c0_12], %12 {strides = array<i32>} : memref<64x128xf32, #tpu.memory_space<vmem>>, vector<64x128xf32>,
    } else {
    }
    %c0 = arith.constant 0 : index
    %c0_1 = arith.constant 0 : index
    %3 = vector.load %arg7[%c0, %c0_1] : memref<64x128xf32, #tpu.memory_space<vmem>>, vector<64x128xf32>
    %c0_2 = arith.constant 0 : index
    %c0_3 = arith.constant 0 : index
    %4 = vector.load %arg3[%c0_2, %c0_3] : memref<64x256xbf16, #tpu.memory_space<vmem>>, vector<64x256xbf16>
    %c0_4 = arith.constant 0 : index
    %c0_5 = arith.constant 0 : index
    %5 = vector.load %arg4[%c0_4, %c0_5] : memref<256x128xbf16, #tpu.memory_space<vmem>>, vector<256x128xbf16>
    %cst = arith.constant dense<0.000000e+00> : vector<64x128xf32>
    %6 = tpu.matmul %4, %5, %cst {dimension_numbers = #tpu.dot_dimension_numbers<[1], [0], [0], [1], [0, 0, 1, 1], [], []>} : vector<64x256xbf16>, vector<256x128xbf16>, vector<64x128xf32> -> vector<64x128xf32>
    %7 = arith.addf %3, %6 : vector<64x128xf32>
    %c0_6 = arith.constant 0 : index
    %c0_7 = arith.constant 0 : index
    %8 = vector.load %arg7[%c0_6, %c0_7] : memref<64x128xf32, #tpu.memory_space<vmem>>, vector<64x128xf32>
    tpu.vector_store %arg7[%c0_6, %c0_7], %7 {strides = array<i32>} : memref<64x128xf32, #tpu.memory_space<vmem>>, vector<64x128xf32>,
    %c0_i32_8 = arith.constant 0 : i32
    %9 = arith.cmpi eq, %arg2, %c0_i32_8 : i32
    %10 = arith.extui %9 : i1 to i32
    %c0_i32_9 = arith.constant 0 : i32
    %11 = arith.cmpi ne, %10, %c0_i32_9 : i32
    scf.if %11 {
      %c0_10 = arith.constant 0 : index
      %c0_11 = arith.constant 0 : index
      %12 = vector.load %arg7[%c0_10, %c0_11] : memref<64x128xf32, #tpu.memory_space<vmem>>, vector<64x128xf32>
      %c0_12 = arith.constant 0 : index
      %c0_13 = arith.constant 0 : index
      %13 = vector.load %arg5[%c0_12, %c0_13] : memref<1x128xf32, #tpu.memory_space<vmem>>, vector<1x128xf32>
      %14 = vector.broadcast %13 : vector<1x128xf32> to vector<64x128xf32>
      %15 = arith.addf %12, %14 : vector<64x128xf32>
      %cst_14 = arith.constant 0.000000e+00 : f32
      %16 = vector.broadcast %cst_14 : f32 to vector<64x128xf32>
      %17 = arith.maximumf %15, %16 : vector<64x128xf32>
      %c0_15 = arith.constant 0 : index
      %c0_16 = arith.constant 0 : index
      %18 = vector.load %arg6[%c0_15, %c0_16] : memref<64x128xf32, #tpu.memory_space<vmem>>, vector<64x128xf32>
      tpu.vector_store %arg6[%c0_15, %c0_16], %17 {strides = array<i32>} : memref<64x128xf32, #tpu.memory_space<vmem>>, vector<64x128xf32>,
    } else {
    }
    return
  }
  func.func @transform_0(%arg0: i32, %arg1: i32, %arg2: i32) -> (i32, i32) {
    %c0_i32 = arith.constant 0 : i32
    return %arg0, %arg2 : i32, i32
  }
  func.func @transform_1(%arg0: i32, %arg1: i32, %arg2: i32) -> (i32, i32) {
    %c0_i32 = arith.constant 0 : i32
    return %arg2, %arg1 : i32, i32
  }
  func.func @transform_2(%arg0: i32, %arg1: i32, %arg2: i32) -> (i32, i32) {
    %c0_i32 = arith.constant 0 : i32
    %c0_i32_0 = arith.constant 0 : i32
    return %c0_i32, %arg1 : i32, i32
  }
  func.func @transform_3(%arg0: i32, %arg1: i32, %arg2: i32) -> (i32, i32) {
    %c0_i32 = arith.constant 0 : i32
    return %arg0, %arg1 : i32, i32
  }
}

module attributes {stable_mosaic.version = 11 : i64} {
  func.func @_mm_kernel(%arg0: i32, %arg1: i32, %arg2: i32, %arg3: memref<64x128xbf16, #tpu.memory_space<vmem>>, %arg4: memref<128x128xbf16, #tpu.memory_space<vmem>>, %arg5: memref<1x128xf32, #tpu.memory_space<vmem>>, %arg6: memref<64x128xf32, #tpu.memory_space<vmem>>, %arg7: memref<64x128xf32, #tpu.memory_space<vmem>>) attributes {dimension_semantics = [#tpu.dimension_semantics<parallel>, #tpu.dimension_semantics<parallel>, #tpu.dimension_semantics<arbitrary>], iteration_bounds = array<i64: 1, 1, 1>, scalar_prefetch = 0 : i64, scratch_operands = 1 : i64, tpu.core_type = #tpu.core_type<tc>, window_params = [{transform_indices = @transform_0, window_bounds = array<i64: 64, 128>}, {transform_indices = @transform_1, window_bounds = array<i64: 128, 128>}, {transform_indices = @transform_2, window_bounds = array<i64: 1, 128>}, {transform_indices = @transform_3, window_bounds = array<i64: 64, 128>}]} {
    %c0_i32 = arith.constant 0 : i32
    %0 = arith.cmpi eq, %arg2, %c0_i32 : i32
    %1 = arith.extui %0 : i1 to i32
    %c0_i32_0 = arith.constant 0 : i32
    %2 = arith.cmpi ne, %1, %c0_i32_0 : i32
    scf.if %2 {
      %cst_10 = arith.constant 0.000000e+00 : f32
      %12 = vector.broadcast %cst_10 : f32 to vector<64x128xf32>
      %c0_11 = arith.constant 0 : index
      %c0_12 = arith.constant 0 : index
      %13 = vector.load %arg7[%c0_11, %c0_12] : memref<64x128xf32, #tpu.memory_space<vmem>>, vector<64x128xf32>
      tpu.vector_store %arg7[%c0_11, %c0_12], %12 {strides = array<i32>} : memref<64x128xf32, #tpu.memory_space<vmem>>, vector<64x128xf32>,
    } else {
    }
    %c0 = arith.constant 0 : index
    %c0_1 = arith.constant 0 : index
    %3 = vector.load %arg7[%c0, %c0_1] : memref<64x128xf32, #tpu.memory_space<vmem>>, vector<64x128xf32>
    %c0_2 = arith.constant 0 : index
    %c0_3 = arith.constant 0 : index
    %4 = vector.load %arg3[%c0_2, %c0_3] : memref<64x128xbf16, #tpu.memory_space<vmem>>, vector<64x128xbf16>
    %c0_4 = arith.constant 0 : index
    %c0_5 = arith.constant 0 : index
    %5 = vector.load %arg4[%c0_4, %c0_5] : memref<128x128xbf16, #tpu.memory_space<vmem>>, vector<128x128xbf16>
    %cst = arith.constant dense<0.000000e+00> : vector<64x128xf32>
    %6 = tpu.matmul %4, %5, %cst {dimension_numbers = #tpu.dot_dimension_numbers<[1], [0], [0], [1], [0, 0, 1, 1], [], []>} : vector<64x128xbf16>, vector<128x128xbf16>, vector<64x128xf32> -> vector<64x128xf32>
    %7 = arith.addf %3, %6 : vector<64x128xf32>
    %c0_6 = arith.constant 0 : index
    %c0_7 = arith.constant 0 : index
    %8 = vector.load %arg7[%c0_6, %c0_7] : memref<64x128xf32, #tpu.memory_space<vmem>>, vector<64x128xf32>
    tpu.vector_store %arg7[%c0_6, %c0_7], %7 {strides = array<i32>} : memref<64x128xf32, #tpu.memory_space<vmem>>, vector<64x128xf32>,
    %c0_i32_8 = arith.constant 0 : i32
    %9 = arith.cmpi eq, %arg2, %c0_i32_8 : i32
    %10 = arith.extui %9 : i1 to i32
    %c0_i32_9 = arith.constant 0 : i32
    %11 = arith.cmpi ne, %10, %c0_i32_9 : i32
    scf.if %11 {
      %c0_10 = arith.constant 0 : index
      %c0_11 = arith.constant 0 : index
      %12 = vector.load %arg7[%c0_10, %c0_11] : memref<64x128xf32, #tpu.memory_space<vmem>>, vector<64x128xf32>
      %c0_12 = arith.constant 0 : index
      %c0_13 = arith.constant 0 : index
      %13 = vector.load %arg5[%c0_12, %c0_13] : memref<1x128xf32, #tpu.memory_space<vmem>>, vector<1x128xf32>
      %14 = vector.broadcast %13 : vector<1x128xf32> to vector<64x128xf32>
      %15 = arith.addf %12, %14 : vector<64x128xf32>
      %c0_14 = arith.constant 0 : index
      %c0_15 = arith.constant 0 : index
      %16 = vector.load %arg6[%c0_14, %c0_15] : memref<64x128xf32, #tpu.memory_space<vmem>>, vector<64x128xf32>
      tpu.vector_store %arg6[%c0_14, %c0_15], %15 {strides = array<i32>} : memref<64x128xf32, #tpu.memory_space<vmem>>, vector<64x128xf32>,
    } else {
    }
    return
  }
  func.func @transform_0(%arg0: i32, %arg1: i32, %arg2: i32) -> (i32, i32) {
    %c0_i32 = arith.constant 0 : i32
    return %arg0, %arg2 : i32, i32
  }
  func.func @transform_1(%arg0: i32, %arg1: i32, %arg2: i32) -> (i32, i32) {
    %c0_i32 = arith.constant 0 : i32
    return %arg2, %arg1 : i32, i32
  }
  func.func @transform_2(%arg0: i32, %arg1: i32, %arg2: i32) -> (i32, i32) {
    %c0_i32 = arith.constant 0 : i32
    %c0_i32_0 = arith.constant 0 : i32
    return %c0_i32, %arg1 : i32, i32
  }
  func.func @transform_3(%arg0: i32, %arg1: i32, %arg2: i32) -> (i32, i32) {
    %c0_i32 = arith.constant 0 : i32
    return %arg0, %arg1 : i32, i32
  }
}

module attributes {stable_mosaic.version = 11 : i64} {
  func.func @_mm_kernel(%arg0: i32, %arg1: i32, %arg2: i32, %arg3: memref<64x384xbf16, #tpu.memory_space<vmem>>, %arg4: memref<384x128xbf16, #tpu.memory_space<vmem>>, %arg5: memref<1x128xf32, #tpu.memory_space<vmem>>, %arg6: memref<64x128xf32, #tpu.memory_space<vmem>>, %arg7: memref<64x128xf32, #tpu.memory_space<vmem>>) attributes {dimension_semantics = [#tpu.dimension_semantics<parallel>, #tpu.dimension_semantics<parallel>, #tpu.dimension_semantics<arbitrary>], iteration_bounds = array<i64: 1, 1, 1>, scalar_prefetch = 0 : i64, scratch_operands = 1 : i64, tpu.core_type = #tpu.core_type<tc>, window_params = [{transform_indices = @transform_0, window_bounds = array<i64: 64, 384>}, {transform_indices = @transform_1, window_bounds = array<i64: 384, 128>}, {transform_indices = @transform_2, window_bounds = array<i64: 1, 128>}, {transform_indices = @transform_3, window_bounds = array<i64: 64, 128>}]} {
    %c0_i32 = arith.constant 0 : i32
    %0 = arith.cmpi eq, %arg2, %c0_i32 : i32
    %1 = arith.extui %0 : i1 to i32
    %c0_i32_0 = arith.constant 0 : i32
    %2 = arith.cmpi ne, %1, %c0_i32_0 : i32
    scf.if %2 {
      %cst_10 = arith.constant 0.000000e+00 : f32
      %12 = vector.broadcast %cst_10 : f32 to vector<64x128xf32>
      %c0_11 = arith.constant 0 : index
      %c0_12 = arith.constant 0 : index
      %13 = vector.load %arg7[%c0_11, %c0_12] : memref<64x128xf32, #tpu.memory_space<vmem>>, vector<64x128xf32>
      tpu.vector_store %arg7[%c0_11, %c0_12], %12 {strides = array<i32>} : memref<64x128xf32, #tpu.memory_space<vmem>>, vector<64x128xf32>,
    } else {
    }
    %c0 = arith.constant 0 : index
    %c0_1 = arith.constant 0 : index
    %3 = vector.load %arg7[%c0, %c0_1] : memref<64x128xf32, #tpu.memory_space<vmem>>, vector<64x128xf32>
    %c0_2 = arith.constant 0 : index
    %c0_3 = arith.constant 0 : index
    %4 = vector.load %arg3[%c0_2, %c0_3] : memref<64x384xbf16, #tpu.memory_space<vmem>>, vector<64x384xbf16>
    %c0_4 = arith.constant 0 : index
    %c0_5 = arith.constant 0 : index
    %5 = vector.load %arg4[%c0_4, %c0_5] : memref<384x128xbf16, #tpu.memory_space<vmem>>, vector<384x128xbf16>
    %cst = arith.constant dense<0.000000e+00> : vector<64x128xf32>
    %6 = tpu.matmul %4, %5, %cst {dimension_numbers = #tpu.dot_dimension_numbers<[1], [0], [0], [1], [0, 0, 1, 1], [], []>} : vector<64x384xbf16>, vector<384x128xbf16>, vector<64x128xf32> -> vector<64x128xf32>
    %7 = arith.addf %3, %6 : vector<64x128xf32>
    %c0_6 = arith.constant 0 : index
    %c0_7 = arith.constant 0 : index
    %8 = vector.load %arg7[%c0_6, %c0_7] : memref<64x128xf32, #tpu.memory_space<vmem>>, vector<64x128xf32>
    tpu.vector_store %arg7[%c0_6, %c0_7], %7 {strides = array<i32>} : memref<64x128xf32, #tpu.memory_space<vmem>>, vector<64x128xf32>,
    %c0_i32_8 = arith.constant 0 : i32
    %9 = arith.cmpi eq, %arg2, %c0_i32_8 : i32
    %10 = arith.extui %9 : i1 to i32
    %c0_i32_9 = arith.constant 0 : i32
    %11 = arith.cmpi ne, %10, %c0_i32_9 : i32
    scf.if %11 {
      %c0_10 = arith.constant 0 : index
      %c0_11 = arith.constant 0 : index
      %12 = vector.load %arg7[%c0_10, %c0_11] : memref<64x128xf32, #tpu.memory_space<vmem>>, vector<64x128xf32>
      %c0_12 = arith.constant 0 : index
      %c0_13 = arith.constant 0 : index
      %13 = vector.load %arg5[%c0_12, %c0_13] : memref<1x128xf32, #tpu.memory_space<vmem>>, vector<1x128xf32>
      %14 = vector.broadcast %13 : vector<1x128xf32> to vector<64x128xf32>
      %15 = arith.addf %12, %14 : vector<64x128xf32>
      %cst_14 = arith.constant 0.000000e+00 : f32
      %16 = vector.broadcast %cst_14 : f32 to vector<64x128xf32>
      %17 = arith.maximumf %15, %16 : vector<64x128xf32>
      %c0_15 = arith.constant 0 : index
      %c0_16 = arith.constant 0 : index
      %18 = vector.load %arg6[%c0_15, %c0_16] : memref<64x128xf32, #tpu.memory_space<vmem>>, vector<64x128xf32>
      tpu.vector_store %arg6[%c0_15, %c0_16], %17 {strides = array<i32>} : memref<64x128xf32, #tpu.memory_space<vmem>>, vector<64x128xf32>,
    } else {
    }
    return
  }
  func.func @transform_0(%arg0: i32, %arg1: i32, %arg2: i32) -> (i32, i32) {
    %c0_i32 = arith.constant 0 : i32
    return %arg0, %arg2 : i32, i32
  }
  func.func @transform_1(%arg0: i32, %arg1: i32, %arg2: i32) -> (i32, i32) {
    %c0_i32 = arith.constant 0 : i32
    return %arg2, %arg1 : i32, i32
  }
  func.func @transform_2(%arg0: i32, %arg1: i32, %arg2: i32) -> (i32, i32) {
    %c0_i32 = arith.constant 0 : i32
    %c0_i32_0 = arith.constant 0 : i32
    return %c0_i32, %arg1 : i32, i32
  }
  func.func @transform_3(%arg0: i32, %arg1: i32, %arg2: i32) -> (i32, i32) {
    %c0_i32 = arith.constant 0 : i32
    return %arg0, %arg1 : i32, i32
  }
}

module attributes {stable_mosaic.version = 11 : i64} {
  func.func @_mm_kernel(%arg0: i32, %arg1: i32, %arg2: i32, %arg3: memref<64x384xbf16, #tpu.memory_space<vmem>>, %arg4: memref<384x128xbf16, #tpu.memory_space<vmem>>, %arg5: memref<1x128xf32, #tpu.memory_space<vmem>>, %arg6: memref<64x128xf32, #tpu.memory_space<vmem>>, %arg7: memref<64x128xf32, #tpu.memory_space<vmem>>, %arg8: memref<64x128xf32, #tpu.memory_space<vmem>>) attributes {dimension_semantics = [#tpu.dimension_semantics<parallel>, #tpu.dimension_semantics<parallel>, #tpu.dimension_semantics<arbitrary>], iteration_bounds = array<i64: 1, 1, 1>, scalar_prefetch = 0 : i64, scratch_operands = 1 : i64, tpu.core_type = #tpu.core_type<tc>, window_params = [{transform_indices = @transform_0, window_bounds = array<i64: 64, 384>}, {transform_indices = @transform_1, window_bounds = array<i64: 384, 128>}, {transform_indices = @transform_2, window_bounds = array<i64: 1, 128>}, {transform_indices = @transform_3, window_bounds = array<i64: 64, 128>}, {transform_indices = @transform_4, window_bounds = array<i64: 64, 128>}]} {
    %c0_i32 = arith.constant 0 : i32
    %0 = arith.cmpi eq, %arg2, %c0_i32 : i32
    %1 = arith.extui %0 : i1 to i32
    %c0_i32_0 = arith.constant 0 : i32
    %2 = arith.cmpi ne, %1, %c0_i32_0 : i32
    scf.if %2 {
      %cst_10 = arith.constant 0.000000e+00 : f32
      %12 = vector.broadcast %cst_10 : f32 to vector<64x128xf32>
      %c0_11 = arith.constant 0 : index
      %c0_12 = arith.constant 0 : index
      %13 = vector.load %arg8[%c0_11, %c0_12] : memref<64x128xf32, #tpu.memory_space<vmem>>, vector<64x128xf32>
      tpu.vector_store %arg8[%c0_11, %c0_12], %12 {strides = array<i32>} : memref<64x128xf32, #tpu.memory_space<vmem>>, vector<64x128xf32>,
    } else {
    }
    %c0 = arith.constant 0 : index
    %c0_1 = arith.constant 0 : index
    %3 = vector.load %arg8[%c0, %c0_1] : memref<64x128xf32, #tpu.memory_space<vmem>>, vector<64x128xf32>
    %c0_2 = arith.constant 0 : index
    %c0_3 = arith.constant 0 : index
    %4 = vector.load %arg3[%c0_2, %c0_3] : memref<64x384xbf16, #tpu.memory_space<vmem>>, vector<64x384xbf16>
    %c0_4 = arith.constant 0 : index
    %c0_5 = arith.constant 0 : index
    %5 = vector.load %arg4[%c0_4, %c0_5] : memref<384x128xbf16, #tpu.memory_space<vmem>>, vector<384x128xbf16>
    %cst = arith.constant dense<0.000000e+00> : vector<64x128xf32>
    %6 = tpu.matmul %4, %5, %cst {dimension_numbers = #tpu.dot_dimension_numbers<[1], [0], [0], [1], [0, 0, 1, 1], [], []>} : vector<64x384xbf16>, vector<384x128xbf16>, vector<64x128xf32> -> vector<64x128xf32>
    %7 = arith.addf %3, %6 : vector<64x128xf32>
    %c0_6 = arith.constant 0 : index
    %c0_7 = arith.constant 0 : index
    %8 = vector.load %arg8[%c0_6, %c0_7] : memref<64x128xf32, #tpu.memory_space<vmem>>, vector<64x128xf32>
    tpu.vector_store %arg8[%c0_6, %c0_7], %7 {strides = array<i32>} : memref<64x128xf32, #tpu.memory_space<vmem>>, vector<64x128xf32>,
    %c0_i32_8 = arith.constant 0 : i32
    %9 = arith.cmpi eq, %arg2, %c0_i32_8 : i32
    %10 = arith.extui %9 : i1 to i32
    %c0_i32_9 = arith.constant 0 : i32
    %11 = arith.cmpi ne, %10, %c0_i32_9 : i32
    scf.if %11 {
      %c0_10 = arith.constant 0 : index
      %c0_11 = arith.constant 0 : index
      %12 = vector.load %arg8[%c0_10, %c0_11] : memref<64x128xf32, #tpu.memory_space<vmem>>, vector<64x128xf32>
      %c0_12 = arith.constant 0 : index
      %c0_13 = arith.constant 0 : index
      %13 = vector.load %arg5[%c0_12, %c0_13] : memref<1x128xf32, #tpu.memory_space<vmem>>, vector<1x128xf32>
      %14 = vector.broadcast %13 : vector<1x128xf32> to vector<64x128xf32>
      %15 = arith.addf %12, %14 : vector<64x128xf32>
      %c0_14 = arith.constant 0 : index
      %c0_15 = arith.constant 0 : index
      %16 = vector.load %arg6[%c0_14, %c0_15] : memref<64x128xf32, #tpu.memory_space<vmem>>, vector<64x128xf32>
      %17 = arith.addf %15, %16 : vector<64x128xf32>
      %cst_16 = arith.constant 0.000000e+00 : f32
      %18 = vector.broadcast %cst_16 : f32 to vector<64x128xf32>
      %19 = arith.maximumf %17, %18 : vector<64x128xf32>
      %c0_17 = arith.constant 0 : index
      %c0_18 = arith.constant 0 : index
      %20 = vector.load %arg7[%c0_17, %c0_18] : memref<64x128xf32, #tpu.memory_space<vmem>>, vector<64x128xf32>
      tpu.vector_store %arg7[%c0_17, %c0_18], %19 {strides = array<i32>} : memref<64x128xf32, #tpu.memory_space<vmem>>, vector<64x128xf32>,
    } else {
    }
    return
  }
  func.func @transform_0(%arg0: i32, %arg1: i32, %arg2: i32) -> (i32, i32) {
    %c0_i32 = arith.constant 0 : i32
    return %arg0, %arg2 : i32, i32
  }
  func.func @transform_1(%arg0: i32, %arg1: i32, %arg2: i32) -> (i32, i32) {
    %c0_i32 = arith.constant 0 : i32
    return %arg2, %arg1 : i32, i32
  }
  func.func @transform_2(%arg0: i32, %arg1: i32, %arg2: i32) -> (i32, i32) {
    %c0_i32 = arith.constant 0 : i32
    %c0_i32_0 = arith.constant 0 : i32
    return %c0_i32, %arg1 : i32, i32
  }
  func.func @transform_3(%arg0: i32, %arg1: i32, %arg2: i32) -> (i32, i32) {
    %c0_i32 = arith.constant 0 : i32
    return %arg0, %arg1 : i32, i32
  }
  func.func @transform_4(%arg0: i32, %arg1: i32, %arg2: i32) -> (i32, i32) {
    %c0_i32 = arith.constant 0 : i32
    return %arg0, %arg1 : i32, i32
  }
}

module attributes {stable_mosaic.version = 11 : i64} {
  func.func @_mm_kernel(%arg0: i32, %arg1: i32, %arg2: i32, %arg3: memref<16x128xbf16, #tpu.memory_space<vmem>>, %arg4: memref<128x256xbf16, #tpu.memory_space<vmem>>, %arg5: memref<1x256xf32, #tpu.memory_space<vmem>>, %arg6: memref<16x256xf32, #tpu.memory_space<vmem>>, %arg7: memref<16x256xf32, #tpu.memory_space<vmem>>) attributes {dimension_semantics = [#tpu.dimension_semantics<parallel>, #tpu.dimension_semantics<parallel>, #tpu.dimension_semantics<arbitrary>], iteration_bounds = array<i64: 1, 1, 1>, scalar_prefetch = 0 : i64, scratch_operands = 1 : i64, tpu.core_type = #tpu.core_type<tc>, window_params = [{transform_indices = @transform_0, window_bounds = array<i64: 16, 128>}, {transform_indices = @transform_1, window_bounds = array<i64: 128, 256>}, {transform_indices = @transform_2, window_bounds = array<i64: 1, 256>}, {transform_indices = @transform_3, window_bounds = array<i64: 16, 256>}]} {
    %c0_i32 = arith.constant 0 : i32
    %0 = arith.cmpi eq, %arg2, %c0_i32 : i32
    %1 = arith.extui %0 : i1 to i32
    %c0_i32_0 = arith.constant 0 : i32
    %2 = arith.cmpi ne, %1, %c0_i32_0 : i32
    scf.if %2 {
      %cst_10 = arith.constant 0.000000e+00 : f32
      %12 = vector.broadcast %cst_10 : f32 to vector<16x256xf32>
      %c0_11 = arith.constant 0 : index
      %c0_12 = arith.constant 0 : index
      %13 = vector.load %arg7[%c0_11, %c0_12] : memref<16x256xf32, #tpu.memory_space<vmem>>, vector<16x256xf32>
      tpu.vector_store %arg7[%c0_11, %c0_12], %12 {strides = array<i32>} : memref<16x256xf32, #tpu.memory_space<vmem>>, vector<16x256xf32>,
    } else {
    }
    %c0 = arith.constant 0 : index
    %c0_1 = arith.constant 0 : index
    %3 = vector.load %arg7[%c0, %c0_1] : memref<16x256xf32, #tpu.memory_space<vmem>>, vector<16x256xf32>
    %c0_2 = arith.constant 0 : index
    %c0_3 = arith.constant 0 : index
    %4 = vector.load %arg3[%c0_2, %c0_3] : memref<16x128xbf16, #tpu.memory_space<vmem>>, vector<16x128xbf16>
    %c0_4 = arith.constant 0 : index
    %c0_5 = arith.constant 0 : index
    %5 = vector.load %arg4[%c0_4, %c0_5] : memref<128x256xbf16, #tpu.memory_space<vmem>>, vector<128x256xbf16>
    %cst = arith.constant dense<0.000000e+00> : vector<16x256xf32>
    %6 = tpu.matmul %4, %5, %cst {dimension_numbers = #tpu.dot_dimension_numbers<[1], [0], [0], [1], [0, 0, 1, 1], [], []>} : vector<16x128xbf16>, vector<128x256xbf16>, vector<16x256xf32> -> vector<16x256xf32>
    %7 = arith.addf %3, %6 : vector<16x256xf32>
    %c0_6 = arith.constant 0 : index
    %c0_7 = arith.constant 0 : index
    %8 = vector.load %arg7[%c0_6, %c0_7] : memref<16x256xf32, #tpu.memory_space<vmem>>, vector<16x256xf32>
    tpu.vector_store %arg7[%c0_6, %c0_7], %7 {strides = array<i32>} : memref<16x256xf32, #tpu.memory_space<vmem>>, vector<16x256xf32>,
    %c0_i32_8 = arith.constant 0 : i32
    %9 = arith.cmpi eq, %arg2, %c0_i32_8 : i32
    %10 = arith.extui %9 : i1 to i32
    %c0_i32_9 = arith.constant 0 : i32
    %11 = arith.cmpi ne, %10, %c0_i32_9 : i32
    scf.if %11 {
      %c0_10 = arith.constant 0 : index
      %c0_11 = arith.constant 0 : index
      %12 = vector.load %arg7[%c0_10, %c0_11] : memref<16x256xf32, #tpu.memory_space<vmem>>, vector<16x256xf32>
      %c0_12 = arith.constant 0 : index
      %c0_13 = arith.constant 0 : index
      %13 = vector.load %arg5[%c0_12, %c0_13] : memref<1x256xf32, #tpu.memory_space<vmem>>, vector<1x256xf32>
      %14 = vector.broadcast %13 : vector<1x256xf32> to vector<16x256xf32>
      %15 = arith.addf %12, %14 : vector<16x256xf32>
      %c0_14 = arith.constant 0 : index
      %c0_15 = arith.constant 0 : index
      %16 = vector.load %arg6[%c0_14, %c0_15] : memref<16x256xf32, #tpu.memory_space<vmem>>, vector<16x256xf32>
      tpu.vector_store %arg6[%c0_14, %c0_15], %15 {strides = array<i32>} : memref<16x256xf32, #tpu.memory_space<vmem>>, vector<16x256xf32>,
    } else {
    }
    return
  }
  func.func @transform_0(%arg0: i32, %arg1: i32, %arg2: i32) -> (i32, i32) {
    %c0_i32 = arith.constant 0 : i32
    return %arg0, %arg2 : i32, i32
  }
  func.func @transform_1(%arg0: i32, %arg1: i32, %arg2: i32) -> (i32, i32) {
    %c0_i32 = arith.constant 0 : i32
    return %arg2, %arg1 : i32, i32
  }
  func.func @transform_2(%arg0: i32, %arg1: i32, %arg2: i32) -> (i32, i32) {
    %c0_i32 = arith.constant 0 : i32
    %c0_i32_0 = arith.constant 0 : i32
    return %c0_i32, %arg1 : i32, i32
  }
  func.func @transform_3(%arg0: i32, %arg1: i32, %arg2: i32) -> (i32, i32) {
    %c0_i32 = arith.constant 0 : i32
    return %arg0, %arg1 : i32, i32
  }
}

module attributes {stable_mosaic.version = 11 : i64} {
  func.func @_mm_kernel(%arg0: i32, %arg1: i32, %arg2: i32, %arg3: memref<16x128xbf16, #tpu.memory_space<vmem>>, %arg4: memref<128x128xbf16, #tpu.memory_space<vmem>>, %arg5: memref<1x128xf32, #tpu.memory_space<vmem>>, %arg6: memref<16x128xf32, #tpu.memory_space<vmem>>, %arg7: memref<16x128xf32, #tpu.memory_space<vmem>>) attributes {dimension_semantics = [#tpu.dimension_semantics<parallel>, #tpu.dimension_semantics<parallel>, #tpu.dimension_semantics<arbitrary>], iteration_bounds = array<i64: 1, 1, 1>, scalar_prefetch = 0 : i64, scratch_operands = 1 : i64, tpu.core_type = #tpu.core_type<tc>, window_params = [{transform_indices = @transform_0, window_bounds = array<i64: 16, 128>}, {transform_indices = @transform_1, window_bounds = array<i64: 128, 128>}, {transform_indices = @transform_2, window_bounds = array<i64: 1, 128>}, {transform_indices = @transform_3, window_bounds = array<i64: 16, 128>}]} {
    %c0_i32 = arith.constant 0 : i32
    %0 = arith.cmpi eq, %arg2, %c0_i32 : i32
    %1 = arith.extui %0 : i1 to i32
    %c0_i32_0 = arith.constant 0 : i32
    %2 = arith.cmpi ne, %1, %c0_i32_0 : i32
    scf.if %2 {
      %cst_10 = arith.constant 0.000000e+00 : f32
      %12 = vector.broadcast %cst_10 : f32 to vector<16x128xf32>
      %c0_11 = arith.constant 0 : index
      %c0_12 = arith.constant 0 : index
      %13 = vector.load %arg7[%c0_11, %c0_12] : memref<16x128xf32, #tpu.memory_space<vmem>>, vector<16x128xf32>
      tpu.vector_store %arg7[%c0_11, %c0_12], %12 {strides = array<i32>} : memref<16x128xf32, #tpu.memory_space<vmem>>, vector<16x128xf32>,
    } else {
    }
    %c0 = arith.constant 0 : index
    %c0_1 = arith.constant 0 : index
    %3 = vector.load %arg7[%c0, %c0_1] : memref<16x128xf32, #tpu.memory_space<vmem>>, vector<16x128xf32>
    %c0_2 = arith.constant 0 : index
    %c0_3 = arith.constant 0 : index
    %4 = vector.load %arg3[%c0_2, %c0_3] : memref<16x128xbf16, #tpu.memory_space<vmem>>, vector<16x128xbf16>
    %c0_4 = arith.constant 0 : index
    %c0_5 = arith.constant 0 : index
    %5 = vector.load %arg4[%c0_4, %c0_5] : memref<128x128xbf16, #tpu.memory_space<vmem>>, vector<128x128xbf16>
    %cst = arith.constant dense<0.000000e+00> : vector<16x128xf32>
    %6 = tpu.matmul %4, %5, %cst {dimension_numbers = #tpu.dot_dimension_numbers<[1], [0], [0], [1], [0, 0, 1, 1], [], []>} : vector<16x128xbf16>, vector<128x128xbf16>, vector<16x128xf32> -> vector<16x128xf32>
    %7 = arith.addf %3, %6 : vector<16x128xf32>
    %c0_6 = arith.constant 0 : index
    %c0_7 = arith.constant 0 : index
    %8 = vector.load %arg7[%c0_6, %c0_7] : memref<16x128xf32, #tpu.memory_space<vmem>>, vector<16x128xf32>
    tpu.vector_store %arg7[%c0_6, %c0_7], %7 {strides = array<i32>} : memref<16x128xf32, #tpu.memory_space<vmem>>, vector<16x128xf32>,
    %c0_i32_8 = arith.constant 0 : i32
    %9 = arith.cmpi eq, %arg2, %c0_i32_8 : i32
    %10 = arith.extui %9 : i1 to i32
    %c0_i32_9 = arith.constant 0 : i32
    %11 = arith.cmpi ne, %10, %c0_i32_9 : i32
    scf.if %11 {
      %c0_10 = arith.constant 0 : index
      %c0_11 = arith.constant 0 : index
      %12 = vector.load %arg7[%c0_10, %c0_11] : memref<16x128xf32, #tpu.memory_space<vmem>>, vector<16x128xf32>
      %c0_12 = arith.constant 0 : index
      %c0_13 = arith.constant 0 : index
      %13 = vector.load %arg5[%c0_12, %c0_13] : memref<1x128xf32, #tpu.memory_space<vmem>>, vector<1x128xf32>
      %14 = vector.broadcast %13 : vector<1x128xf32> to vector<16x128xf32>
      %15 = arith.addf %12, %14 : vector<16x128xf32>
      %c0_14 = arith.constant 0 : index
      %c0_15 = arith.constant 0 : index
      %16 = vector.load %arg6[%c0_14, %c0_15] : memref<16x128xf32, #tpu.memory_space<vmem>>, vector<16x128xf32>
      tpu.vector_store %arg6[%c0_14, %c0_15], %15 {strides = array<i32>} : memref<16x128xf32, #tpu.memory_space<vmem>>, vector<16x128xf32>,
    } else {
    }
    return
  }
  func.func @transform_0(%arg0: i32, %arg1: i32, %arg2: i32) -> (i32, i32) {
    %c0_i32 = arith.constant 0 : i32
    return %arg0, %arg2 : i32, i32
  }
  func.func @transform_1(%arg0: i32, %arg1: i32, %arg2: i32) -> (i32, i32) {
    %c0_i32 = arith.constant 0 : i32
    return %arg2, %arg1 : i32, i32
  }
  func.func @transform_2(%arg0: i32, %arg1: i32, %arg2: i32) -> (i32, i32) {
    %c0_i32 = arith.constant 0 : i32
    %c0_i32_0 = arith.constant 0 : i32
    return %c0_i32, %arg1 : i32, i32
  }
  func.func @transform_3(%arg0: i32, %arg1: i32, %arg2: i32) -> (i32, i32) {
    %c0_i32 = arith.constant 0 : i32
    return %arg0, %arg1 : i32, i32
  }
}

module attributes {stable_mosaic.version = 11 : i64} {
  func.func @_bilstm_kernel(%arg0: i32, %arg1: memref<8x2x128xf32, #tpu.memory_space<vmem>>, %arg2: memref<8x2x128xf32, #tpu.memory_space<vmem>>, %arg3: memref<64x256xbf16, #tpu.memory_space<vmem>>, %arg4: memref<8x2x32xf32, #tpu.memory_space<vmem>>, %arg5: memref<8x2x32xf32, #tpu.memory_space<vmem>>, %arg6: memref<2x64xf32, #tpu.memory_space<vmem>>, %arg7: memref<2x64xf32, #tpu.memory_space<vmem>>) attributes {dimension_semantics = [#tpu.dimension_semantics<arbitrary>], iteration_bounds = array<i64: 1>, scalar_prefetch = 0 : i64, scratch_operands = 2 : i64, tpu.core_type = #tpu.core_type<tc>, window_params = [{transform_indices = @transform_0, window_bounds = array<i64: 8, 2, 128>}, {transform_indices = @transform_1, window_bounds = array<i64: 8, 2, 128>}, {pipeline_mode = #tpu.pipeline_mode<synchronous>, transform_indices = @transform_2, window_bounds = array<i64: 64, 256>}, {transform_indices = @transform_3, window_bounds = array<i64: 8, 2, 32>}, {transform_indices = @transform_4, window_bounds = array<i64: 8, 2, 32>}]} {
    %c0_i32 = arith.constant 0 : i32
    %0 = arith.cmpi eq, %arg0, %c0_i32 : i32
    %1 = arith.extui %0 : i1 to i32
    %c0_i32_0 = arith.constant 0 : i32
    %2 = arith.cmpi ne, %1, %c0_i32_0 : i32
    scf.if %2 {
      %cst_209 = arith.constant 0.000000e+00 : f32
      %468 = vector.broadcast %cst_209 : f32 to vector<2x64xf32>
      %c0_210 = arith.constant 0 : index
      %c0_211 = arith.constant 0 : index
      %469 = vector.load %arg6[%c0_210, %c0_211] : memref<2x64xf32, #tpu.memory_space<vmem>>, vector<2x64xf32>
      tpu.vector_store %arg6[%c0_210, %c0_211], %468 {strides = array<i32>} : memref<2x64xf32, #tpu.memory_space<vmem>>, vector<2x64xf32>,
      %cst_212 = arith.constant 0.000000e+00 : f32
      %470 = vector.broadcast %cst_212 : f32 to vector<2x64xf32>
      %c0_213 = arith.constant 0 : index
      %c0_214 = arith.constant 0 : index
      %471 = vector.load %arg7[%c0_213, %c0_214] : memref<2x64xf32, #tpu.memory_space<vmem>>, vector<2x64xf32>
      tpu.vector_store %arg7[%c0_213, %c0_214], %470 {strides = array<i32>} : memref<2x64xf32, #tpu.memory_space<vmem>>, vector<2x64xf32>,
    } else {
    }
    %c0 = arith.constant 0 : index
    %c0_1 = arith.constant 0 : index
    %3 = vector.load %arg3[%c0, %c0_1] : memref<64x256xbf16, #tpu.memory_space<vmem>>, vector<64x256xbf16>
    %c0_i32_2 = arith.constant 0 : i32
    %c7_i32 = arith.constant 7 : i32
    %4 = arith.subi %c7_i32, %c0_i32_2 : i32
    %c0_3 = arith.constant 0 : index
    %c0_4 = arith.constant 0 : index
    %5 = vector.load %arg6[%c0_3, %c0_4] : memref<2x64xf32, #tpu.memory_space<vmem>>, vector<2x64xf32>
    %6 = arith.truncf %5 : vector<2x64xf32> to vector<2x64xbf16>
    %cst = arith.constant dense<0.000000e+00> : vector<2x256xf32>
    %7 = tpu.matmul %6, %3, %cst {dimension_numbers = #tpu.dot_dimension_numbers<[1], [0], [0], [1], [0, 0, 1, 1], [], []>} : vector<2x64xbf16>, vector<64x256xbf16>, vector<2x256xf32> -> vector<2x256xf32>
    %8 = arith.index_cast %c0_i32_2 : i32 to index
    %c0_5 = arith.constant 0 : index
    %c0_6 = arith.constant 0 : index
    %9 = vector.load %arg1[%8, %c0_5, %c0_6] : memref<8x2x128xf32, #tpu.memory_space<vmem>>, vector<1x2x128xf32>
    %10 = vector.shape_cast %9 : vector<1x2x128xf32> to vector<2x128xf32>
    %11 = vector.extract_strided_slice %7 {offsets = [0, 0], sizes = [2, 128], strides = [1, 1]} : vector<2x256xf32> to vector<2x128xf32>
    %12 = arith.addf %10, %11 : vector<2x128xf32>
    %13 = arith.negf %12 : vector<2x128xf32>
    %14 = math.exp %13 : vector<2x128xf32>
    %cst_7 = arith.constant 1.000000e+00 : f32
    %15 = vector.broadcast %cst_7 : f32 to vector<2x128xf32>
    %16 = arith.addf %15, %14 : vector<2x128xf32>
    %17 = arith.divf %15, %16 : vector<2x128xf32>
    %18 = math.tanh %12 : vector<2x128xf32>
    %19 = vector.extract_strided_slice %17 {offsets = [0, 32], sizes = [2, 32], strides = [1, 1]} : vector<2x128xf32> to vector<2x32xf32>
    %c0_8 = arith.constant 0 : index
    %c0_9 = arith.constant 0 : index
    %20 = vector.load %arg7[%c0_8, %c0_9] : memref<2x64xf32, #tpu.memory_space<vmem>>, vector<2x32xf32>
    %21 = arith.mulf %19, %20 : vector<2x32xf32>
    %22 = vector.extract_strided_slice %17 {offsets = [0, 0], sizes = [2, 32], strides = [1, 1]} : vector<2x128xf32> to vector<2x32xf32>
    %23 = vector.extract_strided_slice %18 {offsets = [0, 64], sizes = [2, 32], strides = [1, 1]} : vector<2x128xf32> to vector<2x32xf32>
    %24 = arith.mulf %22, %23 : vector<2x32xf32>
    %25 = arith.addf %21, %24 : vector<2x32xf32>
    %26 = vector.extract_strided_slice %17 {offsets = [0, 96], sizes = [2, 32], strides = [1, 1]} : vector<2x128xf32> to vector<2x32xf32>
    %27 = math.tanh %25 : vector<2x32xf32>
    %28 = arith.mulf %26, %27 : vector<2x32xf32>
    %29 = arith.index_cast %4 : i32 to index
    %c0_10 = arith.constant 0 : index
    %c0_11 = arith.constant 0 : index
    %30 = vector.load %arg2[%29, %c0_10, %c0_11] : memref<8x2x128xf32, #tpu.memory_space<vmem>>, vector<1x2x128xf32>
    %31 = vector.shape_cast %30 : vector<1x2x128xf32> to vector<2x128xf32>
    %32 = vector.extract_strided_slice %7 {offsets = [0, 128], sizes = [2, 128], strides = [1, 1]} : vector<2x256xf32> to vector<2x128xf32>
    %33 = arith.addf %31, %32 : vector<2x128xf32>
    %34 = arith.negf %33 : vector<2x128xf32>
    %35 = math.exp %34 : vector<2x128xf32>
    %cst_12 = arith.constant 1.000000e+00 : f32
    %36 = vector.broadcast %cst_12 : f32 to vector<2x128xf32>
    %37 = arith.addf %36, %35 : vector<2x128xf32>
    %38 = arith.divf %36, %37 : vector<2x128xf32>
    %39 = math.tanh %33 : vector<2x128xf32>
    %40 = vector.extract_strided_slice %38 {offsets = [0, 32], sizes = [2, 32], strides = [1, 1]} : vector<2x128xf32> to vector<2x32xf32>
    %c0_13 = arith.constant 0 : index
    %c32 = arith.constant 32 : index
    %41 = vector.load %arg7[%c0_13, %c32] : memref<2x64xf32, #tpu.memory_space<vmem>>, vector<2x32xf32>
    %42 = arith.mulf %40, %41 : vector<2x32xf32>
    %43 = vector.extract_strided_slice %38 {offsets = [0, 0], sizes = [2, 32], strides = [1, 1]} : vector<2x128xf32> to vector<2x32xf32>
    %44 = vector.extract_strided_slice %39 {offsets = [0, 64], sizes = [2, 32], strides = [1, 1]} : vector<2x128xf32> to vector<2x32xf32>
    %45 = arith.mulf %43, %44 : vector<2x32xf32>
    %46 = arith.addf %42, %45 : vector<2x32xf32>
    %47 = vector.extract_strided_slice %38 {offsets = [0, 96], sizes = [2, 32], strides = [1, 1]} : vector<2x128xf32> to vector<2x32xf32>
    %48 = math.tanh %46 : vector<2x32xf32>
    %49 = arith.mulf %47, %48 : vector<2x32xf32>
    %c0_14 = arith.constant 0 : index
    %c0_15 = arith.constant 0 : index
    %50 = vector.load %arg6[%c0_14, %c0_15] : memref<2x64xf32, #tpu.memory_space<vmem>>, vector<2x32xf32>
    tpu.vector_store %arg6[%c0_14, %c0_15], %28 {strides = array<i32>} : memref<2x64xf32, #tpu.memory_space<vmem>>, vector<2x32xf32>,
    %c0_16 = arith.constant 0 : index
    %c32_17 = arith.constant 32 : index
    %51 = vector.load %arg6[%c0_16, %c32_17] : memref<2x64xf32, #tpu.memory_space<vmem>>, vector<2x32xf32>
    tpu.vector_store %arg6[%c0_16, %c32_17], %49 {strides = array<i32>} : memref<2x64xf32, #tpu.memory_space<vmem>>, vector<2x32xf32>,
    %c0_18 = arith.constant 0 : index
    %c0_19 = arith.constant 0 : index
    %52 = vector.load %arg7[%c0_18, %c0_19] : memref<2x64xf32, #tpu.memory_space<vmem>>, vector<2x32xf32>
    tpu.vector_store %arg7[%c0_18, %c0_19], %25 {strides = array<i32>} : memref<2x64xf32, #tpu.memory_space<vmem>>, vector<2x32xf32>,
    %c0_20 = arith.constant 0 : index
    %c32_21 = arith.constant 32 : index
    %53 = vector.load %arg7[%c0_20, %c32_21] : memref<2x64xf32, #tpu.memory_space<vmem>>, vector<2x32xf32>
    tpu.vector_store %arg7[%c0_20, %c32_21], %46 {strides = array<i32>} : memref<2x64xf32, #tpu.memory_space<vmem>>, vector<2x32xf32>,
    %54 = arith.index_cast %c0_i32_2 : i32 to index
    %c0_22 = arith.constant 0 : index
    %c0_23 = arith.constant 0 : index
    %55 = vector.load %arg4[%54, %c0_22, %c0_23] : memref<8x2x32xf32, #tpu.memory_space<vmem>>, vector<1x2x32xf32>
    %56 = vector.shape_cast %55 : vector<1x2x32xf32> to vector<2x32xf32>
    %57 = vector.shape_cast %28 : vector<2x32xf32> to vector<1x2x32xf32>
    tpu.vector_store %arg4[%54, %c0_22, %c0_23], %57 {strides = array<i32>} : memref<8x2x32xf32, #tpu.memory_space<vmem>>, vector<1x2x32xf32>,
    %58 = arith.index_cast %4 : i32 to index
    %c0_24 = arith.constant 0 : index
    %c0_25 = arith.constant 0 : index
    %59 = vector.load %arg5[%58, %c0_24, %c0_25] : memref<8x2x32xf32, #tpu.memory_space<vmem>>, vector<1x2x32xf32>
    %60 = vector.shape_cast %59 : vector<1x2x32xf32> to vector<2x32xf32>
    %61 = vector.shape_cast %49 : vector<2x32xf32> to vector<1x2x32xf32>
    tpu.vector_store %arg5[%58, %c0_24, %c0_25], %61 {strides = array<i32>} : memref<8x2x32xf32, #tpu.memory_space<vmem>>, vector<1x2x32xf32>,
    %c1_i32 = arith.constant 1 : i32
    %c7_i32_26 = arith.constant 7 : i32
    %62 = arith.subi %c7_i32_26, %c1_i32 : i32
    %c0_27 = arith.constant 0 : index
    %c0_28 = arith.constant 0 : index
    %63 = vector.load %arg6[%c0_27, %c0_28] : memref<2x64xf32, #tpu.memory_space<vmem>>, vector<2x64xf32>
    %64 = arith.truncf %63 : vector<2x64xf32> to vector<2x64xbf16>
    %cst_29 = arith.constant dense<0.000000e+00> : vector<2x256xf32>
    %65 = tpu.matmul %64, %3, %cst_29 {dimension_numbers = #tpu.dot_dimension_numbers<[1], [0], [0], [1], [0, 0, 1, 1], [], []>} : vector<2x64xbf16>, vector<64x256xbf16>, vector<2x256xf32> -> vector<2x256xf32>
    %66 = arith.index_cast %c1_i32 : i32 to index
    %c0_30 = arith.constant 0 : index
    %c0_31 = arith.constant 0 : index
    %67 = vector.load %arg1[%66, %c0_30, %c0_31] : memref<8x2x128xf32, #tpu.memory_space<vmem>>, vector<1x2x128xf32>
    %68 = vector.shape_cast %67 : vector<1x2x128xf32> to vector<2x128xf32>
    %69 = vector.extract_strided_slice %65 {offsets = [0, 0], sizes = [2, 128], strides = [1, 1]} : vector<2x256xf32> to vector<2x128xf32>
    %70 = arith.addf %68, %69 : vector<2x128xf32>
    %71 = arith.negf %70 : vector<2x128xf32>
    %72 = math.exp %71 : vector<2x128xf32>
    %cst_32 = arith.constant 1.000000e+00 : f32
    %73 = vector.broadcast %cst_32 : f32 to vector<2x128xf32>
    %74 = arith.addf %73, %72 : vector<2x128xf32>
    %75 = arith.divf %73, %74 : vector<2x128xf32>
    %76 = math.tanh %70 : vector<2x128xf32>
    %77 = vector.extract_strided_slice %75 {offsets = [0, 32], sizes = [2, 32], strides = [1, 1]} : vector<2x128xf32> to vector<2x32xf32>
    %c0_33 = arith.constant 0 : index
    %c0_34 = arith.constant 0 : index
    %78 = vector.load %arg7[%c0_33, %c0_34] : memref<2x64xf32, #tpu.memory_space<vmem>>, vector<2x32xf32>
    %79 = arith.mulf %77, %78 : vector<2x32xf32>
    %80 = vector.extract_strided_slice %75 {offsets = [0, 0], sizes = [2, 32], strides = [1, 1]} : vector<2x128xf32> to vector<2x32xf32>
    %81 = vector.extract_strided_slice %76 {offsets = [0, 64], sizes = [2, 32], strides = [1, 1]} : vector<2x128xf32> to vector<2x32xf32>
    %82 = arith.mulf %80, %81 : vector<2x32xf32>
    %83 = arith.addf %79, %82 : vector<2x32xf32>
    %84 = vector.extract_strided_slice %75 {offsets = [0, 96], sizes = [2, 32], strides = [1, 1]} : vector<2x128xf32> to vector<2x32xf32>
    %85 = math.tanh %83 : vector<2x32xf32>
    %86 = arith.mulf %84, %85 : vector<2x32xf32>
    %87 = arith.index_cast %62 : i32 to index
    %c0_35 = arith.constant 0 : index
    %c0_36 = arith.constant 0 : index
    %88 = vector.load %arg2[%87, %c0_35, %c0_36] : memref<8x2x128xf32, #tpu.memory_space<vmem>>, vector<1x2x128xf32>
    %89 = vector.shape_cast %88 : vector<1x2x128xf32> to vector<2x128xf32>
    %90 = vector.extract_strided_slice %65 {offsets = [0, 128], sizes = [2, 128], strides = [1, 1]} : vector<2x256xf32> to vector<2x128xf32>
    %91 = arith.addf %89, %90 : vector<2x128xf32>
    %92 = arith.negf %91 : vector<2x128xf32>
    %93 = math.exp %92 : vector<2x128xf32>
    %cst_37 = arith.constant 1.000000e+00 : f32
    %94 = vector.broadcast %cst_37 : f32 to vector<2x128xf32>
    %95 = arith.addf %94, %93 : vector<2x128xf32>
    %96 = arith.divf %94, %95 : vector<2x128xf32>
    %97 = math.tanh %91 : vector<2x128xf32>
    %98 = vector.extract_strided_slice %96 {offsets = [0, 32], sizes = [2, 32], strides = [1, 1]} : vector<2x128xf32> to vector<2x32xf32>
    %c0_38 = arith.constant 0 : index
    %c32_39 = arith.constant 32 : index
    %99 = vector.load %arg7[%c0_38, %c32_39] : memref<2x64xf32, #tpu.memory_space<vmem>>, vector<2x32xf32>
    %100 = arith.mulf %98, %99 : vector<2x32xf32>
    %101 = vector.extract_strided_slice %96 {offsets = [0, 0], sizes = [2, 32], strides = [1, 1]} : vector<2x128xf32> to vector<2x32xf32>
    %102 = vector.extract_strided_slice %97 {offsets = [0, 64], sizes = [2, 32], strides = [1, 1]} : vector<2x128xf32> to vector<2x32xf32>
    %103 = arith.mulf %101, %102 : vector<2x32xf32>
    %104 = arith.addf %100, %103 : vector<2x32xf32>
    %105 = vector.extract_strided_slice %96 {offsets = [0, 96], sizes = [2, 32], strides = [1, 1]} : vector<2x128xf32> to vector<2x32xf32>
    %106 = math.tanh %104 : vector<2x32xf32>
    %107 = arith.mulf %105, %106 : vector<2x32xf32>
    %c0_40 = arith.constant 0 : index
    %c0_41 = arith.constant 0 : index
    %108 = vector.load %arg6[%c0_40, %c0_41] : memref<2x64xf32, #tpu.memory_space<vmem>>, vector<2x32xf32>
    tpu.vector_store %arg6[%c0_40, %c0_41], %86 {strides = array<i32>} : memref<2x64xf32, #tpu.memory_space<vmem>>, vector<2x32xf32>,
    %c0_42 = arith.constant 0 : index
    %c32_43 = arith.constant 32 : index
    %109 = vector.load %arg6[%c0_42, %c32_43] : memref<2x64xf32, #tpu.memory_space<vmem>>, vector<2x32xf32>
    tpu.vector_store %arg6[%c0_42, %c32_43], %107 {strides = array<i32>} : memref<2x64xf32, #tpu.memory_space<vmem>>, vector<2x32xf32>,
    %c0_44 = arith.constant 0 : index
    %c0_45 = arith.constant 0 : index
    %110 = vector.load %arg7[%c0_44, %c0_45] : memref<2x64xf32, #tpu.memory_space<vmem>>, vector<2x32xf32>
    tpu.vector_store %arg7[%c0_44, %c0_45], %83 {strides = array<i32>} : memref<2x64xf32, #tpu.memory_space<vmem>>, vector<2x32xf32>,
    %c0_46 = arith.constant 0 : index
    %c32_47 = arith.constant 32 : index
    %111 = vector.load %arg7[%c0_46, %c32_47] : memref<2x64xf32, #tpu.memory_space<vmem>>, vector<2x32xf32>
    tpu.vector_store %arg7[%c0_46, %c32_47], %104 {strides = array<i32>} : memref<2x64xf32, #tpu.memory_space<vmem>>, vector<2x32xf32>,
    %112 = arith.index_cast %c1_i32 : i32 to index
    %c0_48 = arith.constant 0 : index
    %c0_49 = arith.constant 0 : index
    %113 = vector.load %arg4[%112, %c0_48, %c0_49] : memref<8x2x32xf32, #tpu.memory_space<vmem>>, vector<1x2x32xf32>
    %114 = vector.shape_cast %113 : vector<1x2x32xf32> to vector<2x32xf32>
    %115 = vector.shape_cast %86 : vector<2x32xf32> to vector<1x2x32xf32>
    tpu.vector_store %arg4[%112, %c0_48, %c0_49], %115 {strides = array<i32>} : memref<8x2x32xf32, #tpu.memory_space<vmem>>, vector<1x2x32xf32>,
    %116 = arith.index_cast %62 : i32 to index
    %c0_50 = arith.constant 0 : index
    %c0_51 = arith.constant 0 : index
    %117 = vector.load %arg5[%116, %c0_50, %c0_51] : memref<8x2x32xf32, #tpu.memory_space<vmem>>, vector<1x2x32xf32>
    %118 = vector.shape_cast %117 : vector<1x2x32xf32> to vector<2x32xf32>
    %119 = vector.shape_cast %107 : vector<2x32xf32> to vector<1x2x32xf32>
    tpu.vector_store %arg5[%116, %c0_50, %c0_51], %119 {strides = array<i32>} : memref<8x2x32xf32, #tpu.memory_space<vmem>>, vector<1x2x32xf32>,
    %c2_i32 = arith.constant 2 : i32
    %c7_i32_52 = arith.constant 7 : i32
    %120 = arith.subi %c7_i32_52, %c2_i32 : i32
    %c0_53 = arith.constant 0 : index
    %c0_54 = arith.constant 0 : index
    %121 = vector.load %arg6[%c0_53, %c0_54] : memref<2x64xf32, #tpu.memory_space<vmem>>, vector<2x64xf32>
    %122 = arith.truncf %121 : vector<2x64xf32> to vector<2x64xbf16>
    %cst_55 = arith.constant dense<0.000000e+00> : vector<2x256xf32>
    %123 = tpu.matmul %122, %3, %cst_55 {dimension_numbers = #tpu.dot_dimension_numbers<[1], [0], [0], [1], [0, 0, 1, 1], [], []>} : vector<2x64xbf16>, vector<64x256xbf16>, vector<2x256xf32> -> vector<2x256xf32>
    %124 = arith.index_cast %c2_i32 : i32 to index
    %c0_56 = arith.constant 0 : index
    %c0_57 = arith.constant 0 : index
    %125 = vector.load %arg1[%124, %c0_56, %c0_57] : memref<8x2x128xf32, #tpu.memory_space<vmem>>, vector<1x2x128xf32>
    %126 = vector.shape_cast %125 : vector<1x2x128xf32> to vector<2x128xf32>
    %127 = vector.extract_strided_slice %123 {offsets = [0, 0], sizes = [2, 128], strides = [1, 1]} : vector<2x256xf32> to vector<2x128xf32>
    %128 = arith.addf %126, %127 : vector<2x128xf32>
    %129 = arith.negf %128 : vector<2x128xf32>
    %130 = math.exp %129 : vector<2x128xf32>
    %cst_58 = arith.constant 1.000000e+00 : f32
    %131 = vector.broadcast %cst_58 : f32 to vector<2x128xf32>
    %132 = arith.addf %131, %130 : vector<2x128xf32>
    %133 = arith.divf %131, %132 : vector<2x128xf32>
    %134 = math.tanh %128 : vector<2x128xf32>
    %135 = vector.extract_strided_slice %133 {offsets = [0, 32], sizes = [2, 32], strides = [1, 1]} : vector<2x128xf32> to vector<2x32xf32>
    %c0_59 = arith.constant 0 : index
    %c0_60 = arith.constant 0 : index
    %136 = vector.load %arg7[%c0_59, %c0_60] : memref<2x64xf32, #tpu.memory_space<vmem>>, vector<2x32xf32>
    %137 = arith.mulf %135, %136 : vector<2x32xf32>
    %138 = vector.extract_strided_slice %133 {offsets = [0, 0], sizes = [2, 32], strides = [1, 1]} : vector<2x128xf32> to vector<2x32xf32>
    %139 = vector.extract_strided_slice %134 {offsets = [0, 64], sizes = [2, 32], strides = [1, 1]} : vector<2x128xf32> to vector<2x32xf32>
    %140 = arith.mulf %138, %139 : vector<2x32xf32>
    %141 = arith.addf %137, %140 : vector<2x32xf32>
    %142 = vector.extract_strided_slice %133 {offsets = [0, 96], sizes = [2, 32], strides = [1, 1]} : vector<2x128xf32> to vector<2x32xf32>
    %143 = math.tanh %141 : vector<2x32xf32>
    %144 = arith.mulf %142, %143 : vector<2x32xf32>
    %145 = arith.index_cast %120 : i32 to index
    %c0_61 = arith.constant 0 : index
    %c0_62 = arith.constant 0 : index
    %146 = vector.load %arg2[%145, %c0_61, %c0_62] : memref<8x2x128xf32, #tpu.memory_space<vmem>>, vector<1x2x128xf32>
    %147 = vector.shape_cast %146 : vector<1x2x128xf32> to vector<2x128xf32>
    %148 = vector.extract_strided_slice %123 {offsets = [0, 128], sizes = [2, 128], strides = [1, 1]} : vector<2x256xf32> to vector<2x128xf32>
    %149 = arith.addf %147, %148 : vector<2x128xf32>
    %150 = arith.negf %149 : vector<2x128xf32>
    %151 = math.exp %150 : vector<2x128xf32>
    %cst_63 = arith.constant 1.000000e+00 : f32
    %152 = vector.broadcast %cst_63 : f32 to vector<2x128xf32>
    %153 = arith.addf %152, %151 : vector<2x128xf32>
    %154 = arith.divf %152, %153 : vector<2x128xf32>
    %155 = math.tanh %149 : vector<2x128xf32>
    %156 = vector.extract_strided_slice %154 {offsets = [0, 32], sizes = [2, 32], strides = [1, 1]} : vector<2x128xf32> to vector<2x32xf32>
    %c0_64 = arith.constant 0 : index
    %c32_65 = arith.constant 32 : index
    %157 = vector.load %arg7[%c0_64, %c32_65] : memref<2x64xf32, #tpu.memory_space<vmem>>, vector<2x32xf32>
    %158 = arith.mulf %156, %157 : vector<2x32xf32>
    %159 = vector.extract_strided_slice %154 {offsets = [0, 0], sizes = [2, 32], strides = [1, 1]} : vector<2x128xf32> to vector<2x32xf32>
    %160 = vector.extract_strided_slice %155 {offsets = [0, 64], sizes = [2, 32], strides = [1, 1]} : vector<2x128xf32> to vector<2x32xf32>
    %161 = arith.mulf %159, %160 : vector<2x32xf32>
    %162 = arith.addf %158, %161 : vector<2x32xf32>
    %163 = vector.extract_strided_slice %154 {offsets = [0, 96], sizes = [2, 32], strides = [1, 1]} : vector<2x128xf32> to vector<2x32xf32>
    %164 = math.tanh %162 : vector<2x32xf32>
    %165 = arith.mulf %163, %164 : vector<2x32xf32>
    %c0_66 = arith.constant 0 : index
    %c0_67 = arith.constant 0 : index
    %166 = vector.load %arg6[%c0_66, %c0_67] : memref<2x64xf32, #tpu.memory_space<vmem>>, vector<2x32xf32>
    tpu.vector_store %arg6[%c0_66, %c0_67], %144 {strides = array<i32>} : memref<2x64xf32, #tpu.memory_space<vmem>>, vector<2x32xf32>,
    %c0_68 = arith.constant 0 : index
    %c32_69 = arith.constant 32 : index
    %167 = vector.load %arg6[%c0_68, %c32_69] : memref<2x64xf32, #tpu.memory_space<vmem>>, vector<2x32xf32>
    tpu.vector_store %arg6[%c0_68, %c32_69], %165 {strides = array<i32>} : memref<2x64xf32, #tpu.memory_space<vmem>>, vector<2x32xf32>,
    %c0_70 = arith.constant 0 : index
    %c0_71 = arith.constant 0 : index
    %168 = vector.load %arg7[%c0_70, %c0_71] : memref<2x64xf32, #tpu.memory_space<vmem>>, vector<2x32xf32>
    tpu.vector_store %arg7[%c0_70, %c0_71], %141 {strides = array<i32>} : memref<2x64xf32, #tpu.memory_space<vmem>>, vector<2x32xf32>,
    %c0_72 = arith.constant 0 : index
    %c32_73 = arith.constant 32 : index
    %169 = vector.load %arg7[%c0_72, %c32_73] : memref<2x64xf32, #tpu.memory_space<vmem>>, vector<2x32xf32>
    tpu.vector_store %arg7[%c0_72, %c32_73], %162 {strides = array<i32>} : memref<2x64xf32, #tpu.memory_space<vmem>>, vector<2x32xf32>,
    %170 = arith.index_cast %c2_i32 : i32 to index
    %c0_74 = arith.constant 0 : index
    %c0_75 = arith.constant 0 : index
    %171 = vector.load %arg4[%170, %c0_74, %c0_75] : memref<8x2x32xf32, #tpu.memory_space<vmem>>, vector<1x2x32xf32>
    %172 = vector.shape_cast %171 : vector<1x2x32xf32> to vector<2x32xf32>
    %173 = vector.shape_cast %144 : vector<2x32xf32> to vector<1x2x32xf32>
    tpu.vector_store %arg4[%170, %c0_74, %c0_75], %173 {strides = array<i32>} : memref<8x2x32xf32, #tpu.memory_space<vmem>>, vector<1x2x32xf32>,
    %174 = arith.index_cast %120 : i32 to index
    %c0_76 = arith.constant 0 : index
    %c0_77 = arith.constant 0 : index
    %175 = vector.load %arg5[%174, %c0_76, %c0_77] : memref<8x2x32xf32, #tpu.memory_space<vmem>>, vector<1x2x32xf32>
    %176 = vector.shape_cast %175 : vector<1x2x32xf32> to vector<2x32xf32>
    %177 = vector.shape_cast %165 : vector<2x32xf32> to vector<1x2x32xf32>
    tpu.vector_store %arg5[%174, %c0_76, %c0_77], %177 {strides = array<i32>} : memref<8x2x32xf32, #tpu.memory_space<vmem>>, vector<1x2x32xf32>,
    %c3_i32 = arith.constant 3 : i32
    %c7_i32_78 = arith.constant 7 : i32
    %178 = arith.subi %c7_i32_78, %c3_i32 : i32
    %c0_79 = arith.constant 0 : index
    %c0_80 = arith.constant 0 : index
    %179 = vector.load %arg6[%c0_79, %c0_80] : memref<2x64xf32, #tpu.memory_space<vmem>>, vector<2x64xf32>
    %180 = arith.truncf %179 : vector<2x64xf32> to vector<2x64xbf16>
    %cst_81 = arith.constant dense<0.000000e+00> : vector<2x256xf32>
    %181 = tpu.matmul %180, %3, %cst_81 {dimension_numbers = #tpu.dot_dimension_numbers<[1], [0], [0], [1], [0, 0, 1, 1], [], []>} : vector<2x64xbf16>, vector<64x256xbf16>, vector<2x256xf32> -> vector<2x256xf32>
    %182 = arith.index_cast %c3_i32 : i32 to index
    %c0_82 = arith.constant 0 : index
    %c0_83 = arith.constant 0 : index
    %183 = vector.load %arg1[%182, %c0_82, %c0_83] : memref<8x2x128xf32, #tpu.memory_space<vmem>>, vector<1x2x128xf32>
    %184 = vector.shape_cast %183 : vector<1x2x128xf32> to vector<2x128xf32>
    %185 = vector.extract_strided_slice %181 {offsets = [0, 0], sizes = [2, 128], strides = [1, 1]} : vector<2x256xf32> to vector<2x128xf32>
    %186 = arith.addf %184, %185 : vector<2x128xf32>
    %187 = arith.negf %186 : vector<2x128xf32>
    %188 = math.exp %187 : vector<2x128xf32>
    %cst_84 = arith.constant 1.000000e+00 : f32
    %189 = vector.broadcast %cst_84 : f32 to vector<2x128xf32>
    %190 = arith.addf %189, %188 : vector<2x128xf32>
    %191 = arith.divf %189, %190 : vector<2x128xf32>
    %192 = math.tanh %186 : vector<2x128xf32>
    %193 = vector.extract_strided_slice %191 {offsets = [0, 32], sizes = [2, 32], strides = [1, 1]} : vector<2x128xf32> to vector<2x32xf32>
    %c0_85 = arith.constant 0 : index
    %c0_86 = arith.constant 0 : index
    %194 = vector.load %arg7[%c0_85, %c0_86] : memref<2x64xf32, #tpu.memory_space<vmem>>, vector<2x32xf32>
    %195 = arith.mulf %193, %194 : vector<2x32xf32>
    %196 = vector.extract_strided_slice %191 {offsets = [0, 0], sizes = [2, 32], strides = [1, 1]} : vector<2x128xf32> to vector<2x32xf32>
    %197 = vector.extract_strided_slice %192 {offsets = [0, 64], sizes = [2, 32], strides = [1, 1]} : vector<2x128xf32> to vector<2x32xf32>
    %198 = arith.mulf %196, %197 : vector<2x32xf32>
    %199 = arith.addf %195, %198 : vector<2x32xf32>
    %200 = vector.extract_strided_slice %191 {offsets = [0, 96], sizes = [2, 32], strides = [1, 1]} : vector<2x128xf32> to vector<2x32xf32>
    %201 = math.tanh %199 : vector<2x32xf32>
    %202 = arith.mulf %200, %201 : vector<2x32xf32>
    %203 = arith.index_cast %178 : i32 to index
    %c0_87 = arith.constant 0 : index
    %c0_88 = arith.constant 0 : index
    %204 = vector.load %arg2[%203, %c0_87, %c0_88] : memref<8x2x128xf32, #tpu.memory_space<vmem>>, vector<1x2x128xf32>
    %205 = vector.shape_cast %204 : vector<1x2x128xf32> to vector<2x128xf32>
    %206 = vector.extract_strided_slice %181 {offsets = [0, 128], sizes = [2, 128], strides = [1, 1]} : vector<2x256xf32> to vector<2x128xf32>
    %207 = arith.addf %205, %206 : vector<2x128xf32>
    %208 = arith.negf %207 : vector<2x128xf32>
    %209 = math.exp %208 : vector<2x128xf32>
    %cst_89 = arith.constant 1.000000e+00 : f32
    %210 = vector.broadcast %cst_89 : f32 to vector<2x128xf32>
    %211 = arith.addf %210, %209 : vector<2x128xf32>
    %212 = arith.divf %210, %211 : vector<2x128xf32>
    %213 = math.tanh %207 : vector<2x128xf32>
    %214 = vector.extract_strided_slice %212 {offsets = [0, 32], sizes = [2, 32], strides = [1, 1]} : vector<2x128xf32> to vector<2x32xf32>
    %c0_90 = arith.constant 0 : index
    %c32_91 = arith.constant 32 : index
    %215 = vector.load %arg7[%c0_90, %c32_91] : memref<2x64xf32, #tpu.memory_space<vmem>>, vector<2x32xf32>
    %216 = arith.mulf %214, %215 : vector<2x32xf32>
    %217 = vector.extract_strided_slice %212 {offsets = [0, 0], sizes = [2, 32], strides = [1, 1]} : vector<2x128xf32> to vector<2x32xf32>
    %218 = vector.extract_strided_slice %213 {offsets = [0, 64], sizes = [2, 32], strides = [1, 1]} : vector<2x128xf32> to vector<2x32xf32>
    %219 = arith.mulf %217, %218 : vector<2x32xf32>
    %220 = arith.addf %216, %219 : vector<2x32xf32>
    %221 = vector.extract_strided_slice %212 {offsets = [0, 96], sizes = [2, 32], strides = [1, 1]} : vector<2x128xf32> to vector<2x32xf32>
    %222 = math.tanh %220 : vector<2x32xf32>
    %223 = arith.mulf %221, %222 : vector<2x32xf32>
    %c0_92 = arith.constant 0 : index
    %c0_93 = arith.constant 0 : index
    %224 = vector.load %arg6[%c0_92, %c0_93] : memref<2x64xf32, #tpu.memory_space<vmem>>, vector<2x32xf32>
    tpu.vector_store %arg6[%c0_92, %c0_93], %202 {strides = array<i32>} : memref<2x64xf32, #tpu.memory_space<vmem>>, vector<2x32xf32>,
    %c0_94 = arith.constant 0 : index
    %c32_95 = arith.constant 32 : index
    %225 = vector.load %arg6[%c0_94, %c32_95] : memref<2x64xf32, #tpu.memory_space<vmem>>, vector<2x32xf32>
    tpu.vector_store %arg6[%c0_94, %c32_95], %223 {strides = array<i32>} : memref<2x64xf32, #tpu.memory_space<vmem>>, vector<2x32xf32>,
    %c0_96 = arith.constant 0 : index
    %c0_97 = arith.constant 0 : index
    %226 = vector.load %arg7[%c0_96, %c0_97] : memref<2x64xf32, #tpu.memory_space<vmem>>, vector<2x32xf32>
    tpu.vector_store %arg7[%c0_96, %c0_97], %199 {strides = array<i32>} : memref<2x64xf32, #tpu.memory_space<vmem>>, vector<2x32xf32>,
    %c0_98 = arith.constant 0 : index
    %c32_99 = arith.constant 32 : index
    %227 = vector.load %arg7[%c0_98, %c32_99] : memref<2x64xf32, #tpu.memory_space<vmem>>, vector<2x32xf32>
    tpu.vector_store %arg7[%c0_98, %c32_99], %220 {strides = array<i32>} : memref<2x64xf32, #tpu.memory_space<vmem>>, vector<2x32xf32>,
    %228 = arith.index_cast %c3_i32 : i32 to index
    %c0_100 = arith.constant 0 : index
    %c0_101 = arith.constant 0 : index
    %229 = vector.load %arg4[%228, %c0_100, %c0_101] : memref<8x2x32xf32, #tpu.memory_space<vmem>>, vector<1x2x32xf32>
    %230 = vector.shape_cast %229 : vector<1x2x32xf32> to vector<2x32xf32>
    %231 = vector.shape_cast %202 : vector<2x32xf32> to vector<1x2x32xf32>
    tpu.vector_store %arg4[%228, %c0_100, %c0_101], %231 {strides = array<i32>} : memref<8x2x32xf32, #tpu.memory_space<vmem>>, vector<1x2x32xf32>,
    %232 = arith.index_cast %178 : i32 to index
    %c0_102 = arith.constant 0 : index
    %c0_103 = arith.constant 0 : index
    %233 = vector.load %arg5[%232, %c0_102, %c0_103] : memref<8x2x32xf32, #tpu.memory_space<vmem>>, vector<1x2x32xf32>
    %234 = vector.shape_cast %233 : vector<1x2x32xf32> to vector<2x32xf32>
    %235 = vector.shape_cast %223 : vector<2x32xf32> to vector<1x2x32xf32>
    tpu.vector_store %arg5[%232, %c0_102, %c0_103], %235 {strides = array<i32>} : memref<8x2x32xf32, #tpu.memory_space<vmem>>, vector<1x2x32xf32>,
    %c4_i32 = arith.constant 4 : i32
    %c7_i32_104 = arith.constant 7 : i32
    %236 = arith.subi %c7_i32_104, %c4_i32 : i32
    %c0_105 = arith.constant 0 : index
    %c0_106 = arith.constant 0 : index
    %237 = vector.load %arg6[%c0_105, %c0_106] : memref<2x64xf32, #tpu.memory_space<vmem>>, vector<2x64xf32>
    %238 = arith.truncf %237 : vector<2x64xf32> to vector<2x64xbf16>
    %cst_107 = arith.constant dense<0.000000e+00> : vector<2x256xf32>
    %239 = tpu.matmul %238, %3, %cst_107 {dimension_numbers = #tpu.dot_dimension_numbers<[1], [0], [0], [1], [0, 0, 1, 1], [], []>} : vector<2x64xbf16>, vector<64x256xbf16>, vector<2x256xf32> -> vector<2x256xf32>
    %240 = arith.index_cast %c4_i32 : i32 to index
    %c0_108 = arith.constant 0 : index
    %c0_109 = arith.constant 0 : index
    %241 = vector.load %arg1[%240, %c0_108, %c0_109] : memref<8x2x128xf32, #tpu.memory_space<vmem>>, vector<1x2x128xf32>
    %242 = vector.shape_cast %241 : vector<1x2x128xf32> to vector<2x128xf32>
    %243 = vector.extract_strided_slice %239 {offsets = [0, 0], sizes = [2, 128], strides = [1, 1]} : vector<2x256xf32> to vector<2x128xf32>
    %244 = arith.addf %242, %243 : vector<2x128xf32>
    %245 = arith.negf %244 : vector<2x128xf32>
    %246 = math.exp %245 : vector<2x128xf32>
    %cst_110 = arith.constant 1.000000e+00 : f32
    %247 = vector.broadcast %cst_110 : f32 to vector<2x128xf32>
    %248 = arith.addf %247, %246 : vector<2x128xf32>
    %249 = arith.divf %247, %248 : vector<2x128xf32>
    %250 = math.tanh %244 : vector<2x128xf32>
    %251 = vector.extract_strided_slice %249 {offsets = [0, 32], sizes = [2, 32], strides = [1, 1]} : vector<2x128xf32> to vector<2x32xf32>
    %c0_111 = arith.constant 0 : index
    %c0_112 = arith.constant 0 : index
    %252 = vector.load %arg7[%c0_111, %c0_112] : memref<2x64xf32, #tpu.memory_space<vmem>>, vector<2x32xf32>
    %253 = arith.mulf %251, %252 : vector<2x32xf32>
    %254 = vector.extract_strided_slice %249 {offsets = [0, 0], sizes = [2, 32], strides = [1, 1]} : vector<2x128xf32> to vector<2x32xf32>
    %255 = vector.extract_strided_slice %250 {offsets = [0, 64], sizes = [2, 32], strides = [1, 1]} : vector<2x128xf32> to vector<2x32xf32>
    %256 = arith.mulf %254, %255 : vector<2x32xf32>
    %257 = arith.addf %253, %256 : vector<2x32xf32>
    %258 = vector.extract_strided_slice %249 {offsets = [0, 96], sizes = [2, 32], strides = [1, 1]} : vector<2x128xf32> to vector<2x32xf32>
    %259 = math.tanh %257 : vector<2x32xf32>
    %260 = arith.mulf %258, %259 : vector<2x32xf32>
    %261 = arith.index_cast %236 : i32 to index
    %c0_113 = arith.constant 0 : index
    %c0_114 = arith.constant 0 : index
    %262 = vector.load %arg2[%261, %c0_113, %c0_114] : memref<8x2x128xf32, #tpu.memory_space<vmem>>, vector<1x2x128xf32>
    %263 = vector.shape_cast %262 : vector<1x2x128xf32> to vector<2x128xf32>
    %264 = vector.extract_strided_slice %239 {offsets = [0, 128], sizes = [2, 128], strides = [1, 1]} : vector<2x256xf32> to vector<2x128xf32>
    %265 = arith.addf %263, %264 : vector<2x128xf32>
    %266 = arith.negf %265 : vector<2x128xf32>
    %267 = math.exp %266 : vector<2x128xf32>
    %cst_115 = arith.constant 1.000000e+00 : f32
    %268 = vector.broadcast %cst_115 : f32 to vector<2x128xf32>
    %269 = arith.addf %268, %267 : vector<2x128xf32>
    %270 = arith.divf %268, %269 : vector<2x128xf32>
    %271 = math.tanh %265 : vector<2x128xf32>
    %272 = vector.extract_strided_slice %270 {offsets = [0, 32], sizes = [2, 32], strides = [1, 1]} : vector<2x128xf32> to vector<2x32xf32>
    %c0_116 = arith.constant 0 : index
    %c32_117 = arith.constant 32 : index
    %273 = vector.load %arg7[%c0_116, %c32_117] : memref<2x64xf32, #tpu.memory_space<vmem>>, vector<2x32xf32>
    %274 = arith.mulf %272, %273 : vector<2x32xf32>
    %275 = vector.extract_strided_slice %270 {offsets = [0, 0], sizes = [2, 32], strides = [1, 1]} : vector<2x128xf32> to vector<2x32xf32>
    %276 = vector.extract_strided_slice %271 {offsets = [0, 64], sizes = [2, 32], strides = [1, 1]} : vector<2x128xf32> to vector<2x32xf32>
    %277 = arith.mulf %275, %276 : vector<2x32xf32>
    %278 = arith.addf %274, %277 : vector<2x32xf32>
    %279 = vector.extract_strided_slice %270 {offsets = [0, 96], sizes = [2, 32], strides = [1, 1]} : vector<2x128xf32> to vector<2x32xf32>
    %280 = math.tanh %278 : vector<2x32xf32>
    %281 = arith.mulf %279, %280 : vector<2x32xf32>
    %c0_118 = arith.constant 0 : index
    %c0_119 = arith.constant 0 : index
    %282 = vector.load %arg6[%c0_118, %c0_119] : memref<2x64xf32, #tpu.memory_space<vmem>>, vector<2x32xf32>
    tpu.vector_store %arg6[%c0_118, %c0_119], %260 {strides = array<i32>} : memref<2x64xf32, #tpu.memory_space<vmem>>, vector<2x32xf32>,
    %c0_120 = arith.constant 0 : index
    %c32_121 = arith.constant 32 : index
    %283 = vector.load %arg6[%c0_120, %c32_121] : memref<2x64xf32, #tpu.memory_space<vmem>>, vector<2x32xf32>
    tpu.vector_store %arg6[%c0_120, %c32_121], %281 {strides = array<i32>} : memref<2x64xf32, #tpu.memory_space<vmem>>, vector<2x32xf32>,
    %c0_122 = arith.constant 0 : index
    %c0_123 = arith.constant 0 : index
    %284 = vector.load %arg7[%c0_122, %c0_123] : memref<2x64xf32, #tpu.memory_space<vmem>>, vector<2x32xf32>
    tpu.vector_store %arg7[%c0_122, %c0_123], %257 {strides = array<i32>} : memref<2x64xf32, #tpu.memory_space<vmem>>, vector<2x32xf32>,
    %c0_124 = arith.constant 0 : index
    %c32_125 = arith.constant 32 : index
    %285 = vector.load %arg7[%c0_124, %c32_125] : memref<2x64xf32, #tpu.memory_space<vmem>>, vector<2x32xf32>
    tpu.vector_store %arg7[%c0_124, %c32_125], %278 {strides = array<i32>} : memref<2x64xf32, #tpu.memory_space<vmem>>, vector<2x32xf32>,
    %286 = arith.index_cast %c4_i32 : i32 to index
    %c0_126 = arith.constant 0 : index
    %c0_127 = arith.constant 0 : index
    %287 = vector.load %arg4[%286, %c0_126, %c0_127] : memref<8x2x32xf32, #tpu.memory_space<vmem>>, vector<1x2x32xf32>
    %288 = vector.shape_cast %287 : vector<1x2x32xf32> to vector<2x32xf32>
    %289 = vector.shape_cast %260 : vector<2x32xf32> to vector<1x2x32xf32>
    tpu.vector_store %arg4[%286, %c0_126, %c0_127], %289 {strides = array<i32>} : memref<8x2x32xf32, #tpu.memory_space<vmem>>, vector<1x2x32xf32>,
    %290 = arith.index_cast %236 : i32 to index
    %c0_128 = arith.constant 0 : index
    %c0_129 = arith.constant 0 : index
    %291 = vector.load %arg5[%290, %c0_128, %c0_129] : memref<8x2x32xf32, #tpu.memory_space<vmem>>, vector<1x2x32xf32>
    %292 = vector.shape_cast %291 : vector<1x2x32xf32> to vector<2x32xf32>
    %293 = vector.shape_cast %281 : vector<2x32xf32> to vector<1x2x32xf32>
    tpu.vector_store %arg5[%290, %c0_128, %c0_129], %293 {strides = array<i32>} : memref<8x2x32xf32, #tpu.memory_space<vmem>>, vector<1x2x32xf32>,
    %c5_i32 = arith.constant 5 : i32
    %c7_i32_130 = arith.constant 7 : i32
    %294 = arith.subi %c7_i32_130, %c5_i32 : i32
    %c0_131 = arith.constant 0 : index
    %c0_132 = arith.constant 0 : index
    %295 = vector.load %arg6[%c0_131, %c0_132] : memref<2x64xf32, #tpu.memory_space<vmem>>, vector<2x64xf32>
    %296 = arith.truncf %295 : vector<2x64xf32> to vector<2x64xbf16>
    %cst_133 = arith.constant dense<0.000000e+00> : vector<2x256xf32>
    %297 = tpu.matmul %296, %3, %cst_133 {dimension_numbers = #tpu.dot_dimension_numbers<[1], [0], [0], [1], [0, 0, 1, 1], [], []>} : vector<2x64xbf16>, vector<64x256xbf16>, vector<2x256xf32> -> vector<2x256xf32>
    %298 = arith.index_cast %c5_i32 : i32 to index
    %c0_134 = arith.constant 0 : index
    %c0_135 = arith.constant 0 : index
    %299 = vector.load %arg1[%298, %c0_134, %c0_135] : memref<8x2x128xf32, #tpu.memory_space<vmem>>, vector<1x2x128xf32>
    %300 = vector.shape_cast %299 : vector<1x2x128xf32> to vector<2x128xf32>
    %301 = vector.extract_strided_slice %297 {offsets = [0, 0], sizes = [2, 128], strides = [1, 1]} : vector<2x256xf32> to vector<2x128xf32>
    %302 = arith.addf %300, %301 : vector<2x128xf32>
    %303 = arith.negf %302 : vector<2x128xf32>
    %304 = math.exp %303 : vector<2x128xf32>
    %cst_136 = arith.constant 1.000000e+00 : f32
    %305 = vector.broadcast %cst_136 : f32 to vector<2x128xf32>
    %306 = arith.addf %305, %304 : vector<2x128xf32>
    %307 = arith.divf %305, %306 : vector<2x128xf32>
    %308 = math.tanh %302 : vector<2x128xf32>
    %309 = vector.extract_strided_slice %307 {offsets = [0, 32], sizes = [2, 32], strides = [1, 1]} : vector<2x128xf32> to vector<2x32xf32>
    %c0_137 = arith.constant 0 : index
    %c0_138 = arith.constant 0 : index
    %310 = vector.load %arg7[%c0_137, %c0_138] : memref<2x64xf32, #tpu.memory_space<vmem>>, vector<2x32xf32>
    %311 = arith.mulf %309, %310 : vector<2x32xf32>
    %312 = vector.extract_strided_slice %307 {offsets = [0, 0], sizes = [2, 32], strides = [1, 1]} : vector<2x128xf32> to vector<2x32xf32>
    %313 = vector.extract_strided_slice %308 {offsets = [0, 64], sizes = [2, 32], strides = [1, 1]} : vector<2x128xf32> to vector<2x32xf32>
    %314 = arith.mulf %312, %313 : vector<2x32xf32>
    %315 = arith.addf %311, %314 : vector<2x32xf32>
    %316 = vector.extract_strided_slice %307 {offsets = [0, 96], sizes = [2, 32], strides = [1, 1]} : vector<2x128xf32> to vector<2x32xf32>
    %317 = math.tanh %315 : vector<2x32xf32>
    %318 = arith.mulf %316, %317 : vector<2x32xf32>
    %319 = arith.index_cast %294 : i32 to index
    %c0_139 = arith.constant 0 : index
    %c0_140 = arith.constant 0 : index
    %320 = vector.load %arg2[%319, %c0_139, %c0_140] : memref<8x2x128xf32, #tpu.memory_space<vmem>>, vector<1x2x128xf32>
    %321 = vector.shape_cast %320 : vector<1x2x128xf32> to vector<2x128xf32>
    %322 = vector.extract_strided_slice %297 {offsets = [0, 128], sizes = [2, 128], strides = [1, 1]} : vector<2x256xf32> to vector<2x128xf32>
    %323 = arith.addf %321, %322 : vector<2x128xf32>
    %324 = arith.negf %323 : vector<2x128xf32>
    %325 = math.exp %324 : vector<2x128xf32>
    %cst_141 = arith.constant 1.000000e+00 : f32
    %326 = vector.broadcast %cst_141 : f32 to vector<2x128xf32>
    %327 = arith.addf %326, %325 : vector<2x128xf32>
    %328 = arith.divf %326, %327 : vector<2x128xf32>
    %329 = math.tanh %323 : vector<2x128xf32>
    %330 = vector.extract_strided_slice %328 {offsets = [0, 32], sizes = [2, 32], strides = [1, 1]} : vector<2x128xf32> to vector<2x32xf32>
    %c0_142 = arith.constant 0 : index
    %c32_143 = arith.constant 32 : index
    %331 = vector.load %arg7[%c0_142, %c32_143] : memref<2x64xf32, #tpu.memory_space<vmem>>, vector<2x32xf32>
    %332 = arith.mulf %330, %331 : vector<2x32xf32>
    %333 = vector.extract_strided_slice %328 {offsets = [0, 0], sizes = [2, 32], strides = [1, 1]} : vector<2x128xf32> to vector<2x32xf32>
    %334 = vector.extract_strided_slice %329 {offsets = [0, 64], sizes = [2, 32], strides = [1, 1]} : vector<2x128xf32> to vector<2x32xf32>
    %335 = arith.mulf %333, %334 : vector<2x32xf32>
    %336 = arith.addf %332, %335 : vector<2x32xf32>
    %337 = vector.extract_strided_slice %328 {offsets = [0, 96], sizes = [2, 32], strides = [1, 1]} : vector<2x128xf32> to vector<2x32xf32>
    %338 = math.tanh %336 : vector<2x32xf32>
    %339 = arith.mulf %337, %338 : vector<2x32xf32>
    %c0_144 = arith.constant 0 : index
    %c0_145 = arith.constant 0 : index
    %340 = vector.load %arg6[%c0_144, %c0_145] : memref<2x64xf32, #tpu.memory_space<vmem>>, vector<2x32xf32>
    tpu.vector_store %arg6[%c0_144, %c0_145], %318 {strides = array<i32>} : memref<2x64xf32, #tpu.memory_space<vmem>>, vector<2x32xf32>,
    %c0_146 = arith.constant 0 : index
    %c32_147 = arith.constant 32 : index
    %341 = vector.load %arg6[%c0_146, %c32_147] : memref<2x64xf32, #tpu.memory_space<vmem>>, vector<2x32xf32>
    tpu.vector_store %arg6[%c0_146, %c32_147], %339 {strides = array<i32>} : memref<2x64xf32, #tpu.memory_space<vmem>>, vector<2x32xf32>,
    %c0_148 = arith.constant 0 : index
    %c0_149 = arith.constant 0 : index
    %342 = vector.load %arg7[%c0_148, %c0_149] : memref<2x64xf32, #tpu.memory_space<vmem>>, vector<2x32xf32>
    tpu.vector_store %arg7[%c0_148, %c0_149], %315 {strides = array<i32>} : memref<2x64xf32, #tpu.memory_space<vmem>>, vector<2x32xf32>,
    %c0_150 = arith.constant 0 : index
    %c32_151 = arith.constant 32 : index
    %343 = vector.load %arg7[%c0_150, %c32_151] : memref<2x64xf32, #tpu.memory_space<vmem>>, vector<2x32xf32>
    tpu.vector_store %arg7[%c0_150, %c32_151], %336 {strides = array<i32>} : memref<2x64xf32, #tpu.memory_space<vmem>>, vector<2x32xf32>,
    %344 = arith.index_cast %c5_i32 : i32 to index
    %c0_152 = arith.constant 0 : index
    %c0_153 = arith.constant 0 : index
    %345 = vector.load %arg4[%344, %c0_152, %c0_153] : memref<8x2x32xf32, #tpu.memory_space<vmem>>, vector<1x2x32xf32>
    %346 = vector.shape_cast %345 : vector<1x2x32xf32> to vector<2x32xf32>
    %347 = vector.shape_cast %318 : vector<2x32xf32> to vector<1x2x32xf32>
    tpu.vector_store %arg4[%344, %c0_152, %c0_153], %347 {strides = array<i32>} : memref<8x2x32xf32, #tpu.memory_space<vmem>>, vector<1x2x32xf32>,
    %348 = arith.index_cast %294 : i32 to index
    %c0_154 = arith.constant 0 : index
    %c0_155 = arith.constant 0 : index
    %349 = vector.load %arg5[%348, %c0_154, %c0_155] : memref<8x2x32xf32, #tpu.memory_space<vmem>>, vector<1x2x32xf32>
    %350 = vector.shape_cast %349 : vector<1x2x32xf32> to vector<2x32xf32>
    %351 = vector.shape_cast %339 : vector<2x32xf32> to vector<1x2x32xf32>
    tpu.vector_store %arg5[%348, %c0_154, %c0_155], %351 {strides = array<i32>} : memref<8x2x32xf32, #tpu.memory_space<vmem>>, vector<1x2x32xf32>,
    %c6_i32 = arith.constant 6 : i32
    %c7_i32_156 = arith.constant 7 : i32
    %352 = arith.subi %c7_i32_156, %c6_i32 : i32
    %c0_157 = arith.constant 0 : index
    %c0_158 = arith.constant 0 : index
    %353 = vector.load %arg6[%c0_157, %c0_158] : memref<2x64xf32, #tpu.memory_space<vmem>>, vector<2x64xf32>
    %354 = arith.truncf %353 : vector<2x64xf32> to vector<2x64xbf16>
    %cst_159 = arith.constant dense<0.000000e+00> : vector<2x256xf32>
    %355 = tpu.matmul %354, %3, %cst_159 {dimension_numbers = #tpu.dot_dimension_numbers<[1], [0], [0], [1], [0, 0, 1, 1], [], []>} : vector<2x64xbf16>, vector<64x256xbf16>, vector<2x256xf32> -> vector<2x256xf32>
    %356 = arith.index_cast %c6_i32 : i32 to index
    %c0_160 = arith.constant 0 : index
    %c0_161 = arith.constant 0 : index
    %357 = vector.load %arg1[%356, %c0_160, %c0_161] : memref<8x2x128xf32, #tpu.memory_space<vmem>>, vector<1x2x128xf32>
    %358 = vector.shape_cast %357 : vector<1x2x128xf32> to vector<2x128xf32>
    %359 = vector.extract_strided_slice %355 {offsets = [0, 0], sizes = [2, 128], strides = [1, 1]} : vector<2x256xf32> to vector<2x128xf32>
    %360 = arith.addf %358, %359 : vector<2x128xf32>
    %361 = arith.negf %360 : vector<2x128xf32>
    %362 = math.exp %361 : vector<2x128xf32>
    %cst_162 = arith.constant 1.000000e+00 : f32
    %363 = vector.broadcast %cst_162 : f32 to vector<2x128xf32>
    %364 = arith.addf %363, %362 : vector<2x128xf32>
    %365 = arith.divf %363, %364 : vector<2x128xf32>
    %366 = math.tanh %360 : vector<2x128xf32>
    %367 = vector.extract_strided_slice %365 {offsets = [0, 32], sizes = [2, 32], strides = [1, 1]} : vector<2x128xf32> to vector<2x32xf32>
    %c0_163 = arith.constant 0 : index
    %c0_164 = arith.constant 0 : index
    %368 = vector.load %arg7[%c0_163, %c0_164] : memref<2x64xf32, #tpu.memory_space<vmem>>, vector<2x32xf32>
    %369 = arith.mulf %367, %368 : vector<2x32xf32>
    %370 = vector.extract_strided_slice %365 {offsets = [0, 0], sizes = [2, 32], strides = [1, 1]} : vector<2x128xf32> to vector<2x32xf32>
    %371 = vector.extract_strided_slice %366 {offsets = [0, 64], sizes = [2, 32], strides = [1, 1]} : vector<2x128xf32> to vector<2x32xf32>
    %372 = arith.mulf %370, %371 : vector<2x32xf32>
    %373 = arith.addf %369, %372 : vector<2x32xf32>
    %374 = vector.extract_strided_slice %365 {offsets = [0, 96], sizes = [2, 32], strides = [1, 1]} : vector<2x128xf32> to vector<2x32xf32>
    %375 = math.tanh %373 : vector<2x32xf32>
    %376 = arith.mulf %374, %375 : vector<2x32xf32>
    %377 = arith.index_cast %352 : i32 to index
    %c0_165 = arith.constant 0 : index
    %c0_166 = arith.constant 0 : index
    %378 = vector.load %arg2[%377, %c0_165, %c0_166] : memref<8x2x128xf32, #tpu.memory_space<vmem>>, vector<1x2x128xf32>
    %379 = vector.shape_cast %378 : vector<1x2x128xf32> to vector<2x128xf32>
    %380 = vector.extract_strided_slice %355 {offsets = [0, 128], sizes = [2, 128], strides = [1, 1]} : vector<2x256xf32> to vector<2x128xf32>
    %381 = arith.addf %379, %380 : vector<2x128xf32>
    %382 = arith.negf %381 : vector<2x128xf32>
    %383 = math.exp %382 : vector<2x128xf32>
    %cst_167 = arith.constant 1.000000e+00 : f32
    %384 = vector.broadcast %cst_167 : f32 to vector<2x128xf32>
    %385 = arith.addf %384, %383 : vector<2x128xf32>
    %386 = arith.divf %384, %385 : vector<2x128xf32>
    %387 = math.tanh %381 : vector<2x128xf32>
    %388 = vector.extract_strided_slice %386 {offsets = [0, 32], sizes = [2, 32], strides = [1, 1]} : vector<2x128xf32> to vector<2x32xf32>
    %c0_168 = arith.constant 0 : index
    %c32_169 = arith.constant 32 : index
    %389 = vector.load %arg7[%c0_168, %c32_169] : memref<2x64xf32, #tpu.memory_space<vmem>>, vector<2x32xf32>
    %390 = arith.mulf %388, %389 : vector<2x32xf32>
    %391 = vector.extract_strided_slice %386 {offsets = [0, 0], sizes = [2, 32], strides = [1, 1]} : vector<2x128xf32> to vector<2x32xf32>
    %392 = vector.extract_strided_slice %387 {offsets = [0, 64], sizes = [2, 32], strides = [1, 1]} : vector<2x128xf32> to vector<2x32xf32>
    %393 = arith.mulf %391, %392 : vector<2x32xf32>
    %394 = arith.addf %390, %393 : vector<2x32xf32>
    %395 = vector.extract_strided_slice %386 {offsets = [0, 96], sizes = [2, 32], strides = [1, 1]} : vector<2x128xf32> to vector<2x32xf32>
    %396 = math.tanh %394 : vector<2x32xf32>
    %397 = arith.mulf %395, %396 : vector<2x32xf32>
    %c0_170 = arith.constant 0 : index
    %c0_171 = arith.constant 0 : index
    %398 = vector.load %arg6[%c0_170, %c0_171] : memref<2x64xf32, #tpu.memory_space<vmem>>, vector<2x32xf32>
    tpu.vector_store %arg6[%c0_170, %c0_171], %376 {strides = array<i32>} : memref<2x64xf32, #tpu.memory_space<vmem>>, vector<2x32xf32>,
    %c0_172 = arith.constant 0 : index
    %c32_173 = arith.constant 32 : index
    %399 = vector.load %arg6[%c0_172, %c32_173] : memref<2x64xf32, #tpu.memory_space<vmem>>, vector<2x32xf32>
    tpu.vector_store %arg6[%c0_172, %c32_173], %397 {strides = array<i32>} : memref<2x64xf32, #tpu.memory_space<vmem>>, vector<2x32xf32>,
    %c0_174 = arith.constant 0 : index
    %c0_175 = arith.constant 0 : index
    %400 = vector.load %arg7[%c0_174, %c0_175] : memref<2x64xf32, #tpu.memory_space<vmem>>, vector<2x32xf32>
    tpu.vector_store %arg7[%c0_174, %c0_175], %373 {strides = array<i32>} : memref<2x64xf32, #tpu.memory_space<vmem>>, vector<2x32xf32>,
    %c0_176 = arith.constant 0 : index
    %c32_177 = arith.constant 32 : index
    %401 = vector.load %arg7[%c0_176, %c32_177] : memref<2x64xf32, #tpu.memory_space<vmem>>, vector<2x32xf32>
    tpu.vector_store %arg7[%c0_176, %c32_177], %394 {strides = array<i32>} : memref<2x64xf32, #tpu.memory_space<vmem>>, vector<2x32xf32>,
    %402 = arith.index_cast %c6_i32 : i32 to index
    %c0_178 = arith.constant 0 : index
    %c0_179 = arith.constant 0 : index
    %403 = vector.load %arg4[%402, %c0_178, %c0_179] : memref<8x2x32xf32, #tpu.memory_space<vmem>>, vector<1x2x32xf32>
    %404 = vector.shape_cast %403 : vector<1x2x32xf32> to vector<2x32xf32>
    %405 = vector.shape_cast %376 : vector<2x32xf32> to vector<1x2x32xf32>
    tpu.vector_store %arg4[%402, %c0_178, %c0_179], %405 {strides = array<i32>} : memref<8x2x32xf32, #tpu.memory_space<vmem>>, vector<1x2x32xf32>,
    %406 = arith.index_cast %352 : i32 to index
    %c0_180 = arith.constant 0 : index
    %c0_181 = arith.constant 0 : index
    %407 = vector.load %arg5[%406, %c0_180, %c0_181] : memref<8x2x32xf32, #tpu.memory_space<vmem>>, vector<1x2x32xf32>
    %408 = vector.shape_cast %407 : vector<1x2x32xf32> to vector<2x32xf32>
    %409 = vector.shape_cast %397 : vector<2x32xf32> to vector<1x2x32xf32>
    tpu.vector_store %arg5[%406, %c0_180, %c0_181], %409 {strides = array<i32>} : memref<8x2x32xf32, #tpu.memory_space<vmem>>, vector<1x2x32xf32>,
    %c7_i32_182 = arith.constant 7 : i32
    %c7_i32_183 = arith.constant 7 : i32
    %410 = arith.subi %c7_i32_183, %c7_i32_182 : i32
    %c0_184 = arith.constant 0 : index
    %c0_185 = arith.constant 0 : index
    %411 = vector.load %arg6[%c0_184, %c0_185] : memref<2x64xf32, #tpu.memory_space<vmem>>, vector<2x64xf32>
    %412 = arith.truncf %411 : vector<2x64xf32> to vector<2x64xbf16>
    %cst_186 = arith.constant dense<0.000000e+00> : vector<2x256xf32>
    %413 = tpu.matmul %412, %3, %cst_186 {dimension_numbers = #tpu.dot_dimension_numbers<[1], [0], [0], [1], [0, 0, 1, 1], [], []>} : vector<2x64xbf16>, vector<64x256xbf16>, vector<2x256xf32> -> vector<2x256xf32>
    %414 = arith.index_cast %c7_i32_182 : i32 to index
    %c0_187 = arith.constant 0 : index
    %c0_188 = arith.constant 0 : index
    %415 = vector.load %arg1[%414, %c0_187, %c0_188] : memref<8x2x128xf32, #tpu.memory_space<vmem>>, vector<1x2x128xf32>
    %416 = vector.shape_cast %415 : vector<1x2x128xf32> to vector<2x128xf32>
    %417 = vector.extract_strided_slice %413 {offsets = [0, 0], sizes = [2, 128], strides = [1, 1]} : vector<2x256xf32> to vector<2x128xf32>
    %418 = arith.addf %416, %417 : vector<2x128xf32>
    %419 = arith.negf %418 : vector<2x128xf32>
    %420 = math.exp %419 : vector<2x128xf32>
    %cst_189 = arith.constant 1.000000e+00 : f32
    %421 = vector.broadcast %cst_189 : f32 to vector<2x128xf32>
    %422 = arith.addf %421, %420 : vector<2x128xf32>
    %423 = arith.divf %421, %422 : vector<2x128xf32>
    %424 = math.tanh %418 : vector<2x128xf32>
    %425 = vector.extract_strided_slice %423 {offsets = [0, 32], sizes = [2, 32], strides = [1, 1]} : vector<2x128xf32> to vector<2x32xf32>
    %c0_190 = arith.constant 0 : index
    %c0_191 = arith.constant 0 : index
    %426 = vector.load %arg7[%c0_190, %c0_191] : memref<2x64xf32, #tpu.memory_space<vmem>>, vector<2x32xf32>
    %427 = arith.mulf %425, %426 : vector<2x32xf32>
    %428 = vector.extract_strided_slice %423 {offsets = [0, 0], sizes = [2, 32], strides = [1, 1]} : vector<2x128xf32> to vector<2x32xf32>
    %429 = vector.extract_strided_slice %424 {offsets = [0, 64], sizes = [2, 32], strides = [1, 1]} : vector<2x128xf32> to vector<2x32xf32>
    %430 = arith.mulf %428, %429 : vector<2x32xf32>
    %431 = arith.addf %427, %430 : vector<2x32xf32>
    %432 = vector.extract_strided_slice %423 {offsets = [0, 96], sizes = [2, 32], strides = [1, 1]} : vector<2x128xf32> to vector<2x32xf32>
    %433 = math.tanh %431 : vector<2x32xf32>
    %434 = arith.mulf %432, %433 : vector<2x32xf32>
    %435 = arith.index_cast %410 : i32 to index
    %c0_192 = arith.constant 0 : index
    %c0_193 = arith.constant 0 : index
    %436 = vector.load %arg2[%435, %c0_192, %c0_193] : memref<8x2x128xf32, #tpu.memory_space<vmem>>, vector<1x2x128xf32>
    %437 = vector.shape_cast %436 : vector<1x2x128xf32> to vector<2x128xf32>
    %438 = vector.extract_strided_slice %413 {offsets = [0, 128], sizes = [2, 128], strides = [1, 1]} : vector<2x256xf32> to vector<2x128xf32>
    %439 = arith.addf %437, %438 : vector<2x128xf32>
    %440 = arith.negf %439 : vector<2x128xf32>
    %441 = math.exp %440 : vector<2x128xf32>
    %cst_194 = arith.constant 1.000000e+00 : f32
    %442 = vector.broadcast %cst_194 : f32 to vector<2x128xf32>
    %443 = arith.addf %442, %441 : vector<2x128xf32>
    %444 = arith.divf %442, %443 : vector<2x128xf32>
    %445 = math.tanh %439 : vector<2x128xf32>
    %446 = vector.extract_strided_slice %444 {offsets = [0, 32], sizes = [2, 32], strides = [1, 1]} : vector<2x128xf32> to vector<2x32xf32>
    %c0_195 = arith.constant 0 : index
    %c32_196 = arith.constant 32 : index
    %447 = vector.load %arg7[%c0_195, %c32_196] : memref<2x64xf32, #tpu.memory_space<vmem>>, vector<2x32xf32>
    %448 = arith.mulf %446, %447 : vector<2x32xf32>
    %449 = vector.extract_strided_slice %444 {offsets = [0, 0], sizes = [2, 32], strides = [1, 1]} : vector<2x128xf32> to vector<2x32xf32>
    %450 = vector.extract_strided_slice %445 {offsets = [0, 64], sizes = [2, 32], strides = [1, 1]} : vector<2x128xf32> to vector<2x32xf32>
    %451 = arith.mulf %449, %450 : vector<2x32xf32>
    %452 = arith.addf %448, %451 : vector<2x32xf32>
    %453 = vector.extract_strided_slice %444 {offsets = [0, 96], sizes = [2, 32], strides = [1, 1]} : vector<2x128xf32> to vector<2x32xf32>
    %454 = math.tanh %452 : vector<2x32xf32>
    %455 = arith.mulf %453, %454 : vector<2x32xf32>
    %c0_197 = arith.constant 0 : index
    %c0_198 = arith.constant 0 : index
    %456 = vector.load %arg6[%c0_197, %c0_198] : memref<2x64xf32, #tpu.memory_space<vmem>>, vector<2x32xf32>
    tpu.vector_store %arg6[%c0_197, %c0_198], %434 {strides = array<i32>} : memref<2x64xf32, #tpu.memory_space<vmem>>, vector<2x32xf32>,
    %c0_199 = arith.constant 0 : index
    %c32_200 = arith.constant 32 : index
    %457 = vector.load %arg6[%c0_199, %c32_200] : memref<2x64xf32, #tpu.memory_space<vmem>>, vector<2x32xf32>
    tpu.vector_store %arg6[%c0_199, %c32_200], %455 {strides = array<i32>} : memref<2x64xf32, #tpu.memory_space<vmem>>, vector<2x32xf32>,
    %c0_201 = arith.constant 0 : index
    %c0_202 = arith.constant 0 : index
    %458 = vector.load %arg7[%c0_201, %c0_202] : memref<2x64xf32, #tpu.memory_space<vmem>>, vector<2x32xf32>
    tpu.vector_store %arg7[%c0_201, %c0_202], %431 {strides = array<i32>} : memref<2x64xf32, #tpu.memory_space<vmem>>, vector<2x32xf32>,
    %c0_203 = arith.constant 0 : index
    %c32_204 = arith.constant 32 : index
    %459 = vector.load %arg7[%c0_203, %c32_204] : memref<2x64xf32, #tpu.memory_space<vmem>>, vector<2x32xf32>
    tpu.vector_store %arg7[%c0_203, %c32_204], %452 {strides = array<i32>} : memref<2x64xf32, #tpu.memory_space<vmem>>, vector<2x32xf32>,
    %460 = arith.index_cast %c7_i32_182 : i32 to index
    %c0_205 = arith.constant 0 : index
    %c0_206 = arith.constant 0 : index
    %461 = vector.load %arg4[%460, %c0_205, %c0_206] : memref<8x2x32xf32, #tpu.memory_space<vmem>>, vector<1x2x32xf32>
    %462 = vector.shape_cast %461 : vector<1x2x32xf32> to vector<2x32xf32>
    %463 = vector.shape_cast %434 : vector<2x32xf32> to vector<1x2x32xf32>
    tpu.vector_store %arg4[%460, %c0_205, %c0_206], %463 {strides = array<i32>} : memref<8x2x32xf32, #tpu.memory_space<vmem>>, vector<1x2x32xf32>,
    %464 = arith.index_cast %410 : i32 to index
    %c0_207 = arith.constant 0 : index
    %c0_208 = arith.constant 0 : index
    %465 = vector.load %arg5[%464, %c0_207, %c0_208] : memref<8x2x32xf32, #tpu.memory_space<vmem>>, vector<1x2x32xf32>
    %466 = vector.shape_cast %465 : vector<1x2x32xf32> to vector<2x32xf32>
    %467 = vector.shape_cast %455 : vector<2x32xf32> to vector<1x2x32xf32>
    tpu.vector_store %arg5[%464, %c0_207, %c0_208], %467 {strides = array<i32>} : memref<8x2x32xf32, #tpu.memory_space<vmem>>, vector<1x2x32xf32>,
    %c8_i32 = arith.constant 8 : i32
    return
  }
  func.func @transform_0(%arg0: i32) -> (i32, i32, i32) {
    %c0_i32 = arith.constant 0 : i32
    %c0_i32_0 = arith.constant 0 : i32
    %c0_i32_1 = arith.constant 0 : i32
    return %arg0, %c0_i32, %c0_i32_0 : i32, i32, i32
  }
  func.func @transform_1(%arg0: i32) -> (i32, i32, i32) {
    %c0_i32 = arith.constant 0 : i32
    %0 = arith.subi %c0_i32, %arg0 : i32
    %c0_i32_0 = arith.constant 0 : i32
    %c0_i32_1 = arith.constant 0 : i32
    %c0_i32_2 = arith.constant 0 : i32
    return %0, %c0_i32_0, %c0_i32_1 : i32, i32, i32
  }
  func.func @transform_2(%arg0: i32) -> (i32, i32) {
    %c0_i32 = arith.constant 0 : i32
    %c0_i32_0 = arith.constant 0 : i32
    %c0_i32_1 = arith.constant 0 : i32
    return %c0_i32, %c0_i32_0 : i32, i32
  }
  func.func @transform_3(%arg0: i32) -> (i32, i32, i32) {
    %c0_i32 = arith.constant 0 : i32
    %c0_i32_0 = arith.constant 0 : i32
    %c0_i32_1 = arith.constant 0 : i32
    return %arg0, %c0_i32, %c0_i32_0 : i32, i32, i32
  }
  func.func @transform_4(%arg0: i32) -> (i32, i32, i32) {
    %c0_i32 = arith.constant 0 : i32
    %0 = arith.subi %c0_i32, %arg0 : i32
    %c0_i32_0 = arith.constant 0 : i32
    %c0_i32_1 = arith.constant 0 : i32
    %c0_i32_2 = arith.constant 0 : i32
    return %0, %c0_i32_0, %c0_i32_1 : i32, i32, i32
  }
}

</mosaic_0001>

<llo_original>
// kernel: forward.25
$region0: #{forward.25}
  #allocation0 [shape = 'u32[]', space=smem, size = 0x4, offset = 0x4, fixed_abs, tag = 'smem constant byte address 0x4 - core index']
  #allocation1 [shape = 'u32[72,128]{1,0:T(1,128)}', space=vmem, size = 0x9000, scoped, tag = 'internal scratch']
  #allocation2 [shape = 'f32[256,128]{1,0:T(8,128)}', space=vmem, size = 0x20000, scoped, tag = 'scratch operand']
  %s0 = inlined_call_operand.vmem [shape: bf16[1024,128], index: 0, kind: input, shape index: {}]
  %s1 = inlined_call_operand.vmem [shape: bf16[128,128], index: 1, kind: input, shape index: {}]
  %s2 = inlined_call_operand.vmem [shape: f32[1,128], index: 2, kind: input, shape index: {}]
  %s3 = inlined_call_operand.vmem [shape: f32[1024,128], index: 3, kind: output, shape index: {}]
  %s4 = sld [smem:[#allocation0]]
  $region53: #{forward.25} parent=0
    _
  %s6 = ssub.s32 1, %s4
  %s7 = scalar_select 0, %s6, %s4
  loop: start=0, step=1, limit=6
  $region2: #{forward.25} parent=0 // loop_pre_header
    _
  $region3: #{forward.25} parent=0 // loop_header
    %s9 = sphi 0, %s13
    %p10 = scmp.ge.s32.totalorder %s9, 6
    %s16 = sphi 0, %s35
    %s17 = sphi 0, %s31
    %s18 = sphi 0, %s27
    %s19 = sphi 0, %s16
    %s20 = sphi 0, %s17
    %s21 = sphi 0, %s18
    %s22 = sphi 0, %s19
    %s23 = sphi 0, %s20
    %s24 = sphi 0, %s21
    %s40 = sphi 0, %s42
    %s43 = sphi 0, %s40
    %s44 = sphi 0, %s43
    %s60 = sphi 0, %s44
    %s68 = sphi 0, %s70
    %s71 = sphi 0, %s68
    %s72 = sphi 0, %s71
    %s88 = sphi 0, %s72
    %s94 = sphi 0, %s96
    %s97 = sphi 0, %s94
    %s98 = sphi 0, %s97
    %s114 = sphi 0, %s98
    %s122 = sphi 0, %s124
    %s125 = sphi 0, %s122
    %s126 = sphi 0, %s125
    %s142 = sphi 0, %s126
  $region4: #{forward.25} parent=0 // loop_header_branch
    %12 = sbr.rel (%p10) target = $region8
  $region5: #{forward.25} parent=0 // loop_body
    %s14 = ssub.s32 %s9, 1
    %s15 = ssub.s32 %s9, 2
    %s25 = sadd.s32 1, %s18
    %p26 = scmp.ge.s32.totalorder %s25, 1
    %s27 = scalar_select %p26, 0, %s25
    %s28 = sadd.s32 1, %s17
    %s29 = scalar_select %p26, %s28, %s17
    %p30 = scmp.ge.s32.totalorder %s29, 1
    %s31 = scalar_select %p30, 0, %s29
    %s32 = sadd.s32 1, %s16
    %s33 = scalar_select %p30, %s32, %s16
    %p34 = scmp.ge.s32.totalorder %s33, 4
    %s35 = scalar_select %p34, 0, %s33
    %s36 = ssub.s32 %s16, %s35
    %s37 = ssub.s32 %s18, %s27
    %s38 = sor.u32 %s36, %s37
    %p39 = scmp.eq.s32.totalorder %s38, 0
    %s41 = sadd.s32 %s40, 1
    %s42 = scalar_select %p39, %s40, %s41
    %p45 = pneg %p39
    %p46 = scmp.eq.s32.totalorder %s9, 3
    %p47 = por %p45, %p46
    %p48 = scmp.ne.s32.totalorder %s40, %s43
    %p49 = scmp.eq.s32.totalorder %s9, 0
    %p50 = por %p48, %p49
    %p51 = scmp.ne.s32.totalorder %s40, %s43
    %p52 = scmp.eq.s32.totalorder %s14, 3
    %p53 = por %p51, %p52
    %p54 = scmp.ne.s32.totalorder %s43, %s44
    %p55 = scmp.eq.s32.totalorder %s14, 0
    %p56 = por %p54, %p55
    %p57 = scmp.ne.s32.totalorder %s43, %s44
    %p58 = scmp.eq.s32.totalorder %s15, 3
    %p59 = por %p57, %p58
    %p61 = scmp.ne.s32.totalorder %s44, %s60
    %p62 = scmp.eq.s32.totalorder %s15, 0
    %p63 = por %p61, %p62
    %s64 = ssub.s32 %s18, %s27
    %s65 = ssub.s32 %s17, %s31
    %s66 = sor.u32 %s64, %s65
    %p67 = scmp.eq.s32.totalorder %s66, 0
    %s69 = sadd.s32 %s68, 1
    %s70 = scalar_select %p67, %s68, %s69
    %p73 = pneg %p67
    %p74 = scmp.eq.s32.totalorder %s9, 3
    %p75 = por %p73, %p74
    %p76 = scmp.ne.s32.totalorder %s68, %s71
    %p77 = scmp.eq.s32.totalorder %s9, 0
    %p78 = por %p76, %p77
    %p79 = scmp.ne.s32.totalorder %s68, %s71
    %p80 = scmp.eq.s32.totalorder %s14, 3
    %p81 = por %p79, %p80
    %p82 = scmp.ne.s32.totalorder %s71, %s72
    %p83 = scmp.eq.s32.totalorder %s14, 0
    %p84 = por %p82, %p83
    %p85 = scmp.ne.s32.totalorder %s71, %s72
    %p86 = scmp.eq.s32.totalorder %s15, 3
    %p87 = por %p85, %p86
    %p89 = scmp.ne.s32.totalorder %s72, %s88
    %p90 = scmp.eq.s32.totalorder %s15, 0
    %p91 = por %p89, %p90
    %s92 = ssub.s32 %s17, %s31
    %p93 = scmp.eq.s32.totalorder %s92, 0
    %s95 = sadd.s32 %s94, 1
    %s96 = scalar_select %p93, %s94, %s95
    %p99 = pneg %p93
    %p100 = scmp.eq.s32.totalorder %s9, 3
    %p101 = por %p99, %p100
    %p102 = scmp.ne.s32.totalorder %s94, %s97
    %p103 = scmp.eq.s32.totalorder %s9, 0
    %p104 = por %p102, %p103
    %p105 = scmp.ne.s32.totalorder %s94, %s97
    %p106 = scmp.eq.s32.totalorder %s14, 3
    %p107 = por %p105, %p106
    %p108 = scmp.ne.s32.totalorder %s97, %s98
    %p109 = scmp.eq.s32.totalorder %s14, 0
    %p110 = por %p108, %p109
    %p111 = scmp.ne.s32.totalorder %s97, %s98
    %p112 = scmp.eq.s32.totalorder %s15, 3
    %p113 = por %p111, %p112
    %p115 = scmp.ne.s32.totalorder %s98, %s114
    %p116 = scmp.eq.s32.totalorder %s15, 0
    %p117 = por %p115, %p116
    %s118 = ssub.s32 %s16, %s35
    %s119 = ssub.s32 %s17, %s31
    %s120 = sor.u32 %s118, %s119
    %p121 = scmp.eq.s32.totalorder %s120, 0
    %s123 = sadd.s32 %s122, 1
    %s124 = scalar_select %p121, %s122, %s123
    %p127 = pneg %p121
    %p128 = scmp.eq.s32.totalorder %s9, 3
    %p129 = por %p127, %p128
    %p130 = scmp.ne.s32.totalorder %s122, %s125
    %p131 = scmp.eq.s32.totalorder %s9, 0
    %p132 = por %p130, %p131
    %p133 = scmp.ne.s32.totalorder %s122, %s125
    %p134 = scmp.eq.s32.totalorder %s14, 3
    %p135 = por %p133, %p134
    %p136 = scmp.ne.s32.totalorder %s125, %s126
    %p137 = scmp.eq.s32.totalorder %s14, 0
    %p138 = por %p136, %p137
    %p139 = scmp.ne.s32.totalorder %s125, %s126
    %p140 = scmp.eq.s32.totalorder %s15, 3
    %p141 = por %p139, %p140
    %p143 = scmp.ne.s32.totalorder %s126, %s142
    %p144 = scmp.eq.s32.totalorder %s15, 0
    %p145 = por %p143, %p144
    %p146 = scmp.le.s32.totalorder 1, %s9
    %p147 = scmp.lt.s32.totalorder %s9, 5
    %p148 = pnand %p146, %p147
    %p149 = pneg %p148
    // Predicated region
    $region9: #{forward.25} parent=5 // pred_check
      _
    $region10: #{forward.25} parent=5 // pred_check_branch
      %151 = sbr.rel (%p148) target = $region12
    $region11: #{forward.25} parent=5 // pred_region
      %s152 = ssub.s32 %s9, 1
      // Predicated region
      $region13: #{forward.25} parent=11 // pred_check
        %p153 = pneg %p84
      $region14: #{forward.25} parent=11 // pred_check_branch
        %155 = sbr.rel (%p153) target = $region16
      $region15: #{forward.25} parent=11 // pred_region
        %s156 = smul.u32 16, %s21
        %p157 = scmp.lt.s32.totalorder %s156, 15
        %s158 = scalar_select %p157, %s156, 15
        %p159 = scmp.lt.s32.totalorder %s20, 0
        %s160 = scalar_select %p159, %s20, 0
        %s161 = sadd.s32 %s160, %s158
        %s162 = smul.addr %s161, 4
        %s163 = scalar_lea.vmem %s1, %s162
        %s164 = smul.u32 16, %s21
      $region16: #{forward.25} parent=11 // pred_fallthru
        _
      // Predicated region
      $region17: #{forward.25} parent=11 // pred_check
        %p165 = pneg %p110
      $region18: #{forward.25} parent=11 // pred_check_branch
        %167 = sbr.rel (%p165) target = $region20
      $region19: #{forward.25} parent=11 // pred_region
        %p168 = scmp.lt.s32.totalorder %s20, 0
        %s169 = scalar_select %p168, %s20, 0
        %s170 = scalar_lea.vmem %s2, %s169
      $region20: #{forward.25} parent=11 // pred_fallthru
        _
    $region12: #{forward.25} parent=5 // pred_fallthru
      _
    %p171 = scmp.lt.s32.totalorder %s9, 4
    // Predicated region
    $region21: #{forward.25} parent=5 // pred_check
      %p172 = pneg %p171
    $region22: #{forward.25} parent=5 // pred_check_branch
      %174 = sbr.rel (%p172) target = $region24
    $region23: #{forward.25} parent=5 // pred_region
      // Predicated region
      $region25: #{forward.25} parent=23 // pred_check
        %p175 = pneg %p50
      $region26: #{forward.25} parent=23 // pred_check_branch
        %177 = sbr.rel (%p175) target = $region28
      $region27: #{forward.25} parent=23 // pred_region
        %s178 = smul.u32 32, %s16
        %p179 = scmp.lt.s32.totalorder %s178, 127
        %s180 = scalar_select %p179, %s178, 127
        %p181 = scmp.lt.s32.totalorder %s18, 0
        %s182 = scalar_select %p181, %s18, 0
        %s183 = sadd.s32 %s182, %s180
        %s184 = smul.addr %s183, 4
        %s185 = scalar_lea.vmem %s0, %s184
        %s186 = smul.u32 32, %s16
      $region28: #{forward.25} parent=23 // pred_fallthru
        _
    $region24: #{forward.25} parent=5 // pred_fallthru
      _
    %p187 = scmp.le.s32.totalorder 1, %s9
    %p188 = scmp.lt.s32.totalorder %s9, 5
    %p189 = pnand %p187, %p188
    %p190 = pneg %p189
    // Predicated region
    $region29: #{forward.25} parent=5 // pred_check
      _
    $region30: #{forward.25} parent=5 // pred_check_branch
      %192 = sbr.rel (%p189) target = $region32
    $region31: #{forward.25} parent=5 // pred_region
      %s193 = ssub.s32 %s9, 1
      %s194 = smul.u32 32, %s19
      %p195 = scmp.lt.s32.totalorder %s194, 127
      %s196 = scalar_select %p195, %s194, 127
      %p197 = scmp.lt.s32.totalorder %s21, 0
      %s198 = scalar_select %p197, %s21, 0
      %s199 = sadd.s32 %s198, %s196
      %s200 = smul.addr %s199, 4
      %s201 = scalar_lea.vmem %s0, %s200
      %p202 = pneg %p56
      %p203 = pneg %p53
      %s204 = smul.u32 16, %s21
      %p205 = scmp.lt.s32.totalorder %s204, 15
      %s206 = scalar_select %p205, %s204, 15
      %p207 = scmp.lt.s32.totalorder %s20, 0
      %s208 = scalar_select %p207, %s20, 0
      %s209 = sadd.s32 %s208, %s206
      %s210 = smul.addr %s209, 4
      %s211 = scalar_lea.vmem %s1, %s210
      %p212 = pneg %p84
      %p213 = pneg %p81
      %p214 = scmp.lt.s32.totalorder %s20, 0
      %s215 = scalar_select %p214, %s20, 0
      %s216 = scalar_lea.vmem %s2, %s215
      %p217 = pneg %p110
      %p218 = pneg %p107
      %p219 = pneg %p138
      %p220 = pneg %p135
      %s221 = smul.u32 32, %s19
      %p222 = scmp.lt.s32.totalorder %s221, 127
      %s223 = scalar_select %p222, %s221, 127
      %p224 = scmp.lt.s32.totalorder %s20, 0
      %s225 = scalar_select %p224, %s20, 0
      %s226 = sadd.s32 %s225, %s223
      %s227 = smul.addr %s226, 8
      %s228 = scalar_lea.vmem %s3, %s227
      %s229 = smul.u32 32, %s19
      %p230 = scmp.lt.s32.totalorder %s229, 127
      %s231 = scalar_select %p230, %s229, 127
      %p232 = scmp.lt.s32.totalorder %s21, 0
      %s233 = scalar_select %p232, %s21, 0
      %s234 = sadd.s32 %s233, %s231
      %s235 = smul.addr %s234, 4
      %s236 = scalar_lea.vmem %s0, %s235
      %s237 = smul.u32 32, %s19
      %s238 = smul.u32 16, %s21
      %p239 = scmp.lt.s32.totalorder %s238, 15
      %s240 = scalar_select %p239, %s238, 15
      %p241 = scmp.lt.s32.totalorder %s20, 0
      %s242 = scalar_select %p241, %s20, 0
      %s243 = sadd.s32 %s242, %s240
      %s244 = smul.addr %s243, 4
      %s245 = scalar_lea.vmem %s1, %s244
      %s246 = smul.u32 16, %s21
      %p247 = scmp.lt.s32.totalorder %s20, 0
      %s248 = scalar_select %p247, %s20, 0
      %s249 = scalar_lea.vmem %s2, %s248
      %s250 = smul.u32 32, %s19
      %p251 = scmp.lt.s32.totalorder %s250, 127
      %s252 = scalar_select %p251, %s250, 127
      %p253 = scmp.lt.s32.totalorder %s20, 0
      %s254 = scalar_select %p253, %s20, 0
      %s255 = sadd.s32 %s254, %s252
      %s256 = smul.addr %s255, 8
      %s257 = scalar_lea.vmem %s3, %s256
      %s258 = smul.u32 32, %s19
      %p259 = scmp.eq.s32.totalorder %s21, 0
      // Predicated region
      $region33: #{forward.25} parent=31 // pred_check
        %p260 = pneg %p259
      $region34: #{forward.25} parent=31 // pred_check_branch
        %262 = sbr.rel (%p260) target = $region36
      $region35: #{forward.25} parent=31 // pred_region
        %263 = vst [vmem:[#allocation2] sm:$0xff] 0.0
        %264 = vst [vmem:[#allocation2 + $0x8] sm:$0xff] 0.0
        %265 = vst [vmem:[#allocation2 + $0x10] sm:$0xff] 0.0
        %266 = vst [vmem:[#allocation2 + $0x18] sm:$0xff] 0.0
        %267 = vst [vmem:[#allocation2 + $0x20] sm:$0xff] 0.0
        %268 = vst [vmem:[#allocation2 + $0x28] sm:$0xff] 0.0
        %269 = vst [vmem:[#allocation2 + $0x30] sm:$0xff] 0.0
        %270 = vst [vmem:[#allocation2 + $0x38] sm:$0xff] 0.0
        %271 = vst [vmem:[#allocation2 + $0x40] sm:$0xff] 0.0
        %272 = vst [vmem:[#allocation2 + $0x48] sm:$0xff] 0.0
        %273 = vst [vmem:[#allocation2 + $0x50] sm:$0xff] 0.0
        %274 = vst [vmem:[#allocation2 + $0x58] sm:$0xff] 0.0
        %275 = vst [vmem:[#allocation2 + $0x60] sm:$0xff] 0.0
        %276 = vst [vmem:[#allocation2 + $0x68] sm:$0xff] 0.0
        %277 = vst [vmem:[#allocation2 + $0x70] sm:$0xff] 0.0
        %278 = vst [vmem:[#allocation2 + $0x78] sm:$0xff] 0.0
        %279 = vst [vmem:[#allocation2 + $0x80] sm:$0xff] 0.0
        %280 = vst [vmem:[#allocation2 + $0x88] sm:$0xff] 0.0
        %281 = vst [vmem:[#allocation2 + $0x90] sm:$0xff] 0.0
        %282 = vst [vmem:[#allocation2 + $0x98] sm:$0xff] 0.0
        %283 = vst [vmem:[#allocation2 + $0xa0] sm:$0xff] 0.0
        %284 = vst [vmem:[#allocation2 + $0xa8] sm:$0xff] 0.0
        %285 = vst [vmem:[#allocation2 + $0xb0] sm:$0xff] 0.0
        %286 = vst [vmem:[#allocation2 + $0xb8] sm:$0xff] 0.0
        %287 = vst [vmem:[#allocation2 + $0xc0] sm:$0xff] 0.0
        %288 = vst [vmem:[#allocation2 + $0xc8] sm:$0xff] 0.0
        %289 = vst [vmem:[#allocation2 + $0xd0] sm:$0xff] 0.0
        %290 = vst [vmem:[#allocation2 + $0xd8] sm:$0xff] 0.0
        %291 = vst [vmem:[#allocation2 + $0xe0] sm:$0xff] 0.0
        %292 = vst [vmem:[#allocation2 + $0xe8] sm:$0xff] 0.0
        %293 = vst [vmem:[#allocation2 + $0xf0] sm:$0xff] 0.0
        %294 = vst [vmem:[#allocation2 + $0xf8] sm:$0xff] 0.0
      $region36: #{forward.25} parent=31 // pred_fallthru
        _
      %v295 = vld [vmem:[#allocation2] sm:$0xff]
      %v296 = vld [vmem:[#allocation2 + $0x8] sm:$0xff]
      %v297 = vld [vmem:[#allocation2 + $0x10] sm:$0xff]
      %v298 = vld [vmem:[#allocation2 + $0x18] sm:$0xff]
      %v299 = vld [vmem:[#allocation2 + $0x20] sm:$0xff]
      %v300 = vld [vmem:[#allocation2 + $0x28] sm:$0xff]
      %v301 = vld [vmem:[#allocation2 + $0x30] sm:$0xff]
      %v302 = vld [vmem:[#allocation2 + $0x38] sm:$0xff]
      %v303 = vld [vmem:[#allocation2 + $0x40] sm:$0xff]
      %v304 = vld [vmem:[#allocation2 + $0x48] sm:$0xff]
      %v305 = vld [vmem:[#allocation2 + $0x50] sm:$0xff]
      %v306 = vld [vmem:[#allocation2 + $0x58] sm:$0xff]
      %v307 = vld [vmem:[#allocation2 + $0x60] sm:$0xff]
      %v308 = vld [vmem:[#allocation2 + $0x68] sm:$0xff]
      %v309 = vld [vmem:[#allocation2 + $0x70] sm:$0xff]
      %v310 = vld [vmem:[#allocation2 + $0x78] sm:$0xff]
      %v311 = vld [vmem:[#allocation2 + $0x80] sm:$0xff]
      %v312 = vld [vmem:[#allocation2 + $0x88] sm:$0xff]
      %v313 = vld [vmem:[#allocation2 + $0x90] sm:$0xff]
      %v314 = vld [vmem:[#allocation2 + $0x98] sm:$0xff]
      %v315 = vld [vmem:[#allocation2 + $0xa0] sm:$0xff]
      %v316 = vld [vmem:[#allocation2 + $0xa8] sm:$0xff]
      %v317 = vld [vmem:[#allocation2 + $0xb0] sm:$0xff]
      %v318 = vld [vmem:[#allocation2 + $0xb8] sm:$0xff]
      %v319 = vld [vmem:[#allocation2 + $0xc0] sm:$0xff]
      %v320 = vld [vmem:[#allocation2 + $0xc8] sm:$0xff]
      %v321 = vld [vmem:[#allocation2 + $0xd0] sm:$0xff]
      %v322 = vld [vmem:[#allocation2 + $0xd8] sm:$0xff]
      %v323 = vld [vmem:[#allocation2 + $0xe0] sm:$0xff]
      %v324 = vld [vmem:[#allocation2 + $0xe8] sm:$0xff]
      %v325 = vld [vmem:[#allocation2 + $0xf0] sm:$0xff]
      %v326 = vld [vmem:[#allocation2 + $0xf8] sm:$0xff]
      %v327 = vld [vmem:[%s236] sm:$0xf]
      %v328 = vld [vmem:[%s236 + $0x4] sm:$0xf]
      %v329 = vld [vmem:[%s236 + $0x8] sm:$0xf]
      %v330 = vld [vmem:[%s236 + $0xc] sm:$0xf]
      %v331 = vld [vmem:[%s236 + $0x10] sm:$0xf]
      %v332 = vld [vmem:[%s236 + $0x14] sm:$0xf]
      %v333 = vld [vmem:[%s236 + $0x18] sm:$0xf]
      %v334 = vld [vmem:[%s236 + $0x1c] sm:$0xf]
      %v335 = vld [vmem:[%s236 + $0x20] sm:$0xf]
      %v336 = vld [vmem:[%s236 + $0x24] sm:$0xf]
      %v337 = vld [vmem:[%s236 + $0x28] sm:$0xf]
      %v338 = vld [vmem:[%s236 + $0x2c] sm:$0xf]
      %v339 = vld [vmem:[%s236 + $0x30] sm:$0xf]
      %v340 = vld [vmem:[%s236 + $0x34] sm:$0xf]
      %v341 = vld [vmem:[%s236 + $0x38] sm:$0xf]
      %v342 = vld [vmem:[%s236 + $0x3c] sm:$0xf]
      %v343 = vld [vmem:[%s236 + $0x40] sm:$0xf]
      %v344 = vld [vmem:[%s236 + $0x44] sm:$0xf]
      %v345 = vld [vmem:[%s236 + $0x48] sm:$0xf]
      %v346 = vld [vmem:[%s236 + $0x4c] sm:$0xf]
      %v347 = vld [vmem:[%s236 + $0x50] sm:$0xf]
      %v348 = vld [vmem:[%s236 + $0x54] sm:$0xf]
      %v349 = vld [vmem:[%s236 + $0x58] sm:$0xf]
      %v350 = vld [vmem:[%s236 + $0x5c] sm:$0xf]
      %v351 = vld [vmem:[%s236 + $0x60] sm:$0xf]
      %v352 = vld [vmem:[%s236 + $0x64] sm:$0xf]
      %v353 = vld [vmem:[%s236 + $0x68] sm:$0xf]
      %v354 = vld [vmem:[%s236 + $0x6c] sm:$0xf]
      %v355 = vld [vmem:[%s236 + $0x70] sm:$0xf]
      %v356 = vld [vmem:[%s236 + $0x74] sm:$0xf]
      %v357 = vld [vmem:[%s236 + $0x78] sm:$0xf]
      %v358 = vld [vmem:[%s236 + $0x7c] sm:$0xf]
      %v359 = vld [vmem:[%s245] sm:$0xf]
      %v360 = vld [vmem:[%s245 + $0x4] sm:$0xf]
      %v361 = vld [vmem:[%s245 + $0x8] sm:$0xf]
      %v362 = vld [vmem:[%s245 + $0xc] sm:$0xf]
      %v363 = vld [vmem:[%s245 + $0x10] sm:$0xf]
      %v364 = vld [vmem:[%s245 + $0x14] sm:$0xf]
      %v365 = vld [vmem:[%s245 + $0x18] sm:$0xf]
      %v366 = vld [vmem:[%s245 + $0x1c] sm:$0xf]
      %v367 = vld [vmem:[%s245 + $0x20] sm:$0xf]
      %v368 = vld [vmem:[%s245 + $0x24] sm:$0xf]
      %v369 = vld [vmem:[%s245 + $0x28] sm:$0xf]
      %v370 = vld [vmem:[%s245 + $0x2c] sm:$0xf]
      %v371 = vld [vmem:[%s245 + $0x30] sm:$0xf]
      %v372 = vld [vmem:[%s245 + $0x34] sm:$0xf]
      %v373 = vld [vmem:[%s245 + $0x38] sm:$0xf]
      %v374 = vld [vmem:[%s245 + $0x3c] sm:$0xf]
      %v407 = vunpack.c.l.b16 %v327
      %v408 = vunpack.c.l.b16 %v328
      %v409 = vunpack.c.l.b16 %v329
      %v410 = vunpack.c.l.b16 %v330
      %v411 = vunpack.c.l.b16 %v331
      %v412 = vunpack.c.l.b16 %v332
      %v413 = vunpack.c.l.b16 %v333
      %v414 = vunpack.c.l.b16 %v334
      %v415 = vunpack.c.l.b16 %v335
      %v416 = vunpack.c.l.b16 %v336
      %v417 = vunpack.c.l.b16 %v337
      %v418 = vunpack.c.l.b16 %v338
      %v419 = vunpack.c.l.b16 %v339
      %v420 = vunpack.c.l.b16 %v340
      %v421 = vunpack.c.l.b16 %v341
      %v422 = vunpack.c.l.b16 %v342
      %v423 = vunpack.c.l.b16 %v343
      %v424 = vunpack.c.l.b16 %v344
      %v425 = vunpack.c.l.b16 %v345
      %v426 = vunpack.c.l.b16 %v346
      %v427 = vunpack.c.l.b16 %v347
      %v428 = vunpack.c.l.b16 %v348
      %v429 = vunpack.c.l.b16 %v349
      %v430 = vunpack.c.l.b16 %v350
      %v431 = vunpack.c.l.b16 %v351
      %v432 = vunpack.c.l.b16 %v352
      %v433 = vunpack.c.l.b16 %v353
      %v434 = vunpack.c.l.b16 %v354
      %v435 = vunpack.c.l.b16 %v355
      %v436 = vunpack.c.l.b16 %v356
      %v437 = vunpack.c.l.b16 %v357
      %v438 = vunpack.c.l.b16 %v358
      %v439 = vpack.c.b16 %v408, %v407
      %v440 = vpack.c.b16 %v410, %v409
      %v441 = vpack.c.b16 %v412, %v411
      %v442 = vpack.c.b16 %v414, %v413
      %v443 = vpack.c.b16 %v416, %v415
      %v444 = vpack.c.b16 %v418, %v417
      %v445 = vpack.c.b16 %v420, %v419
      %v446 = vpack.c.b16 %v422, %v421
      %v447 = vpack.c.b16 %v424, %v423
      %v448 = vpack.c.b16 %v426, %v425
      %v449 = vpack.c.b16 %v428, %v427
      %v450 = vpack.c.b16 %v430, %v429
      %v451 = vpack.c.b16 %v432, %v431
      %v452 = vpack.c.b16 %v434, %v433
      %v453 = vpack.c.b16 %v436, %v435
      %v454 = vpack.c.b16 %v438, %v437
      %v487 = vunpack.c.l.b16 %v359
      %v488 = vunpack.c.l.b16 %v360
      %v489 = vunpack.c.l.b16 %v361
      %v490 = vunpack.c.l.b16 %v362
      %v491 = vunpack.c.l.b16 %v363
      %v492 = vunpack.c.l.b16 %v364
      %v493 = vunpack.c.l.b16 %v365
      %v494 = vunpack.c.l.b16 %v366
      %v495 = vunpack.c.l.b16 %v367
      %v496 = vunpack.c.l.b16 %v368
      %v497 = vunpack.c.l.b16 %v369
      %v498 = vunpack.c.l.b16 %v370
      %v499 = vunpack.c.l.b16 %v371
      %v500 = vunpack.c.l.b16 %v372
      %v501 = vunpack.c.l.b16 %v373
      %v502 = vunpack.c.l.b16 %v374
      %v503 = vpack.c.b16 %v488, %v487
      %v504 = vpack.c.b16 %v490, %v489
      %v505 = vpack.c.b16 %v492, %v491
      %v506 = vpack.c.b16 %v494, %v493
      %v507 = vpack.c.b16 %v496, %v495
      %v508 = vpack.c.b16 %v498, %v497
      %v509 = vpack.c.b16 %v500, %v499
      %v510 = vpack.c.b16 %v502, %v501
      %519 = vmatpush.bf16.msra.mxu0 %v510
      %520 = vmatpush.bf16.msra.mxu0 %v509
      %521 = vmatpush.bf16.msra.mxu0 %v508
      %522 = vmatpush.bf16.msra.mxu0 %v507
      %523 = vmatpush.bf16.msra.mxu0 %v506
      %524 = vmatpush.bf16.msra.mxu0 %v505
      %525 = vmatpush.bf16.msra.mxu0 %v504
      %526 = vmatpush.bf16.msra.mxu0 %v503
      %527 = vmatmul.bf16.gmra.mxu0 %v439
      %v528 = vpop.f32.mrf.mxu0
      %v529 = vadd.f32 0.0, %v528
      %v530 = vpop.f32.mrf.mxu0
      %v531 = vadd.f32 0.0, %v530
      %532 = vmatmul.bf16.gmra.mxu0 %v440
      %v533 = vpop.f32.mrf.mxu0
      %v534 = vadd.f32 0.0, %v533
      %v535 = vpop.f32.mrf.mxu0
      %v536 = vadd.f32 0.0, %v535
      %537 = vmatmul.bf16.gmra.mxu0 %v441
      %v538 = vpop.f32.mrf.mxu0
      %v539 = vadd.f32 0.0, %v538
      %v540 = vpop.f32.mrf.mxu0
      %v541 = vadd.f32 0.0, %v540
      %542 = vmatmul.bf16.gmra.mxu0 %v442
      %v543 = vpop.f32.mrf.mxu0
      %v544 = vadd.f32 0.0, %v543
      %v545 = vpop.f32.mrf.mxu0
      %v546 = vadd.f32 0.0, %v545
      %547 = vmatmul.bf16.gmra.mxu0 %v443
      %v548 = vpop.f32.mrf.mxu0
      %v549 = vadd.f32 0.0, %v548
      %v550 = vpop.f32.mrf.mxu0
      %v551 = vadd.f32 0.0, %v550
      %552 = vmatmul.bf16.gmra.mxu0 %v444
      %v553 = vpop.f32.mrf.mxu0
      %v554 = vadd.f32 0.0, %v553
      %v555 = vpop.f32.mrf.mxu0
      %v556 = vadd.f32 0.0, %v555
      %557 = vmatmul.bf16.gmra.mxu0 %v445
      %v558 = vpop.f32.mrf.mxu0
      %v559 = vadd.f32 0.0, %v558
      %v560 = vpop.f32.mrf.mxu0
      %v561 = vadd.f32 0.0, %v560
      %562 = vmatmul.bf16.gmra.mxu0 %v446
      %v563 = vpop.f32.mrf.mxu0
      %v564 = vadd.f32 0.0, %v563
      %v565 = vpop.f32.mrf.mxu0
      %v566 = vadd.f32 0.0, %v565
      %567 = vmatmul.bf16.gmra.mxu0 %v447
      %v568 = vpop.f32.mrf.mxu0
      %v569 = vadd.f32 0.0, %v568
      %v570 = vpop.f32.mrf.mxu0
      %v571 = vadd.f32 0.0, %v570
      %572 = vmatmul.bf16.gmra.mxu0 %v448
      %v573 = vpop.f32.mrf.mxu0
      %v574 = vadd.f32 0.0, %v573
      %v575 = vpop.f32.mrf.mxu0
      %v576 = vadd.f32 0.0, %v575
      %577 = vmatmul.bf16.gmra.mxu0 %v449
      %v578 = vpop.f32.mrf.mxu0
      %v579 = vadd.f32 0.0, %v578
      %v580 = vpop.f32.mrf.mxu0
      %v581 = vadd.f32 0.0, %v580
      %582 = vmatmul.bf16.gmra.mxu0 %v450
      %v583 = vpop.f32.mrf.mxu0
      %v584 = vadd.f32 0.0, %v583
      %v585 = vpop.f32.mrf.mxu0
      %v586 = vadd.f32 0.0, %v585
      %587 = vmatmul.bf16.gmra.mxu0 %v451
      %v588 = vpop.f32.mrf.mxu0
      %v589 = vadd.f32 0.0, %v588
      %v590 = vpop.f32.mrf.mxu0
      %v591 = vadd.f32 0.0, %v590
      %592 = vmatmul.bf16.gmra.mxu0 %v452
      %v593 = vpop.f32.mrf.mxu0
      %v594 = vadd.f32 0.0, %v593
      %v595 = vpop.f32.mrf.mxu0
      %v596 = vadd.f32 0.0, %v595
      %597 = vmatmul.bf16.gmra.mxu0 %v453
      %v598 = vpop.f32.mrf.mxu0
      %v599 = vadd.f32 0.0, %v598
      %v600 = vpop.f32.mrf.mxu0
      %v601 = vadd.f32 0.0, %v600
      %602 = vmatmul.bf16.gmra.mxu0 %v454
      %v603 = vpop.f32.mrf.mxu0
      %v604 = vadd.f32 0.0, %v603
      %v605 = vpop.f32.mrf.mxu0
      %v606 = vadd.f32 0.0, %v605
      %607 = vdwg.mxu0
      %v608 = vadd.f32 %v295, %v529
      %v609 = vadd.f32 %v296, %v531
      %v610 = vadd.f32 %v297, %v534
      %v611 = vadd.f32 %v298, %v536
      %v612 = vadd.f32 %v299, %v539
      %v613 = vadd.f32 %v300, %v541
      %v614 = vadd.f32 %v301, %v544
      %v615 = vadd.f32 %v302, %v546
      %v616 = vadd.f32 %v303, %v549
      %v617 = vadd.f32 %v304, %v551
      %v618 = vadd.f32 %v305, %v554
      %v619 = vadd.f32 %v306, %v556
      %v620 = vadd.f32 %v307, %v559
      %v621 = vadd.f32 %v308, %v561
      %v622 = vadd.f32 %v309, %v564
      %v623 = vadd.f32 %v310, %v566
      %v624 = vadd.f32 %v311, %v569
      %v625 = vadd.f32 %v312, %v571
      %v626 = vadd.f32 %v313, %v574
      %v627 = vadd.f32 %v314, %v576
      %v628 = vadd.f32 %v315, %v579
      %v629 = vadd.f32 %v316, %v581
      %v630 = vadd.f32 %v317, %v584
      %v631 = vadd.f32 %v318, %v586
      %v632 = vadd.f32 %v319, %v589
      %v633 = vadd.f32 %v320, %v591
      %v634 = vadd.f32 %v321, %v594
      %v635 = vadd.f32 %v322, %v596
      %v636 = vadd.f32 %v323, %v599
      %v637 = vadd.f32 %v324, %v601
      %v638 = vadd.f32 %v325, %v604
      %v639 = vadd.f32 %v326, %v606
      %640 = vst [vmem:[#allocation2] sm:$0xff] %v608
      %641 = vst [vmem:[#allocation2 + $0x8] sm:$0xff] %v609
      %642 = vst [vmem:[#allocation2 + $0x10] sm:$0xff] %v610
      %643 = vst [vmem:[#allocation2 + $0x18] sm:$0xff] %v611
      %644 = vst [vmem:[#allocation2 + $0x20] sm:$0xff] %v612
      %645 = vst [vmem:[#allocation2 + $0x28] sm:$0xff] %v613
      %646 = vst [vmem:[#allocation2 + $0x30] sm:$0xff] %v614
      %647 = vst [vmem:[#allocation2 + $0x38] sm:$0xff] %v615
      %648 = vst [vmem:[#allocation2 + $0x40] sm:$0xff] %v616
      %649 = vst [vmem:[#allocation2 + $0x48] sm:$0xff] %v617
      %650 = vst [vmem:[#allocation2 + $0x50] sm:$0xff] %v618
      %651 = vst [vmem:[#allocation2 + $0x58] sm:$0xff] %v619
      %652 = vst [vmem:[#allocation2 + $0x60] sm:$0xff] %v620
      %653 = vst [vmem:[#allocation2 + $0x68] sm:$0xff] %v621
      %654 = vst [vmem:[#allocation2 + $0x70] sm:$0xff] %v622
      %655 = vst [vmem:[#allocation2 + $0x78] sm:$0xff] %v623
      %656 = vst [vmem:[#allocation2 + $0x80] sm:$0xff] %v624
      %657 = vst [vmem:[#allocation2 + $0x88] sm:$0xff] %v625
      %658 = vst [vmem:[#allocation2 + $0x90] sm:$0xff] %v626
      %659 = vst [vmem:[#allocation2 + $0x98] sm:$0xff] %v627
      %660 = vst [vmem:[#allocation2 + $0xa0] sm:$0xff] %v628
      %661 = vst [vmem:[#allocation2 + $0xa8] sm:$0xff] %v629
      %662 = vst [vmem:[#allocation2 + $0xb0] sm:$0xff] %v630
      %663 = vst [vmem:[#allocation2 + $0xb8] sm:$0xff] %v631
      %664 = vst [vmem:[#allocation2 + $0xc0] sm:$0xff] %v632
      %665 = vst [vmem:[#allocation2 + $0xc8] sm:$0xff] %v633
      %666 = vst [vmem:[#allocation2 + $0xd0] sm:$0xff] %v634
      %667 = vst [vmem:[#allocation2 + $0xd8] sm:$0xff] %v635
      %668 = vst [vmem:[#allocation2 + $0xe0] sm:$0xff] %v636
      %669 = vst [vmem:[#allocation2 + $0xe8] sm:$0xff] %v637
      %670 = vst [vmem:[#allocation2 + $0xf0] sm:$0xff] %v638
      %671 = vst [vmem:[#allocation2 + $0xf8] sm:$0xff] %v639
      // Predicated region
      $region37: #{forward.25} parent=31 // pred_check
        %p672 = pneg %p259
      $region38: #{forward.25} parent=31 // pred_check_branch
        %674 = sbr.rel (%p672) target = $region40
      $region39: #{forward.25} parent=31 // pred_region
        %v675 = vld [vmem:[#allocation2] sm:$0xff]
        %v676 = vld [vmem:[#allocation2 + $0x8] sm:$0xff]
        %v677 = vld [vmem:[#allocation2 + $0x10] sm:$0xff]
        %v678 = vld [vmem:[#allocation2 + $0x18] sm:$0xff]
        %v679 = vld [vmem:[#allocation2 + $0x20] sm:$0xff]
        %v680 = vld [vmem:[#allocation2 + $0x28] sm:$0xff]
        %v681 = vld [vmem:[#allocation2 + $0x30] sm:$0xff]
        %v682 = vld [vmem:[#allocation2 + $0x38] sm:$0xff]
        %v683 = vld [vmem:[#allocation2 + $0x40] sm:$0xff]
        %v684 = vld [vmem:[#allocation2 + $0x48] sm:$0xff]
        %v685 = vld [vmem:[#allocation2 + $0x50] sm:$0xff]
        %v686 = vld [vmem:[#allocation2 + $0x58] sm:$0xff]
        %v687 = vld [vmem:[#allocation2 + $0x60] sm:$0xff]
        %v688 = vld [vmem:[#allocation2 + $0x68] sm:$0xff]
        %v689 = vld [vmem:[#allocation2 + $0x70] sm:$0xff]
        %v690 = vld [vmem:[#allocation2 + $0x78] sm:$0xff]
        %v691 = vld [vmem:[#allocation2 + $0x80] sm:$0xff]
        %v692 = vld [vmem:[#allocation2 + $0x88] sm:$0xff]
        %v693 = vld [vmem:[#allocation2 + $0x90] sm:$0xff]
        %v694 = vld [vmem:[#allocation2 + $0x98] sm:$0xff]
        %v695 = vld [vmem:[#allocation2 + $0xa0] sm:$0xff]
        %v696 = vld [vmem:[#allocation2 + $0xa8] sm:$0xff]
        %v697 = vld [vmem:[#allocation2 + $0xb0] sm:$0xff]
        %v698 = vld [vmem:[#allocation2 + $0xb8] sm:$0xff]
        %v699 = vld [vmem:[#allocation2 + $0xc0] sm:$0xff]
        %v700 = vld [vmem:[#allocation2 + $0xc8] sm:$0xff]
        %v701 = vld [vmem:[#allocation2 + $0xd0] sm:$0xff]
        %v702 = vld [vmem:[#allocation2 + $0xd8] sm:$0xff]
        %v703 = vld [vmem:[#allocation2 + $0xe0] sm:$0xff]
        %v704 = vld [vmem:[#allocation2 + $0xe8] sm:$0xff]
        %v705 = vld [vmem:[#allocation2 + $0xf0] sm:$0xff]
        %v706 = vld [vmem:[#allocation2 + $0xf8] sm:$0xff]
        %v707 = vld [vmem:[%s249] sm:$0x1]
        %v709 = vperm.slane %v707, 0
        %v711 = vadd.f32 %v675, %v709
        %v712 = vadd.f32 %v676, %v709
        %v713 = vadd.f32 %v677, %v709
        %v714 = vadd.f32 %v678, %v709
        %v715 = vadd.f32 %v679, %v709
        %v716 = vadd.f32 %v680, %v709
        %v717 = vadd.f32 %v681, %v709
        %v718 = vadd.f32 %v682, %v709
        %v719 = vadd.f32 %v683, %v709
        %v720 = vadd.f32 %v684, %v709
        %v721 = vadd.f32 %v685, %v709
        %v722 = vadd.f32 %v686, %v709
        %v723 = vadd.f32 %v687, %v709
        %v724 = vadd.f32 %v688, %v709
        %v725 = vadd.f32 %v689, %v709
        %v726 = vadd.f32 %v690, %v709
        %v727 = vadd.f32 %v691, %v709
        %v728 = vadd.f32 %v692, %v709
        %v729 = vadd.f32 %v693, %v709
        %v730 = vadd.f32 %v694, %v709
        %v731 = vadd.f32 %v695, %v709
        %v732 = vadd.f32 %v696, %v709
        %v733 = vadd.f32 %v697, %v709
        %v734 = vadd.f32 %v698, %v709
        %v735 = vadd.f32 %v699, %v709
        %v736 = vadd.f32 %v700, %v709
        %v737 = vadd.f32 %v701, %v709
        %v738 = vadd.f32 %v702, %v709
        %v739 = vadd.f32 %v703, %v709
        %v740 = vadd.f32 %v704, %v709
        %v741 = vadd.f32 %v705, %v709
        %v742 = vadd.f32 %v706, %v709
        %v743 = vmax.f32 %v711, 0.0
        %v744 = vmax.f32 %v712, 0.0
        %v745 = vmax.f32 %v713, 0.0
        %v746 = vmax.f32 %v714, 0.0
        %v747 = vmax.f32 %v715, 0.0
        %v748 = vmax.f32 %v716, 0.0
        %v749 = vmax.f32 %v717, 0.0
        %v750 = vmax.f32 %v718, 0.0
        %v751 = vmax.f32 %v719, 0.0
        %v752 = vmax.f32 %v720, 0.0
        %v753 = vmax.f32 %v721, 0.0
        %v754 = vmax.f32 %v722, 0.0
        %v755 = vmax.f32 %v723, 0.0
        %v756 = vmax.f32 %v724, 0.0
        %v757 = vmax.f32 %v725, 0.0
        %v758 = vmax.f32 %v726, 0.0
        %v759 = vmax.f32 %v727, 0.0
        %v760 = vmax.f32 %v728, 0.0
        %v761 = vmax.f32 %v729, 0.0
        %v762 = vmax.f32 %v730, 0.0
        %v763 = vmax.f32 %v731, 0.0
        %v764 = vmax.f32 %v732, 0.0
        %v765 = vmax.f32 %v733, 0.0
        %v766 = vmax.f32 %v734, 0.0
        %v767 = vmax.f32 %v735, 0.0
        %v768 = vmax.f32 %v736, 0.0
        %v769 = vmax.f32 %v737, 0.0
        %v770 = vmax.f32 %v738, 0.0
        %v771 = vmax.f32 %v739, 0.0
        %v772 = vmax.f32 %v740, 0.0
        %v773 = vmax.f32 %v741, 0.0
        %v774 = vmax.f32 %v742, 0.0
        %775 = vst [vmem:[%s257] sm:$0xff] %v743
        %776 = vst [vmem:[%s257 + $0x8] sm:$0xff] %v744
        %777 = vst [vmem:[%s257 + $0x10] sm:$0xff] %v745
        %778 = vst [vmem:[%s257 + $0x18] sm:$0xff] %v746
        %779 = vst [vmem:[%s257 + $0x20] sm:$0xff] %v747
        %780 = vst [vmem:[%s257 + $0x28] sm:$0xff] %v748
        %781 = vst [vmem:[%s257 + $0x30] sm:$0xff] %v749
        %782 = vst [vmem:[%s257 + $0x38] sm:$0xff] %v750
        %783 = vst [vmem:[%s257 + $0x40] sm:$0xff] %v751
        %784 = vst [vmem:[%s257 + $0x48] sm:$0xff] %v752
        %785 = vst [vmem:[%s257 + $0x50] sm:$0xff] %v753
        %786 = vst [vmem:[%s257 + $0x58] sm:$0xff] %v754
        %787 = vst [vmem:[%s257 + $0x60] sm:$0xff] %v755
        %788 = vst [vmem:[%s257 + $0x68] sm:$0xff] %v756
        %789 = vst [vmem:[%s257 + $0x70] sm:$0xff] %v757
        %790 = vst [vmem:[%s257 + $0x78] sm:$0xff] %v758
        %791 = vst [vmem:[%s257 + $0x80] sm:$0xff] %v759
        %792 = vst [vmem:[%s257 + $0x88] sm:$0xff] %v760
        %793 = vst [vmem:[%s257 + $0x90] sm:$0xff] %v761
        %794 = vst [vmem:[%s257 + $0x98] sm:$0xff] %v762
        %795 = vst [vmem:[%s257 + $0xa0] sm:$0xff] %v763
        %796 = vst [vmem:[%s257 + $0xa8] sm:$0xff] %v764
        %797 = vst [vmem:[%s257 + $0xb0] sm:$0xff] %v765
        %798 = vst [vmem:[%s257 + $0xb8] sm:$0xff] %v766
        %799 = vst [vmem:[%s257 + $0xc0] sm:$0xff] %v767
        %800 = vst [vmem:[%s257 + $0xc8] sm:$0xff] %v768
        %801 = vst [vmem:[%s257 + $0xd0] sm:$0xff] %v769
        %802 = vst [vmem:[%s257 + $0xd8] sm:$0xff] %v770
        %803 = vst [vmem:[%s257 + $0xe0] sm:$0xff] %v771
        %804 = vst [vmem:[%s257 + $0xe8] sm:$0xff] %v772
        %805 = vst [vmem:[%s257 + $0xf0] sm:$0xff] %v773
        %806 = vst [vmem:[%s257 + $0xf8] sm:$0xff] %v774
      $region40: #{forward.25} parent=31 // pred_fallthru
        _
      %s807 = smul.u32 32, %s19
      %p808 = scmp.lt.s32.totalorder %s807, 127
      %s809 = scalar_select %p808, %s807, 127
      %p810 = scmp.lt.s32.totalorder %s20, 0
      %s811 = scalar_select %p810, %s20, 0
      %s812 = sadd.s32 %s811, %s809
      %s813 = smul.addr %s812, 8
      %s814 = scalar_lea.vmem %s3, %s813
      // Predicated region
      $region41: #{forward.25} parent=31 // pred_check
        %p815 = pneg %p135
      $region42: #{forward.25} parent=31 // pred_check_branch
        %817 = sbr.rel (%p815) target = $region44
      $region43: #{forward.25} parent=31 // pred_region
        %s818 = smul.u32 32, %s19
      $region44: #{forward.25} parent=31 // pred_fallthru
        _
    $region32: #{forward.25} parent=5 // pred_fallthru
      _
    %p819 = scmp.le.s32.totalorder 2, %s9
    // Predicated region
    $region45: #{forward.25} parent=5 // pred_check
      %p820 = pneg %p819
    $region46: #{forward.25} parent=5 // pred_check_branch
      %822 = sbr.rel (%p820) target = $region48
    $region47: #{forward.25} parent=5 // pred_region
      %s823 = ssub.s32 %s9, 2
      // Predicated region
      $region49: #{forward.25} parent=47 // pred_check
        %p824 = pneg %p141
      $region50: #{forward.25} parent=47 // pred_check_branch
        %826 = sbr.rel (%p824) target = $region52
      $region51: #{forward.25} parent=47 // pred_region
        %s827 = smul.u32 32, %s22
        %p828 = scmp.lt.s32.totalorder %s827, 127
        %s829 = scalar_select %p828, %s827, 127
        %p830 = scmp.lt.s32.totalorder %s23, 0
        %s831 = scalar_select %p830, %s23, 0
        %s832 = sadd.s32 %s831, %s829
        %s833 = smul.addr %s832, 8
        %s834 = scalar_lea.vmem %s3, %s833
      $region52: #{forward.25} parent=47 // pred_fallthru
        _
    $region48: #{forward.25} parent=5 // pred_fallthru
      _
  $region6: #{forward.25} parent=0 // loop_footer
    %s13 = sadd.s32 1, %s9
  $region7: #{forward.25} parent=0 // loop_footer_branch
    %8 = sbr.rel target = $region3
  $region8: #{forward.25} parent=0 // loop_exit
    _

// kernel: forward.27
$region0: #{forward.27}
  #allocation0 [shape = 'u32[]', space=smem, size = 0x4, offset = 0x4, fixed_abs, tag = 'smem constant byte address 0x4 - core index']
  #allocation1 [shape = 'u32[72,128]{1,0:T(1,128)}', space=vmem, size = 0x9000, scoped, tag = 'internal scratch']
  #allocation2 [shape = 'f32[256,128]{1,0:T(8,128)}', space=vmem, size = 0x20000, scoped, tag = 'scratch operand']
  %s0 = inlined_call_operand.vmem [shape: bf16[1024,128], index: 0, kind: input, shape index: {}]
  %s1 = inlined_call_operand.vmem [shape: bf16[128,128], index: 1, kind: input, shape index: {}]
  %s2 = inlined_call_operand.vmem [shape: f32[1,128], index: 2, kind: input, shape index: {}]
  %s3 = inlined_call_operand.vmem [shape: f32[1024,128], index: 3, kind: input, shape index: {}]
  %s4 = inlined_call_operand.vmem [shape: f32[1024,128], index: 4, kind: output, shape index: {}]
  %s5 = sld [smem:[#allocation0]]
  $region57: #{forward.27} parent=0
    _
  %s7 = ssub.s32 1, %s5
  %s8 = scalar_select 0, %s7, %s5
  loop: start=0, step=1, limit=6
  $region2: #{forward.27} parent=0 // loop_pre_header
    _
  $region3: #{forward.27} parent=0 // loop_header
    %s10 = sphi 0, %s14
    %p11 = scmp.ge.s32.totalorder %s10, 6
    %s17 = sphi 0, %s36
    %s18 = sphi 0, %s32
    %s19 = sphi 0, %s28
    %s20 = sphi 0, %s17
    %s21 = sphi 0, %s18
    %s22 = sphi 0, %s19
    %s23 = sphi 0, %s20
    %s24 = sphi 0, %s21
    %s25 = sphi 0, %s22
    %s41 = sphi 0, %s43
    %s44 = sphi 0, %s41
    %s45 = sphi 0, %s44
    %s61 = sphi 0, %s45
    %s69 = sphi 0, %s71
    %s72 = sphi 0, %s69
    %s73 = sphi 0, %s72
    %s89 = sphi 0, %s73
    %s95 = sphi 0, %s97
    %s98 = sphi 0, %s95
    %s99 = sphi 0, %s98
    %s115 = sphi 0, %s99
    %s123 = sphi 0, %s125
    %s126 = sphi 0, %s123
    %s127 = sphi 0, %s126
    %s143 = sphi 0, %s127
    %s151 = sphi 0, %s153
    %s154 = sphi 0, %s151
    %s155 = sphi 0, %s154
    %s171 = sphi 0, %s155
  $region4: #{forward.27} parent=0 // loop_header_branch
    %13 = sbr.rel (%p11) target = $region8
  $region5: #{forward.27} parent=0 // loop_body
    %s15 = ssub.s32 %s10, 1
    %s16 = ssub.s32 %s10, 2
    %s26 = sadd.s32 1, %s19
    %p27 = scmp.ge.s32.totalorder %s26, 1
    %s28 = scalar_select %p27, 0, %s26
    %s29 = sadd.s32 1, %s18
    %s30 = scalar_select %p27, %s29, %s18
    %p31 = scmp.ge.s32.totalorder %s30, 1
    %s32 = scalar_select %p31, 0, %s30
    %s33 = sadd.s32 1, %s17
    %s34 = scalar_select %p31, %s33, %s17
    %p35 = scmp.ge.s32.totalorder %s34, 4
    %s36 = scalar_select %p35, 0, %s34
    %s37 = ssub.s32 %s17, %s36
    %s38 = ssub.s32 %s19, %s28
    %s39 = sor.u32 %s37, %s38
    %p40 = scmp.eq.s32.totalorder %s39, 0
    %s42 = sadd.s32 %s41, 1
    %s43 = scalar_select %p40, %s41, %s42
    %p46 = pneg %p40
    %p47 = scmp.eq.s32.totalorder %s10, 3
    %p48 = por %p46, %p47
    %p49 = scmp.ne.s32.totalorder %s41, %s44
    %p50 = scmp.eq.s32.totalorder %s10, 0
    %p51 = por %p49, %p50
    %p52 = scmp.ne.s32.totalorder %s41, %s44
    %p53 = scmp.eq.s32.totalorder %s15, 3
    %p54 = por %p52, %p53
    %p55 = scmp.ne.s32.totalorder %s44, %s45
    %p56 = scmp.eq.s32.totalorder %s15, 0
    %p57 = por %p55, %p56
    %p58 = scmp.ne.s32.totalorder %s44, %s45
    %p59 = scmp.eq.s32.totalorder %s16, 3
    %p60 = por %p58, %p59
    %p62 = scmp.ne.s32.totalorder %s45, %s61
    %p63 = scmp.eq.s32.totalorder %s16, 0
    %p64 = por %p62, %p63
    %s65 = ssub.s32 %s19, %s28
    %s66 = ssub.s32 %s18, %s32
    %s67 = sor.u32 %s65, %s66
    %p68 = scmp.eq.s32.totalorder %s67, 0
    %s70 = sadd.s32 %s69, 1
    %s71 = scalar_select %p68, %s69, %s70
    %p74 = pneg %p68
    %p75 = scmp.eq.s32.totalorder %s10, 3
    %p76 = por %p74, %p75
    %p77 = scmp.ne.s32.totalorder %s69, %s72
    %p78 = scmp.eq.s32.totalorder %s10, 0
    %p79 = por %p77, %p78
    %p80 = scmp.ne.s32.totalorder %s69, %s72
    %p81 = scmp.eq.s32.totalorder %s15, 3
    %p82 = por %p80, %p81
    %p83 = scmp.ne.s32.totalorder %s72, %s73
    %p84 = scmp.eq.s32.totalorder %s15, 0
    %p85 = por %p83, %p84
    %p86 = scmp.ne.s32.totalorder %s72, %s73
    %p87 = scmp.eq.s32.totalorder %s16, 3
    %p88 = por %p86, %p87
    %p90 = scmp.ne.s32.totalorder %s73, %s89
    %p91 = scmp.eq.s32.totalorder %s16, 0
    %p92 = por %p90, %p91
    %s93 = ssub.s32 %s18, %s32
    %p94 = scmp.eq.s32.totalorder %s93, 0
    %s96 = sadd.s32 %s95, 1
    %s97 = scalar_select %p94, %s95, %s96
    %p100 = pneg %p94
    %p101 = scmp.eq.s32.totalorder %s10, 3
    %p102 = por %p100, %p101
    %p103 = scmp.ne.s32.totalorder %s95, %s98
    %p104 = scmp.eq.s32.totalorder %s10, 0
    %p105 = por %p103, %p104
    %p106 = scmp.ne.s32.totalorder %s95, %s98
    %p107 = scmp.eq.s32.totalorder %s15, 3
    %p108 = por %p106, %p107
    %p109 = scmp.ne.s32.totalorder %s98, %s99
    %p110 = scmp.eq.s32.totalorder %s15, 0
    %p111 = por %p109, %p110
    %p112 = scmp.ne.s32.totalorder %s98, %s99
    %p113 = scmp.eq.s32.totalorder %s16, 3
    %p114 = por %p112, %p113
    %p116 = scmp.ne.s32.totalorder %s99, %s115
    %p117 = scmp.eq.s32.totalorder %s16, 0
    %p118 = por %p116, %p117
    %s119 = ssub.s32 %s17, %s36
    %s120 = ssub.s32 %s18, %s32
    %s121 = sor.u32 %s119, %s120
    %p122 = scmp.eq.s32.totalorder %s121, 0
    %s124 = sadd.s32 %s123, 1
    %s125 = scalar_select %p122, %s123, %s124
    %p128 = pneg %p122
    %p129 = scmp.eq.s32.totalorder %s10, 3
    %p130 = por %p128, %p129
    %p131 = scmp.ne.s32.totalorder %s123, %s126
    %p132 = scmp.eq.s32.totalorder %s10, 0
    %p133 = por %p131, %p132
    %p134 = scmp.ne.s32.totalorder %s123, %s126
    %p135 = scmp.eq.s32.totalorder %s15, 3
    %p136 = por %p134, %p135
    %p137 = scmp.ne.s32.totalorder %s126, %s127
    %p138 = scmp.eq.s32.totalorder %s15, 0
    %p139 = por %p137, %p138
    %p140 = scmp.ne.s32.totalorder %s126, %s127
    %p141 = scmp.eq.s32.totalorder %s16, 3
    %p142 = por %p140, %p141
    %p144 = scmp.ne.s32.totalorder %s127, %s143
    %p145 = scmp.eq.s32.totalorder %s16, 0
    %p146 = por %p144, %p145
    %s147 = ssub.s32 %s17, %s36
    %s148 = ssub.s32 %s18, %s32
    %s149 = sor.u32 %s147, %s148
    %p150 = scmp.eq.s32.totalorder %s149, 0
    %s152 = sadd.s32 %s151, 1
    %s153 = scalar_select %p150, %s151, %s152
    %p156 = pneg %p150
    %p157 = scmp.eq.s32.totalorder %s10, 3
    %p158 = por %p156, %p157
    %p159 = scmp.ne.s32.totalorder %s151, %s154
    %p160 = scmp.eq.s32.totalorder %s10, 0
    %p161 = por %p159, %p160
    %p162 = scmp.ne.s32.totalorder %s151, %s154
    %p163 = scmp.eq.s32.totalorder %s15, 3
    %p164 = por %p162, %p163
    %p165 = scmp.ne.s32.totalorder %s154, %s155
    %p166 = scmp.eq.s32.totalorder %s15, 0
    %p167 = por %p165, %p166
    %p168 = scmp.ne.s32.totalorder %s154, %s155
    %p169 = scmp.eq.s32.totalorder %s16, 3
    %p170 = por %p168, %p169
    %p172 = scmp.ne.s32.totalorder %s155, %s171
    %p173 = scmp.eq.s32.totalorder %s16, 0
    %p174 = por %p172, %p173
    %p175 = scmp.le.s32.totalorder 1, %s10
    %p176 = scmp.lt.s32.totalorder %s10, 5
    %p177 = pnand %p175, %p176
    %p178 = pneg %p177
    // Predicated region
    $region9: #{forward.27} parent=5 // pred_check
      _
    $region10: #{forward.27} parent=5 // pred_check_branch
      %180 = sbr.rel (%p177) target = $region12
    $region11: #{forward.27} parent=5 // pred_region
      %s181 = ssub.s32 %s10, 1
      // Predicated region
      $region13: #{forward.27} parent=11 // pred_check
        %p182 = pneg %p85
      $region14: #{forward.27} parent=11 // pred_check_branch
        %184 = sbr.rel (%p182) target = $region16
      $region15: #{forward.27} parent=11 // pred_region
        %s185 = smul.u32 16, %s22
        %p186 = scmp.lt.s32.totalorder %s185, 15
        %s187 = scalar_select %p186, %s185, 15
        %p188 = scmp.lt.s32.totalorder %s21, 0
        %s189 = scalar_select %p188, %s21, 0
        %s190 = sadd.s32 %s189, %s187
        %s191 = smul.addr %s190, 4
        %s192 = scalar_lea.vmem %s1, %s191
        %s193 = smul.u32 16, %s22
      $region16: #{forward.27} parent=11 // pred_fallthru
        _
      // Predicated region
      $region17: #{forward.27} parent=11 // pred_check
        %p194 = pneg %p111
      $region18: #{forward.27} parent=11 // pred_check_branch
        %196 = sbr.rel (%p194) target = $region20
      $region19: #{forward.27} parent=11 // pred_region
        %p197 = scmp.lt.s32.totalorder %s21, 0
        %s198 = scalar_select %p197, %s21, 0
        %s199 = scalar_lea.vmem %s2, %s198
      $region20: #{forward.27} parent=11 // pred_fallthru
        _
    $region12: #{forward.27} parent=5 // pred_fallthru
      _
    %p200 = scmp.lt.s32.totalorder %s10, 4
    // Predicated region
    $region21: #{forward.27} parent=5 // pred_check
      %p201 = pneg %p200
    $region22: #{forward.27} parent=5 // pred_check_branch
      %203 = sbr.rel (%p201) target = $region24
    $region23: #{forward.27} parent=5 // pred_region
      // Predicated region
      $region25: #{forward.27} parent=23 // pred_check
        %p204 = pneg %p51
      $region26: #{forward.27} parent=23 // pred_check_branch
        %206 = sbr.rel (%p204) target = $region28
      $region27: #{forward.27} parent=23 // pred_region
        %s207 = smul.u32 32, %s17
        %p208 = scmp.lt.s32.totalorder %s207, 127
        %s209 = scalar_select %p208, %s207, 127
        %p210 = scmp.lt.s32.totalorder %s19, 0
        %s211 = scalar_select %p210, %s19, 0
        %s212 = sadd.s32 %s211, %s209
        %s213 = smul.addr %s212, 4
        %s214 = scalar_lea.vmem %s0, %s213
        %s215 = smul.u32 32, %s17
      $region28: #{forward.27} parent=23 // pred_fallthru
        _
      // Predicated region
      $region29: #{forward.27} parent=23 // pred_check
        %p216 = pneg %p133
      $region30: #{forward.27} parent=23 // pred_check_branch
        %218 = sbr.rel (%p216) target = $region32
      $region31: #{forward.27} parent=23 // pred_region
        %s219 = smul.u32 32, %s17
        %p220 = scmp.lt.s32.totalorder %s219, 127
        %s221 = scalar_select %p220, %s219, 127
        %p222 = scmp.lt.s32.totalorder %s18, 0
        %s223 = scalar_select %p222, %s18, 0
        %s224 = sadd.s32 %s223, %s221
        %s225 = smul.addr %s224, 8
        %s226 = scalar_lea.vmem %s3, %s225
        %s227 = smul.u32 32, %s17
      $region32: #{forward.27} parent=23 // pred_fallthru
        _
    $region24: #{forward.27} parent=5 // pred_fallthru
      _
    %p228 = scmp.le.s32.totalorder 1, %s10
    %p229 = scmp.lt.s32.totalorder %s10, 5
    %p230 = pnand %p228, %p229
    %p231 = pneg %p230
    // Predicated region
    $region33: #{forward.27} parent=5 // pred_check
      _
    $region34: #{forward.27} parent=5 // pred_check_branch
      %233 = sbr.rel (%p230) target = $region36
    $region35: #{forward.27} parent=5 // pred_region
      %s234 = ssub.s32 %s10, 1
      %s235 = smul.u32 32, %s20
      %p236 = scmp.lt.s32.totalorder %s235, 127
      %s237 = scalar_select %p236, %s235, 127
      %p238 = scmp.lt.s32.totalorder %s22, 0
      %s239 = scalar_select %p238, %s22, 0
      %s240 = sadd.s32 %s239, %s237
      %s241 = smul.addr %s240, 4
      %s242 = scalar_lea.vmem %s0, %s241
      %p243 = pneg %p57
      %p244 = pneg %p54
      %s245 = smul.u32 16, %s22
      %p246 = scmp.lt.s32.totalorder %s245, 15
      %s247 = scalar_select %p246, %s245, 15
      %p248 = scmp.lt.s32.totalorder %s21, 0
      %s249 = scalar_select %p248, %s21, 0
      %s250 = sadd.s32 %s249, %s247
      %s251 = smul.addr %s250, 4
      %s252 = scalar_lea.vmem %s1, %s251
      %p253 = pneg %p85
      %p254 = pneg %p82
      %p255 = scmp.lt.s32.totalorder %s21, 0
      %s256 = scalar_select %p255, %s21, 0
      %s257 = scalar_lea.vmem %s2, %s256
      %p258 = pneg %p111
      %p259 = pneg %p108
      %s260 = smul.u32 32, %s20
      %p261 = scmp.lt.s32.totalorder %s260, 127
      %s262 = scalar_select %p261, %s260, 127
      %p263 = scmp.lt.s32.totalorder %s21, 0
      %s264 = scalar_select %p263, %s21, 0
      %s265 = sadd.s32 %s264, %s262
      %s266 = smul.addr %s265, 8
      %s267 = scalar_lea.vmem %s3, %s266
      %p268 = pneg %p139
      %p269 = pneg %p136
      %p270 = pneg %p167
      %p271 = pneg %p164
      %s272 = smul.u32 32, %s20
      %p273 = scmp.lt.s32.totalorder %s272, 127
      %s274 = scalar_select %p273, %s272, 127
      %p275 = scmp.lt.s32.totalorder %s21, 0
      %s276 = scalar_select %p275, %s21, 0
      %s277 = sadd.s32 %s276, %s274
      %s278 = smul.addr %s277, 8
      %s279 = scalar_lea.vmem %s4, %s278
      %s280 = smul.u32 32, %s20
      %p281 = scmp.lt.s32.totalorder %s280, 127
      %s282 = scalar_select %p281, %s280, 127
      %p283 = scmp.lt.s32.totalorder %s22, 0
      %s284 = scalar_select %p283, %s22, 0
      %s285 = sadd.s32 %s284, %s282
      %s286 = smul.addr %s285, 4
      %s287 = scalar_lea.vmem %s0, %s286
      %s288 = smul.u32 32, %s20
      %s289 = smul.u32 16, %s22
      %p290 = scmp.lt.s32.totalorder %s289, 15
      %s291 = scalar_select %p290, %s289, 15
      %p292 = scmp.lt.s32.totalorder %s21, 0
      %s293 = scalar_select %p292, %s21, 0
      %s294 = sadd.s32 %s293, %s291
      %s295 = smul.addr %s294, 4
      %s296 = scalar_lea.vmem %s1, %s295
      %s297 = smul.u32 16, %s22
      %p298 = scmp.lt.s32.totalorder %s21, 0
      %s299 = scalar_select %p298, %s21, 0
      %s300 = scalar_lea.vmem %s2, %s299
      %s301 = smul.u32 32, %s20
      %p302 = scmp.lt.s32.totalorder %s301, 127
      %s303 = scalar_select %p302, %s301, 127
      %p304 = scmp.lt.s32.totalorder %s21, 0
      %s305 = scalar_select %p304, %s21, 0
      %s306 = sadd.s32 %s305, %s303
      %s307 = smul.addr %s306, 8
      %s308 = scalar_lea.vmem %s3, %s307
      %s309 = smul.u32 32, %s20
      %s310 = smul.u32 32, %s20
      %p311 = scmp.lt.s32.totalorder %s310, 127
      %s312 = scalar_select %p311, %s310, 127
      %p313 = scmp.lt.s32.totalorder %s21, 0
      %s314 = scalar_select %p313, %s21, 0
      %s315 = sadd.s32 %s314, %s312
      %s316 = smul.addr %s315, 8
      %s317 = scalar_lea.vmem %s4, %s316
      %s318 = smul.u32 32, %s20
      %p319 = scmp.eq.s32.totalorder %s22, 0
      // Predicated region
      $region37: #{forward.27} parent=35 // pred_check
        %p320 = pneg %p319
      $region38: #{forward.27} parent=35 // pred_check_branch
        %322 = sbr.rel (%p320) target = $region40
      $region39: #{forward.27} parent=35 // pred_region
        %323 = vst [vmem:[#allocation2] sm:$0xff] 0.0
        %324 = vst [vmem:[#allocation2 + $0x8] sm:$0xff] 0.0
        %325 = vst [vmem:[#allocation2 + $0x10] sm:$0xff] 0.0
        %326 = vst [vmem:[#allocation2 + $0x18] sm:$0xff] 0.0
        %327 = vst [vmem:[#allocation2 + $0x20] sm:$0xff] 0.0
        %328 = vst [vmem:[#allocation2 + $0x28] sm:$0xff] 0.0
        %329 = vst [vmem:[#allocation2 + $0x30] sm:$0xff] 0.0
        %330 = vst [vmem:[#allocation2 + $0x38] sm:$0xff] 0.0
        %331 = vst [vmem:[#allocation2 + $0x40] sm:$0xff] 0.0
        %332 = vst [vmem:[#allocation2 + $0x48] sm:$0xff] 0.0
        %333 = vst [vmem:[#allocation2 + $0x50] sm:$0xff] 0.0
        %334 = vst [vmem:[#allocation2 + $0x58] sm:$0xff] 0.0
        %335 = vst [vmem:[#allocation2 + $0x60] sm:$0xff] 0.0
        %336 = vst [vmem:[#allocation2 + $0x68] sm:$0xff] 0.0
        %337 = vst [vmem:[#allocation2 + $0x70] sm:$0xff] 0.0
        %338 = vst [vmem:[#allocation2 + $0x78] sm:$0xff] 0.0
        %339 = vst [vmem:[#allocation2 + $0x80] sm:$0xff] 0.0
        %340 = vst [vmem:[#allocation2 + $0x88] sm:$0xff] 0.0
        %341 = vst [vmem:[#allocation2 + $0x90] sm:$0xff] 0.0
        %342 = vst [vmem:[#allocation2 + $0x98] sm:$0xff] 0.0
        %343 = vst [vmem:[#allocation2 + $0xa0] sm:$0xff] 0.0
        %344 = vst [vmem:[#allocation2 + $0xa8] sm:$0xff] 0.0
        %345 = vst [vmem:[#allocation2 + $0xb0] sm:$0xff] 0.0
        %346 = vst [vmem:[#allocation2 + $0xb8] sm:$0xff] 0.0
        %347 = vst [vmem:[#allocation2 + $0xc0] sm:$0xff] 0.0
        %348 = vst [vmem:[#allocation2 + $0xc8] sm:$0xff] 0.0
        %349 = vst [vmem:[#allocation2 + $0xd0] sm:$0xff] 0.0
        %350 = vst [vmem:[#allocation2 + $0xd8] sm:$0xff] 0.0
        %351 = vst [vmem:[#allocation2 + $0xe0] sm:$0xff] 0.0
        %352 = vst [vmem:[#allocation2 + $0xe8] sm:$0xff] 0.0
        %353 = vst [vmem:[#allocation2 + $0xf0] sm:$0xff] 0.0
        %354 = vst [vmem:[#allocation2 + $0xf8] sm:$0xff] 0.0
      $region40: #{forward.27} parent=35 // pred_fallthru
        _
      %v355 = vld [vmem:[#allocation2] sm:$0xff]
      %v356 = vld [vmem:[#allocation2 + $0x8] sm:$0xff]
      %v357 = vld [vmem:[#allocation2 + $0x10] sm:$0xff]
      %v358 = vld [vmem:[#allocation2 + $0x18] sm:$0xff]
      %v359 = vld [vmem:[#allocation2 + $0x20] sm:$0xff]
      %v360 = vld [vmem:[#allocation2 + $0x28] sm:$0xff]
      %v361 = vld [vmem:[#allocation2 + $0x30] sm:$0xff]
      %v362 = vld [vmem:[#allocation2 + $0x38] sm:$0xff]
      %v363 = vld [vmem:[#allocation2 + $0x40] sm:$0xff]
      %v364 = vld [vmem:[#allocation2 + $0x48] sm:$0xff]
      %v365 = vld [vmem:[#allocation2 + $0x50] sm:$0xff]
      %v366 = vld [vmem:[#allocation2 + $0x58] sm:$0xff]
      %v367 = vld [vmem:[#allocation2 + $0x60] sm:$0xff]
      %v368 = vld [vmem:[#allocation2 + $0x68] sm:$0xff]
      %v369 = vld [vmem:[#allocation2 + $0x70] sm:$0xff]
      %v370 = vld [vmem:[#allocation2 + $0x78] sm:$0xff]
      %v371 = vld [vmem:[#allocation2 + $0x80] sm:$0xff]
      %v372 = vld [vmem:[#allocation2 + $0x88] sm:$0xff]
      %v373 = vld [vmem:[#allocation2 + $0x90] sm:$0xff]
      %v374 = vld [vmem:[#allocation2 + $0x98] sm:$0xff]
      %v375 = vld [vmem:[#allocation2 + $0xa0] sm:$0xff]
      %v376 = vld [vmem:[#allocation2 + $0xa8] sm:$0xff]
      %v377 = vld [vmem:[#allocation2 + $0xb0] sm:$0xff]
      %v378 = vld [vmem:[#allocation2 + $0xb8] sm:$0xff]
      %v379 = vld [vmem:[#allocation2 + $0xc0] sm:$0xff]
      %v380 = vld [vmem:[#allocation2 + $0xc8] sm:$0xff]
      %v381 = vld [vmem:[#allocation2 + $0xd0] sm:$0xff]
      %v382 = vld [vmem:[#allocation2 + $0xd8] sm:$0xff]
      %v383 = vld [vmem:[#allocation2 + $0xe0] sm:$0xff]
      %v384 = vld [vmem:[#allocation2 + $0xe8] sm:$0xff]
      %v385 = vld [vmem:[#allocation2 + $0xf0] sm:$0xff]
      %v386 = vld [vmem:[#allocation2 + $0xf8] sm:$0xff]
      %v387 = vld [vmem:[%s287] sm:$0xf]
      %v388 = vld [vmem:[%s287 + $0x4] sm:$0xf]
      %v389 = vld [vmem:[%s287 + $0x8] sm:$0xf]
      %v390 = vld [vmem:[%s287 + $0xc] sm:$0xf]
      %v391 = vld [vmem:[%s287 + $0x10] sm:$0xf]
      %v392 = vld [vmem:[%s287 + $0x14] sm:$0xf]
      %v393 = vld [vmem:[%s287 + $0x18] sm:$0xf]
      %v394 = vld [vmem:[%s287 + $0x1c] sm:$0xf]
      %v395 = vld [vmem:[%s287 + $0x20] sm:$0xf]
      %v396 = vld [vmem:[%s287 + $0x24] sm:$0xf]
      %v397 = vld [vmem:[%s287 + $0x28] sm:$0xf]
      %v398 = vld [vmem:[%s287 + $0x2c] sm:$0xf]
      %v399 = vld [vmem:[%s287 + $0x30] sm:$0xf]
      %v400 = vld [vmem:[%s287 + $0x34] sm:$0xf]
      %v401 = vld [vmem:[%s287 + $0x38] sm:$0xf]
      %v402 = vld [vmem:[%s287 + $0x3c] sm:$0xf]
      %v403 = vld [vmem:[%s287 + $0x40] sm:$0xf]
      %v404 = vld [vmem:[%s287 + $0x44] sm:$0xf]
      %v405 = vld [vmem:[%s287 + $0x48] sm:$0xf]
      %v406 = vld [vmem:[%s287 + $0x4c] sm:$0xf]
      %v407 = vld [vmem:[%s287 + $0x50] sm:$0xf]
      %v408 = vld [vmem:[%s287 + $0x54] sm:$0xf]
      %v409 = vld [vmem:[%s287 + $0x58] sm:$0xf]
      %v410 = vld [vmem:[%s287 + $0x5c] sm:$0xf]
      %v411 = vld [vmem:[%s287 + $0x60] sm:$0xf]
      %v412 = vld [vmem:[%s287 + $0x64] sm:$0xf]
      %v413 = vld [vmem:[%s287 + $0x68] sm:$0xf]
      %v414 = vld [vmem:[%s287 + $0x6c] sm:$0xf]
      %v415 = vld [vmem:[%s287 + $0x70] sm:$0xf]
      %v416 = vld [vmem:[%s287 + $0x74] sm:$0xf]
      %v417 = vld [vmem:[%s287 + $0x78] sm:$0xf]
      %v418 = vld [vmem:[%s287 + $0x7c] sm:$0xf]
      %v419 = vld [vmem:[%s296] sm:$0xf]
      %v420 = vld [vmem:[%s296 + $0x4] sm:$0xf]
      %v421 = vld [vmem:[%s296 + $0x8] sm:$0xf]
      %v422 = vld [vmem:[%s296 + $0xc] sm:$0xf]
      %v423 = vld [vmem:[%s296 + $0x10] sm:$0xf]
      %v424 = vld [vmem:[%s296 + $0x14] sm:$0xf]
      %v425 = vld [vmem:[%s296 + $0x18] sm:$0xf]
      %v426 = vld [vmem:[%s296 + $0x1c] sm:$0xf]
      %v427 = vld [vmem:[%s296 + $0x20] sm:$0xf]
      %v428 = vld [vmem:[%s296 + $0x24] sm:$0xf]
      %v429 = vld [vmem:[%s296 + $0x28] sm:$0xf]
      %v430 = vld [vmem:[%s296 + $0x2c] sm:$0xf]
      %v431 = vld [vmem:[%s296 + $0x30] sm:$0xf]
      %v432 = vld [vmem:[%s296 + $0x34] sm:$0xf]
      %v433 = vld [vmem:[%s296 + $0x38] sm:$0xf]
      %v434 = vld [vmem:[%s296 + $0x3c] sm:$0xf]
      %v467 = vunpack.c.l.b16 %v387
      %v468 = vunpack.c.l.b16 %v388
      %v469 = vunpack.c.l.b16 %v389
      %v470 = vunpack.c.l.b16 %v390
      %v471 = vunpack.c.l.b16 %v391
      %v472 = vunpack.c.l.b16 %v392
      %v473 = vunpack.c.l.b16 %v393
      %v474 = vunpack.c.l.b16 %v394
      %v475 = vunpack.c.l.b16 %v395
      %v476 = vunpack.c.l.b16 %v396
      %v477 = vunpack.c.l.b16 %v397
      %v478 = vunpack.c.l.b16 %v398
      %v479 = vunpack.c.l.b16 %v399
      %v480 = vunpack.c.l.b16 %v400
      %v481 = vunpack.c.l.b16 %v401
      %v482 = vunpack.c.l.b16 %v402
      %v483 = vunpack.c.l.b16 %v403
      %v484 = vunpack.c.l.b16 %v404
      %v485 = vunpack.c.l.b16 %v405
      %v486 = vunpack.c.l.b16 %v406
      %v487 = vunpack.c.l.b16 %v407
      %v488 = vunpack.c.l.b16 %v408
      %v489 = vunpack.c.l.b16 %v409
      %v490 = vunpack.c.l.b16 %v410
      %v491 = vunpack.c.l.b16 %v411
      %v492 = vunpack.c.l.b16 %v412
      %v493 = vunpack.c.l.b16 %v413
      %v494 = vunpack.c.l.b16 %v414
      %v495 = vunpack.c.l.b16 %v415
      %v496 = vunpack.c.l.b16 %v416
      %v497 = vunpack.c.l.b16 %v417
      %v498 = vunpack.c.l.b16 %v418
      %v499 = vpack.c.b16 %v468, %v467
      %v500 = vpack.c.b16 %v470, %v469
      %v501 = vpack.c.b16 %v472, %v471
      %v502 = vpack.c.b16 %v474, %v473
      %v503 = vpack.c.b16 %v476, %v475
      %v504 = vpack.c.b16 %v478, %v477
      %v505 = vpack.c.b16 %v480, %v479
      %v506 = vpack.c.b16 %v482, %v481
      %v507 = vpack.c.b16 %v484, %v483
      %v508 = vpack.c.b16 %v486, %v485
      %v509 = vpack.c.b16 %v488, %v487
      %v510 = vpack.c.b16 %v490, %v489
      %v511 = vpack.c.b16 %v492, %v491
      %v512 = vpack.c.b16 %v494, %v493
      %v513 = vpack.c.b16 %v496, %v495
      %v514 = vpack.c.b16 %v498, %v497
      %v547 = vunpack.c.l.b16 %v419
      %v548 = vunpack.c.l.b16 %v420
      %v549 = vunpack.c.l.b16 %v421
      %v550 = vunpack.c.l.b16 %v422
      %v551 = vunpack.c.l.b16 %v423
      %v552 = vunpack.c.l.b16 %v424
      %v553 = vunpack.c.l.b16 %v425
      %v554 = vunpack.c.l.b16 %v426
      %v555 = vunpack.c.l.b16 %v427
      %v556 = vunpack.c.l.b16 %v428
      %v557 = vunpack.c.l.b16 %v429
      %v558 = vunpack.c.l.b16 %v430
      %v559 = vunpack.c.l.b16 %v431
      %v560 = vunpack.c.l.b16 %v432
      %v561 = vunpack.c.l.b16 %v433
      %v562 = vunpack.c.l.b16 %v434
      %v563 = vpack.c.b16 %v548, %v547
      %v564 = vpack.c.b16 %v550, %v549
      %v565 = vpack.c.b16 %v552, %v551
      %v566 = vpack.c.b16 %v554, %v553
      %v567 = vpack.c.b16 %v556, %v555
      %v568 = vpack.c.b16 %v558, %v557
      %v569 = vpack.c.b16 %v560, %v559
      %v570 = vpack.c.b16 %v562, %v561
      %579 = vmatpush.bf16.msra.mxu0 %v570
      %580 = vmatpush.bf16.msra.mxu0 %v569
      %581 = vmatpush.bf16.msra.mxu0 %v568
      %582 = vmatpush.bf16.msra.mxu0 %v567
      %583 = vmatpush.bf16.msra.mxu0 %v566
      %584 = vmatpush.bf16.msra.mxu0 %v565
      %585 = vmatpush.bf16.msra.mxu0 %v564
      %586 = vmatpush.bf16.msra.mxu0 %v563
      %587 = vmatmul.bf16.gmra.mxu0 %v499
      %v588 = vpop.f32.mrf.mxu0
      %v589 = vadd.f32 0.0, %v588
      %v590 = vpop.f32.mrf.mxu0
      %v591 = vadd.f32 0.0, %v590
      %592 = vmatmul.bf16.gmra.mxu0 %v500
      %v593 = vpop.f32.mrf.mxu0
      %v594 = vadd.f32 0.0, %v593
      %v595 = vpop.f32.mrf.mxu0
      %v596 = vadd.f32 0.0, %v595
      %597 = vmatmul.bf16.gmra.mxu0 %v501
      %v598 = vpop.f32.mrf.mxu0
      %v599 = vadd.f32 0.0, %v598
      %v600 = vpop.f32.mrf.mxu0
      %v601 = vadd.f32 0.0, %v600
      %602 = vmatmul.bf16.gmra.mxu0 %v502
      %v603 = vpop.f32.mrf.mxu0
      %v604 = vadd.f32 0.0, %v603
      %v605 = vpop.f32.mrf.mxu0
      %v606 = vadd.f32 0.0, %v605
      %607 = vmatmul.bf16.gmra.mxu0 %v503
      %v608 = vpop.f32.mrf.mxu0
      %v609 = vadd.f32 0.0, %v608
      %v610 = vpop.f32.mrf.mxu0
      %v611 = vadd.f32 0.0, %v610
      %612 = vmatmul.bf16.gmra.mxu0 %v504
      %v613 = vpop.f32.mrf.mxu0
      %v614 = vadd.f32 0.0, %v613
      %v615 = vpop.f32.mrf.mxu0
      %v616 = vadd.f32 0.0, %v615
      %617 = vmatmul.bf16.gmra.mxu0 %v505
      %v618 = vpop.f32.mrf.mxu0
      %v619 = vadd.f32 0.0, %v618
      %v620 = vpop.f32.mrf.mxu0
      %v621 = vadd.f32 0.0, %v620
      %622 = vmatmul.bf16.gmra.mxu0 %v506
      %v623 = vpop.f32.mrf.mxu0
      %v624 = vadd.f32 0.0, %v623
      %v625 = vpop.f32.mrf.mxu0
      %v626 = vadd.f32 0.0, %v625
      %627 = vmatmul.bf16.gmra.mxu0 %v507
      %v628 = vpop.f32.mrf.mxu0
      %v629 = vadd.f32 0.0, %v628
      %v630 = vpop.f32.mrf.mxu0
      %v631 = vadd.f32 0.0, %v630
      %632 = vmatmul.bf16.gmra.mxu0 %v508
      %v633 = vpop.f32.mrf.mxu0
      %v634 = vadd.f32 0.0, %v633
      %v635 = vpop.f32.mrf.mxu0
      %v636 = vadd.f32 0.0, %v635
      %637 = vmatmul.bf16.gmra.mxu0 %v509
      %v638 = vpop.f32.mrf.mxu0
      %v639 = vadd.f32 0.0, %v638
      %v640 = vpop.f32.mrf.mxu0
      %v641 = vadd.f32 0.0, %v640
      %642 = vmatmul.bf16.gmra.mxu0 %v510
      %v643 = vpop.f32.mrf.mxu0
      %v644 = vadd.f32 0.0, %v643
      %v645 = vpop.f32.mrf.mxu0
      %v646 = vadd.f32 0.0, %v645
      %647 = vmatmul.bf16.gmra.mxu0 %v511
      %v648 = vpop.f32.mrf.mxu0
      %v649 = vadd.f32 0.0, %v648
      %v650 = vpop.f32.mrf.mxu0
      %v651 = vadd.f32 0.0, %v650
      %652 = vmatmul.bf16.gmra.mxu0 %v512
      %v653 = vpop.f32.mrf.mxu0
      %v654 = vadd.f32 0.0, %v653
      %v655 = vpop.f32.mrf.mxu0
      %v656 = vadd.f32 0.0, %v655
      %657 = vmatmul.bf16.gmra.mxu0 %v513
      %v658 = vpop.f32.mrf.mxu0
      %v659 = vadd.f32 0.0, %v658
      %v660 = vpop.f32.mrf.mxu0
      %v661 = vadd.f32 0.0, %v660
      %662 = vmatmul.bf16.gmra.mxu0 %v514
      %v663 = vpop.f32.mrf.mxu0
      %v664 = vadd.f32 0.0, %v663
      %v665 = vpop.f32.mrf.mxu0
      %v666 = vadd.f32 0.0, %v665
      %667 = vdwg.mxu0
      %v668 = vadd.f32 %v355, %v589
      %v669 = vadd.f32 %v356, %v591
      %v670 = vadd.f32 %v357, %v594
      %v671 = vadd.f32 %v358, %v596
      %v672 = vadd.f32 %v359, %v599
      %v673 = vadd.f32 %v360, %v601
      %v674 = vadd.f32 %v361, %v604
      %v675 = vadd.f32 %v362, %v606
      %v676 = vadd.f32 %v363, %v609
      %v677 = vadd.f32 %v364, %v611
      %v678 = vadd.f32 %v365, %v614
      %v679 = vadd.f32 %v366, %v616
      %v680 = vadd.f32 %v367, %v619
      %v681 = vadd.f32 %v368, %v621
      %v682 = vadd.f32 %v369, %v624
      %v683 = vadd.f32 %v370, %v626
      %v684 = vadd.f32 %v371, %v629
      %v685 = vadd.f32 %v372, %v631
      %v686 = vadd.f32 %v373, %v634
      %v687 = vadd.f32 %v374, %v636
      %v688 = vadd.f32 %v375, %v639
      %v689 = vadd.f32 %v376, %v641
      %v690 = vadd.f32 %v377, %v644
      %v691 = vadd.f32 %v378, %v646
      %v692 = vadd.f32 %v379, %v649
      %v693 = vadd.f32 %v380, %v651
      %v694 = vadd.f32 %v381, %v654
      %v695 = vadd.f32 %v382, %v656
      %v696 = vadd.f32 %v383, %v659
      %v697 = vadd.f32 %v384, %v661
      %v698 = vadd.f32 %v385, %v664
      %v699 = vadd.f32 %v386, %v666
      %700 = vst [vmem:[#allocation2] sm:$0xff] %v668
      %701 = vst [vmem:[#allocation2 + $0x8] sm:$0xff] %v669
      %702 = vst [vmem:[#allocation2 + $0x10] sm:$0xff] %v670
      %703 = vst [vmem:[#allocation2 + $0x18] sm:$0xff] %v671
      %704 = vst [vmem:[#allocation2 + $0x20] sm:$0xff] %v672
      %705 = vst [vmem:[#allocation2 + $0x28] sm:$0xff] %v673
      %706 = vst [vmem:[#allocation2 + $0x30] sm:$0xff] %v674
      %707 = vst [vmem:[#allocation2 + $0x38] sm:$0xff] %v675
      %708 = vst [vmem:[#allocation2 + $0x40] sm:$0xff] %v676
      %709 = vst [vmem:[#allocation2 + $0x48] sm:$0xff] %v677
      %710 = vst [vmem:[#allocation2 + $0x50] sm:$0xff] %v678
      %711 = vst [vmem:[#allocation2 + $0x58] sm:$0xff] %v679
      %712 = vst [vmem:[#allocation2 + $0x60] sm:$0xff] %v680
      %713 = vst [vmem:[#allocation2 + $0x68] sm:$0xff] %v681
      %714 = vst [vmem:[#allocation2 + $0x70] sm:$0xff] %v682
      %715 = vst [vmem:[#allocation2 + $0x78] sm:$0xff] %v683
      %716 = vst [vmem:[#allocation2 + $0x80] sm:$0xff] %v684
      %717 = vst [vmem:[#allocation2 + $0x88] sm:$0xff] %v685
      %718 = vst [vmem:[#allocation2 + $0x90] sm:$0xff] %v686
      %719 = vst [vmem:[#allocation2 + $0x98] sm:$0xff] %v687
      %720 = vst [vmem:[#allocation2 + $0xa0] sm:$0xff] %v688
      %721 = vst [vmem:[#allocation2 + $0xa8] sm:$0xff] %v689
      %722 = vst [vmem:[#allocation2 + $0xb0] sm:$0xff] %v690
      %723 = vst [vmem:[#allocation2 + $0xb8] sm:$0xff] %v691
      %724 = vst [vmem:[#allocation2 + $0xc0] sm:$0xff] %v692
      %725 = vst [vmem:[#allocation2 + $0xc8] sm:$0xff] %v693
      %726 = vst [vmem:[#allocation2 + $0xd0] sm:$0xff] %v694
      %727 = vst [vmem:[#allocation2 + $0xd8] sm:$0xff] %v695
      %728 = vst [vmem:[#allocation2 + $0xe0] sm:$0xff] %v696
      %729 = vst [vmem:[#allocation2 + $0xe8] sm:$0xff] %v697
      %730 = vst [vmem:[#allocation2 + $0xf0] sm:$0xff] %v698
      %731 = vst [vmem:[#allocation2 + $0xf8] sm:$0xff] %v699
      // Predicated region
      $region41: #{forward.27} parent=35 // pred_check
        %p732 = pneg %p319
      $region42: #{forward.27} parent=35 // pred_check_branch
        %734 = sbr.rel (%p732) target = $region44
      $region43: #{forward.27} parent=35 // pred_region
        %v735 = vld [vmem:[#allocation2] sm:$0xff]
        %v736 = vld [vmem:[#allocation2 + $0x8] sm:$0xff]
        %v737 = vld [vmem:[#allocation2 + $0x10] sm:$0xff]
        %v738 = vld [vmem:[#allocation2 + $0x18] sm:$0xff]
        %v739 = vld [vmem:[#allocation2 + $0x20] sm:$0xff]
        %v740 = vld [vmem:[#allocation2 + $0x28] sm:$0xff]
        %v741 = vld [vmem:[#allocation2 + $0x30] sm:$0xff]
        %v742 = vld [vmem:[#allocation2 + $0x38] sm:$0xff]
        %v743 = vld [vmem:[#allocation2 + $0x40] sm:$0xff]
        %v744 = vld [vmem:[#allocation2 + $0x48] sm:$0xff]
        %v745 = vld [vmem:[#allocation2 + $0x50] sm:$0xff]
        %v746 = vld [vmem:[#allocation2 + $0x58] sm:$0xff]
        %v747 = vld [vmem:[#allocation2 + $0x60] sm:$0xff]
        %v748 = vld [vmem:[#allocation2 + $0x68] sm:$0xff]
        %v749 = vld [vmem:[#allocation2 + $0x70] sm:$0xff]
        %v750 = vld [vmem:[#allocation2 + $0x78] sm:$0xff]
        %v751 = vld [vmem:[#allocation2 + $0x80] sm:$0xff]
        %v752 = vld [vmem:[#allocation2 + $0x88] sm:$0xff]
        %v753 = vld [vmem:[#allocation2 + $0x90] sm:$0xff]
        %v754 = vld [vmem:[#allocation2 + $0x98] sm:$0xff]
        %v755 = vld [vmem:[#allocation2 + $0xa0] sm:$0xff]
        %v756 = vld [vmem:[#allocation2 + $0xa8] sm:$0xff]
        %v757 = vld [vmem:[#allocation2 + $0xb0] sm:$0xff]
        %v758 = vld [vmem:[#allocation2 + $0xb8] sm:$0xff]
        %v759 = vld [vmem:[#allocation2 + $0xc0] sm:$0xff]
        %v760 = vld [vmem:[#allocation2 + $0xc8] sm:$0xff]
        %v761 = vld [vmem:[#allocation2 + $0xd0] sm:$0xff]
        %v762 = vld [vmem:[#allocation2 + $0xd8] sm:$0xff]
        %v763 = vld [vmem:[#allocation2 + $0xe0] sm:$0xff]
        %v764 = vld [vmem:[#allocation2 + $0xe8] sm:$0xff]
        %v765 = vld [vmem:[#allocation2 + $0xf0] sm:$0xff]
        %v766 = vld [vmem:[#allocation2 + $0xf8] sm:$0xff]
        %v767 = vld [vmem:[%s300] sm:$0x1]
        %v769 = vperm.slane %v767, 0
        %v771 = vadd.f32 %v735, %v769
        %v772 = vadd.f32 %v736, %v769
        %v773 = vadd.f32 %v737, %v769
        %v774 = vadd.f32 %v738, %v769
        %v775 = vadd.f32 %v739, %v769
        %v776 = vadd.f32 %v740, %v769
        %v777 = vadd.f32 %v741, %v769
        %v778 = vadd.f32 %v742, %v769
        %v779 = vadd.f32 %v743, %v769
        %v780 = vadd.f32 %v744, %v769
        %v781 = vadd.f32 %v745, %v769
        %v782 = vadd.f32 %v746, %v769
        %v783 = vadd.f32 %v747, %v769
        %v784 = vadd.f32 %v748, %v769
        %v785 = vadd.f32 %v749, %v769
        %v786 = vadd.f32 %v750, %v769
        %v787 = vadd.f32 %v751, %v769
        %v788 = vadd.f32 %v752, %v769
        %v789 = vadd.f32 %v753, %v769
        %v790 = vadd.f32 %v754, %v769
        %v791 = vadd.f32 %v755, %v769
        %v792 = vadd.f32 %v756, %v769
        %v793 = vadd.f32 %v757, %v769
        %v794 = vadd.f32 %v758, %v769
        %v795 = vadd.f32 %v759, %v769
        %v796 = vadd.f32 %v760, %v769
        %v797 = vadd.f32 %v761, %v769
        %v798 = vadd.f32 %v762, %v769
        %v799 = vadd.f32 %v763, %v769
        %v800 = vadd.f32 %v764, %v769
        %v801 = vadd.f32 %v765, %v769
        %v802 = vadd.f32 %v766, %v769
        %v803 = vld [vmem:[%s308] sm:$0xff]
        %v804 = vld [vmem:[%s308 + $0x8] sm:$0xff]
        %v805 = vld [vmem:[%s308 + $0x10] sm:$0xff]
        %v806 = vld [vmem:[%s308 + $0x18] sm:$0xff]
        %v807 = vld [vmem:[%s308 + $0x20] sm:$0xff]
        %v808 = vld [vmem:[%s308 + $0x28] sm:$0xff]
        %v809 = vld [vmem:[%s308 + $0x30] sm:$0xff]
        %v810 = vld [vmem:[%s308 + $0x38] sm:$0xff]
        %v811 = vld [vmem:[%s308 + $0x40] sm:$0xff]
        %v812 = vld [vmem:[%s308 + $0x48] sm:$0xff]
        %v813 = vld [vmem:[%s308 + $0x50] sm:$0xff]
        %v814 = vld [vmem:[%s308 + $0x58] sm:$0xff]
        %v815 = vld [vmem:[%s308 + $0x60] sm:$0xff]
        %v816 = vld [vmem:[%s308 + $0x68] sm:$0xff]
        %v817 = vld [vmem:[%s308 + $0x70] sm:$0xff]
        %v818 = vld [vmem:[%s308 + $0x78] sm:$0xff]
        %v819 = vld [vmem:[%s308 + $0x80] sm:$0xff]
        %v820 = vld [vmem:[%s308 + $0x88] sm:$0xff]
        %v821 = vld [vmem:[%s308 + $0x90] sm:$0xff]
        %v822 = vld [vmem:[%s308 + $0x98] sm:$0xff]
        %v823 = vld [vmem:[%s308 + $0xa0] sm:$0xff]
        %v824 = vld [vmem:[%s308 + $0xa8] sm:$0xff]
        %v825 = vld [vmem:[%s308 + $0xb0] sm:$0xff]
        %v826 = vld [vmem:[%s308 + $0xb8] sm:$0xff]
        %v827 = vld [vmem:[%s308 + $0xc0] sm:$0xff]
        %v828 = vld [vmem:[%s308 + $0xc8] sm:$0xff]
        %v829 = vld [vmem:[%s308 + $0xd0] sm:$0xff]
        %v830 = vld [vmem:[%s308 + $0xd8] sm:$0xff]
        %v831 = vld [vmem:[%s308 + $0xe0] sm:$0xff]
        %v832 = vld [vmem:[%s308 + $0xe8] sm:$0xff]
        %v833 = vld [vmem:[%s308 + $0xf0] sm:$0xff]
        %v834 = vld [vmem:[%s308 + $0xf8] sm:$0xff]
        %v835 = vadd.f32 %v771, %v803
        %v836 = vadd.f32 %v772, %v804
        %v837 = vadd.f32 %v773, %v805
        %v838 = vadd.f32 %v774, %v806
        %v839 = vadd.f32 %v775, %v807
        %v840 = vadd.f32 %v776, %v808
        %v841 = vadd.f32 %v777, %v809
        %v842 = vadd.f32 %v778, %v810
        %v843 = vadd.f32 %v779, %v811
        %v844 = vadd.f32 %v780, %v812
        %v845 = vadd.f32 %v781, %v813
        %v846 = vadd.f32 %v782, %v814
        %v847 = vadd.f32 %v783, %v815
        %v848 = vadd.f32 %v784, %v816
        %v849 = vadd.f32 %v785, %v817
        %v850 = vadd.f32 %v786, %v818
        %v851 = vadd.f32 %v787, %v819
        %v852 = vadd.f32 %v788, %v820
        %v853 = vadd.f32 %v789, %v821
        %v854 = vadd.f32 %v790, %v822
        %v855 = vadd.f32 %v791, %v823
        %v856 = vadd.f32 %v792, %v824
        %v857 = vadd.f32 %v793, %v825
        %v858 = vadd.f32 %v794, %v826
        %v859 = vadd.f32 %v795, %v827
        %v860 = vadd.f32 %v796, %v828
        %v861 = vadd.f32 %v797, %v829
        %v862 = vadd.f32 %v798, %v830
        %v863 = vadd.f32 %v799, %v831
        %v864 = vadd.f32 %v800, %v832
        %v865 = vadd.f32 %v801, %v833
        %v866 = vadd.f32 %v802, %v834
        %v867 = vmax.f32 %v835, 0.0
        %v868 = vmax.f32 %v836, 0.0
        %v869 = vmax.f32 %v837, 0.0
        %v870 = vmax.f32 %v838, 0.0
        %v871 = vmax.f32 %v839, 0.0
        %v872 = vmax.f32 %v840, 0.0
        %v873 = vmax.f32 %v841, 0.0
        %v874 = vmax.f32 %v842, 0.0
        %v875 = vmax.f32 %v843, 0.0
        %v876 = vmax.f32 %v844, 0.0
        %v877 = vmax.f32 %v845, 0.0
        %v878 = vmax.f32 %v846, 0.0
        %v879 = vmax.f32 %v847, 0.0
        %v880 = vmax.f32 %v848, 0.0
        %v881 = vmax.f32 %v849, 0.0
        %v882 = vmax.f32 %v850, 0.0
        %v883 = vmax.f32 %v851, 0.0
        %v884 = vmax.f32 %v852, 0.0
        %v885 = vmax.f32 %v853, 0.0
        %v886 = vmax.f32 %v854, 0.0
        %v887 = vmax.f32 %v855, 0.0
        %v888 = vmax.f32 %v856, 0.0
        %v889 = vmax.f32 %v857, 0.0
        %v890 = vmax.f32 %v858, 0.0
        %v891 = vmax.f32 %v859, 0.0
        %v892 = vmax.f32 %v860, 0.0
        %v893 = vmax.f32 %v861, 0.0
        %v894 = vmax.f32 %v862, 0.0
        %v895 = vmax.f32 %v863, 0.0
        %v896 = vmax.f32 %v864, 0.0
        %v897 = vmax.f32 %v865, 0.0
        %v898 = vmax.f32 %v866, 0.0
        %899 = vst [vmem:[%s317] sm:$0xff] %v867
        %900 = vst [vmem:[%s317 + $0x8] sm:$0xff] %v868
        %901 = vst [vmem:[%s317 + $0x10] sm:$0xff] %v869
        %902 = vst [vmem:[%s317 + $0x18] sm:$0xff] %v870
        %903 = vst [vmem:[%s317 + $0x20] sm:$0xff] %v871
        %904 = vst [vmem:[%s317 + $0x28] sm:$0xff] %v872
        %905 = vst [vmem:[%s317 + $0x30] sm:$0xff] %v873
        %906 = vst [vmem:[%s317 + $0x38] sm:$0xff] %v874
        %907 = vst [vmem:[%s317 + $0x40] sm:$0xff] %v875
        %908 = vst [vmem:[%s317 + $0x48] sm:$0xff] %v876
        %909 = vst [vmem:[%s317 + $0x50] sm:$0xff] %v877
        %910 = vst [vmem:[%s317 + $0x58] sm:$0xff] %v878
        %911 = vst [vmem:[%s317 + $0x60] sm:$0xff] %v879
        %912 = vst [vmem:[%s317 + $0x68] sm:$0xff] %v880
        %913 = vst [vmem:[%s317 + $0x70] sm:$0xff] %v881
        %914 = vst [vmem:[%s317 + $0x78] sm:$0xff] %v882
        %915 = vst [vmem:[%s317 + $0x80] sm:$0xff] %v883
        %916 = vst [vmem:[%s317 + $0x88] sm:$0xff] %v884
        %917 = vst [vmem:[%s317 + $0x90] sm:$0xff] %v885
        %918 = vst [vmem:[%s317 + $0x98] sm:$0xff] %v886
        %919 = vst [vmem:[%s317 + $0xa0] sm:$0xff] %v887
        %920 = vst [vmem:[%s317 + $0xa8] sm:$0xff] %v888
        %921 = vst [vmem:[%s317 + $0xb0] sm:$0xff] %v889
        %922 = vst [vmem:[%s317 + $0xb8] sm:$0xff] %v890
        %923 = vst [vmem:[%s317 + $0xc0] sm:$0xff] %v891
        %924 = vst [vmem:[%s317 + $0xc8] sm:$0xff] %v892
        %925 = vst [vmem:[%s317 + $0xd0] sm:$0xff] %v893
        %926 = vst [vmem:[%s317 + $0xd8] sm:$0xff] %v894
        %927 = vst [vmem:[%s317 + $0xe0] sm:$0xff] %v895
        %928 = vst [vmem:[%s317 + $0xe8] sm:$0xff] %v896
        %929 = vst [vmem:[%s317 + $0xf0] sm:$0xff] %v897
        %930 = vst [vmem:[%s317 + $0xf8] sm:$0xff] %v898
      $region44: #{forward.27} parent=35 // pred_fallthru
        _
      %s931 = smul.u32 32, %s20
      %p932 = scmp.lt.s32.totalorder %s931, 127
      %s933 = scalar_select %p932, %s931, 127
      %p934 = scmp.lt.s32.totalorder %s21, 0
      %s935 = scalar_select %p934, %s21, 0
      %s936 = sadd.s32 %s935, %s933
      %s937 = smul.addr %s936, 8
      %s938 = scalar_lea.vmem %s4, %s937
      // Predicated region
      $region45: #{forward.27} parent=35 // pred_check
        %p939 = pneg %p164
      $region46: #{forward.27} parent=35 // pred_check_branch
        %941 = sbr.rel (%p939) target = $region48
      $region47: #{forward.27} parent=35 // pred_region
        %s942 = smul.u32 32, %s20
      $region48: #{forward.27} parent=35 // pred_fallthru
        _
    $region36: #{forward.27} parent=5 // pred_fallthru
      _
    %p943 = scmp.le.s32.totalorder 2, %s10
    // Predicated region
    $region49: #{forward.27} parent=5 // pred_check
      %p944 = pneg %p943
    $region50: #{forward.27} parent=5 // pred_check_branch
      %946 = sbr.rel (%p944) target = $region52
    $region51: #{forward.27} parent=5 // pred_region
      %s947 = ssub.s32 %s10, 2
      // Predicated region
      $region53: #{forward.27} parent=51 // pred_check
        %p948 = pneg %p170
      $region54: #{forward.27} parent=51 // pred_check_branch
        %950 = sbr.rel (%p948) target = $region56
      $region55: #{forward.27} parent=51 // pred_region
        %s951 = smul.u32 32, %s23
        %p952 = scmp.lt.s32.totalorder %s951, 127
        %s953 = scalar_select %p952, %s951, 127
        %p954 = scmp.lt.s32.totalorder %s24, 0
        %s955 = scalar_select %p954, %s24, 0
        %s956 = sadd.s32 %s955, %s953
        %s957 = smul.addr %s956, 8
        %s958 = scalar_lea.vmem %s4, %s957
      $region56: #{forward.27} parent=51 // pred_fallthru
        _
    $region52: #{forward.27} parent=5 // pred_fallthru
      _
  $region6: #{forward.27} parent=0 // loop_footer
    %s14 = sadd.s32 1, %s10
  $region7: #{forward.27} parent=0 // loop_footer_branch
    %9 = sbr.rel target = $region3
  $region8: #{forward.27} parent=0 // loop_exit
    _

// kernel: forward.30
$region0: #{forward.30}
  #allocation0 [shape = 'u32[]', space=smem, size = 0x4, offset = 0x4, fixed_abs, tag = 'smem constant byte address 0x4 - core index']
  #allocation1 [shape = 'u32[72,128]{1,0:T(1,128)}', space=vmem, size = 0x9000, scoped, tag = 'internal scratch']
  #allocation2 [shape = 'f32[256,128]{1,0:T(8,128)}', space=vmem, size = 0x20000, scoped, tag = 'scratch operand']
  %s0 = inlined_call_operand.vmem [shape: bf16[256,128], index: 0, kind: input, shape index: {}]
  %s1 = inlined_call_operand.vmem [shape: bf16[128,128], index: 1, kind: input, shape index: {}]
  %s2 = inlined_call_operand.vmem [shape: f32[1,128], index: 2, kind: input, shape index: {}]
  %s3 = inlined_call_operand.vmem [shape: f32[256,128], index: 3, kind: output, shape index: {}]
  %s4 = sld [smem:[#allocation0]]
  $region30: #{forward.30} parent=0
    _
  %s6 = ssub.s32 1, %s4
  %s7 = scalar_select 0, %s6, %s4
  // Predicated region
  $region2: #{forward.30} parent=0 // pred_check
    _
  $region3: #{forward.30} parent=0 // pred_check_branch
    %9 = sbr.rel (0) target = $region5
  $region4: #{forward.30} parent=0 // pred_region
    _
  $region5: #{forward.30} parent=0 // pred_fallthru
    _
  // Predicated region
  $region6: #{forward.30} parent=0 // pred_check
    _
  $region7: #{forward.30} parent=0 // pred_check_branch
    %11 = sbr.rel (0) target = $region9
  $region8: #{forward.30} parent=0 // pred_region
    _
  $region9: #{forward.30} parent=0 // pred_fallthru
    _
  // Predicated region
  $region10: #{forward.30} parent=0 // pred_check
    _
  $region11: #{forward.30} parent=0 // pred_check_branch
    %13 = sbr.rel (0) target = $region13
  $region12: #{forward.30} parent=0 // pred_region
    _
  $region13: #{forward.30} parent=0 // pred_fallthru
    _
  %p14 = scmp.eq.s32.totalorder 0, 0
  // Predicated region
  $region14: #{forward.30} parent=0 // pred_check
    %p15 = pneg %p14
  $region15: #{forward.30} parent=0 // pred_check_branch
    %17 = sbr.rel (%p15) target = $region17
  $region16: #{forward.30} parent=0 // pred_region
    %18 = vst [vmem:[#allocation2] sm:$0xff] 0.0
    %19 = vst [vmem:[#allocation2 + $0x8] sm:$0xff] 0.0
    %20 = vst [vmem:[#allocation2 + $0x10] sm:$0xff] 0.0
    %21 = vst [vmem:[#allocation2 + $0x18] sm:$0xff] 0.0
    %22 = vst [vmem:[#allocation2 + $0x20] sm:$0xff] 0.0
    %23 = vst [vmem:[#allocation2 + $0x28] sm:$0xff] 0.0
    %24 = vst [vmem:[#allocation2 + $0x30] sm:$0xff] 0.0
    %25 = vst [vmem:[#allocation2 + $0x38] sm:$0xff] 0.0
    %26 = vst [vmem:[#allocation2 + $0x40] sm:$0xff] 0.0
    %27 = vst [vmem:[#allocation2 + $0x48] sm:$0xff] 0.0
    %28 = vst [vmem:[#allocation2 + $0x50] sm:$0xff] 0.0
    %29 = vst [vmem:[#allocation2 + $0x58] sm:$0xff] 0.0
    %30 = vst [vmem:[#allocation2 + $0x60] sm:$0xff] 0.0
    %31 = vst [vmem:[#allocation2 + $0x68] sm:$0xff] 0.0
    %32 = vst [vmem:[#allocation2 + $0x70] sm:$0xff] 0.0
    %33 = vst [vmem:[#allocation2 + $0x78] sm:$0xff] 0.0
    %34 = vst [vmem:[#allocation2 + $0x80] sm:$0xff] 0.0
    %35 = vst [vmem:[#allocation2 + $0x88] sm:$0xff] 0.0
    %36 = vst [vmem:[#allocation2 + $0x90] sm:$0xff] 0.0
    %37 = vst [vmem:[#allocation2 + $0x98] sm:$0xff] 0.0
    %38 = vst [vmem:[#allocation2 + $0xa0] sm:$0xff] 0.0
    %39 = vst [vmem:[#allocation2 + $0xa8] sm:$0xff] 0.0
    %40 = vst [vmem:[#allocation2 + $0xb0] sm:$0xff] 0.0
    %41 = vst [vmem:[#allocation2 + $0xb8] sm:$0xff] 0.0
    %42 = vst [vmem:[#allocation2 + $0xc0] sm:$0xff] 0.0
    %43 = vst [vmem:[#allocation2 + $0xc8] sm:$0xff] 0.0
    %44 = vst [vmem:[#allocation2 + $0xd0] sm:$0xff] 0.0
    %45 = vst [vmem:[#allocation2 + $0xd8] sm:$0xff] 0.0
    %46 = vst [vmem:[#allocation2 + $0xe0] sm:$0xff] 0.0
    %47 = vst [vmem:[#allocation2 + $0xe8] sm:$0xff] 0.0
    %48 = vst [vmem:[#allocation2 + $0xf0] sm:$0xff] 0.0
    %49 = vst [vmem:[#allocation2 + $0xf8] sm:$0xff] 0.0
  $region17: #{forward.30} parent=0 // pred_fallthru
    _
  %v50 = vld [vmem:[#allocation2] sm:$0xff]
  %v51 = vld [vmem:[#allocation2 + $0x8] sm:$0xff]
  %v52 = vld [vmem:[#allocation2 + $0x10] sm:$0xff]
  %v53 = vld [vmem:[#allocation2 + $0x18] sm:$0xff]
  %v54 = vld [vmem:[#allocation2 + $0x20] sm:$0xff]
  %v55 = vld [vmem:[#allocation2 + $0x28] sm:$0xff]
  %v56 = vld [vmem:[#allocation2 + $0x30] sm:$0xff]
  %v57 = vld [vmem:[#allocation2 + $0x38] sm:$0xff]
  %v58 = vld [vmem:[#allocation2 + $0x40] sm:$0xff]
  %v59 = vld [vmem:[#allocation2 + $0x48] sm:$0xff]
  %v60 = vld [vmem:[#allocation2 + $0x50] sm:$0xff]
  %v61 = vld [vmem:[#allocation2 + $0x58] sm:$0xff]
  %v62 = vld [vmem:[#allocation2 + $0x60] sm:$0xff]
  %v63 = vld [vmem:[#allocation2 + $0x68] sm:$0xff]
  %v64 = vld [vmem:[#allocation2 + $0x70] sm:$0xff]
  %v65 = vld [vmem:[#allocation2 + $0x78] sm:$0xff]
  %v66 = vld [vmem:[#allocation2 + $0x80] sm:$0xff]
  %v67 = vld [vmem:[#allocation2 + $0x88] sm:$0xff]
  %v68 = vld [vmem:[#allocation2 + $0x90] sm:$0xff]
  %v69 = vld [vmem:[#allocation2 + $0x98] sm:$0xff]
  %v70 = vld [vmem:[#allocation2 + $0xa0] sm:$0xff]
  %v71 = vld [vmem:[#allocation2 + $0xa8] sm:$0xff]
  %v72 = vld [vmem:[#allocation2 + $0xb0] sm:$0xff]
  %v73 = vld [vmem:[#allocation2 + $0xb8] sm:$0xff]
  %v74 = vld [vmem:[#allocation2 + $0xc0] sm:$0xff]
  %v75 = vld [vmem:[#allocation2 + $0xc8] sm:$0xff]
  %v76 = vld [vmem:[#allocation2 + $0xd0] sm:$0xff]
  %v77 = vld [vmem:[#allocation2 + $0xd8] sm:$0xff]
  %v78 = vld [vmem:[#allocation2 + $0xe0] sm:$0xff]
  %v79 = vld [vmem:[#allocation2 + $0xe8] sm:$0xff]
  %v80 = vld [vmem:[#allocation2 + $0xf0] sm:$0xff]
  %v81 = vld [vmem:[#allocation2 + $0xf8] sm:$0xff]
  %v82 = vld [vmem:[%s0] sm:$0xf]
  %v83 = vld [vmem:[%s0 + $0x4] sm:$0xf]
  %v84 = vld [vmem:[%s0 + $0x8] sm:$0xf]
  %v85 = vld [vmem:[%s0 + $0xc] sm:$0xf]
  %v86 = vld [vmem:[%s0 + $0x10] sm:$0xf]
  %v87 = vld [vmem:[%s0 + $0x14] sm:$0xf]
  %v88 = vld [vmem:[%s0 + $0x18] sm:$0xf]
  %v89 = vld [vmem:[%s0 + $0x1c] sm:$0xf]
  %v90 = vld [vmem:[%s0 + $0x20] sm:$0xf]
  %v91 = vld [vmem:[%s0 + $0x24] sm:$0xf]
  %v92 = vld [vmem:[%s0 + $0x28] sm:$0xf]
  %v93 = vld [vmem:[%s0 + $0x2c] sm:$0xf]
  %v94 = vld [vmem:[%s0 + $0x30] sm:$0xf]
  %v95 = vld [vmem:[%s0 + $0x34] sm:$0xf]
  %v96 = vld [vmem:[%s0 + $0x38] sm:$0xf]
  %v97 = vld [vmem:[%s0 + $0x3c] sm:$0xf]
  %v98 = vld [vmem:[%s0 + $0x40] sm:$0xf]
  %v99 = vld [vmem:[%s0 + $0x44] sm:$0xf]
  %v100 = vld [vmem:[%s0 + $0x48] sm:$0xf]
  %v101 = vld [vmem:[%s0 + $0x4c] sm:$0xf]
  %v102 = vld [vmem:[%s0 + $0x50] sm:$0xf]
  %v103 = vld [vmem:[%s0 + $0x54] sm:$0xf]
  %v104 = vld [vmem:[%s0 + $0x58] sm:$0xf]
  %v105 = vld [vmem:[%s0 + $0x5c] sm:$0xf]
  %v106 = vld [vmem:[%s0 + $0x60] sm:$0xf]
  %v107 = vld [vmem:[%s0 + $0x64] sm:$0xf]
  %v108 = vld [vmem:[%s0 + $0x68] sm:$0xf]
  %v109 = vld [vmem:[%s0 + $0x6c] sm:$0xf]
  %v110 = vld [vmem:[%s0 + $0x70] sm:$0xf]
  %v111 = vld [vmem:[%s0 + $0x74] sm:$0xf]
  %v112 = vld [vmem:[%s0 + $0x78] sm:$0xf]
  %v113 = vld [vmem:[%s0 + $0x7c] sm:$0xf]
  %v114 = vld [vmem:[%s1] sm:$0xf]
  %v115 = vld [vmem:[%s1 + $0x4] sm:$0xf]
  %v116 = vld [vmem:[%s1 + $0x8] sm:$0xf]
  %v117 = vld [vmem:[%s1 + $0xc] sm:$0xf]
  %v118 = vld [vmem:[%s1 + $0x10] sm:$0xf]
  %v119 = vld [vmem:[%s1 + $0x14] sm:$0xf]
  %v120 = vld [vmem:[%s1 + $0x18] sm:$0xf]
  %v121 = vld [vmem:[%s1 + $0x1c] sm:$0xf]
  %v122 = vld [vmem:[%s1 + $0x20] sm:$0xf]
  %v123 = vld [vmem:[%s1 + $0x24] sm:$0xf]
  %v124 = vld [vmem:[%s1 + $0x28] sm:$0xf]
  %v125 = vld [vmem:[%s1 + $0x2c] sm:$0xf]
  %v126 = vld [vmem:[%s1 + $0x30] sm:$0xf]
  %v127 = vld [vmem:[%s1 + $0x34] sm:$0xf]
  %v128 = vld [vmem:[%s1 + $0x38] sm:$0xf]
  %v129 = vld [vmem:[%s1 + $0x3c] sm:$0xf]
  %v162 = vunpack.c.l.b16 %v82
  %v163 = vunpack.c.l.b16 %v83
  %v164 = vunpack.c.l.b16 %v84
  %v165 = vunpack.c.l.b16 %v85
  %v166 = vunpack.c.l.b16 %v86
  %v167 = vunpack.c.l.b16 %v87
  %v168 = vunpack.c.l.b16 %v88
  %v169 = vunpack.c.l.b16 %v89
  %v170 = vunpack.c.l.b16 %v90
  %v171 = vunpack.c.l.b16 %v91
  %v172 = vunpack.c.l.b16 %v92
  %v173 = vunpack.c.l.b16 %v93
  %v174 = vunpack.c.l.b16 %v94
  %v175 = vunpack.c.l.b16 %v95
  %v176 = vunpack.c.l.b16 %v96
  %v177 = vunpack.c.l.b16 %v97
  %v178 = vunpack.c.l.b16 %v98
  %v179 = vunpack.c.l.b16 %v99
  %v180 = vunpack.c.l.b16 %v100
  %v181 = vunpack.c.l.b16 %v101
  %v182 = vunpack.c.l.b16 %v102
  %v183 = vunpack.c.l.b16 %v103
  %v184 = vunpack.c.l.b16 %v104
  %v185 = vunpack.c.l.b16 %v105
  %v186 = vunpack.c.l.b16 %v106
  %v187 = vunpack.c.l.b16 %v107
  %v188 = vunpack.c.l.b16 %v108
  %v189 = vunpack.c.l.b16 %v109
  %v190 = vunpack.c.l.b16 %v110
  %v191 = vunpack.c.l.b16 %v111
  %v192 = vunpack.c.l.b16 %v112
  %v193 = vunpack.c.l.b16 %v113
  %v194 = vpack.c.b16 %v163, %v162
  %v195 = vpack.c.b16 %v165, %v164
  %v196 = vpack.c.b16 %v167, %v166
  %v197 = vpack.c.b16 %v169, %v168
  %v198 = vpack.c.b16 %v171, %v170
  %v199 = vpack.c.b16 %v173, %v172
  %v200 = vpack.c.b16 %v175, %v174
  %v201 = vpack.c.b16 %v177, %v176
  %v202 = vpack.c.b16 %v179, %v178
  %v203 = vpack.c.b16 %v181, %v180
  %v204 = vpack.c.b16 %v183, %v182
  %v205 = vpack.c.b16 %v185, %v184
  %v206 = vpack.c.b16 %v187, %v186
  %v207 = vpack.c.b16 %v189, %v188
  %v208 = vpack.c.b16 %v191, %v190
  %v209 = vpack.c.b16 %v193, %v192
  %v242 = vunpack.c.l.b16 %v114
  %v243 = vunpack.c.l.b16 %v115
  %v244 = vunpack.c.l.b16 %v116
  %v245 = vunpack.c.l.b16 %v117
  %v246 = vunpack.c.l.b16 %v118
  %v247 = vunpack.c.l.b16 %v119
  %v248 = vunpack.c.l.b16 %v120
  %v249 = vunpack.c.l.b16 %v121
  %v250 = vunpack.c.l.b16 %v122
  %v251 = vunpack.c.l.b16 %v123
  %v252 = vunpack.c.l.b16 %v124
  %v253 = vunpack.c.l.b16 %v125
  %v254 = vunpack.c.l.b16 %v126
  %v255 = vunpack.c.l.b16 %v127
  %v256 = vunpack.c.l.b16 %v128
  %v257 = vunpack.c.l.b16 %v129
  %v258 = vpack.c.b16 %v243, %v242
  %v259 = vpack.c.b16 %v245, %v244
  %v260 = vpack.c.b16 %v247, %v246
  %v261 = vpack.c.b16 %v249, %v248
  %v262 = vpack.c.b16 %v251, %v250
  %v263 = vpack.c.b16 %v253, %v252
  %v264 = vpack.c.b16 %v255, %v254
  %v265 = vpack.c.b16 %v257, %v256
  %274 = vmatpush.bf16.msra.mxu0 %v265
  %275 = vmatpush.bf16.msra.mxu0 %v264
  %276 = vmatpush.bf16.msra.mxu0 %v263
  %277 = vmatpush.bf16.msra.mxu0 %v262
  %278 = vmatpush.bf16.msra.mxu0 %v261
  %279 = vmatpush.bf16.msra.mxu0 %v260
  %280 = vmatpush.bf16.msra.mxu0 %v259
  %281 = vmatpush.bf16.msra.mxu0 %v258
  %282 = vmatmul.bf16.gmra.mxu0 %v194
  %v283 = vpop.f32.mrf.mxu0
  %v284 = vadd.f32 0.0, %v283
  %v285 = vpop.f32.mrf.mxu0
  %v286 = vadd.f32 0.0, %v285
  %287 = vmatmul.bf16.gmra.mxu0 %v195
  %v288 = vpop.f32.mrf.mxu0
  %v289 = vadd.f32 0.0, %v288
  %v290 = vpop.f32.mrf.mxu0
  %v291 = vadd.f32 0.0, %v290
  %292 = vmatmul.bf16.gmra.mxu0 %v196
  %v293 = vpop.f32.mrf.mxu0
  %v294 = vadd.f32 0.0, %v293
  %v295 = vpop.f32.mrf.mxu0
  %v296 = vadd.f32 0.0, %v295
  %297 = vmatmul.bf16.gmra.mxu0 %v197
  %v298 = vpop.f32.mrf.mxu0
  %v299 = vadd.f32 0.0, %v298
  %v300 = vpop.f32.mrf.mxu0
  %v301 = vadd.f32 0.0, %v300
  %302 = vmatmul.bf16.gmra.mxu0 %v198
  %v303 = vpop.f32.mrf.mxu0
  %v304 = vadd.f32 0.0, %v303
  %v305 = vpop.f32.mrf.mxu0
  %v306 = vadd.f32 0.0, %v305
  %307 = vmatmul.bf16.gmra.mxu0 %v199
  %v308 = vpop.f32.mrf.mxu0
  %v309 = vadd.f32 0.0, %v308
  %v310 = vpop.f32.mrf.mxu0
  %v311 = vadd.f32 0.0, %v310
  %312 = vmatmul.bf16.gmra.mxu0 %v200
  %v313 = vpop.f32.mrf.mxu0
  %v314 = vadd.f32 0.0, %v313
  %v315 = vpop.f32.mrf.mxu0
  %v316 = vadd.f32 0.0, %v315
  %317 = vmatmul.bf16.gmra.mxu0 %v201
  %v318 = vpop.f32.mrf.mxu0
  %v319 = vadd.f32 0.0, %v318
  %v320 = vpop.f32.mrf.mxu0
  %v321 = vadd.f32 0.0, %v320
  %322 = vmatmul.bf16.gmra.mxu0 %v202
  %v323 = vpop.f32.mrf.mxu0
  %v324 = vadd.f32 0.0, %v323
  %v325 = vpop.f32.mrf.mxu0
  %v326 = vadd.f32 0.0, %v325
  %327 = vmatmul.bf16.gmra.mxu0 %v203
  %v328 = vpop.f32.mrf.mxu0
  %v329 = vadd.f32 0.0, %v328
  %v330 = vpop.f32.mrf.mxu0
  %v331 = vadd.f32 0.0, %v330
  %332 = vmatmul.bf16.gmra.mxu0 %v204
  %v333 = vpop.f32.mrf.mxu0
  %v334 = vadd.f32 0.0, %v333
  %v335 = vpop.f32.mrf.mxu0
  %v336 = vadd.f32 0.0, %v335
  %337 = vmatmul.bf16.gmra.mxu0 %v205
  %v338 = vpop.f32.mrf.mxu0
  %v339 = vadd.f32 0.0, %v338
  %v340 = vpop.f32.mrf.mxu0
  %v341 = vadd.f32 0.0, %v340
  %342 = vmatmul.bf16.gmra.mxu0 %v206
  %v343 = vpop.f32.mrf.mxu0
  %v344 = vadd.f32 0.0, %v343
  %v345 = vpop.f32.mrf.mxu0
  %v346 = vadd.f32 0.0, %v345
  %347 = vmatmul.bf16.gmra.mxu0 %v207
  %v348 = vpop.f32.mrf.mxu0
  %v349 = vadd.f32 0.0, %v348
  %v350 = vpop.f32.mrf.mxu0
  %v351 = vadd.f32 0.0, %v350
  %352 = vmatmul.bf16.gmra.mxu0 %v208
  %v353 = vpop.f32.mrf.mxu0
  %v354 = vadd.f32 0.0, %v353
  %v355 = vpop.f32.mrf.mxu0
  %v356 = vadd.f32 0.0, %v355
  %357 = vmatmul.bf16.gmra.mxu0 %v209
  %v358 = vpop.f32.mrf.mxu0
  %v359 = vadd.f32 0.0, %v358
  %v360 = vpop.f32.mrf.mxu0
  %v361 = vadd.f32 0.0, %v360
  %362 = vdwg.mxu0
  %v363 = vadd.f32 %v50, %v284
  %v364 = vadd.f32 %v51, %v286
  %v365 = vadd.f32 %v52, %v289
  %v366 = vadd.f32 %v53, %v291
  %v367 = vadd.f32 %v54, %v294
  %v368 = vadd.f32 %v55, %v296
  %v369 = vadd.f32 %v56, %v299
  %v370 = vadd.f32 %v57, %v301
  %v371 = vadd.f32 %v58, %v304
  %v372 = vadd.f32 %v59, %v306
  %v373 = vadd.f32 %v60, %v309
  %v374 = vadd.f32 %v61, %v311
  %v375 = vadd.f32 %v62, %v314
  %v376 = vadd.f32 %v63, %v316
  %v377 = vadd.f32 %v64, %v319
  %v378 = vadd.f32 %v65, %v321
  %v379 = vadd.f32 %v66, %v324
  %v380 = vadd.f32 %v67, %v326
  %v381 = vadd.f32 %v68, %v329
  %v382 = vadd.f32 %v69, %v331
  %v383 = vadd.f32 %v70, %v334
  %v384 = vadd.f32 %v71, %v336
  %v385 = vadd.f32 %v72, %v339
  %v386 = vadd.f32 %v73, %v341
  %v387 = vadd.f32 %v74, %v344
  %v388 = vadd.f32 %v75, %v346
  %v389 = vadd.f32 %v76, %v349
  %v390 = vadd.f32 %v77, %v351
  %v391 = vadd.f32 %v78, %v354
  %v392 = vadd.f32 %v79, %v356
  %v393 = vadd.f32 %v80, %v359
  %v394 = vadd.f32 %v81, %v361
  %395 = vst [vmem:[#allocation2] sm:$0xff] %v363
  %396 = vst [vmem:[#allocation2 + $0x8] sm:$0xff] %v364
  %397 = vst [vmem:[#allocation2 + $0x10] sm:$0xff] %v365
  %398 = vst [vmem:[#allocation2 + $0x18] sm:$0xff] %v366
  %399 = vst [vmem:[#allocation2 + $0x20] sm:$0xff] %v367
  %400 = vst [vmem:[#allocation2 + $0x28] sm:$0xff] %v368
  %401 = vst [vmem:[#allocation2 + $0x30] sm:$0xff] %v369
  %402 = vst [vmem:[#allocation2 + $0x38] sm:$0xff] %v370
  %403 = vst [vmem:[#allocation2 + $0x40] sm:$0xff] %v371
  %404 = vst [vmem:[#allocation2 + $0x48] sm:$0xff] %v372
  %405 = vst [vmem:[#allocation2 + $0x50] sm:$0xff] %v373
  %406 = vst [vmem:[#allocation2 + $0x58] sm:$0xff] %v374
  %407 = vst [vmem:[#allocation2 + $0x60] sm:$0xff] %v375
  %408 = vst [vmem:[#allocation2 + $0x68] sm:$0xff] %v376
  %409 = vst [vmem:[#allocation2 + $0x70] sm:$0xff] %v377
  %410 = vst [vmem:[#allocation2 + $0x78] sm:$0xff] %v378
  %411 = vst [vmem:[#allocation2 + $0x80] sm:$0xff] %v379
  %412 = vst [vmem:[#allocation2 + $0x88] sm:$0xff] %v380
  %413 = vst [vmem:[#allocation2 + $0x90] sm:$0xff] %v381
  %414 = vst [vmem:[#allocation2 + $0x98] sm:$0xff] %v382
  %415 = vst [vmem:[#allocation2 + $0xa0] sm:$0xff] %v383
  %416 = vst [vmem:[#allocation2 + $0xa8] sm:$0xff] %v384
  %417 = vst [vmem:[#allocation2 + $0xb0] sm:$0xff] %v385
  %418 = vst [vmem:[#allocation2 + $0xb8] sm:$0xff] %v386
  %419 = vst [vmem:[#allocation2 + $0xc0] sm:$0xff] %v387
  %420 = vst [vmem:[#allocation2 + $0xc8] sm:$0xff] %v388
  %421 = vst [vmem:[#allocation2 + $0xd0] sm:$0xff] %v389
  %422 = vst [vmem:[#allocation2 + $0xd8] sm:$0xff] %v390
  %423 = vst [vmem:[#allocation2 + $0xe0] sm:$0xff] %v391
  %424 = vst [vmem:[#allocation2 + $0xe8] sm:$0xff] %v392
  %425 = vst [vmem:[#allocation2 + $0xf0] sm:$0xff] %v393
  %426 = vst [vmem:[#allocation2 + $0xf8] sm:$0xff] %v394
  // Predicated region
  $region18: #{forward.30} parent=0 // pred_check
    %p427 = pneg %p14
  $region19: #{forward.30} parent=0 // pred_check_branch
    %429 = sbr.rel (%p427) target = $region21
  $region20: #{forward.30} parent=0 // pred_region
    %v430 = vld [vmem:[#allocation2] sm:$0xff]
    %v431 = vld [vmem:[#allocation2 + $0x8] sm:$0xff]
    %v432 = vld [vmem:[#allocation2 + $0x10] sm:$0xff]
    %v433 = vld [vmem:[#allocation2 + $0x18] sm:$0xff]
    %v434 = vld [vmem:[#allocation2 + $0x20] sm:$0xff]
    %v435 = vld [vmem:[#allocation2 + $0x28] sm:$0xff]
    %v436 = vld [vmem:[#allocation2 + $0x30] sm:$0xff]
    %v437 = vld [vmem:[#allocation2 + $0x38] sm:$0xff]
    %v438 = vld [vmem:[#allocation2 + $0x40] sm:$0xff]
    %v439 = vld [vmem:[#allocation2 + $0x48] sm:$0xff]
    %v440 = vld [vmem:[#allocation2 + $0x50] sm:$0xff]
    %v441 = vld [vmem:[#allocation2 + $0x58] sm:$0xff]
    %v442 = vld [vmem:[#allocation2 + $0x60] sm:$0xff]
    %v443 = vld [vmem:[#allocation2 + $0x68] sm:$0xff]
    %v444 = vld [vmem:[#allocation2 + $0x70] sm:$0xff]
    %v445 = vld [vmem:[#allocation2 + $0x78] sm:$0xff]
    %v446 = vld [vmem:[#allocation2 + $0x80] sm:$0xff]
    %v447 = vld [vmem:[#allocation2 + $0x88] sm:$0xff]
    %v448 = vld [vmem:[#allocation2 + $0x90] sm:$0xff]
    %v449 = vld [vmem:[#allocation2 + $0x98] sm:$0xff]
    %v450 = vld [vmem:[#allocation2 + $0xa0] sm:$0xff]
    %v451 = vld [vmem:[#allocation2 + $0xa8] sm:$0xff]
    %v452 = vld [vmem:[#allocation2 + $0xb0] sm:$0xff]
    %v453 = vld [vmem:[#allocation2 + $0xb8] sm:$0xff]
    %v454 = vld [vmem:[#allocation2 + $0xc0] sm:$0xff]
    %v455 = vld [vmem:[#allocation2 + $0xc8] sm:$0xff]
    %v456 = vld [vmem:[#allocation2 + $0xd0] sm:$0xff]
    %v457 = vld [vmem:[#allocation2 + $0xd8] sm:$0xff]
    %v458 = vld [vmem:[#allocation2 + $0xe0] sm:$0xff]
    %v459 = vld [vmem:[#allocation2 + $0xe8] sm:$0xff]
    %v460 = vld [vmem:[#allocation2 + $0xf0] sm:$0xff]
    %v461 = vld [vmem:[#allocation2 + $0xf8] sm:$0xff]
    %v462 = vld [vmem:[%s2] sm:$0x1]
    %v464 = vperm.slane %v462, 0
    %v466 = vadd.f32 %v430, %v464
    %v467 = vadd.f32 %v431, %v464
    %v468 = vadd.f32 %v432, %v464
    %v469 = vadd.f32 %v433, %v464
    %v470 = vadd.f32 %v434, %v464
    %v471 = vadd.f32 %v435, %v464
    %v472 = vadd.f32 %v436, %v464
    %v473 = vadd.f32 %v437, %v464
    %v474 = vadd.f32 %v438, %v464
    %v475 = vadd.f32 %v439, %v464
    %v476 = vadd.f32 %v440, %v464
    %v477 = vadd.f32 %v441, %v464
    %v478 = vadd.f32 %v442, %v464
    %v479 = vadd.f32 %v443, %v464
    %v480 = vadd.f32 %v444, %v464
    %v481 = vadd.f32 %v445, %v464
    %v482 = vadd.f32 %v446, %v464
    %v483 = vadd.f32 %v447, %v464
    %v484 = vadd.f32 %v448, %v464
    %v485 = vadd.f32 %v449, %v464
    %v486 = vadd.f32 %v450, %v464
    %v487 = vadd.f32 %v451, %v464
    %v488 = vadd.f32 %v452, %v464
    %v489 = vadd.f32 %v453, %v464
    %v490 = vadd.f32 %v454, %v464
    %v491 = vadd.f32 %v455, %v464
    %v492 = vadd.f32 %v456, %v464
    %v493 = vadd.f32 %v457, %v464
    %v494 = vadd.f32 %v458, %v464
    %v495 = vadd.f32 %v459, %v464
    %v496 = vadd.f32 %v460, %v464
    %v497 = vadd.f32 %v461, %v464
    %v498 = vmax.f32 %v466, 0.0
    %v499 = vmax.f32 %v467, 0.0
    %v500 = vmax.f32 %v468, 0.0
    %v501 = vmax.f32 %v469, 0.0
    %v502 = vmax.f32 %v470, 0.0
    %v503 = vmax.f32 %v471, 0.0
    %v504 = vmax.f32 %v472, 0.0
    %v505 = vmax.f32 %v473, 0.0
    %v506 = vmax.f32 %v474, 0.0
    %v507 = vmax.f32 %v475, 0.0
    %v508 = vmax.f32 %v476, 0.0
    %v509 = vmax.f32 %v477, 0.0
    %v510 = vmax.f32 %v478, 0.0
    %v511 = vmax.f32 %v479, 0.0
    %v512 = vmax.f32 %v480, 0.0
    %v513 = vmax.f32 %v481, 0.0
    %v514 = vmax.f32 %v482, 0.0
    %v515 = vmax.f32 %v483, 0.0
    %v516 = vmax.f32 %v484, 0.0
    %v517 = vmax.f32 %v485, 0.0
    %v518 = vmax.f32 %v486, 0.0
    %v519 = vmax.f32 %v487, 0.0
    %v520 = vmax.f32 %v488, 0.0
    %v521 = vmax.f32 %v489, 0.0
    %v522 = vmax.f32 %v490, 0.0
    %v523 = vmax.f32 %v491, 0.0
    %v524 = vmax.f32 %v492, 0.0
    %v525 = vmax.f32 %v493, 0.0
    %v526 = vmax.f32 %v494, 0.0
    %v527 = vmax.f32 %v495, 0.0
    %v528 = vmax.f32 %v496, 0.0
    %v529 = vmax.f32 %v497, 0.0
    %530 = vst [vmem:[%s3] sm:$0xff] %v498
    %531 = vst [vmem:[%s3 + $0x8] sm:$0xff] %v499
    %532 = vst [vmem:[%s3 + $0x10] sm:$0xff] %v500
    %533 = vst [vmem:[%s3 + $0x18] sm:$0xff] %v501
    %534 = vst [vmem:[%s3 + $0x20] sm:$0xff] %v502
    %535 = vst [vmem:[%s3 + $0x28] sm:$0xff] %v503
    %536 = vst [vmem:[%s3 + $0x30] sm:$0xff] %v504
    %537 = vst [vmem:[%s3 + $0x38] sm:$0xff] %v505
    %538 = vst [vmem:[%s3 + $0x40] sm:$0xff] %v506
    %539 = vst [vmem:[%s3 + $0x48] sm:$0xff] %v507
    %540 = vst [vmem:[%s3 + $0x50] sm:$0xff] %v508
    %541 = vst [vmem:[%s3 + $0x58] sm:$0xff] %v509
    %542 = vst [vmem:[%s3 + $0x60] sm:$0xff] %v510
    %543 = vst [vmem:[%s3 + $0x68] sm:$0xff] %v511
    %544 = vst [vmem:[%s3 + $0x70] sm:$0xff] %v512
    %545 = vst [vmem:[%s3 + $0x78] sm:$0xff] %v513
    %546 = vst [vmem:[%s3 + $0x80] sm:$0xff] %v514
    %547 = vst [vmem:[%s3 + $0x88] sm:$0xff] %v515
    %548 = vst [vmem:[%s3 + $0x90] sm:$0xff] %v516
    %549 = vst [vmem:[%s3 + $0x98] sm:$0xff] %v517
    %550 = vst [vmem:[%s3 + $0xa0] sm:$0xff] %v518
    %551 = vst [vmem:[%s3 + $0xa8] sm:$0xff] %v519
    %552 = vst [vmem:[%s3 + $0xb0] sm:$0xff] %v520
    %553 = vst [vmem:[%s3 + $0xb8] sm:$0xff] %v521
    %554 = vst [vmem:[%s3 + $0xc0] sm:$0xff] %v522
    %555 = vst [vmem:[%s3 + $0xc8] sm:$0xff] %v523
    %556 = vst [vmem:[%s3 + $0xd0] sm:$0xff] %v524
    %557 = vst [vmem:[%s3 + $0xd8] sm:$0xff] %v525
    %558 = vst [vmem:[%s3 + $0xe0] sm:$0xff] %v526
    %559 = vst [vmem:[%s3 + $0xe8] sm:$0xff] %v527
    %560 = vst [vmem:[%s3 + $0xf0] sm:$0xff] %v528
    %561 = vst [vmem:[%s3 + $0xf8] sm:$0xff] %v529
  $region21: #{forward.30} parent=0 // pred_fallthru
    _
  // Predicated region
  $region22: #{forward.30} parent=0 // pred_check
    _
  $region23: #{forward.30} parent=0 // pred_check_branch
    %563 = sbr.rel (0) target = $region25
  $region24: #{forward.30} parent=0 // pred_region
    _
  $region25: #{forward.30} parent=0 // pred_fallthru
    _
  // Predicated region
  $region26: #{forward.30} parent=0 // pred_check
    _
  $region27: #{forward.30} parent=0 // pred_check_branch
    %565 = sbr.rel (0) target = $region29
  $region28: #{forward.30} parent=0 // pred_region
    _
  $region29: #{forward.30} parent=0 // pred_fallthru
    _

// kernel: forward.31
$region0: #{forward.31}
  #allocation0 [shape = 'u32[]', space=smem, size = 0x4, offset = 0x4, fixed_abs, tag = 'smem constant byte address 0x4 - core index']
  #allocation1 [shape = 'u32[72,128]{1,0:T(1,128)}', space=vmem, size = 0x9000, scoped, tag = 'internal scratch']
  #allocation2 [shape = 'f32[256,128]{1,0:T(8,128)}', space=vmem, size = 0x20000, scoped, tag = 'scratch operand']
  %s0 = inlined_call_operand.vmem [shape: bf16[256,128], index: 0, kind: input, shape index: {}]
  %s1 = inlined_call_operand.vmem [shape: bf16[128,128], index: 1, kind: input, shape index: {}]
  %s2 = inlined_call_operand.vmem [shape: f32[1,128], index: 2, kind: input, shape index: {}]
  %s3 = inlined_call_operand.vmem [shape: f32[256,128], index: 3, kind: output, shape index: {}]
  %s4 = sld [smem:[#allocation0]]
  $region30: #{forward.31} parent=0
    _
  %s6 = ssub.s32 1, %s4
  %s7 = scalar_select 0, %s6, %s4
  // Predicated region
  $region2: #{forward.31} parent=0 // pred_check
    _
  $region3: #{forward.31} parent=0 // pred_check_branch
    %9 = sbr.rel (0) target = $region5
  $region4: #{forward.31} parent=0 // pred_region
    _
  $region5: #{forward.31} parent=0 // pred_fallthru
    _
  // Predicated region
  $region6: #{forward.31} parent=0 // pred_check
    _
  $region7: #{forward.31} parent=0 // pred_check_branch
    %11 = sbr.rel (0) target = $region9
  $region8: #{forward.31} parent=0 // pred_region
    _
  $region9: #{forward.31} parent=0 // pred_fallthru
    _
  // Predicated region
  $region10: #{forward.31} parent=0 // pred_check
    _
  $region11: #{forward.31} parent=0 // pred_check_branch
    %13 = sbr.rel (0) target = $region13
  $region12: #{forward.31} parent=0 // pred_region
    _
  $region13: #{forward.31} parent=0 // pred_fallthru
    _
  %p14 = scmp.eq.s32.totalorder 0, 0
  // Predicated region
  $region14: #{forward.31} parent=0 // pred_check
    %p15 = pneg %p14
  $region15: #{forward.31} parent=0 // pred_check_branch
    %17 = sbr.rel (%p15) target = $region17
  $region16: #{forward.31} parent=0 // pred_region
    %18 = vst [vmem:[#allocation2] sm:$0xff] 0.0
    %19 = vst [vmem:[#allocation2 + $0x8] sm:$0xff] 0.0
    %20 = vst [vmem:[#allocation2 + $0x10] sm:$0xff] 0.0
    %21 = vst [vmem:[#allocation2 + $0x18] sm:$0xff] 0.0
    %22 = vst [vmem:[#allocation2 + $0x20] sm:$0xff] 0.0
    %23 = vst [vmem:[#allocation2 + $0x28] sm:$0xff] 0.0
    %24 = vst [vmem:[#allocation2 + $0x30] sm:$0xff] 0.0
    %25 = vst [vmem:[#allocation2 + $0x38] sm:$0xff] 0.0
    %26 = vst [vmem:[#allocation2 + $0x40] sm:$0xff] 0.0
    %27 = vst [vmem:[#allocation2 + $0x48] sm:$0xff] 0.0
    %28 = vst [vmem:[#allocation2 + $0x50] sm:$0xff] 0.0
    %29 = vst [vmem:[#allocation2 + $0x58] sm:$0xff] 0.0
    %30 = vst [vmem:[#allocation2 + $0x60] sm:$0xff] 0.0
    %31 = vst [vmem:[#allocation2 + $0x68] sm:$0xff] 0.0
    %32 = vst [vmem:[#allocation2 + $0x70] sm:$0xff] 0.0
    %33 = vst [vmem:[#allocation2 + $0x78] sm:$0xff] 0.0
    %34 = vst [vmem:[#allocation2 + $0x80] sm:$0xff] 0.0
    %35 = vst [vmem:[#allocation2 + $0x88] sm:$0xff] 0.0
    %36 = vst [vmem:[#allocation2 + $0x90] sm:$0xff] 0.0
    %37 = vst [vmem:[#allocation2 + $0x98] sm:$0xff] 0.0
    %38 = vst [vmem:[#allocation2 + $0xa0] sm:$0xff] 0.0
    %39 = vst [vmem:[#allocation2 + $0xa8] sm:$0xff] 0.0
    %40 = vst [vmem:[#allocation2 + $0xb0] sm:$0xff] 0.0
    %41 = vst [vmem:[#allocation2 + $0xb8] sm:$0xff] 0.0
    %42 = vst [vmem:[#allocation2 + $0xc0] sm:$0xff] 0.0
    %43 = vst [vmem:[#allocation2 + $0xc8] sm:$0xff] 0.0
    %44 = vst [vmem:[#allocation2 + $0xd0] sm:$0xff] 0.0
    %45 = vst [vmem:[#allocation2 + $0xd8] sm:$0xff] 0.0
    %46 = vst [vmem:[#allocation2 + $0xe0] sm:$0xff] 0.0
    %47 = vst [vmem:[#allocation2 + $0xe8] sm:$0xff] 0.0
    %48 = vst [vmem:[#allocation2 + $0xf0] sm:$0xff] 0.0
    %49 = vst [vmem:[#allocation2 + $0xf8] sm:$0xff] 0.0
  $region17: #{forward.31} parent=0 // pred_fallthru
    _
  %v50 = vld [vmem:[#allocation2] sm:$0xff]
  %v51 = vld [vmem:[#allocation2 + $0x8] sm:$0xff]
  %v52 = vld [vmem:[#allocation2 + $0x10] sm:$0xff]
  %v53 = vld [vmem:[#allocation2 + $0x18] sm:$0xff]
  %v54 = vld [vmem:[#allocation2 + $0x20] sm:$0xff]
  %v55 = vld [vmem:[#allocation2 + $0x28] sm:$0xff]
  %v56 = vld [vmem:[#allocation2 + $0x30] sm:$0xff]
  %v57 = vld [vmem:[#allocation2 + $0x38] sm:$0xff]
  %v58 = vld [vmem:[#allocation2 + $0x40] sm:$0xff]
  %v59 = vld [vmem:[#allocation2 + $0x48] sm:$0xff]
  %v60 = vld [vmem:[#allocation2 + $0x50] sm:$0xff]
  %v61 = vld [vmem:[#allocation2 + $0x58] sm:$0xff]
  %v62 = vld [vmem:[#allocation2 + $0x60] sm:$0xff]
  %v63 = vld [vmem:[#allocation2 + $0x68] sm:$0xff]
  %v64 = vld [vmem:[#allocation2 + $0x70] sm:$0xff]
  %v65 = vld [vmem:[#allocation2 + $0x78] sm:$0xff]
  %v66 = vld [vmem:[#allocation2 + $0x80] sm:$0xff]
  %v67 = vld [vmem:[#allocation2 + $0x88] sm:$0xff]
  %v68 = vld [vmem:[#allocation2 + $0x90] sm:$0xff]
  %v69 = vld [vmem:[#allocation2 + $0x98] sm:$0xff]
  %v70 = vld [vmem:[#allocation2 + $0xa0] sm:$0xff]
  %v71 = vld [vmem:[#allocation2 + $0xa8] sm:$0xff]
  %v72 = vld [vmem:[#allocation2 + $0xb0] sm:$0xff]
  %v73 = vld [vmem:[#allocation2 + $0xb8] sm:$0xff]
  %v74 = vld [vmem:[#allocation2 + $0xc0] sm:$0xff]
  %v75 = vld [vmem:[#allocation2 + $0xc8] sm:$0xff]
  %v76 = vld [vmem:[#allocation2 + $0xd0] sm:$0xff]
  %v77 = vld [vmem:[#allocation2 + $0xd8] sm:$0xff]
  %v78 = vld [vmem:[#allocation2 + $0xe0] sm:$0xff]
  %v79 = vld [vmem:[#allocation2 + $0xe8] sm:$0xff]
  %v80 = vld [vmem:[#allocation2 + $0xf0] sm:$0xff]
  %v81 = vld [vmem:[#allocation2 + $0xf8] sm:$0xff]
  %v82 = vld [vmem:[%s0] sm:$0xf]
  %v83 = vld [vmem:[%s0 + $0x4] sm:$0xf]
  %v84 = vld [vmem:[%s0 + $0x8] sm:$0xf]
  %v85 = vld [vmem:[%s0 + $0xc] sm:$0xf]
  %v86 = vld [vmem:[%s0 + $0x10] sm:$0xf]
  %v87 = vld [vmem:[%s0 + $0x14] sm:$0xf]
  %v88 = vld [vmem:[%s0 + $0x18] sm:$0xf]
  %v89 = vld [vmem:[%s0 + $0x1c] sm:$0xf]
  %v90 = vld [vmem:[%s0 + $0x20] sm:$0xf]
  %v91 = vld [vmem:[%s0 + $0x24] sm:$0xf]
  %v92 = vld [vmem:[%s0 + $0x28] sm:$0xf]
  %v93 = vld [vmem:[%s0 + $0x2c] sm:$0xf]
  %v94 = vld [vmem:[%s0 + $0x30] sm:$0xf]
  %v95 = vld [vmem:[%s0 + $0x34] sm:$0xf]
  %v96 = vld [vmem:[%s0 + $0x38] sm:$0xf]
  %v97 = vld [vmem:[%s0 + $0x3c] sm:$0xf]
  %v98 = vld [vmem:[%s0 + $0x40] sm:$0xf]
  %v99 = vld [vmem:[%s0 + $0x44] sm:$0xf]
  %v100 = vld [vmem:[%s0 + $0x48] sm:$0xf]
  %v101 = vld [vmem:[%s0 + $0x4c] sm:$0xf]
  %v102 = vld [vmem:[%s0 + $0x50] sm:$0xf]
  %v103 = vld [vmem:[%s0 + $0x54] sm:$0xf]
  %v104 = vld [vmem:[%s0 + $0x58] sm:$0xf]
  %v105 = vld [vmem:[%s0 + $0x5c] sm:$0xf]
  %v106 = vld [vmem:[%s0 + $0x60] sm:$0xf]
  %v107 = vld [vmem:[%s0 + $0x64] sm:$0xf]
  %v108 = vld [vmem:[%s0 + $0x68] sm:$0xf]
  %v109 = vld [vmem:[%s0 + $0x6c] sm:$0xf]
  %v110 = vld [vmem:[%s0 + $0x70] sm:$0xf]
  %v111 = vld [vmem:[%s0 + $0x74] sm:$0xf]
  %v112 = vld [vmem:[%s0 + $0x78] sm:$0xf]
  %v113 = vld [vmem:[%s0 + $0x7c] sm:$0xf]
  %v114 = vld [vmem:[%s1] sm:$0xf]
  %v115 = vld [vmem:[%s1 + $0x4] sm:$0xf]
  %v116 = vld [vmem:[%s1 + $0x8] sm:$0xf]
  %v117 = vld [vmem:[%s1 + $0xc] sm:$0xf]
  %v118 = vld [vmem:[%s1 + $0x10] sm:$0xf]
  %v119 = vld [vmem:[%s1 + $0x14] sm:$0xf]
  %v120 = vld [vmem:[%s1 + $0x18] sm:$0xf]
  %v121 = vld [vmem:[%s1 + $0x1c] sm:$0xf]
  %v122 = vld [vmem:[%s1 + $0x20] sm:$0xf]
  %v123 = vld [vmem:[%s1 + $0x24] sm:$0xf]
  %v124 = vld [vmem:[%s1 + $0x28] sm:$0xf]
  %v125 = vld [vmem:[%s1 + $0x2c] sm:$0xf]
  %v126 = vld [vmem:[%s1 + $0x30] sm:$0xf]
  %v127 = vld [vmem:[%s1 + $0x34] sm:$0xf]
  %v128 = vld [vmem:[%s1 + $0x38] sm:$0xf]
  %v129 = vld [vmem:[%s1 + $0x3c] sm:$0xf]
  %v162 = vunpack.c.l.b16 %v82
  %v163 = vunpack.c.l.b16 %v83
  %v164 = vunpack.c.l.b16 %v84
  %v165 = vunpack.c.l.b16 %v85
  %v166 = vunpack.c.l.b16 %v86
  %v167 = vunpack.c.l.b16 %v87
  %v168 = vunpack.c.l.b16 %v88
  %v169 = vunpack.c.l.b16 %v89
  %v170 = vunpack.c.l.b16 %v90
  %v171 = vunpack.c.l.b16 %v91
  %v172 = vunpack.c.l.b16 %v92
  %v173 = vunpack.c.l.b16 %v93
  %v174 = vunpack.c.l.b16 %v94
  %v175 = vunpack.c.l.b16 %v95
  %v176 = vunpack.c.l.b16 %v96
  %v177 = vunpack.c.l.b16 %v97
  %v178 = vunpack.c.l.b16 %v98
  %v179 = vunpack.c.l.b16 %v99
  %v180 = vunpack.c.l.b16 %v100
  %v181 = vunpack.c.l.b16 %v101
  %v182 = vunpack.c.l.b16 %v102
  %v183 = vunpack.c.l.b16 %v103
  %v184 = vunpack.c.l.b16 %v104
  %v185 = vunpack.c.l.b16 %v105
  %v186 = vunpack.c.l.b16 %v106
  %v187 = vunpack.c.l.b16 %v107
  %v188 = vunpack.c.l.b16 %v108
  %v189 = vunpack.c.l.b16 %v109
  %v190 = vunpack.c.l.b16 %v110
  %v191 = vunpack.c.l.b16 %v111
  %v192 = vunpack.c.l.b16 %v112
  %v193 = vunpack.c.l.b16 %v113
  %v194 = vpack.c.b16 %v163, %v162
  %v195 = vpack.c.b16 %v165, %v164
  %v196 = vpack.c.b16 %v167, %v166
  %v197 = vpack.c.b16 %v169, %v168
  %v198 = vpack.c.b16 %v171, %v170
  %v199 = vpack.c.b16 %v173, %v172
  %v200 = vpack.c.b16 %v175, %v174
  %v201 = vpack.c.b16 %v177, %v176
  %v202 = vpack.c.b16 %v179, %v178
  %v203 = vpack.c.b16 %v181, %v180
  %v204 = vpack.c.b16 %v183, %v182
  %v205 = vpack.c.b16 %v185, %v184
  %v206 = vpack.c.b16 %v187, %v186
  %v207 = vpack.c.b16 %v189, %v188
  %v208 = vpack.c.b16 %v191, %v190
  %v209 = vpack.c.b16 %v193, %v192
  %v242 = vunpack.c.l.b16 %v114
  %v243 = vunpack.c.l.b16 %v115
  %v244 = vunpack.c.l.b16 %v116
  %v245 = vunpack.c.l.b16 %v117
  %v246 = vunpack.c.l.b16 %v118
  %v247 = vunpack.c.l.b16 %v119
  %v248 = vunpack.c.l.b16 %v120
  %v249 = vunpack.c.l.b16 %v121
  %v250 = vunpack.c.l.b16 %v122
  %v251 = vunpack.c.l.b16 %v123
  %v252 = vunpack.c.l.b16 %v124
  %v253 = vunpack.c.l.b16 %v125
  %v254 = vunpack.c.l.b16 %v126
  %v255 = vunpack.c.l.b16 %v127
  %v256 = vunpack.c.l.b16 %v128
  %v257 = vunpack.c.l.b16 %v129
  %v258 = vpack.c.b16 %v243, %v242
  %v259 = vpack.c.b16 %v245, %v244
  %v260 = vpack.c.b16 %v247, %v246
  %v261 = vpack.c.b16 %v249, %v248
  %v262 = vpack.c.b16 %v251, %v250
  %v263 = vpack.c.b16 %v253, %v252
  %v264 = vpack.c.b16 %v255, %v254
  %v265 = vpack.c.b16 %v257, %v256
  %274 = vmatpush.bf16.msra.mxu0 %v265
  %275 = vmatpush.bf16.msra.mxu0 %v264
  %276 = vmatpush.bf16.msra.mxu0 %v263
  %277 = vmatpush.bf16.msra.mxu0 %v262
  %278 = vmatpush.bf16.msra.mxu0 %v261
  %279 = vmatpush.bf16.msra.mxu0 %v260
  %280 = vmatpush.bf16.msra.mxu0 %v259
  %281 = vmatpush.bf16.msra.mxu0 %v258
  %282 = vmatmul.bf16.gmra.mxu0 %v194
  %v283 = vpop.f32.mrf.mxu0
  %v284 = vadd.f32 0.0, %v283
  %v285 = vpop.f32.mrf.mxu0
  %v286 = vadd.f32 0.0, %v285
  %287 = vmatmul.bf16.gmra.mxu0 %v195
  %v288 = vpop.f32.mrf.mxu0
  %v289 = vadd.f32 0.0, %v288
  %v290 = vpop.f32.mrf.mxu0
  %v291 = vadd.f32 0.0, %v290
  %292 = vmatmul.bf16.gmra.mxu0 %v196
  %v293 = vpop.f32.mrf.mxu0
  %v294 = vadd.f32 0.0, %v293
  %v295 = vpop.f32.mrf.mxu0
  %v296 = vadd.f32 0.0, %v295
  %297 = vmatmul.bf16.gmra.mxu0 %v197
  %v298 = vpop.f32.mrf.mxu0
  %v299 = vadd.f32 0.0, %v298
  %v300 = vpop.f32.mrf.mxu0
  %v301 = vadd.f32 0.0, %v300
  %302 = vmatmul.bf16.gmra.mxu0 %v198
  %v303 = vpop.f32.mrf.mxu0
  %v304 = vadd.f32 0.0, %v303
  %v305 = vpop.f32.mrf.mxu0
  %v306 = vadd.f32 0.0, %v305
  %307 = vmatmul.bf16.gmra.mxu0 %v199
  %v308 = vpop.f32.mrf.mxu0
  %v309 = vadd.f32 0.0, %v308
  %v310 = vpop.f32.mrf.mxu0
  %v311 = vadd.f32 0.0, %v310
  %312 = vmatmul.bf16.gmra.mxu0 %v200
  %v313 = vpop.f32.mrf.mxu0
  %v314 = vadd.f32 0.0, %v313
  %v315 = vpop.f32.mrf.mxu0
  %v316 = vadd.f32 0.0, %v315
  %317 = vmatmul.bf16.gmra.mxu0 %v201
  %v318 = vpop.f32.mrf.mxu0
  %v319 = vadd.f32 0.0, %v318
  %v320 = vpop.f32.mrf.mxu0
  %v321 = vadd.f32 0.0, %v320
  %322 = vmatmul.bf16.gmra.mxu0 %v202
  %v323 = vpop.f32.mrf.mxu0
  %v324 = vadd.f32 0.0, %v323
  %v325 = vpop.f32.mrf.mxu0
  %v326 = vadd.f32 0.0, %v325
  %327 = vmatmul.bf16.gmra.mxu0 %v203
  %v328 = vpop.f32.mrf.mxu0
  %v329 = vadd.f32 0.0, %v328
  %v330 = vpop.f32.mrf.mxu0
  %v331 = vadd.f32 0.0, %v330
  %332 = vmatmul.bf16.gmra.mxu0 %v204
  %v333 = vpop.f32.mrf.mxu0
  %v334 = vadd.f32 0.0, %v333
  %v335 = vpop.f32.mrf.mxu0
  %v336 = vadd.f32 0.0, %v335
  %337 = vmatmul.bf16.gmra.mxu0 %v205
  %v338 = vpop.f32.mrf.mxu0
  %v339 = vadd.f32 0.0, %v338
  %v340 = vpop.f32.mrf.mxu0
  %v341 = vadd.f32 0.0, %v340
  %342 = vmatmul.bf16.gmra.mxu0 %v206
  %v343 = vpop.f32.mrf.mxu0
  %v344 = vadd.f32 0.0, %v343
  %v345 = vpop.f32.mrf.mxu0
  %v346 = vadd.f32 0.0, %v345
  %347 = vmatmul.bf16.gmra.mxu0 %v207
  %v348 = vpop.f32.mrf.mxu0
  %v349 = vadd.f32 0.0, %v348
  %v350 = vpop.f32.mrf.mxu0
  %v351 = vadd.f32 0.0, %v350
  %352 = vmatmul.bf16.gmra.mxu0 %v208
  %v353 = vpop.f32.mrf.mxu0
  %v354 = vadd.f32 0.0, %v353
  %v355 = vpop.f32.mrf.mxu0
  %v356 = vadd.f32 0.0, %v355
  %357 = vmatmul.bf16.gmra.mxu0 %v209
  %v358 = vpop.f32.mrf.mxu0
  %v359 = vadd.f32 0.0, %v358
  %v360 = vpop.f32.mrf.mxu0
  %v361 = vadd.f32 0.0, %v360
  %362 = vdwg.mxu0
  %v363 = vadd.f32 %v50, %v284
  %v364 = vadd.f32 %v51, %v286
  %v365 = vadd.f32 %v52, %v289
  %v366 = vadd.f32 %v53, %v291
  %v367 = vadd.f32 %v54, %v294
  %v368 = vadd.f32 %v55, %v296
  %v369 = vadd.f32 %v56, %v299
  %v370 = vadd.f32 %v57, %v301
  %v371 = vadd.f32 %v58, %v304
  %v372 = vadd.f32 %v59, %v306
  %v373 = vadd.f32 %v60, %v309
  %v374 = vadd.f32 %v61, %v311
  %v375 = vadd.f32 %v62, %v314
  %v376 = vadd.f32 %v63, %v316
  %v377 = vadd.f32 %v64, %v319
  %v378 = vadd.f32 %v65, %v321
  %v379 = vadd.f32 %v66, %v324
  %v380 = vadd.f32 %v67, %v326
  %v381 = vadd.f32 %v68, %v329
  %v382 = vadd.f32 %v69, %v331
  %v383 = vadd.f32 %v70, %v334
  %v384 = vadd.f32 %v71, %v336
  %v385 = vadd.f32 %v72, %v339
  %v386 = vadd.f32 %v73, %v341
  %v387 = vadd.f32 %v74, %v344
  %v388 = vadd.f32 %v75, %v346
  %v389 = vadd.f32 %v76, %v349
  %v390 = vadd.f32 %v77, %v351
  %v391 = vadd.f32 %v78, %v354
  %v392 = vadd.f32 %v79, %v356
  %v393 = vadd.f32 %v80, %v359
  %v394 = vadd.f32 %v81, %v361
  %395 = vst [vmem:[#allocation2] sm:$0xff] %v363
  %396 = vst [vmem:[#allocation2 + $0x8] sm:$0xff] %v364
  %397 = vst [vmem:[#allocation2 + $0x10] sm:$0xff] %v365
  %398 = vst [vmem:[#allocation2 + $0x18] sm:$0xff] %v366
  %399 = vst [vmem:[#allocation2 + $0x20] sm:$0xff] %v367
  %400 = vst [vmem:[#allocation2 + $0x28] sm:$0xff] %v368
  %401 = vst [vmem:[#allocation2 + $0x30] sm:$0xff] %v369
  %402 = vst [vmem:[#allocation2 + $0x38] sm:$0xff] %v370
  %403 = vst [vmem:[#allocation2 + $0x40] sm:$0xff] %v371
  %404 = vst [vmem:[#allocation2 + $0x48] sm:$0xff] %v372
  %405 = vst [vmem:[#allocation2 + $0x50] sm:$0xff] %v373
  %406 = vst [vmem:[#allocation2 + $0x58] sm:$0xff] %v374
  %407 = vst [vmem:[#allocation2 + $0x60] sm:$0xff] %v375
  %408 = vst [vmem:[#allocation2 + $0x68] sm:$0xff] %v376
  %409 = vst [vmem:[#allocation2 + $0x70] sm:$0xff] %v377
  %410 = vst [vmem:[#allocation2 + $0x78] sm:$0xff] %v378
  %411 = vst [vmem:[#allocation2 + $0x80] sm:$0xff] %v379
  %412 = vst [vmem:[#allocation2 + $0x88] sm:$0xff] %v380
  %413 = vst [vmem:[#allocation2 + $0x90] sm:$0xff] %v381
  %414 = vst [vmem:[#allocation2 + $0x98] sm:$0xff] %v382
  %415 = vst [vmem:[#allocation2 + $0xa0] sm:$0xff] %v383
  %416 = vst [vmem:[#allocation2 + $0xa8] sm:$0xff] %v384
  %417 = vst [vmem:[#allocation2 + $0xb0] sm:$0xff] %v385
  %418 = vst [vmem:[#allocation2 + $0xb8] sm:$0xff] %v386
  %419 = vst [vmem:[#allocation2 + $0xc0] sm:$0xff] %v387
  %420 = vst [vmem:[#allocation2 + $0xc8] sm:$0xff] %v388
  %421 = vst [vmem:[#allocation2 + $0xd0] sm:$0xff] %v389
  %422 = vst [vmem:[#allocation2 + $0xd8] sm:$0xff] %v390
  %423 = vst [vmem:[#allocation2 + $0xe0] sm:$0xff] %v391
  %424 = vst [vmem:[#allocation2 + $0xe8] sm:$0xff] %v392
  %425 = vst [vmem:[#allocation2 + $0xf0] sm:$0xff] %v393
  %426 = vst [vmem:[#allocation2 + $0xf8] sm:$0xff] %v394
  // Predicated region
  $region18: #{forward.31} parent=0 // pred_check
    %p427 = pneg %p14
  $region19: #{forward.31} parent=0 // pred_check_branch
    %429 = sbr.rel (%p427) target = $region21
  $region20: #{forward.31} parent=0 // pred_region
    %v430 = vld [vmem:[#allocation2] sm:$0xff]
    %v431 = vld [vmem:[#allocation2 + $0x8] sm:$0xff]
    %v432 = vld [vmem:[#allocation2 + $0x10] sm:$0xff]
    %v433 = vld [vmem:[#allocation2 + $0x18] sm:$0xff]
    %v434 = vld [vmem:[#allocation2 + $0x20] sm:$0xff]
    %v435 = vld [vmem:[#allocation2 + $0x28] sm:$0xff]
    %v436 = vld [vmem:[#allocation2 + $0x30] sm:$0xff]
    %v437 = vld [vmem:[#allocation2 + $0x38] sm:$0xff]
    %v438 = vld [vmem:[#allocation2 + $0x40] sm:$0xff]
    %v439 = vld [vmem:[#allocation2 + $0x48] sm:$0xff]
    %v440 = vld [vmem:[#allocation2 + $0x50] sm:$0xff]
    %v441 = vld [vmem:[#allocation2 + $0x58] sm:$0xff]
    %v442 = vld [vmem:[#allocation2 + $0x60] sm:$0xff]
    %v443 = vld [vmem:[#allocation2 + $0x68] sm:$0xff]
    %v444 = vld [vmem:[#allocation2 + $0x70] sm:$0xff]
    %v445 = vld [vmem:[#allocation2 + $0x78] sm:$0xff]
    %v446 = vld [vmem:[#allocation2 + $0x80] sm:$0xff]
    %v447 = vld [vmem:[#allocation2 + $0x88] sm:$0xff]
    %v448 = vld [vmem:[#allocation2 + $0x90] sm:$0xff]
    %v449 = vld [vmem:[#allocation2 + $0x98] sm:$0xff]
    %v450 = vld [vmem:[#allocation2 + $0xa0] sm:$0xff]
    %v451 = vld [vmem:[#allocation2 + $0xa8] sm:$0xff]
    %v452 = vld [vmem:[#allocation2 + $0xb0] sm:$0xff]
    %v453 = vld [vmem:[#allocation2 + $0xb8] sm:$0xff]
    %v454 = vld [vmem:[#allocation2 + $0xc0] sm:$0xff]
    %v455 = vld [vmem:[#allocation2 + $0xc8] sm:$0xff]
    %v456 = vld [vmem:[#allocation2 + $0xd0] sm:$0xff]
    %v457 = vld [vmem:[#allocation2 + $0xd8] sm:$0xff]
    %v458 = vld [vmem:[#allocation2 + $0xe0] sm:$0xff]
    %v459 = vld [vmem:[#allocation2 + $0xe8] sm:$0xff]
    %v460 = vld [vmem:[#allocation2 + $0xf0] sm:$0xff]
    %v461 = vld [vmem:[#allocation2 + $0xf8] sm:$0xff]
    %v462 = vld [vmem:[%s2] sm:$0x1]
    %v464 = vperm.slane %v462, 0
    %v466 = vadd.f32 %v430, %v464
    %v467 = vadd.f32 %v431, %v464
    %v468 = vadd.f32 %v432, %v464
    %v469 = vadd.f32 %v433, %v464
    %v470 = vadd.f32 %v434, %v464
    %v471 = vadd.f32 %v435, %v464
    %v472 = vadd.f32 %v436, %v464
    %v473 = vadd.f32 %v437, %v464
    %v474 = vadd.f32 %v438, %v464
    %v475 = vadd.f32 %v439, %v464
    %v476 = vadd.f32 %v440, %v464
    %v477 = vadd.f32 %v441, %v464
    %v478 = vadd.f32 %v442, %v464
    %v479 = vadd.f32 %v443, %v464
    %v480 = vadd.f32 %v444, %v464
    %v481 = vadd.f32 %v445, %v464
    %v482 = vadd.f32 %v446, %v464
    %v483 = vadd.f32 %v447, %v464
    %v484 = vadd.f32 %v448, %v464
    %v485 = vadd.f32 %v449, %v464
    %v486 = vadd.f32 %v450, %v464
    %v487 = vadd.f32 %v451, %v464
    %v488 = vadd.f32 %v452, %v464
    %v489 = vadd.f32 %v453, %v464
    %v490 = vadd.f32 %v454, %v464
    %v491 = vadd.f32 %v455, %v464
    %v492 = vadd.f32 %v456, %v464
    %v493 = vadd.f32 %v457, %v464
    %v494 = vadd.f32 %v458, %v464
    %v495 = vadd.f32 %v459, %v464
    %v496 = vadd.f32 %v460, %v464
    %v497 = vadd.f32 %v461, %v464
    %498 = vst [vmem:[%s3] sm:$0xff] %v466
    %499 = vst [vmem:[%s3 + $0x8] sm:$0xff] %v467
    %500 = vst [vmem:[%s3 + $0x10] sm:$0xff] %v468
    %501 = vst [vmem:[%s3 + $0x18] sm:$0xff] %v469
    %502 = vst [vmem:[%s3 + $0x20] sm:$0xff] %v470
    %503 = vst [vmem:[%s3 + $0x28] sm:$0xff] %v471
    %504 = vst [vmem:[%s3 + $0x30] sm:$0xff] %v472
    %505 = vst [vmem:[%s3 + $0x38] sm:$0xff] %v473
    %506 = vst [vmem:[%s3 + $0x40] sm:$0xff] %v474
    %507 = vst [vmem:[%s3 + $0x48] sm:$0xff] %v475
    %508 = vst [vmem:[%s3 + $0x50] sm:$0xff] %v476
    %509 = vst [vmem:[%s3 + $0x58] sm:$0xff] %v477
    %510 = vst [vmem:[%s3 + $0x60] sm:$0xff] %v478
    %511 = vst [vmem:[%s3 + $0x68] sm:$0xff] %v479
    %512 = vst [vmem:[%s3 + $0x70] sm:$0xff] %v480
    %513 = vst [vmem:[%s3 + $0x78] sm:$0xff] %v481
    %514 = vst [vmem:[%s3 + $0x80] sm:$0xff] %v482
    %515 = vst [vmem:[%s3 + $0x88] sm:$0xff] %v483
    %516 = vst [vmem:[%s3 + $0x90] sm:$0xff] %v484
    %517 = vst [vmem:[%s3 + $0x98] sm:$0xff] %v485
    %518 = vst [vmem:[%s3 + $0xa0] sm:$0xff] %v486
    %519 = vst [vmem:[%s3 + $0xa8] sm:$0xff] %v487
    %520 = vst [vmem:[%s3 + $0xb0] sm:$0xff] %v488
    %521 = vst [vmem:[%s3 + $0xb8] sm:$0xff] %v489
    %522 = vst [vmem:[%s3 + $0xc0] sm:$0xff] %v490
    %523 = vst [vmem:[%s3 + $0xc8] sm:$0xff] %v491
    %524 = vst [vmem:[%s3 + $0xd0] sm:$0xff] %v492
    %525 = vst [vmem:[%s3 + $0xd8] sm:$0xff] %v493
    %526 = vst [vmem:[%s3 + $0xe0] sm:$0xff] %v494
    %527 = vst [vmem:[%s3 + $0xe8] sm:$0xff] %v495
    %528 = vst [vmem:[%s3 + $0xf0] sm:$0xff] %v496
    %529 = vst [vmem:[%s3 + $0xf8] sm:$0xff] %v497
  $region21: #{forward.31} parent=0 // pred_fallthru
    _
  // Predicated region
  $region22: #{forward.31} parent=0 // pred_check
    _
  $region23: #{forward.31} parent=0 // pred_check_branch
    %531 = sbr.rel (0) target = $region25
  $region24: #{forward.31} parent=0 // pred_region
    _
  $region25: #{forward.31} parent=0 // pred_fallthru
    _
  // Predicated region
  $region26: #{forward.31} parent=0 // pred_check
    _
  $region27: #{forward.31} parent=0 // pred_check_branch
    %533 = sbr.rel (0) target = $region29
  $region28: #{forward.31} parent=0 // pred_region
    _
  $region29: #{forward.31} parent=0 // pred_fallthru
    _

// kernel: forward.32
$region0: #{forward.32}
  #allocation0 [shape = 'u32[]', space=smem, size = 0x4, offset = 0x4, fixed_abs, tag = 'smem constant byte address 0x4 - core index']
  #allocation1 [shape = 'u32[72,128]{1,0:T(1,128)}', space=vmem, size = 0x9000, scoped, tag = 'internal scratch']
  #allocation2 [shape = 'f32[256,128]{1,0:T(8,128)}', space=vmem, size = 0x20000, scoped, tag = 'scratch operand']
  %s0 = inlined_call_operand.vmem [shape: bf16[256,128], index: 0, kind: input, shape index: {}]
  %s1 = inlined_call_operand.vmem [shape: bf16[128,128], index: 1, kind: input, shape index: {}]
  %s2 = inlined_call_operand.vmem [shape: f32[1,128], index: 2, kind: input, shape index: {}]
  %s3 = inlined_call_operand.vmem [shape: f32[256,128], index: 3, kind: input, shape index: {}]
  %s4 = inlined_call_operand.vmem [shape: f32[256,128], index: 4, kind: output, shape index: {}]
  %s5 = sld [smem:[#allocation0]]
  $region34: #{forward.32} parent=0
    _
  %s7 = ssub.s32 1, %s5
  %s8 = scalar_select 0, %s7, %s5
  // Predicated region
  $region2: #{forward.32} parent=0 // pred_check
    _
  $region3: #{forward.32} parent=0 // pred_check_branch
    %10 = sbr.rel (0) target = $region5
  $region4: #{forward.32} parent=0 // pred_region
    _
  $region5: #{forward.32} parent=0 // pred_fallthru
    _
  // Predicated region
  $region6: #{forward.32} parent=0 // pred_check
    _
  $region7: #{forward.32} parent=0 // pred_check_branch
    %12 = sbr.rel (0) target = $region9
  $region8: #{forward.32} parent=0 // pred_region
    _
  $region9: #{forward.32} parent=0 // pred_fallthru
    _
  // Predicated region
  $region10: #{forward.32} parent=0 // pred_check
    _
  $region11: #{forward.32} parent=0 // pred_check_branch
    %14 = sbr.rel (0) target = $region13
  $region12: #{forward.32} parent=0 // pred_region
    _
  $region13: #{forward.32} parent=0 // pred_fallthru
    _
  // Predicated region
  $region14: #{forward.32} parent=0 // pred_check
    _
  $region15: #{forward.32} parent=0 // pred_check_branch
    %16 = sbr.rel (0) target = $region17
  $region16: #{forward.32} parent=0 // pred_region
    _
  $region17: #{forward.32} parent=0 // pred_fallthru
    _
  %p17 = scmp.eq.s32.totalorder 0, 0
  // Predicated region
  $region18: #{forward.32} parent=0 // pred_check
    %p18 = pneg %p17
  $region19: #{forward.32} parent=0 // pred_check_branch
    %20 = sbr.rel (%p18) target = $region21
  $region20: #{forward.32} parent=0 // pred_region
    %21 = vst [vmem:[#allocation2] sm:$0xff] 0.0
    %22 = vst [vmem:[#allocation2 + $0x8] sm:$0xff] 0.0
    %23 = vst [vmem:[#allocation2 + $0x10] sm:$0xff] 0.0
    %24 = vst [vmem:[#allocation2 + $0x18] sm:$0xff] 0.0
    %25 = vst [vmem:[#allocation2 + $0x20] sm:$0xff] 0.0
    %26 = vst [vmem:[#allocation2 + $0x28] sm:$0xff] 0.0
    %27 = vst [vmem:[#allocation2 + $0x30] sm:$0xff] 0.0
    %28 = vst [vmem:[#allocation2 + $0x38] sm:$0xff] 0.0
    %29 = vst [vmem:[#allocation2 + $0x40] sm:$0xff] 0.0
    %30 = vst [vmem:[#allocation2 + $0x48] sm:$0xff] 0.0
    %31 = vst [vmem:[#allocation2 + $0x50] sm:$0xff] 0.0
    %32 = vst [vmem:[#allocation2 + $0x58] sm:$0xff] 0.0
    %33 = vst [vmem:[#allocation2 + $0x60] sm:$0xff] 0.0
    %34 = vst [vmem:[#allocation2 + $0x68] sm:$0xff] 0.0
    %35 = vst [vmem:[#allocation2 + $0x70] sm:$0xff] 0.0
    %36 = vst [vmem:[#allocation2 + $0x78] sm:$0xff] 0.0
    %37 = vst [vmem:[#allocation2 + $0x80] sm:$0xff] 0.0
    %38 = vst [vmem:[#allocation2 + $0x88] sm:$0xff] 0.0
    %39 = vst [vmem:[#allocation2 + $0x90] sm:$0xff] 0.0
    %40 = vst [vmem:[#allocation2 + $0x98] sm:$0xff] 0.0
    %41 = vst [vmem:[#allocation2 + $0xa0] sm:$0xff] 0.0
    %42 = vst [vmem:[#allocation2 + $0xa8] sm:$0xff] 0.0
    %43 = vst [vmem:[#allocation2 + $0xb0] sm:$0xff] 0.0
    %44 = vst [vmem:[#allocation2 + $0xb8] sm:$0xff] 0.0
    %45 = vst [vmem:[#allocation2 + $0xc0] sm:$0xff] 0.0
    %46 = vst [vmem:[#allocation2 + $0xc8] sm:$0xff] 0.0
    %47 = vst [vmem:[#allocation2 + $0xd0] sm:$0xff] 0.0
    %48 = vst [vmem:[#allocation2 + $0xd8] sm:$0xff] 0.0
    %49 = vst [vmem:[#allocation2 + $0xe0] sm:$0xff] 0.0
    %50 = vst [vmem:[#allocation2 + $0xe8] sm:$0xff] 0.0
    %51 = vst [vmem:[#allocation2 + $0xf0] sm:$0xff] 0.0
    %52 = vst [vmem:[#allocation2 + $0xf8] sm:$0xff] 0.0
  $region21: #{forward.32} parent=0 // pred_fallthru
    _
  %v53 = vld [vmem:[#allocation2] sm:$0xff]
  %v54 = vld [vmem:[#allocation2 + $0x8] sm:$0xff]
  %v55 = vld [vmem:[#allocation2 + $0x10] sm:$0xff]
  %v56 = vld [vmem:[#allocation2 + $0x18] sm:$0xff]
  %v57 = vld [vmem:[#allocation2 + $0x20] sm:$0xff]
  %v58 = vld [vmem:[#allocation2 + $0x28] sm:$0xff]
  %v59 = vld [vmem:[#allocation2 + $0x30] sm:$0xff]
  %v60 = vld [vmem:[#allocation2 + $0x38] sm:$0xff]
  %v61 = vld [vmem:[#allocation2 + $0x40] sm:$0xff]
  %v62 = vld [vmem:[#allocation2 + $0x48] sm:$0xff]
  %v63 = vld [vmem:[#allocation2 + $0x50] sm:$0xff]
  %v64 = vld [vmem:[#allocation2 + $0x58] sm:$0xff]
  %v65 = vld [vmem:[#allocation2 + $0x60] sm:$0xff]
  %v66 = vld [vmem:[#allocation2 + $0x68] sm:$0xff]
  %v67 = vld [vmem:[#allocation2 + $0x70] sm:$0xff]
  %v68 = vld [vmem:[#allocation2 + $0x78] sm:$0xff]
  %v69 = vld [vmem:[#allocation2 + $0x80] sm:$0xff]
  %v70 = vld [vmem:[#allocation2 + $0x88] sm:$0xff]
  %v71 = vld [vmem:[#allocation2 + $0x90] sm:$0xff]
  %v72 = vld [vmem:[#allocation2 + $0x98] sm:$0xff]
  %v73 = vld [vmem:[#allocation2 + $0xa0] sm:$0xff]
  %v74 = vld [vmem:[#allocation2 + $0xa8] sm:$0xff]
  %v75 = vld [vmem:[#allocation2 + $0xb0] sm:$0xff]
  %v76 = vld [vmem:[#allocation2 + $0xb8] sm:$0xff]
  %v77 = vld [vmem:[#allocation2 + $0xc0] sm:$0xff]
  %v78 = vld [vmem:[#allocation2 + $0xc8] sm:$0xff]
  %v79 = vld [vmem:[#allocation2 + $0xd0] sm:$0xff]
  %v80 = vld [vmem:[#allocation2 + $0xd8] sm:$0xff]
  %v81 = vld [vmem:[#allocation2 + $0xe0] sm:$0xff]
  %v82 = vld [vmem:[#allocation2 + $0xe8] sm:$0xff]
  %v83 = vld [vmem:[#allocation2 + $0xf0] sm:$0xff]
  %v84 = vld [vmem:[#allocation2 + $0xf8] sm:$0xff]
  %v85 = vld [vmem:[%s0] sm:$0xf]
  %v86 = vld [vmem:[%s0 + $0x4] sm:$0xf]
  %v87 = vld [vmem:[%s0 + $0x8] sm:$0xf]
  %v88 = vld [vmem:[%s0 + $0xc] sm:$0xf]
  %v89 = vld [vmem:[%s0 + $0x10] sm:$0xf]
  %v90 = vld [vmem:[%s0 + $0x14] sm:$0xf]
  %v91 = vld [vmem:[%s0 + $0x18] sm:$0xf]
  %v92 = vld [vmem:[%s0 + $0x1c] sm:$0xf]
  %v93 = vld [vmem:[%s0 + $0x20] sm:$0xf]
  %v94 = vld [vmem:[%s0 + $0x24] sm:$0xf]
  %v95 = vld [vmem:[%s0 + $0x28] sm:$0xf]
  %v96 = vld [vmem:[%s0 + $0x2c] sm:$0xf]
  %v97 = vld [vmem:[%s0 + $0x30] sm:$0xf]
  %v98 = vld [vmem:[%s0 + $0x34] sm:$0xf]
  %v99 = vld [vmem:[%s0 + $0x38] sm:$0xf]
  %v100 = vld [vmem:[%s0 + $0x3c] sm:$0xf]
  %v101 = vld [vmem:[%s0 + $0x40] sm:$0xf]
  %v102 = vld [vmem:[%s0 + $0x44] sm:$0xf]
  %v103 = vld [vmem:[%s0 + $0x48] sm:$0xf]
  %v104 = vld [vmem:[%s0 + $0x4c] sm:$0xf]
  %v105 = vld [vmem:[%s0 + $0x50] sm:$0xf]
  %v106 = vld [vmem:[%s0 + $0x54] sm:$0xf]
  %v107 = vld [vmem:[%s0 + $0x58] sm:$0xf]
  %v108 = vld [vmem:[%s0 + $0x5c] sm:$0xf]
  %v109 = vld [vmem:[%s0 + $0x60] sm:$0xf]
  %v110 = vld [vmem:[%s0 + $0x64] sm:$0xf]
  %v111 = vld [vmem:[%s0 + $0x68] sm:$0xf]
  %v112 = vld [vmem:[%s0 + $0x6c] sm:$0xf]
  %v113 = vld [vmem:[%s0 + $0x70] sm:$0xf]
  %v114 = vld [vmem:[%s0 + $0x74] sm:$0xf]
  %v115 = vld [vmem:[%s0 + $0x78] sm:$0xf]
  %v116 = vld [vmem:[%s0 + $0x7c] sm:$0xf]
  %v117 = vld [vmem:[%s1] sm:$0xf]
  %v118 = vld [vmem:[%s1 + $0x4] sm:$0xf]
  %v119 = vld [vmem:[%s1 + $0x8] sm:$0xf]
  %v120 = vld [vmem:[%s1 + $0xc] sm:$0xf]
  %v121 = vld [vmem:[%s1 + $0x10] sm:$0xf]
  %v122 = vld [vmem:[%s1 + $0x14] sm:$0xf]
  %v123 = vld [vmem:[%s1 + $0x18] sm:$0xf]
  %v124 = vld [vmem:[%s1 + $0x1c] sm:$0xf]
  %v125 = vld [vmem:[%s1 + $0x20] sm:$0xf]
  %v126 = vld [vmem:[%s1 + $0x24] sm:$0xf]
  %v127 = vld [vmem:[%s1 + $0x28] sm:$0xf]
  %v128 = vld [vmem:[%s1 + $0x2c] sm:$0xf]
  %v129 = vld [vmem:[%s1 + $0x30] sm:$0xf]
  %v130 = vld [vmem:[%s1 + $0x34] sm:$0xf]
  %v131 = vld [vmem:[%s1 + $0x38] sm:$0xf]
  %v132 = vld [vmem:[%s1 + $0x3c] sm:$0xf]
  %v165 = vunpack.c.l.b16 %v85
  %v166 = vunpack.c.l.b16 %v86
  %v167 = vunpack.c.l.b16 %v87
  %v168 = vunpack.c.l.b16 %v88
  %v169 = vunpack.c.l.b16 %v89
  %v170 = vunpack.c.l.b16 %v90
  %v171 = vunpack.c.l.b16 %v91
  %v172 = vunpack.c.l.b16 %v92
  %v173 = vunpack.c.l.b16 %v93
  %v174 = vunpack.c.l.b16 %v94
  %v175 = vunpack.c.l.b16 %v95
  %v176 = vunpack.c.l.b16 %v96
  %v177 = vunpack.c.l.b16 %v97
  %v178 = vunpack.c.l.b16 %v98
  %v179 = vunpack.c.l.b16 %v99
  %v180 = vunpack.c.l.b16 %v100
  %v181 = vunpack.c.l.b16 %v101
  %v182 = vunpack.c.l.b16 %v102
  %v183 = vunpack.c.l.b16 %v103
  %v184 = vunpack.c.l.b16 %v104
  %v185 = vunpack.c.l.b16 %v105
  %v186 = vunpack.c.l.b16 %v106
  %v187 = vunpack.c.l.b16 %v107
  %v188 = vunpack.c.l.b16 %v108
  %v189 = vunpack.c.l.b16 %v109
  %v190 = vunpack.c.l.b16 %v110
  %v191 = vunpack.c.l.b16 %v111
  %v192 = vunpack.c.l.b16 %v112
  %v193 = vunpack.c.l.b16 %v113
  %v194 = vunpack.c.l.b16 %v114
  %v195 = vunpack.c.l.b16 %v115
  %v196 = vunpack.c.l.b16 %v116
  %v197 = vpack.c.b16 %v166, %v165
  %v198 = vpack.c.b16 %v168, %v167
  %v199 = vpack.c.b16 %v170, %v169
  %v200 = vpack.c.b16 %v172, %v171
  %v201 = vpack.c.b16 %v174, %v173
  %v202 = vpack.c.b16 %v176, %v175
  %v203 = vpack.c.b16 %v178, %v177
  %v204 = vpack.c.b16 %v180, %v179
  %v205 = vpack.c.b16 %v182, %v181
  %v206 = vpack.c.b16 %v184, %v183
  %v207 = vpack.c.b16 %v186, %v185
  %v208 = vpack.c.b16 %v188, %v187
  %v209 = vpack.c.b16 %v190, %v189
  %v210 = vpack.c.b16 %v192, %v191
  %v211 = vpack.c.b16 %v194, %v193
  %v212 = vpack.c.b16 %v196, %v195
  %v245 = vunpack.c.l.b16 %v117
  %v246 = vunpack.c.l.b16 %v118
  %v247 = vunpack.c.l.b16 %v119
  %v248 = vunpack.c.l.b16 %v120
  %v249 = vunpack.c.l.b16 %v121
  %v250 = vunpack.c.l.b16 %v122
  %v251 = vunpack.c.l.b16 %v123
  %v252 = vunpack.c.l.b16 %v124
  %v253 = vunpack.c.l.b16 %v125
  %v254 = vunpack.c.l.b16 %v126
  %v255 = vunpack.c.l.b16 %v127
  %v256 = vunpack.c.l.b16 %v128
  %v257 = vunpack.c.l.b16 %v129
  %v258 = vunpack.c.l.b16 %v130
  %v259 = vunpack.c.l.b16 %v131
  %v260 = vunpack.c.l.b16 %v132
  %v261 = vpack.c.b16 %v246, %v245
  %v262 = vpack.c.b16 %v248, %v247
  %v263 = vpack.c.b16 %v250, %v249
  %v264 = vpack.c.b16 %v252, %v251
  %v265 = vpack.c.b16 %v254, %v253
  %v266 = vpack.c.b16 %v256, %v255
  %v267 = vpack.c.b16 %v258, %v257
  %v268 = vpack.c.b16 %v260, %v259
  %277 = vmatpush.bf16.msra.mxu0 %v268
  %278 = vmatpush.bf16.msra.mxu0 %v267
  %279 = vmatpush.bf16.msra.mxu0 %v266
  %280 = vmatpush.bf16.msra.mxu0 %v265
  %281 = vmatpush.bf16.msra.mxu0 %v264
  %282 = vmatpush.bf16.msra.mxu0 %v263
  %283 = vmatpush.bf16.msra.mxu0 %v262
  %284 = vmatpush.bf16.msra.mxu0 %v261
  %285 = vmatmul.bf16.gmra.mxu0 %v197
  %v286 = vpop.f32.mrf.mxu0
  %v287 = vadd.f32 0.0, %v286
  %v288 = vpop.f32.mrf.mxu0
  %v289 = vadd.f32 0.0, %v288
  %290 = vmatmul.bf16.gmra.mxu0 %v198
  %v291 = vpop.f32.mrf.mxu0
  %v292 = vadd.f32 0.0, %v291
  %v293 = vpop.f32.mrf.mxu0
  %v294 = vadd.f32 0.0, %v293
  %295 = vmatmul.bf16.gmra.mxu0 %v199
  %v296 = vpop.f32.mrf.mxu0
  %v297 = vadd.f32 0.0, %v296
  %v298 = vpop.f32.mrf.mxu0
  %v299 = vadd.f32 0.0, %v298
  %300 = vmatmul.bf16.gmra.mxu0 %v200
  %v301 = vpop.f32.mrf.mxu0
  %v302 = vadd.f32 0.0, %v301
  %v303 = vpop.f32.mrf.mxu0
  %v304 = vadd.f32 0.0, %v303
  %305 = vmatmul.bf16.gmra.mxu0 %v201
  %v306 = vpop.f32.mrf.mxu0
  %v307 = vadd.f32 0.0, %v306
  %v308 = vpop.f32.mrf.mxu0
  %v309 = vadd.f32 0.0, %v308
  %310 = vmatmul.bf16.gmra.mxu0 %v202
  %v311 = vpop.f32.mrf.mxu0
  %v312 = vadd.f32 0.0, %v311
  %v313 = vpop.f32.mrf.mxu0
  %v314 = vadd.f32 0.0, %v313
  %315 = vmatmul.bf16.gmra.mxu0 %v203
  %v316 = vpop.f32.mrf.mxu0
  %v317 = vadd.f32 0.0, %v316
  %v318 = vpop.f32.mrf.mxu0
  %v319 = vadd.f32 0.0, %v318
  %320 = vmatmul.bf16.gmra.mxu0 %v204
  %v321 = vpop.f32.mrf.mxu0
  %v322 = vadd.f32 0.0, %v321
  %v323 = vpop.f32.mrf.mxu0
  %v324 = vadd.f32 0.0, %v323
  %325 = vmatmul.bf16.gmra.mxu0 %v205
  %v326 = vpop.f32.mrf.mxu0
  %v327 = vadd.f32 0.0, %v326
  %v328 = vpop.f32.mrf.mxu0
  %v329 = vadd.f32 0.0, %v328
  %330 = vmatmul.bf16.gmra.mxu0 %v206
  %v331 = vpop.f32.mrf.mxu0
  %v332 = vadd.f32 0.0, %v331
  %v333 = vpop.f32.mrf.mxu0
  %v334 = vadd.f32 0.0, %v333
  %335 = vmatmul.bf16.gmra.mxu0 %v207
  %v336 = vpop.f32.mrf.mxu0
  %v337 = vadd.f32 0.0, %v336
  %v338 = vpop.f32.mrf.mxu0
  %v339 = vadd.f32 0.0, %v338
  %340 = vmatmul.bf16.gmra.mxu0 %v208
  %v341 = vpop.f32.mrf.mxu0
  %v342 = vadd.f32 0.0, %v341
  %v343 = vpop.f32.mrf.mxu0
  %v344 = vadd.f32 0.0, %v343
  %345 = vmatmul.bf16.gmra.mxu0 %v209
  %v346 = vpop.f32.mrf.mxu0
  %v347 = vadd.f32 0.0, %v346
  %v348 = vpop.f32.mrf.mxu0
  %v349 = vadd.f32 0.0, %v348
  %350 = vmatmul.bf16.gmra.mxu0 %v210
  %v351 = vpop.f32.mrf.mxu0
  %v352 = vadd.f32 0.0, %v351
  %v353 = vpop.f32.mrf.mxu0
  %v354 = vadd.f32 0.0, %v353
  %355 = vmatmul.bf16.gmra.mxu0 %v211
  %v356 = vpop.f32.mrf.mxu0
  %v357 = vadd.f32 0.0, %v356
  %v358 = vpop.f32.mrf.mxu0
  %v359 = vadd.f32 0.0, %v358
  %360 = vmatmul.bf16.gmra.mxu0 %v212
  %v361 = vpop.f32.mrf.mxu0
  %v362 = vadd.f32 0.0, %v361
  %v363 = vpop.f32.mrf.mxu0
  %v364 = vadd.f32 0.0, %v363
  %365 = vdwg.mxu0
  %v366 = vadd.f32 %v53, %v287
  %v367 = vadd.f32 %v54, %v289
  %v368 = vadd.f32 %v55, %v292
  %v369 = vadd.f32 %v56, %v294
  %v370 = vadd.f32 %v57, %v297
  %v371 = vadd.f32 %v58, %v299
  %v372 = vadd.f32 %v59, %v302
  %v373 = vadd.f32 %v60, %v304
  %v374 = vadd.f32 %v61, %v307
  %v375 = vadd.f32 %v62, %v309
  %v376 = vadd.f32 %v63, %v312
  %v377 = vadd.f32 %v64, %v314
  %v378 = vadd.f32 %v65, %v317
  %v379 = vadd.f32 %v66, %v319
  %v380 = vadd.f32 %v67, %v322
  %v381 = vadd.f32 %v68, %v324
  %v382 = vadd.f32 %v69, %v327
  %v383 = vadd.f32 %v70, %v329
  %v384 = vadd.f32 %v71, %v332
  %v385 = vadd.f32 %v72, %v334
  %v386 = vadd.f32 %v73, %v337
  %v387 = vadd.f32 %v74, %v339
  %v388 = vadd.f32 %v75, %v342
  %v389 = vadd.f32 %v76, %v344
  %v390 = vadd.f32 %v77, %v347
  %v391 = vadd.f32 %v78, %v349
  %v392 = vadd.f32 %v79, %v352
  %v393 = vadd.f32 %v80, %v354
  %v394 = vadd.f32 %v81, %v357
  %v395 = vadd.f32 %v82, %v359
  %v396 = vadd.f32 %v83, %v362
  %v397 = vadd.f32 %v84, %v364
  %398 = vst [vmem:[#allocation2] sm:$0xff] %v366
  %399 = vst [vmem:[#allocation2 + $0x8] sm:$0xff] %v367
  %400 = vst [vmem:[#allocation2 + $0x10] sm:$0xff] %v368
  %401 = vst [vmem:[#allocation2 + $0x18] sm:$0xff] %v369
  %402 = vst [vmem:[#allocation2 + $0x20] sm:$0xff] %v370
  %403 = vst [vmem:[#allocation2 + $0x28] sm:$0xff] %v371
  %404 = vst [vmem:[#allocation2 + $0x30] sm:$0xff] %v372
  %405 = vst [vmem:[#allocation2 + $0x38] sm:$0xff] %v373
  %406 = vst [vmem:[#allocation2 + $0x40] sm:$0xff] %v374
  %407 = vst [vmem:[#allocation2 + $0x48] sm:$0xff] %v375
  %408 = vst [vmem:[#allocation2 + $0x50] sm:$0xff] %v376
  %409 = vst [vmem:[#allocation2 + $0x58] sm:$0xff] %v377
  %410 = vst [vmem:[#allocation2 + $0x60] sm:$0xff] %v378
  %411 = vst [vmem:[#allocation2 + $0x68] sm:$0xff] %v379
  %412 = vst [vmem:[#allocation2 + $0x70] sm:$0xff] %v380
  %413 = vst [vmem:[#allocation2 + $0x78] sm:$0xff] %v381
  %414 = vst [vmem:[#allocation2 + $0x80] sm:$0xff] %v382
  %415 = vst [vmem:[#allocation2 + $0x88] sm:$0xff] %v383
  %416 = vst [vmem:[#allocation2 + $0x90] sm:$0xff] %v384
  %417 = vst [vmem:[#allocation2 + $0x98] sm:$0xff] %v385
  %418 = vst [vmem:[#allocation2 + $0xa0] sm:$0xff] %v386
  %419 = vst [vmem:[#allocation2 + $0xa8] sm:$0xff] %v387
  %420 = vst [vmem:[#allocation2 + $0xb0] sm:$0xff] %v388
  %421 = vst [vmem:[#allocation2 + $0xb8] sm:$0xff] %v389
  %422 = vst [vmem:[#allocation2 + $0xc0] sm:$0xff] %v390
  %423 = vst [vmem:[#allocation2 + $0xc8] sm:$0xff] %v391
  %424 = vst [vmem:[#allocation2 + $0xd0] sm:$0xff] %v392
  %425 = vst [vmem:[#allocation2 + $0xd8] sm:$0xff] %v393
  %426 = vst [vmem:[#allocation2 + $0xe0] sm:$0xff] %v394
  %427 = vst [vmem:[#allocation2 + $0xe8] sm:$0xff] %v395
  %428 = vst [vmem:[#allocation2 + $0xf0] sm:$0xff] %v396
  %429 = vst [vmem:[#allocation2 + $0xf8] sm:$0xff] %v397
  // Predicated region
  $region22: #{forward.32} parent=0 // pred_check
    %p430 = pneg %p17
  $region23: #{forward.32} parent=0 // pred_check_branch
    %432 = sbr.rel (%p430) target = $region25
  $region24: #{forward.32} parent=0 // pred_region
    %v433 = vld [vmem:[#allocation2] sm:$0xff]
    %v434 = vld [vmem:[#allocation2 + $0x8] sm:$0xff]
    %v435 = vld [vmem:[#allocation2 + $0x10] sm:$0xff]
    %v436 = vld [vmem:[#allocation2 + $0x18] sm:$0xff]
    %v437 = vld [vmem:[#allocation2 + $0x20] sm:$0xff]
    %v438 = vld [vmem:[#allocation2 + $0x28] sm:$0xff]
    %v439 = vld [vmem:[#allocation2 + $0x30] sm:$0xff]
    %v440 = vld [vmem:[#allocation2 + $0x38] sm:$0xff]
    %v441 = vld [vmem:[#allocation2 + $0x40] sm:$0xff]
    %v442 = vld [vmem:[#allocation2 + $0x48] sm:$0xff]
    %v443 = vld [vmem:[#allocation2 + $0x50] sm:$0xff]
    %v444 = vld [vmem:[#allocation2 + $0x58] sm:$0xff]
    %v445 = vld [vmem:[#allocation2 + $0x60] sm:$0xff]
    %v446 = vld [vmem:[#allocation2 + $0x68] sm:$0xff]
    %v447 = vld [vmem:[#allocation2 + $0x70] sm:$0xff]
    %v448 = vld [vmem:[#allocation2 + $0x78] sm:$0xff]
    %v449 = vld [vmem:[#allocation2 + $0x80] sm:$0xff]
    %v450 = vld [vmem:[#allocation2 + $0x88] sm:$0xff]
    %v451 = vld [vmem:[#allocation2 + $0x90] sm:$0xff]
    %v452 = vld [vmem:[#allocation2 + $0x98] sm:$0xff]
    %v453 = vld [vmem:[#allocation2 + $0xa0] sm:$0xff]
    %v454 = vld [vmem:[#allocation2 + $0xa8] sm:$0xff]
    %v455 = vld [vmem:[#allocation2 + $0xb0] sm:$0xff]
    %v456 = vld [vmem:[#allocation2 + $0xb8] sm:$0xff]
    %v457 = vld [vmem:[#allocation2 + $0xc0] sm:$0xff]
    %v458 = vld [vmem:[#allocation2 + $0xc8] sm:$0xff]
    %v459 = vld [vmem:[#allocation2 + $0xd0] sm:$0xff]
    %v460 = vld [vmem:[#allocation2 + $0xd8] sm:$0xff]
    %v461 = vld [vmem:[#allocation2 + $0xe0] sm:$0xff]
    %v462 = vld [vmem:[#allocation2 + $0xe8] sm:$0xff]
    %v463 = vld [vmem:[#allocation2 + $0xf0] sm:$0xff]
    %v464 = vld [vmem:[#allocation2 + $0xf8] sm:$0xff]
    %v465 = vld [vmem:[%s2] sm:$0x1]
    %v467 = vperm.slane %v465, 0
    %v469 = vadd.f32 %v433, %v467
    %v470 = vadd.f32 %v434, %v467
    %v471 = vadd.f32 %v435, %v467
    %v472 = vadd.f32 %v436, %v467
    %v473 = vadd.f32 %v437, %v467
    %v474 = vadd.f32 %v438, %v467
    %v475 = vadd.f32 %v439, %v467
    %v476 = vadd.f32 %v440, %v467
    %v477 = vadd.f32 %v441, %v467
    %v478 = vadd.f32 %v442, %v467
    %v479 = vadd.f32 %v443, %v467
    %v480 = vadd.f32 %v444, %v467
    %v481 = vadd.f32 %v445, %v467
    %v482 = vadd.f32 %v446, %v467
    %v483 = vadd.f32 %v447, %v467
    %v484 = vadd.f32 %v448, %v467
    %v485 = vadd.f32 %v449, %v467
    %v486 = vadd.f32 %v450, %v467
    %v487 = vadd.f32 %v451, %v467
    %v488 = vadd.f32 %v452, %v467
    %v489 = vadd.f32 %v453, %v467
    %v490 = vadd.f32 %v454, %v467
    %v491 = vadd.f32 %v455, %v467
    %v492 = vadd.f32 %v456, %v467
    %v493 = vadd.f32 %v457, %v467
    %v494 = vadd.f32 %v458, %v467
    %v495 = vadd.f32 %v459, %v467
    %v496 = vadd.f32 %v460, %v467
    %v497 = vadd.f32 %v461, %v467
    %v498 = vadd.f32 %v462, %v467
    %v499 = vadd.f32 %v463, %v467
    %v500 = vadd.f32 %v464, %v467
    %v501 = vld [vmem:[%s3] sm:$0xff]
    %v502 = vld [vmem:[%s3 + $0x8] sm:$0xff]
    %v503 = vld [vmem:[%s3 + $0x10] sm:$0xff]
    %v504 = vld [vmem:[%s3 + $0x18] sm:$0xff]
    %v505 = vld [vmem:[%s3 + $0x20] sm:$0xff]
    %v506 = vld [vmem:[%s3 + $0x28] sm:$0xff]
    %v507 = vld [vmem:[%s3 + $0x30] sm:$0xff]
    %v508 = vld [vmem:[%s3 + $0x38] sm:$0xff]
    %v509 = vld [vmem:[%s3 + $0x40] sm:$0xff]
    %v510 = vld [vmem:[%s3 + $0x48] sm:$0xff]
    %v511 = vld [vmem:[%s3 + $0x50] sm:$0xff]
    %v512 = vld [vmem:[%s3 + $0x58] sm:$0xff]
    %v513 = vld [vmem:[%s3 + $0x60] sm:$0xff]
    %v514 = vld [vmem:[%s3 + $0x68] sm:$0xff]
    %v515 = vld [vmem:[%s3 + $0x70] sm:$0xff]
    %v516 = vld [vmem:[%s3 + $0x78] sm:$0xff]
    %v517 = vld [vmem:[%s3 + $0x80] sm:$0xff]
    %v518 = vld [vmem:[%s3 + $0x88] sm:$0xff]
    %v519 = vld [vmem:[%s3 + $0x90] sm:$0xff]
    %v520 = vld [vmem:[%s3 + $0x98] sm:$0xff]
    %v521 = vld [vmem:[%s3 + $0xa0] sm:$0xff]
    %v522 = vld [vmem:[%s3 + $0xa8] sm:$0xff]
    %v523 = vld [vmem:[%s3 + $0xb0] sm:$0xff]
    %v524 = vld [vmem:[%s3 + $0xb8] sm:$0xff]
    %v525 = vld [vmem:[%s3 + $0xc0] sm:$0xff]
    %v526 = vld [vmem:[%s3 + $0xc8] sm:$0xff]
    %v527 = vld [vmem:[%s3 + $0xd0] sm:$0xff]
    %v528 = vld [vmem:[%s3 + $0xd8] sm:$0xff]
    %v529 = vld [vmem:[%s3 + $0xe0] sm:$0xff]
    %v530 = vld [vmem:[%s3 + $0xe8] sm:$0xff]
    %v531 = vld [vmem:[%s3 + $0xf0] sm:$0xff]
    %v532 = vld [vmem:[%s3 + $0xf8] sm:$0xff]
    %v533 = vadd.f32 %v469, %v501
    %v534 = vadd.f32 %v470, %v502
    %v535 = vadd.f32 %v471, %v503
    %v536 = vadd.f32 %v472, %v504
    %v537 = vadd.f32 %v473, %v505
    %v538 = vadd.f32 %v474, %v506
    %v539 = vadd.f32 %v475, %v507
    %v540 = vadd.f32 %v476, %v508
    %v541 = vadd.f32 %v477, %v509
    %v542 = vadd.f32 %v478, %v510
    %v543 = vadd.f32 %v479, %v511
    %v544 = vadd.f32 %v480, %v512
    %v545 = vadd.f32 %v481, %v513
    %v546 = vadd.f32 %v482, %v514
    %v547 = vadd.f32 %v483, %v515
    %v548 = vadd.f32 %v484, %v516
    %v549 = vadd.f32 %v485, %v517
    %v550 = vadd.f32 %v486, %v518
    %v551 = vadd.f32 %v487, %v519
    %v552 = vadd.f32 %v488, %v520
    %v553 = vadd.f32 %v489, %v521
    %v554 = vadd.f32 %v490, %v522
    %v555 = vadd.f32 %v491, %v523
    %v556 = vadd.f32 %v492, %v524
    %v557 = vadd.f32 %v493, %v525
    %v558 = vadd.f32 %v494, %v526
    %v559 = vadd.f32 %v495, %v527
    %v560 = vadd.f32 %v496, %v528
    %v561 = vadd.f32 %v497, %v529
    %v562 = vadd.f32 %v498, %v530
    %v563 = vadd.f32 %v499, %v531
    %v564 = vadd.f32 %v500, %v532
    %v565 = vmax.f32 %v533, 0.0
    %v566 = vmax.f32 %v534, 0.0
    %v567 = vmax.f32 %v535, 0.0
    %v568 = vmax.f32 %v536, 0.0
    %v569 = vmax.f32 %v537, 0.0
    %v570 = vmax.f32 %v538, 0.0
    %v571 = vmax.f32 %v539, 0.0
    %v572 = vmax.f32 %v540, 0.0
    %v573 = vmax.f32 %v541, 0.0
    %v574 = vmax.f32 %v542, 0.0
    %v575 = vmax.f32 %v543, 0.0
    %v576 = vmax.f32 %v544, 0.0
    %v577 = vmax.f32 %v545, 0.0
    %v578 = vmax.f32 %v546, 0.0
    %v579 = vmax.f32 %v547, 0.0
    %v580 = vmax.f32 %v548, 0.0
    %v581 = vmax.f32 %v549, 0.0
    %v582 = vmax.f32 %v550, 0.0
    %v583 = vmax.f32 %v551, 0.0
    %v584 = vmax.f32 %v552, 0.0
    %v585 = vmax.f32 %v553, 0.0
    %v586 = vmax.f32 %v554, 0.0
    %v587 = vmax.f32 %v555, 0.0
    %v588 = vmax.f32 %v556, 0.0
    %v589 = vmax.f32 %v557, 0.0
    %v590 = vmax.f32 %v558, 0.0
    %v591 = vmax.f32 %v559, 0.0
    %v592 = vmax.f32 %v560, 0.0
    %v593 = vmax.f32 %v561, 0.0
    %v594 = vmax.f32 %v562, 0.0
    %v595 = vmax.f32 %v563, 0.0
    %v596 = vmax.f32 %v564, 0.0
    %597 = vst [vmem:[%s4] sm:$0xff] %v565
    %598 = vst [vmem:[%s4 + $0x8] sm:$0xff] %v566
    %599 = vst [vmem:[%s4 + $0x10] sm:$0xff] %v567
    %600 = vst [vmem:[%s4 + $0x18] sm:$0xff] %v568
    %601 = vst [vmem:[%s4 + $0x20] sm:$0xff] %v569
    %602 = vst [vmem:[%s4 + $0x28] sm:$0xff] %v570
    %603 = vst [vmem:[%s4 + $0x30] sm:$0xff] %v571
    %604 = vst [vmem:[%s4 + $0x38] sm:$0xff] %v572
    %605 = vst [vmem:[%s4 + $0x40] sm:$0xff] %v573
    %606 = vst [vmem:[%s4 + $0x48] sm:$0xff] %v574
    %607 = vst [vmem:[%s4 + $0x50] sm:$0xff] %v575
    %608 = vst [vmem:[%s4 + $0x58] sm:$0xff] %v576
    %609 = vst [vmem:[%s4 + $0x60] sm:$0xff] %v577
    %610 = vst [vmem:[%s4 + $0x68] sm:$0xff] %v578
    %611 = vst [vmem:[%s4 + $0x70] sm:$0xff] %v579
    %612 = vst [vmem:[%s4 + $0x78] sm:$0xff] %v580
    %613 = vst [vmem:[%s4 + $0x80] sm:$0xff] %v581
    %614 = vst [vmem:[%s4 + $0x88] sm:$0xff] %v582
    %615 = vst [vmem:[%s4 + $0x90] sm:$0xff] %v583
    %616 = vst [vmem:[%s4 + $0x98] sm:$0xff] %v584
    %617 = vst [vmem:[%s4 + $0xa0] sm:$0xff] %v585
    %618 = vst [vmem:[%s4 + $0xa8] sm:$0xff] %v586
    %619 = vst [vmem:[%s4 + $0xb0] sm:$0xff] %v587
    %620 = vst [vmem:[%s4 + $0xb8] sm:$0xff] %v588
    %621 = vst [vmem:[%s4 + $0xc0] sm:$0xff] %v589
    %622 = vst [vmem:[%s4 + $0xc8] sm:$0xff] %v590
    %623 = vst [vmem:[%s4 + $0xd0] sm:$0xff] %v591
    %624 = vst [vmem:[%s4 + $0xd8] sm:$0xff] %v592
    %625 = vst [vmem:[%s4 + $0xe0] sm:$0xff] %v593
    %626 = vst [vmem:[%s4 + $0xe8] sm:$0xff] %v594
    %627 = vst [vmem:[%s4 + $0xf0] sm:$0xff] %v595
    %628 = vst [vmem:[%s4 + $0xf8] sm:$0xff] %v596
  $region25: #{forward.32} parent=0 // pred_fallthru
    _
  // Predicated region
  $region26: #{forward.32} parent=0 // pred_check
    _
  $region27: #{forward.32} parent=0 // pred_check_branch
    %630 = sbr.rel (0) target = $region29
  $region28: #{forward.32} parent=0 // pred_region
    _
  $region29: #{forward.32} parent=0 // pred_fallthru
    _
  // Predicated region
  $region30: #{forward.32} parent=0 // pred_check
    _
  $region31: #{forward.32} parent=0 // pred_check_branch
    %632 = sbr.rel (0) target = $region33
  $region32: #{forward.32} parent=0 // pred_region
    _
  $region33: #{forward.32} parent=0 // pred_fallthru
    _

// kernel: forward.37
$region0: #{forward.37}
  #allocation0 [shape = 'u32[]', space=smem, size = 0x4, offset = 0x4, fixed_abs, tag = 'smem constant byte address 0x4 - core index']
  #allocation1 [shape = 'u32[72,128]{1,0:T(1,128)}', space=vmem, size = 0x9000, scoped, tag = 'internal scratch']
  #allocation2 [shape = 'f32[256,128]{1,0:T(8,128)}', space=vmem, size = 0x20000, scoped, tag = 'scratch operand']
  %s0 = inlined_call_operand.vmem [shape: bf16[256,256], index: 0, kind: input, shape index: {}]
  %s1 = inlined_call_operand.vmem [shape: bf16[256,128], index: 1, kind: input, shape index: {}]
  %s2 = inlined_call_operand.vmem [shape: f32[1,128], index: 2, kind: input, shape index: {}]
  %s3 = inlined_call_operand.vmem [shape: f32[256,128], index: 3, kind: input, shape index: {}]
  %s4 = inlined_call_operand.vmem [shape: f32[256,128], index: 4, kind: output, shape index: {}]
  %s5 = sld [smem:[#allocation0]]
  $region34: #{forward.37} parent=0
    _
  %s7 = ssub.s32 1, %s5
  %s8 = scalar_select 0, %s7, %s5
  // Predicated region
  $region2: #{forward.37} parent=0 // pred_check
    _
  $region3: #{forward.37} parent=0 // pred_check_branch
    %10 = sbr.rel (0) target = $region5
  $region4: #{forward.37} parent=0 // pred_region
    _
  $region5: #{forward.37} parent=0 // pred_fallthru
    _
  // Predicated region
  $region6: #{forward.37} parent=0 // pred_check
    _
  $region7: #{forward.37} parent=0 // pred_check_branch
    %12 = sbr.rel (0) target = $region9
  $region8: #{forward.37} parent=0 // pred_region
    _
  $region9: #{forward.37} parent=0 // pred_fallthru
    _
  // Predicated region
  $region10: #{forward.37} parent=0 // pred_check
    _
  $region11: #{forward.37} parent=0 // pred_check_branch
    %14 = sbr.rel (0) target = $region13
  $region12: #{forward.37} parent=0 // pred_region
    _
  $region13: #{forward.37} parent=0 // pred_fallthru
    _
  // Predicated region
  $region14: #{forward.37} parent=0 // pred_check
    _
  $region15: #{forward.37} parent=0 // pred_check_branch
    %16 = sbr.rel (0) target = $region17
  $region16: #{forward.37} parent=0 // pred_region
    _
  $region17: #{forward.37} parent=0 // pred_fallthru
    _
  %p17 = scmp.eq.s32.totalorder 0, 0
  // Predicated region
  $region18: #{forward.37} parent=0 // pred_check
    %p18 = pneg %p17
  $region19: #{forward.37} parent=0 // pred_check_branch
    %20 = sbr.rel (%p18) target = $region21
  $region20: #{forward.37} parent=0 // pred_region
    %21 = vst [vmem:[#allocation2] sm:$0xff] 0.0
    %22 = vst [vmem:[#allocation2 + $0x8] sm:$0xff] 0.0
    %23 = vst [vmem:[#allocation2 + $0x10] sm:$0xff] 0.0
    %24 = vst [vmem:[#allocation2 + $0x18] sm:$0xff] 0.0
    %25 = vst [vmem:[#allocation2 + $0x20] sm:$0xff] 0.0
    %26 = vst [vmem:[#allocation2 + $0x28] sm:$0xff] 0.0
    %27 = vst [vmem:[#allocation2 + $0x30] sm:$0xff] 0.0
    %28 = vst [vmem:[#allocation2 + $0x38] sm:$0xff] 0.0
    %29 = vst [vmem:[#allocation2 + $0x40] sm:$0xff] 0.0
    %30 = vst [vmem:[#allocation2 + $0x48] sm:$0xff] 0.0
    %31 = vst [vmem:[#allocation2 + $0x50] sm:$0xff] 0.0
    %32 = vst [vmem:[#allocation2 + $0x58] sm:$0xff] 0.0
    %33 = vst [vmem:[#allocation2 + $0x60] sm:$0xff] 0.0
    %34 = vst [vmem:[#allocation2 + $0x68] sm:$0xff] 0.0
    %35 = vst [vmem:[#allocation2 + $0x70] sm:$0xff] 0.0
    %36 = vst [vmem:[#allocation2 + $0x78] sm:$0xff] 0.0
    %37 = vst [vmem:[#allocation2 + $0x80] sm:$0xff] 0.0
    %38 = vst [vmem:[#allocation2 + $0x88] sm:$0xff] 0.0
    %39 = vst [vmem:[#allocation2 + $0x90] sm:$0xff] 0.0
    %40 = vst [vmem:[#allocation2 + $0x98] sm:$0xff] 0.0
    %41 = vst [vmem:[#allocation2 + $0xa0] sm:$0xff] 0.0
    %42 = vst [vmem:[#allocation2 + $0xa8] sm:$0xff] 0.0
    %43 = vst [vmem:[#allocation2 + $0xb0] sm:$0xff] 0.0
    %44 = vst [vmem:[#allocation2 + $0xb8] sm:$0xff] 0.0
    %45 = vst [vmem:[#allocation2 + $0xc0] sm:$0xff] 0.0
    %46 = vst [vmem:[#allocation2 + $0xc8] sm:$0xff] 0.0
    %47 = vst [vmem:[#allocation2 + $0xd0] sm:$0xff] 0.0
    %48 = vst [vmem:[#allocation2 + $0xd8] sm:$0xff] 0.0
    %49 = vst [vmem:[#allocation2 + $0xe0] sm:$0xff] 0.0
    %50 = vst [vmem:[#allocation2 + $0xe8] sm:$0xff] 0.0
    %51 = vst [vmem:[#allocation2 + $0xf0] sm:$0xff] 0.0
    %52 = vst [vmem:[#allocation2 + $0xf8] sm:$0xff] 0.0
  $region21: #{forward.37} parent=0 // pred_fallthru
    _
  %v53 = vld [vmem:[#allocation2] sm:$0xff]
  %v54 = vld [vmem:[#allocation2 + $0x8] sm:$0xff]
  %v55 = vld [vmem:[#allocation2 + $0x10] sm:$0xff]
  %v56 = vld [vmem:[#allocation2 + $0x18] sm:$0xff]
  %v57 = vld [vmem:[#allocation2 + $0x20] sm:$0xff]
  %v58 = vld [vmem:[#allocation2 + $0x28] sm:$0xff]
  %v59 = vld [vmem:[#allocation2 + $0x30] sm:$0xff]
  %v60 = vld [vmem:[#allocation2 + $0x38] sm:$0xff]
  %v61 = vld [vmem:[#allocation2 + $0x40] sm:$0xff]
  %v62 = vld [vmem:[#allocation2 + $0x48] sm:$0xff]
  %v63 = vld [vmem:[#allocation2 + $0x50] sm:$0xff]
  %v64 = vld [vmem:[#allocation2 + $0x58] sm:$0xff]
  %v65 = vld [vmem:[#allocation2 + $0x60] sm:$0xff]
  %v66 = vld [vmem:[#allocation2 + $0x68] sm:$0xff]
  %v67 = vld [vmem:[#allocation2 + $0x70] sm:$0xff]
  %v68 = vld [vmem:[#allocation2 + $0x78] sm:$0xff]
  %v69 = vld [vmem:[#allocation2 + $0x80] sm:$0xff]
  %v70 = vld [vmem:[#allocation2 + $0x88] sm:$0xff]
  %v71 = vld [vmem:[#allocation2 + $0x90] sm:$0xff]
  %v72 = vld [vmem:[#allocation2 + $0x98] sm:$0xff]
  %v73 = vld [vmem:[#allocation2 + $0xa0] sm:$0xff]
  %v74 = vld [vmem:[#allocation2 + $0xa8] sm:$0xff]
  %v75 = vld [vmem:[#allocation2 + $0xb0] sm:$0xff]
  %v76 = vld [vmem:[#allocation2 + $0xb8] sm:$0xff]
  %v77 = vld [vmem:[#allocation2 + $0xc0] sm:$0xff]
  %v78 = vld [vmem:[#allocation2 + $0xc8] sm:$0xff]
  %v79 = vld [vmem:[#allocation2 + $0xd0] sm:$0xff]
  %v80 = vld [vmem:[#allocation2 + $0xd8] sm:$0xff]
  %v81 = vld [vmem:[#allocation2 + $0xe0] sm:$0xff]
  %v82 = vld [vmem:[#allocation2 + $0xe8] sm:$0xff]
  %v83 = vld [vmem:[#allocation2 + $0xf0] sm:$0xff]
  %v84 = vld [vmem:[#allocation2 + $0xf8] sm:$0xff]
  %v85 = vld [vmem:[%s0] sm:$0xff]
  %v86 = vld [vmem:[%s0 + $0x8] sm:$0xff]
  %v87 = vld [vmem:[%s0 + $0x10] sm:$0xff]
  %v88 = vld [vmem:[%s0 + $0x18] sm:$0xff]
  %v89 = vld [vmem:[%s0 + $0x20] sm:$0xff]
  %v90 = vld [vmem:[%s0 + $0x28] sm:$0xff]
  %v91 = vld [vmem:[%s0 + $0x30] sm:$0xff]
  %v92 = vld [vmem:[%s0 + $0x38] sm:$0xff]
  %v93 = vld [vmem:[%s0 + $0x40] sm:$0xff]
  %v94 = vld [vmem:[%s0 + $0x48] sm:$0xff]
  %v95 = vld [vmem:[%s0 + $0x50] sm:$0xff]
  %v96 = vld [vmem:[%s0 + $0x58] sm:$0xff]
  %v97 = vld [vmem:[%s0 + $0x60] sm:$0xff]
  %v98 = vld [vmem:[%s0 + $0x68] sm:$0xff]
  %v99 = vld [vmem:[%s0 + $0x70] sm:$0xff]
  %v100 = vld [vmem:[%s0 + $0x78] sm:$0xff]
  %v101 = vld [vmem:[%s0 + $0x80] sm:$0xff]
  %v102 = vld [vmem:[%s0 + $0x88] sm:$0xff]
  %v103 = vld [vmem:[%s0 + $0x90] sm:$0xff]
  %v104 = vld [vmem:[%s0 + $0x98] sm:$0xff]
  %v105 = vld [vmem:[%s0 + $0xa0] sm:$0xff]
  %v106 = vld [vmem:[%s0 + $0xa8] sm:$0xff]
  %v107 = vld [vmem:[%s0 + $0xb0] sm:$0xff]
  %v108 = vld [vmem:[%s0 + $0xb8] sm:$0xff]
  %v109 = vld [vmem:[%s0 + $0xc0] sm:$0xff]
  %v110 = vld [vmem:[%s0 + $0xc8] sm:$0xff]
  %v111 = vld [vmem:[%s0 + $0xd0] sm:$0xff]
  %v112 = vld [vmem:[%s0 + $0xd8] sm:$0xff]
  %v113 = vld [vmem:[%s0 + $0xe0] sm:$0xff]
  %v114 = vld [vmem:[%s0 + $0xe8] sm:$0xff]
  %v115 = vld [vmem:[%s0 + $0xf0] sm:$0xff]
  %v116 = vld [vmem:[%s0 + $0xf8] sm:$0xff]
  %v117 = vld [vmem:[%s1] sm:$0xf]
  %v118 = vld [vmem:[%s1 + $0x4] sm:$0xf]
  %v119 = vld [vmem:[%s1 + $0x8] sm:$0xf]
  %v120 = vld [vmem:[%s1 + $0xc] sm:$0xf]
  %v121 = vld [vmem:[%s1 + $0x10] sm:$0xf]
  %v122 = vld [vmem:[%s1 + $0x14] sm:$0xf]
  %v123 = vld [vmem:[%s1 + $0x18] sm:$0xf]
  %v124 = vld [vmem:[%s1 + $0x1c] sm:$0xf]
  %v125 = vld [vmem:[%s1 + $0x20] sm:$0xf]
  %v126 = vld [vmem:[%s1 + $0x24] sm:$0xf]
  %v127 = vld [vmem:[%s1 + $0x28] sm:$0xf]
  %v128 = vld [vmem:[%s1 + $0x2c] sm:$0xf]
  %v129 = vld [vmem:[%s1 + $0x30] sm:$0xf]
  %v130 = vld [vmem:[%s1 + $0x34] sm:$0xf]
  %v131 = vld [vmem:[%s1 + $0x38] sm:$0xf]
  %v132 = vld [vmem:[%s1 + $0x3c] sm:$0xf]
  %v133 = vld [vmem:[%s1 + $0x40] sm:$0xf]
  %v134 = vld [vmem:[%s1 + $0x44] sm:$0xf]
  %v135 = vld [vmem:[%s1 + $0x48] sm:$0xf]
  %v136 = vld [vmem:[%s1 + $0x4c] sm:$0xf]
  %v137 = vld [vmem:[%s1 + $0x50] sm:$0xf]
  %v138 = vld [vmem:[%s1 + $0x54] sm:$0xf]
  %v139 = vld [vmem:[%s1 + $0x58] sm:$0xf]
  %v140 = vld [vmem:[%s1 + $0x5c] sm:$0xf]
  %v141 = vld [vmem:[%s1 + $0x60] sm:$0xf]
  %v142 = vld [vmem:[%s1 + $0x64] sm:$0xf]
  %v143 = vld [vmem:[%s1 + $0x68] sm:$0xf]
  %v144 = vld [vmem:[%s1 + $0x6c] sm:$0xf]
  %v145 = vld [vmem:[%s1 + $0x70] sm:$0xf]
  %v146 = vld [vmem:[%s1 + $0x74] sm:$0xf]
  %v147 = vld [vmem:[%s1 + $0x78] sm:$0xf]
  %v148 = vld [vmem:[%s1 + $0x7c] sm:$0xf]
  %v181 = vunpack.c.l.b16 %v85
  %v182 = vunpack.c.h.b16 %v85
  %v183 = vunpack.c.l.b16 %v86
  %v184 = vunpack.c.h.b16 %v86
  %v185 = vunpack.c.l.b16 %v87
  %v186 = vunpack.c.h.b16 %v87
  %v187 = vunpack.c.l.b16 %v88
  %v188 = vunpack.c.h.b16 %v88
  %v189 = vunpack.c.l.b16 %v89
  %v190 = vunpack.c.h.b16 %v89
  %v191 = vunpack.c.l.b16 %v90
  %v192 = vunpack.c.h.b16 %v90
  %v193 = vunpack.c.l.b16 %v91
  %v194 = vunpack.c.h.b16 %v91
  %v195 = vunpack.c.l.b16 %v92
  %v196 = vunpack.c.h.b16 %v92
  %v197 = vunpack.c.l.b16 %v93
  %v198 = vunpack.c.h.b16 %v93
  %v199 = vunpack.c.l.b16 %v94
  %v200 = vunpack.c.h.b16 %v94
  %v201 = vunpack.c.l.b16 %v95
  %v202 = vunpack.c.h.b16 %v95
  %v203 = vunpack.c.l.b16 %v96
  %v204 = vunpack.c.h.b16 %v96
  %v205 = vunpack.c.l.b16 %v97
  %v206 = vunpack.c.h.b16 %v97
  %v207 = vunpack.c.l.b16 %v98
  %v208 = vunpack.c.h.b16 %v98
  %v209 = vunpack.c.l.b16 %v99
  %v210 = vunpack.c.h.b16 %v99
  %v211 = vunpack.c.l.b16 %v100
  %v212 = vunpack.c.h.b16 %v100
  %v213 = vunpack.c.l.b16 %v101
  %v214 = vunpack.c.h.b16 %v101
  %v215 = vunpack.c.l.b16 %v102
  %v216 = vunpack.c.h.b16 %v102
  %v217 = vunpack.c.l.b16 %v103
  %v218 = vunpack.c.h.b16 %v103
  %v219 = vunpack.c.l.b16 %v104
  %v220 = vunpack.c.h.b16 %v104
  %v221 = vunpack.c.l.b16 %v105
  %v222 = vunpack.c.h.b16 %v105
  %v223 = vunpack.c.l.b16 %v106
  %v224 = vunpack.c.h.b16 %v106
  %v225 = vunpack.c.l.b16 %v107
  %v226 = vunpack.c.h.b16 %v107
  %v227 = vunpack.c.l.b16 %v108
  %v228 = vunpack.c.h.b16 %v108
  %v229 = vunpack.c.l.b16 %v109
  %v230 = vunpack.c.h.b16 %v109
  %v231 = vunpack.c.l.b16 %v110
  %v232 = vunpack.c.h.b16 %v110
  %v233 = vunpack.c.l.b16 %v111
  %v234 = vunpack.c.h.b16 %v111
  %v235 = vunpack.c.l.b16 %v112
  %v236 = vunpack.c.h.b16 %v112
  %v237 = vunpack.c.l.b16 %v113
  %v238 = vunpack.c.h.b16 %v113
  %v239 = vunpack.c.l.b16 %v114
  %v240 = vunpack.c.h.b16 %v114
  %v241 = vunpack.c.l.b16 %v115
  %v242 = vunpack.c.h.b16 %v115
  %v243 = vunpack.c.l.b16 %v116
  %v244 = vunpack.c.h.b16 %v116
  %v245 = vpack.c.b16 %v183, %v181
  %v246 = vpack.c.b16 %v184, %v182
  %v247 = vpack.c.b16 %v187, %v185
  %v248 = vpack.c.b16 %v188, %v186
  %v249 = vpack.c.b16 %v191, %v189
  %v250 = vpack.c.b16 %v192, %v190
  %v251 = vpack.c.b16 %v195, %v193
  %v252 = vpack.c.b16 %v196, %v194
  %v253 = vpack.c.b16 %v199, %v197
  %v254 = vpack.c.b16 %v200, %v198
  %v255 = vpack.c.b16 %v203, %v201
  %v256 = vpack.c.b16 %v204, %v202
  %v257 = vpack.c.b16 %v207, %v205
  %v258 = vpack.c.b16 %v208, %v206
  %v259 = vpack.c.b16 %v211, %v209
  %v260 = vpack.c.b16 %v212, %v210
  %v261 = vpack.c.b16 %v215, %v213
  %v262 = vpack.c.b16 %v216, %v214
  %v263 = vpack.c.b16 %v219, %v217
  %v264 = vpack.c.b16 %v220, %v218
  %v265 = vpack.c.b16 %v223, %v221
  %v266 = vpack.c.b16 %v224, %v222
  %v267 = vpack.c.b16 %v227, %v225
  %v268 = vpack.c.b16 %v228, %v226
  %v269 = vpack.c.b16 %v231, %v229
  %v270 = vpack.c.b16 %v232, %v230
  %v271 = vpack.c.b16 %v235, %v233
  %v272 = vpack.c.b16 %v236, %v234
  %v273 = vpack.c.b16 %v239, %v237
  %v274 = vpack.c.b16 %v240, %v238
  %v275 = vpack.c.b16 %v243, %v241
  %v276 = vpack.c.b16 %v244, %v242
  %v341 = vunpack.c.l.b16 %v117
  %v342 = vunpack.c.l.b16 %v118
  %v343 = vunpack.c.l.b16 %v119
  %v344 = vunpack.c.l.b16 %v120
  %v345 = vunpack.c.l.b16 %v121
  %v346 = vunpack.c.l.b16 %v122
  %v347 = vunpack.c.l.b16 %v123
  %v348 = vunpack.c.l.b16 %v124
  %v349 = vunpack.c.l.b16 %v125
  %v350 = vunpack.c.l.b16 %v126
  %v351 = vunpack.c.l.b16 %v127
  %v352 = vunpack.c.l.b16 %v128
  %v353 = vunpack.c.l.b16 %v129
  %v354 = vunpack.c.l.b16 %v130
  %v355 = vunpack.c.l.b16 %v131
  %v356 = vunpack.c.l.b16 %v132
  %v357 = vunpack.c.l.b16 %v133
  %v358 = vunpack.c.l.b16 %v134
  %v359 = vunpack.c.l.b16 %v135
  %v360 = vunpack.c.l.b16 %v136
  %v361 = vunpack.c.l.b16 %v137
  %v362 = vunpack.c.l.b16 %v138
  %v363 = vunpack.c.l.b16 %v139
  %v364 = vunpack.c.l.b16 %v140
  %v365 = vunpack.c.l.b16 %v141
  %v366 = vunpack.c.l.b16 %v142
  %v367 = vunpack.c.l.b16 %v143
  %v368 = vunpack.c.l.b16 %v144
  %v369 = vunpack.c.l.b16 %v145
  %v370 = vunpack.c.l.b16 %v146
  %v371 = vunpack.c.l.b16 %v147
  %v372 = vunpack.c.l.b16 %v148
  %v373 = vpack.c.b16 %v342, %v341
  %v374 = vpack.c.b16 %v344, %v343
  %v375 = vpack.c.b16 %v346, %v345
  %v376 = vpack.c.b16 %v348, %v347
  %v377 = vpack.c.b16 %v350, %v349
  %v378 = vpack.c.b16 %v352, %v351
  %v379 = vpack.c.b16 %v354, %v353
  %v380 = vpack.c.b16 %v356, %v355
  %v381 = vpack.c.b16 %v358, %v357
  %v382 = vpack.c.b16 %v360, %v359
  %v383 = vpack.c.b16 %v362, %v361
  %v384 = vpack.c.b16 %v364, %v363
  %v385 = vpack.c.b16 %v366, %v365
  %v386 = vpack.c.b16 %v368, %v367
  %v387 = vpack.c.b16 %v370, %v369
  %v388 = vpack.c.b16 %v372, %v371
  %405 = vmatpush.bf16.msra.mxu0 %v380
  %406 = vmatpush.bf16.msra.mxu0 %v379
  %407 = vmatpush.bf16.msra.mxu0 %v378
  %408 = vmatpush.bf16.msra.mxu0 %v377
  %409 = vmatpush.bf16.msra.mxu0 %v376
  %410 = vmatpush.bf16.msra.mxu0 %v375
  %411 = vmatpush.bf16.msra.mxu0 %v374
  %412 = vmatpush.bf16.msra.mxu0 %v373
  %413 = vmatmul.bf16.gmra.mxu0 %v245
  %v414 = vpop.f32.mrf.mxu0
  %v415 = vadd.f32 0.0, %v414
  %v416 = vpop.f32.mrf.mxu0
  %v417 = vadd.f32 0.0, %v416
  %418 = vmatmul.bf16.gmra.mxu0 %v247
  %v419 = vpop.f32.mrf.mxu0
  %v420 = vadd.f32 0.0, %v419
  %v421 = vpop.f32.mrf.mxu0
  %v422 = vadd.f32 0.0, %v421
  %423 = vmatmul.bf16.gmra.mxu0 %v249
  %v424 = vpop.f32.mrf.mxu0
  %v425 = vadd.f32 0.0, %v424
  %v426 = vpop.f32.mrf.mxu0
  %v427 = vadd.f32 0.0, %v426
  %428 = vmatmul.bf16.gmra.mxu0 %v251
  %v429 = vpop.f32.mrf.mxu0
  %v430 = vadd.f32 0.0, %v429
  %v431 = vpop.f32.mrf.mxu0
  %v432 = vadd.f32 0.0, %v431
  %433 = vmatmul.bf16.gmra.mxu0 %v253
  %v434 = vpop.f32.mrf.mxu0
  %v435 = vadd.f32 0.0, %v434
  %v436 = vpop.f32.mrf.mxu0
  %v437 = vadd.f32 0.0, %v436
  %438 = vmatmul.bf16.gmra.mxu0 %v255
  %v439 = vpop.f32.mrf.mxu0
  %v440 = vadd.f32 0.0, %v439
  %v441 = vpop.f32.mrf.mxu0
  %v442 = vadd.f32 0.0, %v441
  %443 = vmatmul.bf16.gmra.mxu0 %v257
  %v444 = vpop.f32.mrf.mxu0
  %v445 = vadd.f32 0.0, %v444
  %v446 = vpop.f32.mrf.mxu0
  %v447 = vadd.f32 0.0, %v446
  %448 = vmatmul.bf16.gmra.mxu0 %v259
  %v449 = vpop.f32.mrf.mxu0
  %v450 = vadd.f32 0.0, %v449
  %v451 = vpop.f32.mrf.mxu0
  %v452 = vadd.f32 0.0, %v451
  %453 = vmatmul.bf16.gmra.mxu0 %v261
  %v454 = vpop.f32.mrf.mxu0
  %v455 = vadd.f32 0.0, %v454
  %v456 = vpop.f32.mrf.mxu0
  %v457 = vadd.f32 0.0, %v456
  %458 = vmatmul.bf16.gmra.mxu0 %v263
  %v459 = vpop.f32.mrf.mxu0
  %v460 = vadd.f32 0.0, %v459
  %v461 = vpop.f32.mrf.mxu0
  %v462 = vadd.f32 0.0, %v461
  %463 = vmatmul.bf16.gmra.mxu0 %v265
  %v464 = vpop.f32.mrf.mxu0
  %v465 = vadd.f32 0.0, %v464
  %v466 = vpop.f32.mrf.mxu0
  %v467 = vadd.f32 0.0, %v466
  %468 = vmatmul.bf16.gmra.mxu0 %v267
  %v469 = vpop.f32.mrf.mxu0
  %v470 = vadd.f32 0.0, %v469
  %v471 = vpop.f32.mrf.mxu0
  %v472 = vadd.f32 0.0, %v471
  %473 = vmatmul.bf16.gmra.mxu0 %v269
  %v474 = vpop.f32.mrf.mxu0
  %v475 = vadd.f32 0.0, %v474
  %v476 = vpop.f32.mrf.mxu0
  %v477 = vadd.f32 0.0, %v476
  %478 = vmatmul.bf16.gmra.mxu0 %v271
  %v479 = vpop.f32.mrf.mxu0
  %v480 = vadd.f32 0.0, %v479
  %v481 = vpop.f32.mrf.mxu0
  %v482 = vadd.f32 0.0, %v481
  %483 = vmatmul.bf16.gmra.mxu0 %v273
  %v484 = vpop.f32.mrf.mxu0
  %v485 = vadd.f32 0.0, %v484
  %v486 = vpop.f32.mrf.mxu0
  %v487 = vadd.f32 0.0, %v486
  %488 = vmatmul.bf16.gmra.mxu0 %v275
  %v489 = vpop.f32.mrf.mxu0
  %v490 = vadd.f32 0.0, %v489
  %v491 = vpop.f32.mrf.mxu0
  %v492 = vadd.f32 0.0, %v491
  %493 = vdwg.mxu0
  %494 = vmatpush.bf16.msra.mxu0 %v388
  %495 = vmatpush.bf16.msra.mxu0 %v387
  %496 = vmatpush.bf16.msra.mxu0 %v386
  %497 = vmatpush.bf16.msra.mxu0 %v385
  %498 = vmatpush.bf16.msra.mxu0 %v384
  %499 = vmatpush.bf16.msra.mxu0 %v383
  %500 = vmatpush.bf16.msra.mxu0 %v382
  %501 = vmatpush.bf16.msra.mxu0 %v381
  %502 = vmatmul.bf16.gmra.mxu0 %v246
  %v503 = vpop.f32.mrf.mxu0
  %v504 = vadd.f32 %v415, %v503
  %v505 = vpop.f32.mrf.mxu0
  %v506 = vadd.f32 %v417, %v505
  %507 = vmatmul.bf16.gmra.mxu0 %v248
  %v508 = vpop.f32.mrf.mxu0
  %v509 = vadd.f32 %v420, %v508
  %v510 = vpop.f32.mrf.mxu0
  %v511 = vadd.f32 %v422, %v510
  %512 = vmatmul.bf16.gmra.mxu0 %v250
  %v513 = vpop.f32.mrf.mxu0
  %v514 = vadd.f32 %v425, %v513
  %v515 = vpop.f32.mrf.mxu0
  %v516 = vadd.f32 %v427, %v515
  %517 = vmatmul.bf16.gmra.mxu0 %v252
  %v518 = vpop.f32.mrf.mxu0
  %v519 = vadd.f32 %v430, %v518
  %v520 = vpop.f32.mrf.mxu0
  %v521 = vadd.f32 %v432, %v520
  %522 = vmatmul.bf16.gmra.mxu0 %v254
  %v523 = vpop.f32.mrf.mxu0
  %v524 = vadd.f32 %v435, %v523
  %v525 = vpop.f32.mrf.mxu0
  %v526 = vadd.f32 %v437, %v525
  %527 = vmatmul.bf16.gmra.mxu0 %v256
  %v528 = vpop.f32.mrf.mxu0
  %v529 = vadd.f32 %v440, %v528
  %v530 = vpop.f32.mrf.mxu0
  %v531 = vadd.f32 %v442, %v530
  %532 = vmatmul.bf16.gmra.mxu0 %v258
  %v533 = vpop.f32.mrf.mxu0
  %v534 = vadd.f32 %v445, %v533
  %v535 = vpop.f32.mrf.mxu0
  %v536 = vadd.f32 %v447, %v535
  %537 = vmatmul.bf16.gmra.mxu0 %v260
  %v538 = vpop.f32.mrf.mxu0
  %v539 = vadd.f32 %v450, %v538
  %v540 = vpop.f32.mrf.mxu0
  %v541 = vadd.f32 %v452, %v540
  %542 = vmatmul.bf16.gmra.mxu0 %v262
  %v543 = vpop.f32.mrf.mxu0
  %v544 = vadd.f32 %v455, %v543
  %v545 = vpop.f32.mrf.mxu0
  %v546 = vadd.f32 %v457, %v545
  %547 = vmatmul.bf16.gmra.mxu0 %v264
  %v548 = vpop.f32.mrf.mxu0
  %v549 = vadd.f32 %v460, %v548
  %v550 = vpop.f32.mrf.mxu0
  %v551 = vadd.f32 %v462, %v550
  %552 = vmatmul.bf16.gmra.mxu0 %v266
  %v553 = vpop.f32.mrf.mxu0
  %v554 = vadd.f32 %v465, %v553
  %v555 = vpop.f32.mrf.mxu0
  %v556 = vadd.f32 %v467, %v555
  %557 = vmatmul.bf16.gmra.mxu0 %v268
  %v558 = vpop.f32.mrf.mxu0
  %v559 = vadd.f32 %v470, %v558
  %v560 = vpop.f32.mrf.mxu0
  %v561 = vadd.f32 %v472, %v560
  %562 = vmatmul.bf16.gmra.mxu0 %v270
  %v563 = vpop.f32.mrf.mxu0
  %v564 = vadd.f32 %v475, %v563
  %v565 = vpop.f32.mrf.mxu0
  %v566 = vadd.f32 %v477, %v565
  %567 = vmatmul.bf16.gmra.mxu0 %v272
  %v568 = vpop.f32.mrf.mxu0
  %v569 = vadd.f32 %v480, %v568
  %v570 = vpop.f32.mrf.mxu0
  %v571 = vadd.f32 %v482, %v570
  %572 = vmatmul.bf16.gmra.mxu0 %v274
  %v573 = vpop.f32.mrf.mxu0
  %v574 = vadd.f32 %v485, %v573
  %v575 = vpop.f32.mrf.mxu0
  %v576 = vadd.f32 %v487, %v575
  %577 = vmatmul.bf16.gmra.mxu0 %v276
  %v578 = vpop.f32.mrf.mxu0
  %v579 = vadd.f32 %v490, %v578
  %v580 = vpop.f32.mrf.mxu0
  %v581 = vadd.f32 %v492, %v580
  %582 = vdwg.mxu0
  %v583 = vadd.f32 %v53, %v504
  %v584 = vadd.f32 %v54, %v506
  %v585 = vadd.f32 %v55, %v509
  %v586 = vadd.f32 %v56, %v511
  %v587 = vadd.f32 %v57, %v514
  %v588 = vadd.f32 %v58, %v516
  %v589 = vadd.f32 %v59, %v519
  %v590 = vadd.f32 %v60, %v521
  %v591 = vadd.f32 %v61, %v524
  %v592 = vadd.f32 %v62, %v526
  %v593 = vadd.f32 %v63, %v529
  %v594 = vadd.f32 %v64, %v531
  %v595 = vadd.f32 %v65, %v534
  %v596 = vadd.f32 %v66, %v536
  %v597 = vadd.f32 %v67, %v539
  %v598 = vadd.f32 %v68, %v541
  %v599 = vadd.f32 %v69, %v544
  %v600 = vadd.f32 %v70, %v546
  %v601 = vadd.f32 %v71, %v549
  %v602 = vadd.f32 %v72, %v551
  %v603 = vadd.f32 %v73, %v554
  %v604 = vadd.f32 %v74, %v556
  %v605 = vadd.f32 %v75, %v559
  %v606 = vadd.f32 %v76, %v561
  %v607 = vadd.f32 %v77, %v564
  %v608 = vadd.f32 %v78, %v566
  %v609 = vadd.f32 %v79, %v569
  %v610 = vadd.f32 %v80, %v571
  %v611 = vadd.f32 %v81, %v574
  %v612 = vadd.f32 %v82, %v576
  %v613 = vadd.f32 %v83, %v579
  %v614 = vadd.f32 %v84, %v581
  %615 = vst [vmem:[#allocation2] sm:$0xff] %v583
  %616 = vst [vmem:[#allocation2 + $0x8] sm:$0xff] %v584
  %617 = vst [vmem:[#allocation2 + $0x10] sm:$0xff] %v585
  %618 = vst [vmem:[#allocation2 + $0x18] sm:$0xff] %v586
  %619 = vst [vmem:[#allocation2 + $0x20] sm:$0xff] %v587
  %620 = vst [vmem:[#allocation2 + $0x28] sm:$0xff] %v588
  %621 = vst [vmem:[#allocation2 + $0x30] sm:$0xff] %v589
  %622 = vst [vmem:[#allocation2 + $0x38] sm:$0xff] %v590
  %623 = vst [vmem:[#allocation2 + $0x40] sm:$0xff] %v591
  %624 = vst [vmem:[#allocation2 + $0x48] sm:$0xff] %v592
  %625 = vst [vmem:[#allocation2 + $0x50] sm:$0xff] %v593
  %626 = vst [vmem:[#allocation2 + $0x58] sm:$0xff] %v594
  %627 = vst [vmem:[#allocation2 + $0x60] sm:$0xff] %v595
  %628 = vst [vmem:[#allocation2 + $0x68] sm:$0xff] %v596
  %629 = vst [vmem:[#allocation2 + $0x70] sm:$0xff] %v597
  %630 = vst [vmem:[#allocation2 + $0x78] sm:$0xff] %v598
  %631 = vst [vmem:[#allocation2 + $0x80] sm:$0xff] %v599
  %632 = vst [vmem:[#allocation2 + $0x88] sm:$0xff] %v600
  %633 = vst [vmem:[#allocation2 + $0x90] sm:$0xff] %v601
  %634 = vst [vmem:[#allocation2 + $0x98] sm:$0xff] %v602
  %635 = vst [vmem:[#allocation2 + $0xa0] sm:$0xff] %v603
  %636 = vst [vmem:[#allocation2 + $0xa8] sm:$0xff] %v604
  %637 = vst [vmem:[#allocation2 + $0xb0] sm:$0xff] %v605
  %638 = vst [vmem:[#allocation2 + $0xb8] sm:$0xff] %v606
  %639 = vst [vmem:[#allocation2 + $0xc0] sm:$0xff] %v607
  %640 = vst [vmem:[#allocation2 + $0xc8] sm:$0xff] %v608
  %641 = vst [vmem:[#allocation2 + $0xd0] sm:$0xff] %v609
  %642 = vst [vmem:[#allocation2 + $0xd8] sm:$0xff] %v610
  %643 = vst [vmem:[#allocation2 + $0xe0] sm:$0xff] %v611
  %644 = vst [vmem:[#allocation2 + $0xe8] sm:$0xff] %v612
  %645 = vst [vmem:[#allocation2 + $0xf0] sm:$0xff] %v613
  %646 = vst [vmem:[#allocation2 + $0xf8] sm:$0xff] %v614
  // Predicated region
  $region22: #{forward.37} parent=0 // pred_check
    %p647 = pneg %p17
  $region23: #{forward.37} parent=0 // pred_check_branch
    %649 = sbr.rel (%p647) target = $region25
  $region24: #{forward.37} parent=0 // pred_region
    %v650 = vld [vmem:[#allocation2] sm:$0xff]
    %v651 = vld [vmem:[#allocation2 + $0x8] sm:$0xff]
    %v652 = vld [vmem:[#allocation2 + $0x10] sm:$0xff]
    %v653 = vld [vmem:[#allocation2 + $0x18] sm:$0xff]
    %v654 = vld [vmem:[#allocation2 + $0x20] sm:$0xff]
    %v655 = vld [vmem:[#allocation2 + $0x28] sm:$0xff]
    %v656 = vld [vmem:[#allocation2 + $0x30] sm:$0xff]
    %v657 = vld [vmem:[#allocation2 + $0x38] sm:$0xff]
    %v658 = vld [vmem:[#allocation2 + $0x40] sm:$0xff]
    %v659 = vld [vmem:[#allocation2 + $0x48] sm:$0xff]
    %v660 = vld [vmem:[#allocation2 + $0x50] sm:$0xff]
    %v661 = vld [vmem:[#allocation2 + $0x58] sm:$0xff]
    %v662 = vld [vmem:[#allocation2 + $0x60] sm:$0xff]
    %v663 = vld [vmem:[#allocation2 + $0x68] sm:$0xff]
    %v664 = vld [vmem:[#allocation2 + $0x70] sm:$0xff]
    %v665 = vld [vmem:[#allocation2 + $0x78] sm:$0xff]
    %v666 = vld [vmem:[#allocation2 + $0x80] sm:$0xff]
    %v667 = vld [vmem:[#allocation2 + $0x88] sm:$0xff]
    %v668 = vld [vmem:[#allocation2 + $0x90] sm:$0xff]
    %v669 = vld [vmem:[#allocation2 + $0x98] sm:$0xff]
    %v670 = vld [vmem:[#allocation2 + $0xa0] sm:$0xff]
    %v671 = vld [vmem:[#allocation2 + $0xa8] sm:$0xff]
    %v672 = vld [vmem:[#allocation2 + $0xb0] sm:$0xff]
    %v673 = vld [vmem:[#allocation2 + $0xb8] sm:$0xff]
    %v674 = vld [vmem:[#allocation2 + $0xc0] sm:$0xff]
    %v675 = vld [vmem:[#allocation2 + $0xc8] sm:$0xff]
    %v676 = vld [vmem:[#allocation2 + $0xd0] sm:$0xff]
    %v677 = vld [vmem:[#allocation2 + $0xd8] sm:$0xff]
    %v678 = vld [vmem:[#allocation2 + $0xe0] sm:$0xff]
    %v679 = vld [vmem:[#allocation2 + $0xe8] sm:$0xff]
    %v680 = vld [vmem:[#allocation2 + $0xf0] sm:$0xff]
    %v681 = vld [vmem:[#allocation2 + $0xf8] sm:$0xff]
    %v682 = vld [vmem:[%s2] sm:$0x1]
    %v684 = vperm.slane %v682, 0
    %v686 = vadd.f32 %v650, %v684
    %v687 = vadd.f32 %v651, %v684
    %v688 = vadd.f32 %v652, %v684
    %v689 = vadd.f32 %v653, %v684
    %v690 = vadd.f32 %v654, %v684
    %v691 = vadd.f32 %v655, %v684
    %v692 = vadd.f32 %v656, %v684
    %v693 = vadd.f32 %v657, %v684
    %v694 = vadd.f32 %v658, %v684
    %v695 = vadd.f32 %v659, %v684
    %v696 = vadd.f32 %v660, %v684
    %v697 = vadd.f32 %v661, %v684
    %v698 = vadd.f32 %v662, %v684
    %v699 = vadd.f32 %v663, %v684
    %v700 = vadd.f32 %v664, %v684
    %v701 = vadd.f32 %v665, %v684
    %v702 = vadd.f32 %v666, %v684
    %v703 = vadd.f32 %v667, %v684
    %v704 = vadd.f32 %v668, %v684
    %v705 = vadd.f32 %v669, %v684
    %v706 = vadd.f32 %v670, %v684
    %v707 = vadd.f32 %v671, %v684
    %v708 = vadd.f32 %v672, %v684
    %v709 = vadd.f32 %v673, %v684
    %v710 = vadd.f32 %v674, %v684
    %v711 = vadd.f32 %v675, %v684
    %v712 = vadd.f32 %v676, %v684
    %v713 = vadd.f32 %v677, %v684
    %v714 = vadd.f32 %v678, %v684
    %v715 = vadd.f32 %v679, %v684
    %v716 = vadd.f32 %v680, %v684
    %v717 = vadd.f32 %v681, %v684
    %v718 = vld [vmem:[%s3] sm:$0xff]
    %v719 = vld [vmem:[%s3 + $0x8] sm:$0xff]
    %v720 = vld [vmem:[%s3 + $0x10] sm:$0xff]
    %v721 = vld [vmem:[%s3 + $0x18] sm:$0xff]
    %v722 = vld [vmem:[%s3 + $0x20] sm:$0xff]
    %v723 = vld [vmem:[%s3 + $0x28] sm:$0xff]
    %v724 = vld [vmem:[%s3 + $0x30] sm:$0xff]
    %v725 = vld [vmem:[%s3 + $0x38] sm:$0xff]
    %v726 = vld [vmem:[%s3 + $0x40] sm:$0xff]
    %v727 = vld [vmem:[%s3 + $0x48] sm:$0xff]
    %v728 = vld [vmem:[%s3 + $0x50] sm:$0xff]
    %v729 = vld [vmem:[%s3 + $0x58] sm:$0xff]
    %v730 = vld [vmem:[%s3 + $0x60] sm:$0xff]
    %v731 = vld [vmem:[%s3 + $0x68] sm:$0xff]
    %v732 = vld [vmem:[%s3 + $0x70] sm:$0xff]
    %v733 = vld [vmem:[%s3 + $0x78] sm:$0xff]
    %v734 = vld [vmem:[%s3 + $0x80] sm:$0xff]
    %v735 = vld [vmem:[%s3 + $0x88] sm:$0xff]
    %v736 = vld [vmem:[%s3 + $0x90] sm:$0xff]
    %v737 = vld [vmem:[%s3 + $0x98] sm:$0xff]
    %v738 = vld [vmem:[%s3 + $0xa0] sm:$0xff]
    %v739 = vld [vmem:[%s3 + $0xa8] sm:$0xff]
    %v740 = vld [vmem:[%s3 + $0xb0] sm:$0xff]
    %v741 = vld [vmem:[%s3 + $0xb8] sm:$0xff]
    %v742 = vld [vmem:[%s3 + $0xc0] sm:$0xff]
    %v743 = vld [vmem:[%s3 + $0xc8] sm:$0xff]
    %v744 = vld [vmem:[%s3 + $0xd0] sm:$0xff]
    %v745 = vld [vmem:[%s3 + $0xd8] sm:$0xff]
    %v746 = vld [vmem:[%s3 + $0xe0] sm:$0xff]
    %v747 = vld [vmem:[%s3 + $0xe8] sm:$0xff]
    %v748 = vld [vmem:[%s3 + $0xf0] sm:$0xff]
    %v749 = vld [vmem:[%s3 + $0xf8] sm:$0xff]
    %v750 = vadd.f32 %v686, %v718
    %v751 = vadd.f32 %v687, %v719
    %v752 = vadd.f32 %v688, %v720
    %v753 = vadd.f32 %v689, %v721
    %v754 = vadd.f32 %v690, %v722
    %v755 = vadd.f32 %v691, %v723
    %v756 = vadd.f32 %v692, %v724
    %v757 = vadd.f32 %v693, %v725
    %v758 = vadd.f32 %v694, %v726
    %v759 = vadd.f32 %v695, %v727
    %v760 = vadd.f32 %v696, %v728
    %v761 = vadd.f32 %v697, %v729
    %v762 = vadd.f32 %v698, %v730
    %v763 = vadd.f32 %v699, %v731
    %v764 = vadd.f32 %v700, %v732
    %v765 = vadd.f32 %v701, %v733
    %v766 = vadd.f32 %v702, %v734
    %v767 = vadd.f32 %v703, %v735
    %v768 = vadd.f32 %v704, %v736
    %v769 = vadd.f32 %v705, %v737
    %v770 = vadd.f32 %v706, %v738
    %v771 = vadd.f32 %v707, %v739
    %v772 = vadd.f32 %v708, %v740
    %v773 = vadd.f32 %v709, %v741
    %v774 = vadd.f32 %v710, %v742
    %v775 = vadd.f32 %v711, %v743
    %v776 = vadd.f32 %v712, %v744
    %v777 = vadd.f32 %v713, %v745
    %v778 = vadd.f32 %v714, %v746
    %v779 = vadd.f32 %v715, %v747
    %v780 = vadd.f32 %v716, %v748
    %v781 = vadd.f32 %v717, %v749
    %v782 = vmax.f32 %v750, 0.0
    %v783 = vmax.f32 %v751, 0.0
    %v784 = vmax.f32 %v752, 0.0
    %v785 = vmax.f32 %v753, 0.0
    %v786 = vmax.f32 %v754, 0.0
    %v787 = vmax.f32 %v755, 0.0
    %v788 = vmax.f32 %v756, 0.0
    %v789 = vmax.f32 %v757, 0.0
    %v790 = vmax.f32 %v758, 0.0
    %v791 = vmax.f32 %v759, 0.0
    %v792 = vmax.f32 %v760, 0.0
    %v793 = vmax.f32 %v761, 0.0
    %v794 = vmax.f32 %v762, 0.0
    %v795 = vmax.f32 %v763, 0.0
    %v796 = vmax.f32 %v764, 0.0
    %v797 = vmax.f32 %v765, 0.0
    %v798 = vmax.f32 %v766, 0.0
    %v799 = vmax.f32 %v767, 0.0
    %v800 = vmax.f32 %v768, 0.0
    %v801 = vmax.f32 %v769, 0.0
    %v802 = vmax.f32 %v770, 0.0
    %v803 = vmax.f32 %v771, 0.0
    %v804 = vmax.f32 %v772, 0.0
    %v805 = vmax.f32 %v773, 0.0
    %v806 = vmax.f32 %v774, 0.0
    %v807 = vmax.f32 %v775, 0.0
    %v808 = vmax.f32 %v776, 0.0
    %v809 = vmax.f32 %v777, 0.0
    %v810 = vmax.f32 %v778, 0.0
    %v811 = vmax.f32 %v779, 0.0
    %v812 = vmax.f32 %v780, 0.0
    %v813 = vmax.f32 %v781, 0.0
    %814 = vst [vmem:[%s4] sm:$0xff] %v782
    %815 = vst [vmem:[%s4 + $0x8] sm:$0xff] %v783
    %816 = vst [vmem:[%s4 + $0x10] sm:$0xff] %v784
    %817 = vst [vmem:[%s4 + $0x18] sm:$0xff] %v785
    %818 = vst [vmem:[%s4 + $0x20] sm:$0xff] %v786
    %819 = vst [vmem:[%s4 + $0x28] sm:$0xff] %v787
    %820 = vst [vmem:[%s4 + $0x30] sm:$0xff] %v788
    %821 = vst [vmem:[%s4 + $0x38] sm:$0xff] %v789
    %822 = vst [vmem:[%s4 + $0x40] sm:$0xff] %v790
    %823 = vst [vmem:[%s4 + $0x48] sm:$0xff] %v791
    %824 = vst [vmem:[%s4 + $0x50] sm:$0xff] %v792
    %825 = vst [vmem:[%s4 + $0x58] sm:$0xff] %v793
    %826 = vst [vmem:[%s4 + $0x60] sm:$0xff] %v794
    %827 = vst [vmem:[%s4 + $0x68] sm:$0xff] %v795
    %828 = vst [vmem:[%s4 + $0x70] sm:$0xff] %v796
    %829 = vst [vmem:[%s4 + $0x78] sm:$0xff] %v797
    %830 = vst [vmem:[%s4 + $0x80] sm:$0xff] %v798
    %831 = vst [vmem:[%s4 + $0x88] sm:$0xff] %v799
    %832 = vst [vmem:[%s4 + $0x90] sm:$0xff] %v800
    %833 = vst [vmem:[%s4 + $0x98] sm:$0xff] %v801
    %834 = vst [vmem:[%s4 + $0xa0] sm:$0xff] %v802
    %835 = vst [vmem:[%s4 + $0xa8] sm:$0xff] %v803
    %836 = vst [vmem:[%s4 + $0xb0] sm:$0xff] %v804
    %837 = vst [vmem:[%s4 + $0xb8] sm:$0xff] %v805
    %838 = vst [vmem:[%s4 + $0xc0] sm:$0xff] %v806
    %839 = vst [vmem:[%s4 + $0xc8] sm:$0xff] %v807
    %840 = vst [vmem:[%s4 + $0xd0] sm:$0xff] %v808
    %841 = vst [vmem:[%s4 + $0xd8] sm:$0xff] %v809
    %842 = vst [vmem:[%s4 + $0xe0] sm:$0xff] %v810
    %843 = vst [vmem:[%s4 + $0xe8] sm:$0xff] %v811
    %844 = vst [vmem:[%s4 + $0xf0] sm:$0xff] %v812
    %845 = vst [vmem:[%s4 + $0xf8] sm:$0xff] %v813
  $region25: #{forward.37} parent=0 // pred_fallthru
    _
  // Predicated region
  $region26: #{forward.37} parent=0 // pred_check
    _
  $region27: #{forward.37} parent=0 // pred_check_branch
    %847 = sbr.rel (0) target = $region29
  $region28: #{forward.37} parent=0 // pred_region
    _
  $region29: #{forward.37} parent=0 // pred_fallthru
    _
  // Predicated region
  $region30: #{forward.37} parent=0 // pred_check
    _
  $region31: #{forward.37} parent=0 // pred_check_branch
    %849 = sbr.rel (0) target = $region33
  $region32: #{forward.37} parent=0 // pred_region
    _
  $region33: #{forward.37} parent=0 // pred_fallthru
    _

// kernel: forward.38
$region0: #{forward.38}
  #allocation0 [shape = 'u32[]', space=smem, size = 0x4, offset = 0x4, fixed_abs, tag = 'smem constant byte address 0x4 - core index']
  #allocation1 [shape = 'u32[72,128]{1,0:T(1,128)}', space=vmem, size = 0x9000, scoped, tag = 'internal scratch']
  #allocation2 [shape = 'f32[256,128]{1,0:T(8,128)}', space=vmem, size = 0x20000, scoped, tag = 'scratch operand']
  %s0 = inlined_call_operand.vmem [shape: bf16[256,256], index: 0, kind: input, shape index: {}]
  %s1 = inlined_call_operand.vmem [shape: bf16[256,128], index: 1, kind: input, shape index: {}]
  %s2 = inlined_call_operand.vmem [shape: f32[1,128], index: 2, kind: input, shape index: {}]
  %s3 = inlined_call_operand.vmem [shape: f32[256,128], index: 3, kind: output, shape index: {}]
  %s4 = sld [smem:[#allocation0]]
  $region30: #{forward.38} parent=0
    _
  %s6 = ssub.s32 1, %s4
  %s7 = scalar_select 0, %s6, %s4
  // Predicated region
  $region2: #{forward.38} parent=0 // pred_check
    _
  $region3: #{forward.38} parent=0 // pred_check_branch
    %9 = sbr.rel (0) target = $region5
  $region4: #{forward.38} parent=0 // pred_region
    _
  $region5: #{forward.38} parent=0 // pred_fallthru
    _
  // Predicated region
  $region6: #{forward.38} parent=0 // pred_check
    _
  $region7: #{forward.38} parent=0 // pred_check_branch
    %11 = sbr.rel (0) target = $region9
  $region8: #{forward.38} parent=0 // pred_region
    _
  $region9: #{forward.38} parent=0 // pred_fallthru
    _
  // Predicated region
  $region10: #{forward.38} parent=0 // pred_check
    _
  $region11: #{forward.38} parent=0 // pred_check_branch
    %13 = sbr.rel (0) target = $region13
  $region12: #{forward.38} parent=0 // pred_region
    _
  $region13: #{forward.38} parent=0 // pred_fallthru
    _
  %p14 = scmp.eq.s32.totalorder 0, 0
  // Predicated region
  $region14: #{forward.38} parent=0 // pred_check
    %p15 = pneg %p14
  $region15: #{forward.38} parent=0 // pred_check_branch
    %17 = sbr.rel (%p15) target = $region17
  $region16: #{forward.38} parent=0 // pred_region
    %18 = vst [vmem:[#allocation2] sm:$0xff] 0.0
    %19 = vst [vmem:[#allocation2 + $0x8] sm:$0xff] 0.0
    %20 = vst [vmem:[#allocation2 + $0x10] sm:$0xff] 0.0
    %21 = vst [vmem:[#allocation2 + $0x18] sm:$0xff] 0.0
    %22 = vst [vmem:[#allocation2 + $0x20] sm:$0xff] 0.0
    %23 = vst [vmem:[#allocation2 + $0x28] sm:$0xff] 0.0
    %24 = vst [vmem:[#allocation2 + $0x30] sm:$0xff] 0.0
    %25 = vst [vmem:[#allocation2 + $0x38] sm:$0xff] 0.0
    %26 = vst [vmem:[#allocation2 + $0x40] sm:$0xff] 0.0
    %27 = vst [vmem:[#allocation2 + $0x48] sm:$0xff] 0.0
    %28 = vst [vmem:[#allocation2 + $0x50] sm:$0xff] 0.0
    %29 = vst [vmem:[#allocation2 + $0x58] sm:$0xff] 0.0
    %30 = vst [vmem:[#allocation2 + $0x60] sm:$0xff] 0.0
    %31 = vst [vmem:[#allocation2 + $0x68] sm:$0xff] 0.0
    %32 = vst [vmem:[#allocation2 + $0x70] sm:$0xff] 0.0
    %33 = vst [vmem:[#allocation2 + $0x78] sm:$0xff] 0.0
    %34 = vst [vmem:[#allocation2 + $0x80] sm:$0xff] 0.0
    %35 = vst [vmem:[#allocation2 + $0x88] sm:$0xff] 0.0
    %36 = vst [vmem:[#allocation2 + $0x90] sm:$0xff] 0.0
    %37 = vst [vmem:[#allocation2 + $0x98] sm:$0xff] 0.0
    %38 = vst [vmem:[#allocation2 + $0xa0] sm:$0xff] 0.0
    %39 = vst [vmem:[#allocation2 + $0xa8] sm:$0xff] 0.0
    %40 = vst [vmem:[#allocation2 + $0xb0] sm:$0xff] 0.0
    %41 = vst [vmem:[#allocation2 + $0xb8] sm:$0xff] 0.0
    %42 = vst [vmem:[#allocation2 + $0xc0] sm:$0xff] 0.0
    %43 = vst [vmem:[#allocation2 + $0xc8] sm:$0xff] 0.0
    %44 = vst [vmem:[#allocation2 + $0xd0] sm:$0xff] 0.0
    %45 = vst [vmem:[#allocation2 + $0xd8] sm:$0xff] 0.0
    %46 = vst [vmem:[#allocation2 + $0xe0] sm:$0xff] 0.0
    %47 = vst [vmem:[#allocation2 + $0xe8] sm:$0xff] 0.0
    %48 = vst [vmem:[#allocation2 + $0xf0] sm:$0xff] 0.0
    %49 = vst [vmem:[#allocation2 + $0xf8] sm:$0xff] 0.0
  $region17: #{forward.38} parent=0 // pred_fallthru
    _
  %v50 = vld [vmem:[#allocation2] sm:$0xff]
  %v51 = vld [vmem:[#allocation2 + $0x8] sm:$0xff]
  %v52 = vld [vmem:[#allocation2 + $0x10] sm:$0xff]
  %v53 = vld [vmem:[#allocation2 + $0x18] sm:$0xff]
  %v54 = vld [vmem:[#allocation2 + $0x20] sm:$0xff]
  %v55 = vld [vmem:[#allocation2 + $0x28] sm:$0xff]
  %v56 = vld [vmem:[#allocation2 + $0x30] sm:$0xff]
  %v57 = vld [vmem:[#allocation2 + $0x38] sm:$0xff]
  %v58 = vld [vmem:[#allocation2 + $0x40] sm:$0xff]
  %v59 = vld [vmem:[#allocation2 + $0x48] sm:$0xff]
  %v60 = vld [vmem:[#allocation2 + $0x50] sm:$0xff]
  %v61 = vld [vmem:[#allocation2 + $0x58] sm:$0xff]
  %v62 = vld [vmem:[#allocation2 + $0x60] sm:$0xff]
  %v63 = vld [vmem:[#allocation2 + $0x68] sm:$0xff]
  %v64 = vld [vmem:[#allocation2 + $0x70] sm:$0xff]
  %v65 = vld [vmem:[#allocation2 + $0x78] sm:$0xff]
  %v66 = vld [vmem:[#allocation2 + $0x80] sm:$0xff]
  %v67 = vld [vmem:[#allocation2 + $0x88] sm:$0xff]
  %v68 = vld [vmem:[#allocation2 + $0x90] sm:$0xff]
  %v69 = vld [vmem:[#allocation2 + $0x98] sm:$0xff]
  %v70 = vld [vmem:[#allocation2 + $0xa0] sm:$0xff]
  %v71 = vld [vmem:[#allocation2 + $0xa8] sm:$0xff]
  %v72 = vld [vmem:[#allocation2 + $0xb0] sm:$0xff]
  %v73 = vld [vmem:[#allocation2 + $0xb8] sm:$0xff]
  %v74 = vld [vmem:[#allocation2 + $0xc0] sm:$0xff]
  %v75 = vld [vmem:[#allocation2 + $0xc8] sm:$0xff]
  %v76 = vld [vmem:[#allocation2 + $0xd0] sm:$0xff]
  %v77 = vld [vmem:[#allocation2 + $0xd8] sm:$0xff]
  %v78 = vld [vmem:[#allocation2 + $0xe0] sm:$0xff]
  %v79 = vld [vmem:[#allocation2 + $0xe8] sm:$0xff]
  %v80 = vld [vmem:[#allocation2 + $0xf0] sm:$0xff]
  %v81 = vld [vmem:[#allocation2 + $0xf8] sm:$0xff]
  %v82 = vld [vmem:[%s0] sm:$0xff]
  %v83 = vld [vmem:[%s0 + $0x8] sm:$0xff]
  %v84 = vld [vmem:[%s0 + $0x10] sm:$0xff]
  %v85 = vld [vmem:[%s0 + $0x18] sm:$0xff]
  %v86 = vld [vmem:[%s0 + $0x20] sm:$0xff]
  %v87 = vld [vmem:[%s0 + $0x28] sm:$0xff]
  %v88 = vld [vmem:[%s0 + $0x30] sm:$0xff]
  %v89 = vld [vmem:[%s0 + $0x38] sm:$0xff]
  %v90 = vld [vmem:[%s0 + $0x40] sm:$0xff]
  %v91 = vld [vmem:[%s0 + $0x48] sm:$0xff]
  %v92 = vld [vmem:[%s0 + $0x50] sm:$0xff]
  %v93 = vld [vmem:[%s0 + $0x58] sm:$0xff]
  %v94 = vld [vmem:[%s0 + $0x60] sm:$0xff]
  %v95 = vld [vmem:[%s0 + $0x68] sm:$0xff]
  %v96 = vld [vmem:[%s0 + $0x70] sm:$0xff]
  %v97 = vld [vmem:[%s0 + $0x78] sm:$0xff]
  %v98 = vld [vmem:[%s0 + $0x80] sm:$0xff]
  %v99 = vld [vmem:[%s0 + $0x88] sm:$0xff]
  %v100 = vld [vmem:[%s0 + $0x90] sm:$0xff]
  %v101 = vld [vmem:[%s0 + $0x98] sm:$0xff]
  %v102 = vld [vmem:[%s0 + $0xa0] sm:$0xff]
  %v103 = vld [vmem:[%s0 + $0xa8] sm:$0xff]
  %v104 = vld [vmem:[%s0 + $0xb0] sm:$0xff]
  %v105 = vld [vmem:[%s0 + $0xb8] sm:$0xff]
  %v106 = vld [vmem:[%s0 + $0xc0] sm:$0xff]
  %v107 = vld [vmem:[%s0 + $0xc8] sm:$0xff]
  %v108 = vld [vmem:[%s0 + $0xd0] sm:$0xff]
  %v109 = vld [vmem:[%s0 + $0xd8] sm:$0xff]
  %v110 = vld [vmem:[%s0 + $0xe0] sm:$0xff]
  %v111 = vld [vmem:[%s0 + $0xe8] sm:$0xff]
  %v112 = vld [vmem:[%s0 + $0xf0] sm:$0xff]
  %v113 = vld [vmem:[%s0 + $0xf8] sm:$0xff]
  %v114 = vld [vmem:[%s1] sm:$0xf]
  %v115 = vld [vmem:[%s1 + $0x4] sm:$0xf]
  %v116 = vld [vmem:[%s1 + $0x8] sm:$0xf]
  %v117 = vld [vmem:[%s1 + $0xc] sm:$0xf]
  %v118 = vld [vmem:[%s1 + $0x10] sm:$0xf]
  %v119 = vld [vmem:[%s1 + $0x14] sm:$0xf]
  %v120 = vld [vmem:[%s1 + $0x18] sm:$0xf]
  %v121 = vld [vmem:[%s1 + $0x1c] sm:$0xf]
  %v122 = vld [vmem:[%s1 + $0x20] sm:$0xf]
  %v123 = vld [vmem:[%s1 + $0x24] sm:$0xf]
  %v124 = vld [vmem:[%s1 + $0x28] sm:$0xf]
  %v125 = vld [vmem:[%s1 + $0x2c] sm:$0xf]
  %v126 = vld [vmem:[%s1 + $0x30] sm:$0xf]
  %v127 = vld [vmem:[%s1 + $0x34] sm:$0xf]
  %v128 = vld [vmem:[%s1 + $0x38] sm:$0xf]
  %v129 = vld [vmem:[%s1 + $0x3c] sm:$0xf]
  %v130 = vld [vmem:[%s1 + $0x40] sm:$0xf]
  %v131 = vld [vmem:[%s1 + $0x44] sm:$0xf]
  %v132 = vld [vmem:[%s1 + $0x48] sm:$0xf]
  %v133 = vld [vmem:[%s1 + $0x4c] sm:$0xf]
  %v134 = vld [vmem:[%s1 + $0x50] sm:$0xf]
  %v135 = vld [vmem:[%s1 + $0x54] sm:$0xf]
  %v136 = vld [vmem:[%s1 + $0x58] sm:$0xf]
  %v137 = vld [vmem:[%s1 + $0x5c] sm:$0xf]
  %v138 = vld [vmem:[%s1 + $0x60] sm:$0xf]
  %v139 = vld [vmem:[%s1 + $0x64] sm:$0xf]
  %v140 = vld [vmem:[%s1 + $0x68] sm:$0xf]
  %v141 = vld [vmem:[%s1 + $0x6c] sm:$0xf]
  %v142 = vld [vmem:[%s1 + $0x70] sm:$0xf]
  %v143 = vld [vmem:[%s1 + $0x74] sm:$0xf]
  %v144 = vld [vmem:[%s1 + $0x78] sm:$0xf]
  %v145 = vld [vmem:[%s1 + $0x7c] sm:$0xf]
  %v178 = vunpack.c.l.b16 %v82
  %v179 = vunpack.c.h.b16 %v82
  %v180 = vunpack.c.l.b16 %v83
  %v181 = vunpack.c.h.b16 %v83
  %v182 = vunpack.c.l.b16 %v84
  %v183 = vunpack.c.h.b16 %v84
  %v184 = vunpack.c.l.b16 %v85
  %v185 = vunpack.c.h.b16 %v85
  %v186 = vunpack.c.l.b16 %v86
  %v187 = vunpack.c.h.b16 %v86
  %v188 = vunpack.c.l.b16 %v87
  %v189 = vunpack.c.h.b16 %v87
  %v190 = vunpack.c.l.b16 %v88
  %v191 = vunpack.c.h.b16 %v88
  %v192 = vunpack.c.l.b16 %v89
  %v193 = vunpack.c.h.b16 %v89
  %v194 = vunpack.c.l.b16 %v90
  %v195 = vunpack.c.h.b16 %v90
  %v196 = vunpack.c.l.b16 %v91
  %v197 = vunpack.c.h.b16 %v91
  %v198 = vunpack.c.l.b16 %v92
  %v199 = vunpack.c.h.b16 %v92
  %v200 = vunpack.c.l.b16 %v93
  %v201 = vunpack.c.h.b16 %v93
  %v202 = vunpack.c.l.b16 %v94
  %v203 = vunpack.c.h.b16 %v94
  %v204 = vunpack.c.l.b16 %v95
  %v205 = vunpack.c.h.b16 %v95
  %v206 = vunpack.c.l.b16 %v96
  %v207 = vunpack.c.h.b16 %v96
  %v208 = vunpack.c.l.b16 %v97
  %v209 = vunpack.c.h.b16 %v97
  %v210 = vunpack.c.l.b16 %v98
  %v211 = vunpack.c.h.b16 %v98
  %v212 = vunpack.c.l.b16 %v99
  %v213 = vunpack.c.h.b16 %v99
  %v214 = vunpack.c.l.b16 %v100
  %v215 = vunpack.c.h.b16 %v100
  %v216 = vunpack.c.l.b16 %v101
  %v217 = vunpack.c.h.b16 %v101
  %v218 = vunpack.c.l.b16 %v102
  %v219 = vunpack.c.h.b16 %v102
  %v220 = vunpack.c.l.b16 %v103
  %v221 = vunpack.c.h.b16 %v103
  %v222 = vunpack.c.l.b16 %v104
  %v223 = vunpack.c.h.b16 %v104
  %v224 = vunpack.c.l.b16 %v105
  %v225 = vunpack.c.h.b16 %v105
  %v226 = vunpack.c.l.b16 %v106
  %v227 = vunpack.c.h.b16 %v106
  %v228 = vunpack.c.l.b16 %v107
  %v229 = vunpack.c.h.b16 %v107
  %v230 = vunpack.c.l.b16 %v108
  %v231 = vunpack.c.h.b16 %v108
  %v232 = vunpack.c.l.b16 %v109
  %v233 = vunpack.c.h.b16 %v109
  %v234 = vunpack.c.l.b16 %v110
  %v235 = vunpack.c.h.b16 %v110
  %v236 = vunpack.c.l.b16 %v111
  %v237 = vunpack.c.h.b16 %v111
  %v238 = vunpack.c.l.b16 %v112
  %v239 = vunpack.c.h.b16 %v112
  %v240 = vunpack.c.l.b16 %v113
  %v241 = vunpack.c.h.b16 %v113
  %v242 = vpack.c.b16 %v180, %v178
  %v243 = vpack.c.b16 %v181, %v179
  %v244 = vpack.c.b16 %v184, %v182
  %v245 = vpack.c.b16 %v185, %v183
  %v246 = vpack.c.b16 %v188, %v186
  %v247 = vpack.c.b16 %v189, %v187
  %v248 = vpack.c.b16 %v192, %v190
  %v249 = vpack.c.b16 %v193, %v191
  %v250 = vpack.c.b16 %v196, %v194
  %v251 = vpack.c.b16 %v197, %v195
  %v252 = vpack.c.b16 %v200, %v198
  %v253 = vpack.c.b16 %v201, %v199
  %v254 = vpack.c.b16 %v204, %v202
  %v255 = vpack.c.b16 %v205, %v203
  %v256 = vpack.c.b16 %v208, %v206
  %v257 = vpack.c.b16 %v209, %v207
  %v258 = vpack.c.b16 %v212, %v210
  %v259 = vpack.c.b16 %v213, %v211
  %v260 = vpack.c.b16 %v216, %v214
  %v261 = vpack.c.b16 %v217, %v215
  %v262 = vpack.c.b16 %v220, %v218
  %v263 = vpack.c.b16 %v221, %v219
  %v264 = vpack.c.b16 %v224, %v222
  %v265 = vpack.c.b16 %v225, %v223
  %v266 = vpack.c.b16 %v228, %v226
  %v267 = vpack.c.b16 %v229, %v227
  %v268 = vpack.c.b16 %v232, %v230
  %v269 = vpack.c.b16 %v233, %v231
  %v270 = vpack.c.b16 %v236, %v234
  %v271 = vpack.c.b16 %v237, %v235
  %v272 = vpack.c.b16 %v240, %v238
  %v273 = vpack.c.b16 %v241, %v239
  %v338 = vunpack.c.l.b16 %v114
  %v339 = vunpack.c.l.b16 %v115
  %v340 = vunpack.c.l.b16 %v116
  %v341 = vunpack.c.l.b16 %v117
  %v342 = vunpack.c.l.b16 %v118
  %v343 = vunpack.c.l.b16 %v119
  %v344 = vunpack.c.l.b16 %v120
  %v345 = vunpack.c.l.b16 %v121
  %v346 = vunpack.c.l.b16 %v122
  %v347 = vunpack.c.l.b16 %v123
  %v348 = vunpack.c.l.b16 %v124
  %v349 = vunpack.c.l.b16 %v125
  %v350 = vunpack.c.l.b16 %v126
  %v351 = vunpack.c.l.b16 %v127
  %v352 = vunpack.c.l.b16 %v128
  %v353 = vunpack.c.l.b16 %v129
  %v354 = vunpack.c.l.b16 %v130
  %v355 = vunpack.c.l.b16 %v131
  %v356 = vunpack.c.l.b16 %v132
  %v357 = vunpack.c.l.b16 %v133
  %v358 = vunpack.c.l.b16 %v134
  %v359 = vunpack.c.l.b16 %v135
  %v360 = vunpack.c.l.b16 %v136
  %v361 = vunpack.c.l.b16 %v137
  %v362 = vunpack.c.l.b16 %v138
  %v363 = vunpack.c.l.b16 %v139
  %v364 = vunpack.c.l.b16 %v140
  %v365 = vunpack.c.l.b16 %v141
  %v366 = vunpack.c.l.b16 %v142
  %v367 = vunpack.c.l.b16 %v143
  %v368 = vunpack.c.l.b16 %v144
  %v369 = vunpack.c.l.b16 %v145
  %v370 = vpack.c.b16 %v339, %v338
  %v371 = vpack.c.b16 %v341, %v340
  %v372 = vpack.c.b16 %v343, %v342
  %v373 = vpack.c.b16 %v345, %v344
  %v374 = vpack.c.b16 %v347, %v346
  %v375 = vpack.c.b16 %v349, %v348
  %v376 = vpack.c.b16 %v351, %v350
  %v377 = vpack.c.b16 %v353, %v352
  %v378 = vpack.c.b16 %v355, %v354
  %v379 = vpack.c.b16 %v357, %v356
  %v380 = vpack.c.b16 %v359, %v358
  %v381 = vpack.c.b16 %v361, %v360
  %v382 = vpack.c.b16 %v363, %v362
  %v383 = vpack.c.b16 %v365, %v364
  %v384 = vpack.c.b16 %v367, %v366
  %v385 = vpack.c.b16 %v369, %v368
  %402 = vmatpush.bf16.msra.mxu0 %v377
  %403 = vmatpush.bf16.msra.mxu0 %v376
  %404 = vmatpush.bf16.msra.mxu0 %v375
  %405 = vmatpush.bf16.msra.mxu0 %v374
  %406 = vmatpush.bf16.msra.mxu0 %v373
  %407 = vmatpush.bf16.msra.mxu0 %v372
  %408 = vmatpush.bf16.msra.mxu0 %v371
  %409 = vmatpush.bf16.msra.mxu0 %v370
  %410 = vmatmul.bf16.gmra.mxu0 %v242
  %v411 = vpop.f32.mrf.mxu0
  %v412 = vadd.f32 0.0, %v411
  %v413 = vpop.f32.mrf.mxu0
  %v414 = vadd.f32 0.0, %v413
  %415 = vmatmul.bf16.gmra.mxu0 %v244
  %v416 = vpop.f32.mrf.mxu0
  %v417 = vadd.f32 0.0, %v416
  %v418 = vpop.f32.mrf.mxu0
  %v419 = vadd.f32 0.0, %v418
  %420 = vmatmul.bf16.gmra.mxu0 %v246
  %v421 = vpop.f32.mrf.mxu0
  %v422 = vadd.f32 0.0, %v421
  %v423 = vpop.f32.mrf.mxu0
  %v424 = vadd.f32 0.0, %v423
  %425 = vmatmul.bf16.gmra.mxu0 %v248
  %v426 = vpop.f32.mrf.mxu0
  %v427 = vadd.f32 0.0, %v426
  %v428 = vpop.f32.mrf.mxu0
  %v429 = vadd.f32 0.0, %v428
  %430 = vmatmul.bf16.gmra.mxu0 %v250
  %v431 = vpop.f32.mrf.mxu0
  %v432 = vadd.f32 0.0, %v431
  %v433 = vpop.f32.mrf.mxu0
  %v434 = vadd.f32 0.0, %v433
  %435 = vmatmul.bf16.gmra.mxu0 %v252
  %v436 = vpop.f32.mrf.mxu0
  %v437 = vadd.f32 0.0, %v436
  %v438 = vpop.f32.mrf.mxu0
  %v439 = vadd.f32 0.0, %v438
  %440 = vmatmul.bf16.gmra.mxu0 %v254
  %v441 = vpop.f32.mrf.mxu0
  %v442 = vadd.f32 0.0, %v441
  %v443 = vpop.f32.mrf.mxu0
  %v444 = vadd.f32 0.0, %v443
  %445 = vmatmul.bf16.gmra.mxu0 %v256
  %v446 = vpop.f32.mrf.mxu0
  %v447 = vadd.f32 0.0, %v446
  %v448 = vpop.f32.mrf.mxu0
  %v449 = vadd.f32 0.0, %v448
  %450 = vmatmul.bf16.gmra.mxu0 %v258
  %v451 = vpop.f32.mrf.mxu0
  %v452 = vadd.f32 0.0, %v451
  %v453 = vpop.f32.mrf.mxu0
  %v454 = vadd.f32 0.0, %v453
  %455 = vmatmul.bf16.gmra.mxu0 %v260
  %v456 = vpop.f32.mrf.mxu0
  %v457 = vadd.f32 0.0, %v456
  %v458 = vpop.f32.mrf.mxu0
  %v459 = vadd.f32 0.0, %v458
  %460 = vmatmul.bf16.gmra.mxu0 %v262
  %v461 = vpop.f32.mrf.mxu0
  %v462 = vadd.f32 0.0, %v461
  %v463 = vpop.f32.mrf.mxu0
  %v464 = vadd.f32 0.0, %v463
  %465 = vmatmul.bf16.gmra.mxu0 %v264
  %v466 = vpop.f32.mrf.mxu0
  %v467 = vadd.f32 0.0, %v466
  %v468 = vpop.f32.mrf.mxu0
  %v469 = vadd.f32 0.0, %v468
  %470 = vmatmul.bf16.gmra.mxu0 %v266
  %v471 = vpop.f32.mrf.mxu0
  %v472 = vadd.f32 0.0, %v471
  %v473 = vpop.f32.mrf.mxu0
  %v474 = vadd.f32 0.0, %v473
  %475 = vmatmul.bf16.gmra.mxu0 %v268
  %v476 = vpop.f32.mrf.mxu0
  %v477 = vadd.f32 0.0, %v476
  %v478 = vpop.f32.mrf.mxu0
  %v479 = vadd.f32 0.0, %v478
  %480 = vmatmul.bf16.gmra.mxu0 %v270
  %v481 = vpop.f32.mrf.mxu0
  %v482 = vadd.f32 0.0, %v481
  %v483 = vpop.f32.mrf.mxu0
  %v484 = vadd.f32 0.0, %v483
  %485 = vmatmul.bf16.gmra.mxu0 %v272
  %v486 = vpop.f32.mrf.mxu0
  %v487 = vadd.f32 0.0, %v486
  %v488 = vpop.f32.mrf.mxu0
  %v489 = vadd.f32 0.0, %v488
  %490 = vdwg.mxu0
  %491 = vmatpush.bf16.msra.mxu0 %v385
  %492 = vmatpush.bf16.msra.mxu0 %v384
  %493 = vmatpush.bf16.msra.mxu0 %v383
  %494 = vmatpush.bf16.msra.mxu0 %v382
  %495 = vmatpush.bf16.msra.mxu0 %v381
  %496 = vmatpush.bf16.msra.mxu0 %v380
  %497 = vmatpush.bf16.msra.mxu0 %v379
  %498 = vmatpush.bf16.msra.mxu0 %v378
  %499 = vmatmul.bf16.gmra.mxu0 %v243
  %v500 = vpop.f32.mrf.mxu0
  %v501 = vadd.f32 %v412, %v500
  %v502 = vpop.f32.mrf.mxu0
  %v503 = vadd.f32 %v414, %v502
  %504 = vmatmul.bf16.gmra.mxu0 %v245
  %v505 = vpop.f32.mrf.mxu0
  %v506 = vadd.f32 %v417, %v505
  %v507 = vpop.f32.mrf.mxu0
  %v508 = vadd.f32 %v419, %v507
  %509 = vmatmul.bf16.gmra.mxu0 %v247
  %v510 = vpop.f32.mrf.mxu0
  %v511 = vadd.f32 %v422, %v510
  %v512 = vpop.f32.mrf.mxu0
  %v513 = vadd.f32 %v424, %v512
  %514 = vmatmul.bf16.gmra.mxu0 %v249
  %v515 = vpop.f32.mrf.mxu0
  %v516 = vadd.f32 %v427, %v515
  %v517 = vpop.f32.mrf.mxu0
  %v518 = vadd.f32 %v429, %v517
  %519 = vmatmul.bf16.gmra.mxu0 %v251
  %v520 = vpop.f32.mrf.mxu0
  %v521 = vadd.f32 %v432, %v520
  %v522 = vpop.f32.mrf.mxu0
  %v523 = vadd.f32 %v434, %v522
  %524 = vmatmul.bf16.gmra.mxu0 %v253
  %v525 = vpop.f32.mrf.mxu0
  %v526 = vadd.f32 %v437, %v525
  %v527 = vpop.f32.mrf.mxu0
  %v528 = vadd.f32 %v439, %v527
  %529 = vmatmul.bf16.gmra.mxu0 %v255
  %v530 = vpop.f32.mrf.mxu0
  %v531 = vadd.f32 %v442, %v530
  %v532 = vpop.f32.mrf.mxu0
  %v533 = vadd.f32 %v444, %v532
  %534 = vmatmul.bf16.gmra.mxu0 %v257
  %v535 = vpop.f32.mrf.mxu0
  %v536 = vadd.f32 %v447, %v535
  %v537 = vpop.f32.mrf.mxu0
  %v538 = vadd.f32 %v449, %v537
  %539 = vmatmul.bf16.gmra.mxu0 %v259
  %v540 = vpop.f32.mrf.mxu0
  %v541 = vadd.f32 %v452, %v540
  %v542 = vpop.f32.mrf.mxu0
  %v543 = vadd.f32 %v454, %v542
  %544 = vmatmul.bf16.gmra.mxu0 %v261
  %v545 = vpop.f32.mrf.mxu0
  %v546 = vadd.f32 %v457, %v545
  %v547 = vpop.f32.mrf.mxu0
  %v548 = vadd.f32 %v459, %v547
  %549 = vmatmul.bf16.gmra.mxu0 %v263
  %v550 = vpop.f32.mrf.mxu0
  %v551 = vadd.f32 %v462, %v550
  %v552 = vpop.f32.mrf.mxu0
  %v553 = vadd.f32 %v464, %v552
  %554 = vmatmul.bf16.gmra.mxu0 %v265
  %v555 = vpop.f32.mrf.mxu0
  %v556 = vadd.f32 %v467, %v555
  %v557 = vpop.f32.mrf.mxu0
  %v558 = vadd.f32 %v469, %v557
  %559 = vmatmul.bf16.gmra.mxu0 %v267
  %v560 = vpop.f32.mrf.mxu0
  %v561 = vadd.f32 %v472, %v560
  %v562 = vpop.f32.mrf.mxu0
  %v563 = vadd.f32 %v474, %v562
  %564 = vmatmul.bf16.gmra.mxu0 %v269
  %v565 = vpop.f32.mrf.mxu0
  %v566 = vadd.f32 %v477, %v565
  %v567 = vpop.f32.mrf.mxu0
  %v568 = vadd.f32 %v479, %v567
  %569 = vmatmul.bf16.gmra.mxu0 %v271
  %v570 = vpop.f32.mrf.mxu0
  %v571 = vadd.f32 %v482, %v570
  %v572 = vpop.f32.mrf.mxu0
  %v573 = vadd.f32 %v484, %v572
  %574 = vmatmul.bf16.gmra.mxu0 %v273
  %v575 = vpop.f32.mrf.mxu0
  %v576 = vadd.f32 %v487, %v575
  %v577 = vpop.f32.mrf.mxu0
  %v578 = vadd.f32 %v489, %v577
  %579 = vdwg.mxu0
  %v580 = vadd.f32 %v50, %v501
  %v581 = vadd.f32 %v51, %v503
  %v582 = vadd.f32 %v52, %v506
  %v583 = vadd.f32 %v53, %v508
  %v584 = vadd.f32 %v54, %v511
  %v585 = vadd.f32 %v55, %v513
  %v586 = vadd.f32 %v56, %v516
  %v587 = vadd.f32 %v57, %v518
  %v588 = vadd.f32 %v58, %v521
  %v589 = vadd.f32 %v59, %v523
  %v590 = vadd.f32 %v60, %v526
  %v591 = vadd.f32 %v61, %v528
  %v592 = vadd.f32 %v62, %v531
  %v593 = vadd.f32 %v63, %v533
  %v594 = vadd.f32 %v64, %v536
  %v595 = vadd.f32 %v65, %v538
  %v596 = vadd.f32 %v66, %v541
  %v597 = vadd.f32 %v67, %v543
  %v598 = vadd.f32 %v68, %v546
  %v599 = vadd.f32 %v69, %v548
  %v600 = vadd.f32 %v70, %v551
  %v601 = vadd.f32 %v71, %v553
  %v602 = vadd.f32 %v72, %v556
  %v603 = vadd.f32 %v73, %v558
  %v604 = vadd.f32 %v74, %v561
  %v605 = vadd.f32 %v75, %v563
  %v606 = vadd.f32 %v76, %v566
  %v607 = vadd.f32 %v77, %v568
  %v608 = vadd.f32 %v78, %v571
  %v609 = vadd.f32 %v79, %v573
  %v610 = vadd.f32 %v80, %v576
  %v611 = vadd.f32 %v81, %v578
  %612 = vst [vmem:[#allocation2] sm:$0xff] %v580
  %613 = vst [vmem:[#allocation2 + $0x8] sm:$0xff] %v581
  %614 = vst [vmem:[#allocation2 + $0x10] sm:$0xff] %v582
  %615 = vst [vmem:[#allocation2 + $0x18] sm:$0xff] %v583
  %616 = vst [vmem:[#allocation2 + $0x20] sm:$0xff] %v584
  %617 = vst [vmem:[#allocation2 + $0x28] sm:$0xff] %v585
  %618 = vst [vmem:[#allocation2 + $0x30] sm:$0xff] %v586
  %619 = vst [vmem:[#allocation2 + $0x38] sm:$0xff] %v587
  %620 = vst [vmem:[#allocation2 + $0x40] sm:$0xff] %v588
  %621 = vst [vmem:[#allocation2 + $0x48] sm:$0xff] %v589
  %622 = vst [vmem:[#allocation2 + $0x50] sm:$0xff] %v590
  %623 = vst [vmem:[#allocation2 + $0x58] sm:$0xff] %v591
  %624 = vst [vmem:[#allocation2 + $0x60] sm:$0xff] %v592
  %625 = vst [vmem:[#allocation2 + $0x68] sm:$0xff] %v593
  %626 = vst [vmem:[#allocation2 + $0x70] sm:$0xff] %v594
  %627 = vst [vmem:[#allocation2 + $0x78] sm:$0xff] %v595
  %628 = vst [vmem:[#allocation2 + $0x80] sm:$0xff] %v596
  %629 = vst [vmem:[#allocation2 + $0x88] sm:$0xff] %v597
  %630 = vst [vmem:[#allocation2 + $0x90] sm:$0xff] %v598
  %631 = vst [vmem:[#allocation2 + $0x98] sm:$0xff] %v599
  %632 = vst [vmem:[#allocation2 + $0xa0] sm:$0xff] %v600
  %633 = vst [vmem:[#allocation2 + $0xa8] sm:$0xff] %v601
  %634 = vst [vmem:[#allocation2 + $0xb0] sm:$0xff] %v602
  %635 = vst [vmem:[#allocation2 + $0xb8] sm:$0xff] %v603
  %636 = vst [vmem:[#allocation2 + $0xc0] sm:$0xff] %v604
  %637 = vst [vmem:[#allocation2 + $0xc8] sm:$0xff] %v605
  %638 = vst [vmem:[#allocation2 + $0xd0] sm:$0xff] %v606
  %639 = vst [vmem:[#allocation2 + $0xd8] sm:$0xff] %v607
  %640 = vst [vmem:[#allocation2 + $0xe0] sm:$0xff] %v608
  %641 = vst [vmem:[#allocation2 + $0xe8] sm:$0xff] %v609
  %642 = vst [vmem:[#allocation2 + $0xf0] sm:$0xff] %v610
  %643 = vst [vmem:[#allocation2 + $0xf8] sm:$0xff] %v611
  // Predicated region
  $region18: #{forward.38} parent=0 // pred_check
    %p644 = pneg %p14
  $region19: #{forward.38} parent=0 // pred_check_branch
    %646 = sbr.rel (%p644) target = $region21
  $region20: #{forward.38} parent=0 // pred_region
    %v647 = vld [vmem:[#allocation2] sm:$0xff]
    %v648 = vld [vmem:[#allocation2 + $0x8] sm:$0xff]
    %v649 = vld [vmem:[#allocation2 + $0x10] sm:$0xff]
    %v650 = vld [vmem:[#allocation2 + $0x18] sm:$0xff]
    %v651 = vld [vmem:[#allocation2 + $0x20] sm:$0xff]
    %v652 = vld [vmem:[#allocation2 + $0x28] sm:$0xff]
    %v653 = vld [vmem:[#allocation2 + $0x30] sm:$0xff]
    %v654 = vld [vmem:[#allocation2 + $0x38] sm:$0xff]
    %v655 = vld [vmem:[#allocation2 + $0x40] sm:$0xff]
    %v656 = vld [vmem:[#allocation2 + $0x48] sm:$0xff]
    %v657 = vld [vmem:[#allocation2 + $0x50] sm:$0xff]
    %v658 = vld [vmem:[#allocation2 + $0x58] sm:$0xff]
    %v659 = vld [vmem:[#allocation2 + $0x60] sm:$0xff]
    %v660 = vld [vmem:[#allocation2 + $0x68] sm:$0xff]
    %v661 = vld [vmem:[#allocation2 + $0x70] sm:$0xff]
    %v662 = vld [vmem:[#allocation2 + $0x78] sm:$0xff]
    %v663 = vld [vmem:[#allocation2 + $0x80] sm:$0xff]
    %v664 = vld [vmem:[#allocation2 + $0x88] sm:$0xff]
    %v665 = vld [vmem:[#allocation2 + $0x90] sm:$0xff]
    %v666 = vld [vmem:[#allocation2 + $0x98] sm:$0xff]
    %v667 = vld [vmem:[#allocation2 + $0xa0] sm:$0xff]
    %v668 = vld [vmem:[#allocation2 + $0xa8] sm:$0xff]
    %v669 = vld [vmem:[#allocation2 + $0xb0] sm:$0xff]
    %v670 = vld [vmem:[#allocation2 + $0xb8] sm:$0xff]
    %v671 = vld [vmem:[#allocation2 + $0xc0] sm:$0xff]
    %v672 = vld [vmem:[#allocation2 + $0xc8] sm:$0xff]
    %v673 = vld [vmem:[#allocation2 + $0xd0] sm:$0xff]
    %v674 = vld [vmem:[#allocation2 + $0xd8] sm:$0xff]
    %v675 = vld [vmem:[#allocation2 + $0xe0] sm:$0xff]
    %v676 = vld [vmem:[#allocation2 + $0xe8] sm:$0xff]
    %v677 = vld [vmem:[#allocation2 + $0xf0] sm:$0xff]
    %v678 = vld [vmem:[#allocation2 + $0xf8] sm:$0xff]
    %v679 = vld [vmem:[%s2] sm:$0x1]
    %v681 = vperm.slane %v679, 0
    %v683 = vadd.f32 %v647, %v681
    %v684 = vadd.f32 %v648, %v681
    %v685 = vadd.f32 %v649, %v681
    %v686 = vadd.f32 %v650, %v681
    %v687 = vadd.f32 %v651, %v681
    %v688 = vadd.f32 %v652, %v681
    %v689 = vadd.f32 %v653, %v681
    %v690 = vadd.f32 %v654, %v681
    %v691 = vadd.f32 %v655, %v681
    %v692 = vadd.f32 %v656, %v681
    %v693 = vadd.f32 %v657, %v681
    %v694 = vadd.f32 %v658, %v681
    %v695 = vadd.f32 %v659, %v681
    %v696 = vadd.f32 %v660, %v681
    %v697 = vadd.f32 %v661, %v681
    %v698 = vadd.f32 %v662, %v681
    %v699 = vadd.f32 %v663, %v681
    %v700 = vadd.f32 %v664, %v681
    %v701 = vadd.f32 %v665, %v681
    %v702 = vadd.f32 %v666, %v681
    %v703 = vadd.f32 %v667, %v681
    %v704 = vadd.f32 %v668, %v681
    %v705 = vadd.f32 %v669, %v681
    %v706 = vadd.f32 %v670, %v681
    %v707 = vadd.f32 %v671, %v681
    %v708 = vadd.f32 %v672, %v681
    %v709 = vadd.f32 %v673, %v681
    %v710 = vadd.f32 %v674, %v681
    %v711 = vadd.f32 %v675, %v681
    %v712 = vadd.f32 %v676, %v681
    %v713 = vadd.f32 %v677, %v681
    %v714 = vadd.f32 %v678, %v681
    %v715 = vmax.f32 %v683, 0.0
    %v716 = vmax.f32 %v684, 0.0
    %v717 = vmax.f32 %v685, 0.0
    %v718 = vmax.f32 %v686, 0.0
    %v719 = vmax.f32 %v687, 0.0
    %v720 = vmax.f32 %v688, 0.0
    %v721 = vmax.f32 %v689, 0.0
    %v722 = vmax.f32 %v690, 0.0
    %v723 = vmax.f32 %v691, 0.0
    %v724 = vmax.f32 %v692, 0.0
    %v725 = vmax.f32 %v693, 0.0
    %v726 = vmax.f32 %v694, 0.0
    %v727 = vmax.f32 %v695, 0.0
    %v728 = vmax.f32 %v696, 0.0
    %v729 = vmax.f32 %v697, 0.0
    %v730 = vmax.f32 %v698, 0.0
    %v731 = vmax.f32 %v699, 0.0
    %v732 = vmax.f32 %v700, 0.0
    %v733 = vmax.f32 %v701, 0.0
    %v734 = vmax.f32 %v702, 0.0
    %v735 = vmax.f32 %v703, 0.0
    %v736 = vmax.f32 %v704, 0.0
    %v737 = vmax.f32 %v705, 0.0
    %v738 = vmax.f32 %v706, 0.0
    %v739 = vmax.f32 %v707, 0.0
    %v740 = vmax.f32 %v708, 0.0
    %v741 = vmax.f32 %v709, 0.0
    %v742 = vmax.f32 %v710, 0.0
    %v743 = vmax.f32 %v711, 0.0
    %v744 = vmax.f32 %v712, 0.0
    %v745 = vmax.f32 %v713, 0.0
    %v746 = vmax.f32 %v714, 0.0
    %747 = vst [vmem:[%s3] sm:$0xff] %v715
    %748 = vst [vmem:[%s3 + $0x8] sm:$0xff] %v716
    %749 = vst [vmem:[%s3 + $0x10] sm:$0xff] %v717
    %750 = vst [vmem:[%s3 + $0x18] sm:$0xff] %v718
    %751 = vst [vmem:[%s3 + $0x20] sm:$0xff] %v719
    %752 = vst [vmem:[%s3 + $0x28] sm:$0xff] %v720
    %753 = vst [vmem:[%s3 + $0x30] sm:$0xff] %v721
    %754 = vst [vmem:[%s3 + $0x38] sm:$0xff] %v722
    %755 = vst [vmem:[%s3 + $0x40] sm:$0xff] %v723
    %756 = vst [vmem:[%s3 + $0x48] sm:$0xff] %v724
    %757 = vst [vmem:[%s3 + $0x50] sm:$0xff] %v725
    %758 = vst [vmem:[%s3 + $0x58] sm:$0xff] %v726
    %759 = vst [vmem:[%s3 + $0x60] sm:$0xff] %v727
    %760 = vst [vmem:[%s3 + $0x68] sm:$0xff] %v728
    %761 = vst [vmem:[%s3 + $0x70] sm:$0xff] %v729
    %762 = vst [vmem:[%s3 + $0x78] sm:$0xff] %v730
    %763 = vst [vmem:[%s3 + $0x80] sm:$0xff] %v731
    %764 = vst [vmem:[%s3 + $0x88] sm:$0xff] %v732
    %765 = vst [vmem:[%s3 + $0x90] sm:$0xff] %v733
    %766 = vst [vmem:[%s3 + $0x98] sm:$0xff] %v734
    %767 = vst [vmem:[%s3 + $0xa0] sm:$0xff] %v735
    %768 = vst [vmem:[%s3 + $0xa8] sm:$0xff] %v736
    %769 = vst [vmem:[%s3 + $0xb0] sm:$0xff] %v737
    %770 = vst [vmem:[%s3 + $0xb8] sm:$0xff] %v738
    %771 = vst [vmem:[%s3 + $0xc0] sm:$0xff] %v739
    %772 = vst [vmem:[%s3 + $0xc8] sm:$0xff] %v740
    %773 = vst [vmem:[%s3 + $0xd0] sm:$0xff] %v741
    %774 = vst [vmem:[%s3 + $0xd8] sm:$0xff] %v742
    %775 = vst [vmem:[%s3 + $0xe0] sm:$0xff] %v743
    %776 = vst [vmem:[%s3 + $0xe8] sm:$0xff] %v744
    %777 = vst [vmem:[%s3 + $0xf0] sm:$0xff] %v745
    %778 = vst [vmem:[%s3 + $0xf8] sm:$0xff] %v746
  $region21: #{forward.38} parent=0 // pred_fallthru
    _
  // Predicated region
  $region22: #{forward.38} parent=0 // pred_check
    _
  $region23: #{forward.38} parent=0 // pred_check_branch
    %780 = sbr.rel (0) target = $region25
  $region24: #{forward.38} parent=0 // pred_region
    _
  $region25: #{forward.38} parent=0 // pred_fallthru
    _
  // Predicated region
  $region26: #{forward.38} parent=0 // pred_check
    _
  $region27: #{forward.38} parent=0 // pred_check_branch
    %782 = sbr.rel (0) target = $region29
  $region28: #{forward.38} parent=0 // pred_region
    _
  $region29: #{forward.38} parent=0 // pred_fallthru
    _

// kernel: forward.40
$region0: #{forward.40}
  #allocation0 [shape = 'u32[]', space=smem, size = 0x4, offset = 0x4, fixed_abs, tag = 'smem constant byte address 0x4 - core index']
  #allocation1 [shape = 'u32[72,128]{1,0:T(1,128)}', space=vmem, size = 0x9000, scoped, tag = 'internal scratch']
  #allocation2 [shape = 'f32[64,128]{1,0:T(8,128)}', space=vmem, size = 0x8000, scoped, tag = 'scratch operand']
  %s0 = inlined_call_operand.vmem [shape: bf16[64,256], index: 0, kind: input, shape index: {}]
  %s1 = inlined_call_operand.vmem [shape: bf16[256,128], index: 1, kind: input, shape index: {}]
  %s2 = inlined_call_operand.vmem [shape: f32[1,128], index: 2, kind: input, shape index: {}]
  %s3 = inlined_call_operand.vmem [shape: f32[64,128], index: 3, kind: output, shape index: {}]
  %s4 = sld [smem:[#allocation0]]
  $region30: #{forward.40} parent=0
    _
  %s6 = ssub.s32 1, %s4
  %s7 = scalar_select 0, %s6, %s4
  // Predicated region
  $region2: #{forward.40} parent=0 // pred_check
    _
  $region3: #{forward.40} parent=0 // pred_check_branch
    %9 = sbr.rel (0) target = $region5
  $region4: #{forward.40} parent=0 // pred_region
    _
  $region5: #{forward.40} parent=0 // pred_fallthru
    _
  // Predicated region
  $region6: #{forward.40} parent=0 // pred_check
    _
  $region7: #{forward.40} parent=0 // pred_check_branch
    %11 = sbr.rel (0) target = $region9
  $region8: #{forward.40} parent=0 // pred_region
    _
  $region9: #{forward.40} parent=0 // pred_fallthru
    _
  // Predicated region
  $region10: #{forward.40} parent=0 // pred_check
    _
  $region11: #{forward.40} parent=0 // pred_check_branch
    %13 = sbr.rel (0) target = $region13
  $region12: #{forward.40} parent=0 // pred_region
    _
  $region13: #{forward.40} parent=0 // pred_fallthru
    _
  %p14 = scmp.eq.s32.totalorder 0, 0
  // Predicated region
  $region14: #{forward.40} parent=0 // pred_check
    %p15 = pneg %p14
  $region15: #{forward.40} parent=0 // pred_check_branch
    %17 = sbr.rel (%p15) target = $region17
  $region16: #{forward.40} parent=0 // pred_region
    %18 = vst [vmem:[#allocation2] sm:$0xff] 0.0
    %19 = vst [vmem:[#allocation2 + $0x8] sm:$0xff] 0.0
    %20 = vst [vmem:[#allocation2 + $0x10] sm:$0xff] 0.0
    %21 = vst [vmem:[#allocation2 + $0x18] sm:$0xff] 0.0
    %22 = vst [vmem:[#allocation2 + $0x20] sm:$0xff] 0.0
    %23 = vst [vmem:[#allocation2 + $0x28] sm:$0xff] 0.0
    %24 = vst [vmem:[#allocation2 + $0x30] sm:$0xff] 0.0
    %25 = vst [vmem:[#allocation2 + $0x38] sm:$0xff] 0.0
  $region17: #{forward.40} parent=0 // pred_fallthru
    _
  %v26 = vld [vmem:[#allocation2] sm:$0xff]
  %v27 = vld [vmem:[#allocation2 + $0x8] sm:$0xff]
  %v28 = vld [vmem:[#allocation2 + $0x10] sm:$0xff]
  %v29 = vld [vmem:[#allocation2 + $0x18] sm:$0xff]
  %v30 = vld [vmem:[#allocation2 + $0x20] sm:$0xff]
  %v31 = vld [vmem:[#allocation2 + $0x28] sm:$0xff]
  %v32 = vld [vmem:[#allocation2 + $0x30] sm:$0xff]
  %v33 = vld [vmem:[#allocation2 + $0x38] sm:$0xff]
  %v34 = vld [vmem:[%s0] sm:$0xff]
  %v35 = vld [vmem:[%s0 + $0x8] sm:$0xff]
  %v36 = vld [vmem:[%s0 + $0x10] sm:$0xff]
  %v37 = vld [vmem:[%s0 + $0x18] sm:$0xff]
  %v38 = vld [vmem:[%s0 + $0x20] sm:$0xff]
  %v39 = vld [vmem:[%s0 + $0x28] sm:$0xff]
  %v40 = vld [vmem:[%s0 + $0x30] sm:$0xff]
  %v41 = vld [vmem:[%s0 + $0x38] sm:$0xff]
  %v42 = vld [vmem:[%s1] sm:$0xf]
  %v43 = vld [vmem:[%s1 + $0x4] sm:$0xf]
  %v44 = vld [vmem:[%s1 + $0x8] sm:$0xf]
  %v45 = vld [vmem:[%s1 + $0xc] sm:$0xf]
  %v46 = vld [vmem:[%s1 + $0x10] sm:$0xf]
  %v47 = vld [vmem:[%s1 + $0x14] sm:$0xf]
  %v48 = vld [vmem:[%s1 + $0x18] sm:$0xf]
  %v49 = vld [vmem:[%s1 + $0x1c] sm:$0xf]
  %v50 = vld [vmem:[%s1 + $0x20] sm:$0xf]
  %v51 = vld [vmem:[%s1 + $0x24] sm:$0xf]
  %v52 = vld [vmem:[%s1 + $0x28] sm:$0xf]
  %v53 = vld [vmem:[%s1 + $0x2c] sm:$0xf]
  %v54 = vld [vmem:[%s1 + $0x30] sm:$0xf]
  %v55 = vld [vmem:[%s1 + $0x34] sm:$0xf]
  %v56 = vld [vmem:[%s1 + $0x38] sm:$0xf]
  %v57 = vld [vmem:[%s1 + $0x3c] sm:$0xf]
  %v58 = vld [vmem:[%s1 + $0x40] sm:$0xf]
  %v59 = vld [vmem:[%s1 + $0x44] sm:$0xf]
  %v60 = vld [vmem:[%s1 + $0x48] sm:$0xf]
  %v61 = vld [vmem:[%s1 + $0x4c] sm:$0xf]
  %v62 = vld [vmem:[%s1 + $0x50] sm:$0xf]
  %v63 = vld [vmem:[%s1 + $0x54] sm:$0xf]
  %v64 = vld [vmem:[%s1 + $0x58] sm:$0xf]
  %v65 = vld [vmem:[%s1 + $0x5c] sm:$0xf]
  %v66 = vld [vmem:[%s1 + $0x60] sm:$0xf]
  %v67 = vld [vmem:[%s1 + $0x64] sm:$0xf]
  %v68 = vld [vmem:[%s1 + $0x68] sm:$0xf]
  %v69 = vld [vmem:[%s1 + $0x6c] sm:$0xf]
  %v70 = vld [vmem:[%s1 + $0x70] sm:$0xf]
  %v71 = vld [vmem:[%s1 + $0x74] sm:$0xf]
  %v72 = vld [vmem:[%s1 + $0x78] sm:$0xf]
  %v73 = vld [vmem:[%s1 + $0x7c] sm:$0xf]
  %v82 = vunpack.c.l.b16 %v34
  %v83 = vunpack.c.h.b16 %v34
  %v84 = vunpack.c.l.b16 %v35
  %v85 = vunpack.c.h.b16 %v35
  %v86 = vunpack.c.l.b16 %v36
  %v87 = vunpack.c.h.b16 %v36
  %v88 = vunpack.c.l.b16 %v37
  %v89 = vunpack.c.h.b16 %v37
  %v90 = vunpack.c.l.b16 %v38
  %v91 = vunpack.c.h.b16 %v38
  %v92 = vunpack.c.l.b16 %v39
  %v93 = vunpack.c.h.b16 %v39
  %v94 = vunpack.c.l.b16 %v40
  %v95 = vunpack.c.h.b16 %v40
  %v96 = vunpack.c.l.b16 %v41
  %v97 = vunpack.c.h.b16 %v41
  %v98 = vpack.c.b16 %v84, %v82
  %v99 = vpack.c.b16 %v85, %v83
  %v100 = vpack.c.b16 %v88, %v86
  %v101 = vpack.c.b16 %v89, %v87
  %v102 = vpack.c.b16 %v92, %v90
  %v103 = vpack.c.b16 %v93, %v91
  %v104 = vpack.c.b16 %v96, %v94
  %v105 = vpack.c.b16 %v97, %v95
  %v146 = vunpack.c.l.b16 %v42
  %v147 = vunpack.c.l.b16 %v43
  %v148 = vunpack.c.l.b16 %v44
  %v149 = vunpack.c.l.b16 %v45
  %v150 = vunpack.c.l.b16 %v46
  %v151 = vunpack.c.l.b16 %v47
  %v152 = vunpack.c.l.b16 %v48
  %v153 = vunpack.c.l.b16 %v49
  %v154 = vunpack.c.l.b16 %v50
  %v155 = vunpack.c.l.b16 %v51
  %v156 = vunpack.c.l.b16 %v52
  %v157 = vunpack.c.l.b16 %v53
  %v158 = vunpack.c.l.b16 %v54
  %v159 = vunpack.c.l.b16 %v55
  %v160 = vunpack.c.l.b16 %v56
  %v161 = vunpack.c.l.b16 %v57
  %v162 = vunpack.c.l.b16 %v58
  %v163 = vunpack.c.l.b16 %v59
  %v164 = vunpack.c.l.b16 %v60
  %v165 = vunpack.c.l.b16 %v61
  %v166 = vunpack.c.l.b16 %v62
  %v167 = vunpack.c.l.b16 %v63
  %v168 = vunpack.c.l.b16 %v64
  %v169 = vunpack.c.l.b16 %v65
  %v170 = vunpack.c.l.b16 %v66
  %v171 = vunpack.c.l.b16 %v67
  %v172 = vunpack.c.l.b16 %v68
  %v173 = vunpack.c.l.b16 %v69
  %v174 = vunpack.c.l.b16 %v70
  %v175 = vunpack.c.l.b16 %v71
  %v176 = vunpack.c.l.b16 %v72
  %v177 = vunpack.c.l.b16 %v73
  %v178 = vpack.c.b16 %v147, %v146
  %v179 = vpack.c.b16 %v149, %v148
  %v180 = vpack.c.b16 %v151, %v150
  %v181 = vpack.c.b16 %v153, %v152
  %v182 = vpack.c.b16 %v155, %v154
  %v183 = vpack.c.b16 %v157, %v156
  %v184 = vpack.c.b16 %v159, %v158
  %v185 = vpack.c.b16 %v161, %v160
  %v186 = vpack.c.b16 %v163, %v162
  %v187 = vpack.c.b16 %v165, %v164
  %v188 = vpack.c.b16 %v167, %v166
  %v189 = vpack.c.b16 %v169, %v168
  %v190 = vpack.c.b16 %v171, %v170
  %v191 = vpack.c.b16 %v173, %v172
  %v192 = vpack.c.b16 %v175, %v174
  %v193 = vpack.c.b16 %v177, %v176
  %210 = vmatpush.bf16.msra.mxu0 %v185
  %211 = vmatpush.bf16.msra.mxu0 %v184
  %212 = vmatpush.bf16.msra.mxu0 %v183
  %213 = vmatpush.bf16.msra.mxu0 %v182
  %214 = vmatpush.bf16.msra.mxu0 %v181
  %215 = vmatpush.bf16.msra.mxu0 %v180
  %216 = vmatpush.bf16.msra.mxu0 %v179
  %217 = vmatpush.bf16.msra.mxu0 %v178
  %218 = vmatmul.bf16.gmra.mxu0 %v98
  %v219 = vpop.f32.mrf.mxu0
  %v220 = vadd.f32 0.0, %v219
  %v221 = vpop.f32.mrf.mxu0
  %v222 = vadd.f32 0.0, %v221
  %223 = vmatmul.bf16.gmra.mxu0 %v100
  %v224 = vpop.f32.mrf.mxu0
  %v225 = vadd.f32 0.0, %v224
  %v226 = vpop.f32.mrf.mxu0
  %v227 = vadd.f32 0.0, %v226
  %228 = vmatmul.bf16.gmra.mxu0 %v102
  %v229 = vpop.f32.mrf.mxu0
  %v230 = vadd.f32 0.0, %v229
  %v231 = vpop.f32.mrf.mxu0
  %v232 = vadd.f32 0.0, %v231
  %233 = vmatmul.bf16.gmra.mxu0 %v104
  %v234 = vpop.f32.mrf.mxu0
  %v235 = vadd.f32 0.0, %v234
  %v236 = vpop.f32.mrf.mxu0
  %v237 = vadd.f32 0.0, %v236
  %238 = vdwg.mxu0
  %239 = vmatpush.bf16.msra.mxu0 %v193
  %240 = vmatpush.bf16.msra.mxu0 %v192
  %241 = vmatpush.bf16.msra.mxu0 %v191
  %242 = vmatpush.bf16.msra.mxu0 %v190
  %243 = vmatpush.bf16.msra.mxu0 %v189
  %244 = vmatpush.bf16.msra.mxu0 %v188
  %245 = vmatpush.bf16.msra.mxu0 %v187
  %246 = vmatpush.bf16.msra.mxu0 %v186
  %247 = vmatmul.bf16.gmra.mxu0 %v99
  %v248 = vpop.f32.mrf.mxu0
  %v249 = vadd.f32 %v220, %v248
  %v250 = vpop.f32.mrf.mxu0
  %v251 = vadd.f32 %v222, %v250
  %252 = vmatmul.bf16.gmra.mxu0 %v101
  %v253 = vpop.f32.mrf.mxu0
  %v254 = vadd.f32 %v225, %v253
  %v255 = vpop.f32.mrf.mxu0
  %v256 = vadd.f32 %v227, %v255
  %257 = vmatmul.bf16.gmra.mxu0 %v103
  %v258 = vpop.f32.mrf.mxu0
  %v259 = vadd.f32 %v230, %v258
  %v260 = vpop.f32.mrf.mxu0
  %v261 = vadd.f32 %v232, %v260
  %262 = vmatmul.bf16.gmra.mxu0 %v105
  %v263 = vpop.f32.mrf.mxu0
  %v264 = vadd.f32 %v235, %v263
  %v265 = vpop.f32.mrf.mxu0
  %v266 = vadd.f32 %v237, %v265
  %267 = vdwg.mxu0
  %v268 = vadd.f32 %v26, %v249
  %v269 = vadd.f32 %v27, %v251
  %v270 = vadd.f32 %v28, %v254
  %v271 = vadd.f32 %v29, %v256
  %v272 = vadd.f32 %v30, %v259
  %v273 = vadd.f32 %v31, %v261
  %v274 = vadd.f32 %v32, %v264
  %v275 = vadd.f32 %v33, %v266
  %276 = vst [vmem:[#allocation2] sm:$0xff] %v268
  %277 = vst [vmem:[#allocation2 + $0x8] sm:$0xff] %v269
  %278 = vst [vmem:[#allocation2 + $0x10] sm:$0xff] %v270
  %279 = vst [vmem:[#allocation2 + $0x18] sm:$0xff] %v271
  %280 = vst [vmem:[#allocation2 + $0x20] sm:$0xff] %v272
  %281 = vst [vmem:[#allocation2 + $0x28] sm:$0xff] %v273
  %282 = vst [vmem:[#allocation2 + $0x30] sm:$0xff] %v274
  %283 = vst [vmem:[#allocation2 + $0x38] sm:$0xff] %v275
  // Predicated region
  $region18: #{forward.40} parent=0 // pred_check
    %p284 = pneg %p14
  $region19: #{forward.40} parent=0 // pred_check_branch
    %286 = sbr.rel (%p284) target = $region21
  $region20: #{forward.40} parent=0 // pred_region
    %v287 = vld [vmem:[#allocation2] sm:$0xff]
    %v288 = vld [vmem:[#allocation2 + $0x8] sm:$0xff]
    %v289 = vld [vmem:[#allocation2 + $0x10] sm:$0xff]
    %v290 = vld [vmem:[#allocation2 + $0x18] sm:$0xff]
    %v291 = vld [vmem:[#allocation2 + $0x20] sm:$0xff]
    %v292 = vld [vmem:[#allocation2 + $0x28] sm:$0xff]
    %v293 = vld [vmem:[#allocation2 + $0x30] sm:$0xff]
    %v294 = vld [vmem:[#allocation2 + $0x38] sm:$0xff]
    %v295 = vld [vmem:[%s2] sm:$0x1]
    %v297 = vperm.slane %v295, 0
    %v299 = vadd.f32 %v287, %v297
    %v300 = vadd.f32 %v288, %v297
    %v301 = vadd.f32 %v289, %v297
    %v302 = vadd.f32 %v290, %v297
    %v303 = vadd.f32 %v291, %v297
    %v304 = vadd.f32 %v292, %v297
    %v305 = vadd.f32 %v293, %v297
    %v306 = vadd.f32 %v294, %v297
    %v307 = vmax.f32 %v299, 0.0
    %v308 = vmax.f32 %v300, 0.0
    %v309 = vmax.f32 %v301, 0.0
    %v310 = vmax.f32 %v302, 0.0
    %v311 = vmax.f32 %v303, 0.0
    %v312 = vmax.f32 %v304, 0.0
    %v313 = vmax.f32 %v305, 0.0
    %v314 = vmax.f32 %v306, 0.0
    %315 = vst [vmem:[%s3] sm:$0xff] %v307
    %316 = vst [vmem:[%s3 + $0x8] sm:$0xff] %v308
    %317 = vst [vmem:[%s3 + $0x10] sm:$0xff] %v309
    %318 = vst [vmem:[%s3 + $0x18] sm:$0xff] %v310
    %319 = vst [vmem:[%s3 + $0x20] sm:$0xff] %v311
    %320 = vst [vmem:[%s3 + $0x28] sm:$0xff] %v312
    %321 = vst [vmem:[%s3 + $0x30] sm:$0xff] %v313
    %322 = vst [vmem:[%s3 + $0x38] sm:$0xff] %v314
  $region21: #{forward.40} parent=0 // pred_fallthru
    _
  // Predicated region
  $region22: #{forward.40} parent=0 // pred_check
    _
  $region23: #{forward.40} parent=0 // pred_check_branch
    %324 = sbr.rel (0) target = $region25
  $region24: #{forward.40} parent=0 // pred_region
    _
  $region25: #{forward.40} parent=0 // pred_fallthru
    _
  // Predicated region
  $region26: #{forward.40} parent=0 // pred_check
    _
  $region27: #{forward.40} parent=0 // pred_check_branch
    %326 = sbr.rel (0) target = $region29
  $region28: #{forward.40} parent=0 // pred_region
    _
  $region29: #{forward.40} parent=0 // pred_fallthru
    _

// kernel: forward.41
$region0: #{forward.41}
  #allocation0 [shape = 'u32[]', space=smem, size = 0x4, offset = 0x4, fixed_abs, tag = 'smem constant byte address 0x4 - core index']
  #allocation1 [shape = 'u32[72,128]{1,0:T(1,128)}', space=vmem, size = 0x9000, scoped, tag = 'internal scratch']
  #allocation2 [shape = 'f32[64,128]{1,0:T(8,128)}', space=vmem, size = 0x8000, scoped, tag = 'scratch operand']
  %s0 = inlined_call_operand.vmem [shape: bf16[64,128], index: 0, kind: input, shape index: {}]
  %s1 = inlined_call_operand.vmem [shape: bf16[128,128], index: 1, kind: input, shape index: {}]
  %s2 = inlined_call_operand.vmem [shape: f32[1,128], index: 2, kind: input, shape index: {}]
  %s3 = inlined_call_operand.vmem [shape: f32[64,128], index: 3, kind: output, shape index: {}]
  %s4 = sld [smem:[#allocation0]]
  $region30: #{forward.41} parent=0
    _
  %s6 = ssub.s32 1, %s4
  %s7 = scalar_select 0, %s6, %s4
  // Predicated region
  $region2: #{forward.41} parent=0 // pred_check
    _
  $region3: #{forward.41} parent=0 // pred_check_branch
    %9 = sbr.rel (0) target = $region5
  $region4: #{forward.41} parent=0 // pred_region
    _
  $region5: #{forward.41} parent=0 // pred_fallthru
    _
  // Predicated region
  $region6: #{forward.41} parent=0 // pred_check
    _
  $region7: #{forward.41} parent=0 // pred_check_branch
    %11 = sbr.rel (0) target = $region9
  $region8: #{forward.41} parent=0 // pred_region
    _
  $region9: #{forward.41} parent=0 // pred_fallthru
    _
  // Predicated region
  $region10: #{forward.41} parent=0 // pred_check
    _
  $region11: #{forward.41} parent=0 // pred_check_branch
    %13 = sbr.rel (0) target = $region13
  $region12: #{forward.41} parent=0 // pred_region
    _
  $region13: #{forward.41} parent=0 // pred_fallthru
    _
  %p14 = scmp.eq.s32.totalorder 0, 0
  // Predicated region
  $region14: #{forward.41} parent=0 // pred_check
    %p15 = pneg %p14
  $region15: #{forward.41} parent=0 // pred_check_branch
    %17 = sbr.rel (%p15) target = $region17
  $region16: #{forward.41} parent=0 // pred_region
    %18 = vst [vmem:[#allocation2] sm:$0xff] 0.0
    %19 = vst [vmem:[#allocation2 + $0x8] sm:$0xff] 0.0
    %20 = vst [vmem:[#allocation2 + $0x10] sm:$0xff] 0.0
    %21 = vst [vmem:[#allocation2 + $0x18] sm:$0xff] 0.0
    %22 = vst [vmem:[#allocation2 + $0x20] sm:$0xff] 0.0
    %23 = vst [vmem:[#allocation2 + $0x28] sm:$0xff] 0.0
    %24 = vst [vmem:[#allocation2 + $0x30] sm:$0xff] 0.0
    %25 = vst [vmem:[#allocation2 + $0x38] sm:$0xff] 0.0
  $region17: #{forward.41} parent=0 // pred_fallthru
    _
  %v26 = vld [vmem:[#allocation2] sm:$0xff]
  %v27 = vld [vmem:[#allocation2 + $0x8] sm:$0xff]
  %v28 = vld [vmem:[#allocation2 + $0x10] sm:$0xff]
  %v29 = vld [vmem:[#allocation2 + $0x18] sm:$0xff]
  %v30 = vld [vmem:[#allocation2 + $0x20] sm:$0xff]
  %v31 = vld [vmem:[#allocation2 + $0x28] sm:$0xff]
  %v32 = vld [vmem:[#allocation2 + $0x30] sm:$0xff]
  %v33 = vld [vmem:[#allocation2 + $0x38] sm:$0xff]
  %v34 = vld [vmem:[%s0] sm:$0xf]
  %v35 = vld [vmem:[%s0 + $0x4] sm:$0xf]
  %v36 = vld [vmem:[%s0 + $0x8] sm:$0xf]
  %v37 = vld [vmem:[%s0 + $0xc] sm:$0xf]
  %v38 = vld [vmem:[%s0 + $0x10] sm:$0xf]
  %v39 = vld [vmem:[%s0 + $0x14] sm:$0xf]
  %v40 = vld [vmem:[%s0 + $0x18] sm:$0xf]
  %v41 = vld [vmem:[%s0 + $0x1c] sm:$0xf]
  %v42 = vld [vmem:[%s1] sm:$0xf]
  %v43 = vld [vmem:[%s1 + $0x4] sm:$0xf]
  %v44 = vld [vmem:[%s1 + $0x8] sm:$0xf]
  %v45 = vld [vmem:[%s1 + $0xc] sm:$0xf]
  %v46 = vld [vmem:[%s1 + $0x10] sm:$0xf]
  %v47 = vld [vmem:[%s1 + $0x14] sm:$0xf]
  %v48 = vld [vmem:[%s1 + $0x18] sm:$0xf]
  %v49 = vld [vmem:[%s1 + $0x1c] sm:$0xf]
  %v50 = vld [vmem:[%s1 + $0x20] sm:$0xf]
  %v51 = vld [vmem:[%s1 + $0x24] sm:$0xf]
  %v52 = vld [vmem:[%s1 + $0x28] sm:$0xf]
  %v53 = vld [vmem:[%s1 + $0x2c] sm:$0xf]
  %v54 = vld [vmem:[%s1 + $0x30] sm:$0xf]
  %v55 = vld [vmem:[%s1 + $0x34] sm:$0xf]
  %v56 = vld [vmem:[%s1 + $0x38] sm:$0xf]
  %v57 = vld [vmem:[%s1 + $0x3c] sm:$0xf]
  %v66 = vunpack.c.l.b16 %v34
  %v67 = vunpack.c.l.b16 %v35
  %v68 = vunpack.c.l.b16 %v36
  %v69 = vunpack.c.l.b16 %v37
  %v70 = vunpack.c.l.b16 %v38
  %v71 = vunpack.c.l.b16 %v39
  %v72 = vunpack.c.l.b16 %v40
  %v73 = vunpack.c.l.b16 %v41
  %v74 = vpack.c.b16 %v67, %v66
  %v75 = vpack.c.b16 %v69, %v68
  %v76 = vpack.c.b16 %v71, %v70
  %v77 = vpack.c.b16 %v73, %v72
  %v98 = vunpack.c.l.b16 %v42
  %v99 = vunpack.c.l.b16 %v43
  %v100 = vunpack.c.l.b16 %v44
  %v101 = vunpack.c.l.b16 %v45
  %v102 = vunpack.c.l.b16 %v46
  %v103 = vunpack.c.l.b16 %v47
  %v104 = vunpack.c.l.b16 %v48
  %v105 = vunpack.c.l.b16 %v49
  %v106 = vunpack.c.l.b16 %v50
  %v107 = vunpack.c.l.b16 %v51
  %v108 = vunpack.c.l.b16 %v52
  %v109 = vunpack.c.l.b16 %v53
  %v110 = vunpack.c.l.b16 %v54
  %v111 = vunpack.c.l.b16 %v55
  %v112 = vunpack.c.l.b16 %v56
  %v113 = vunpack.c.l.b16 %v57
  %v114 = vpack.c.b16 %v99, %v98
  %v115 = vpack.c.b16 %v101, %v100
  %v116 = vpack.c.b16 %v103, %v102
  %v117 = vpack.c.b16 %v105, %v104
  %v118 = vpack.c.b16 %v107, %v106
  %v119 = vpack.c.b16 %v109, %v108
  %v120 = vpack.c.b16 %v111, %v110
  %v121 = vpack.c.b16 %v113, %v112
  %130 = vmatpush.bf16.msra.mxu0 %v121
  %131 = vmatpush.bf16.msra.mxu0 %v120
  %132 = vmatpush.bf16.msra.mxu0 %v119
  %133 = vmatpush.bf16.msra.mxu0 %v118
  %134 = vmatpush.bf16.msra.mxu0 %v117
  %135 = vmatpush.bf16.msra.mxu0 %v116
  %136 = vmatpush.bf16.msra.mxu0 %v115
  %137 = vmatpush.bf16.msra.mxu0 %v114
  %138 = vmatmul.bf16.gmra.mxu0 %v74
  %v139 = vpop.f32.mrf.mxu0
  %v140 = vadd.f32 0.0, %v139
  %v141 = vpop.f32.mrf.mxu0
  %v142 = vadd.f32 0.0, %v141
  %143 = vmatmul.bf16.gmra.mxu0 %v75
  %v144 = vpop.f32.mrf.mxu0
  %v145 = vadd.f32 0.0, %v144
  %v146 = vpop.f32.mrf.mxu0
  %v147 = vadd.f32 0.0, %v146
  %148 = vmatmul.bf16.gmra.mxu0 %v76
  %v149 = vpop.f32.mrf.mxu0
  %v150 = vadd.f32 0.0, %v149
  %v151 = vpop.f32.mrf.mxu0
  %v152 = vadd.f32 0.0, %v151
  %153 = vmatmul.bf16.gmra.mxu0 %v77
  %v154 = vpop.f32.mrf.mxu0
  %v155 = vadd.f32 0.0, %v154
  %v156 = vpop.f32.mrf.mxu0
  %v157 = vadd.f32 0.0, %v156
  %158 = vdwg.mxu0
  %v159 = vadd.f32 %v26, %v140
  %v160 = vadd.f32 %v27, %v142
  %v161 = vadd.f32 %v28, %v145
  %v162 = vadd.f32 %v29, %v147
  %v163 = vadd.f32 %v30, %v150
  %v164 = vadd.f32 %v31, %v152
  %v165 = vadd.f32 %v32, %v155
  %v166 = vadd.f32 %v33, %v157
  %167 = vst [vmem:[#allocation2] sm:$0xff] %v159
  %168 = vst [vmem:[#allocation2 + $0x8] sm:$0xff] %v160
  %169 = vst [vmem:[#allocation2 + $0x10] sm:$0xff] %v161
  %170 = vst [vmem:[#allocation2 + $0x18] sm:$0xff] %v162
  %171 = vst [vmem:[#allocation2 + $0x20] sm:$0xff] %v163
  %172 = vst [vmem:[#allocation2 + $0x28] sm:$0xff] %v164
  %173 = vst [vmem:[#allocation2 + $0x30] sm:$0xff] %v165
  %174 = vst [vmem:[#allocation2 + $0x38] sm:$0xff] %v166
  // Predicated region
  $region18: #{forward.41} parent=0 // pred_check
    %p175 = pneg %p14
  $region19: #{forward.41} parent=0 // pred_check_branch
    %177 = sbr.rel (%p175) target = $region21
  $region20: #{forward.41} parent=0 // pred_region
    %v178 = vld [vmem:[#allocation2] sm:$0xff]
    %v179 = vld [vmem:[#allocation2 + $0x8] sm:$0xff]
    %v180 = vld [vmem:[#allocation2 + $0x10] sm:$0xff]
    %v181 = vld [vmem:[#allocation2 + $0x18] sm:$0xff]
    %v182 = vld [vmem:[#allocation2 + $0x20] sm:$0xff]
    %v183 = vld [vmem:[#allocation2 + $0x28] sm:$0xff]
    %v184 = vld [vmem:[#allocation2 + $0x30] sm:$0xff]
    %v185 = vld [vmem:[#allocation2 + $0x38] sm:$0xff]
    %v186 = vld [vmem:[%s2] sm:$0x1]
    %v188 = vperm.slane %v186, 0
    %v190 = vadd.f32 %v178, %v188
    %v191 = vadd.f32 %v179, %v188
    %v192 = vadd.f32 %v180, %v188
    %v193 = vadd.f32 %v181, %v188
    %v194 = vadd.f32 %v182, %v188
    %v195 = vadd.f32 %v183, %v188
    %v196 = vadd.f32 %v184, %v188
    %v197 = vadd.f32 %v185, %v188
    %198 = vst [vmem:[%s3] sm:$0xff] %v190
    %199 = vst [vmem:[%s3 + $0x8] sm:$0xff] %v191
    %200 = vst [vmem:[%s3 + $0x10] sm:$0xff] %v192
    %201 = vst [vmem:[%s3 + $0x18] sm:$0xff] %v193
    %202 = vst [vmem:[%s3 + $0x20] sm:$0xff] %v194
    %203 = vst [vmem:[%s3 + $0x28] sm:$0xff] %v195
    %204 = vst [vmem:[%s3 + $0x30] sm:$0xff] %v196
    %205 = vst [vmem:[%s3 + $0x38] sm:$0xff] %v197
  $region21: #{forward.41} parent=0 // pred_fallthru
    _
  // Predicated region
  $region22: #{forward.41} parent=0 // pred_check
    _
  $region23: #{forward.41} parent=0 // pred_check_branch
    %207 = sbr.rel (0) target = $region25
  $region24: #{forward.41} parent=0 // pred_region
    _
  $region25: #{forward.41} parent=0 // pred_fallthru
    _
  // Predicated region
  $region26: #{forward.41} parent=0 // pred_check
    _
  $region27: #{forward.41} parent=0 // pred_check_branch
    %209 = sbr.rel (0) target = $region29
  $region28: #{forward.41} parent=0 // pred_region
    _
  $region29: #{forward.41} parent=0 // pred_fallthru
    _

// kernel: forward.43
$region0: #{forward.43}
  #allocation0 [shape = 'u32[]', space=smem, size = 0x4, offset = 0x4, fixed_abs, tag = 'smem constant byte address 0x4 - core index']
  #allocation1 [shape = 'u32[72,128]{1,0:T(1,128)}', space=vmem, size = 0x9000, scoped, tag = 'internal scratch']
  #allocation2 [shape = 'f32[64,128]{1,0:T(8,128)}', space=vmem, size = 0x8000, scoped, tag = 'scratch operand']
  %s0 = inlined_call_operand.vmem [shape: bf16[64,384], index: 0, kind: input, shape index: {}]
  %s1 = inlined_call_operand.vmem [shape: bf16[384,128], index: 1, kind: input, shape index: {}]
  %s2 = inlined_call_operand.vmem [shape: f32[1,128], index: 2, kind: input, shape index: {}]
  %s3 = inlined_call_operand.vmem [shape: f32[64,128], index: 3, kind: output, shape index: {}]
  %s4 = sld [smem:[#allocation0]]
  $region30: #{forward.43} parent=0
    _
  %s6 = ssub.s32 1, %s4
  %s7 = scalar_select 0, %s6, %s4
  // Predicated region
  $region2: #{forward.43} parent=0 // pred_check
    _
  $region3: #{forward.43} parent=0 // pred_check_branch
    %9 = sbr.rel (0) target = $region5
  $region4: #{forward.43} parent=0 // pred_region
    _
  $region5: #{forward.43} parent=0 // pred_fallthru
    _
  // Predicated region
  $region6: #{forward.43} parent=0 // pred_check
    _
  $region7: #{forward.43} parent=0 // pred_check_branch
    %11 = sbr.rel (0) target = $region9
  $region8: #{forward.43} parent=0 // pred_region
    _
  $region9: #{forward.43} parent=0 // pred_fallthru
    _
  // Predicated region
  $region10: #{forward.43} parent=0 // pred_check
    _
  $region11: #{forward.43} parent=0 // pred_check_branch
    %13 = sbr.rel (0) target = $region13
  $region12: #{forward.43} parent=0 // pred_region
    _
  $region13: #{forward.43} parent=0 // pred_fallthru
    _
  %p14 = scmp.eq.s32.totalorder 0, 0
  // Predicated region
  $region14: #{forward.43} parent=0 // pred_check
    %p15 = pneg %p14
  $region15: #{forward.43} parent=0 // pred_check_branch
    %17 = sbr.rel (%p15) target = $region17
  $region16: #{forward.43} parent=0 // pred_region
    %18 = vst [vmem:[#allocation2] sm:$0xff] 0.0
    %19 = vst [vmem:[#allocation2 + $0x8] sm:$0xff] 0.0
    %20 = vst [vmem:[#allocation2 + $0x10] sm:$0xff] 0.0
    %21 = vst [vmem:[#allocation2 + $0x18] sm:$0xff] 0.0
    %22 = vst [vmem:[#allocation2 + $0x20] sm:$0xff] 0.0
    %23 = vst [vmem:[#allocation2 + $0x28] sm:$0xff] 0.0
    %24 = vst [vmem:[#allocation2 + $0x30] sm:$0xff] 0.0
    %25 = vst [vmem:[#allocation2 + $0x38] sm:$0xff] 0.0
  $region17: #{forward.43} parent=0 // pred_fallthru
    _
  %v26 = vld [vmem:[#allocation2] sm:$0xff]
  %v27 = vld [vmem:[#allocation2 + $0x8] sm:$0xff]
  %v28 = vld [vmem:[#allocation2 + $0x10] sm:$0xff]
  %v29 = vld [vmem:[#allocation2 + $0x18] sm:$0xff]
  %v30 = vld [vmem:[#allocation2 + $0x20] sm:$0xff]
  %v31 = vld [vmem:[#allocation2 + $0x28] sm:$0xff]
  %v32 = vld [vmem:[#allocation2 + $0x30] sm:$0xff]
  %v33 = vld [vmem:[#allocation2 + $0x38] sm:$0xff]
  %v34 = vld [vmem:[%s0] sm:$0xff]
  %v35 = vld [vmem:[%s0 + $0x8] sm:$0xf]
  %v36 = vld [vmem:[%s0 + $0xc] sm:$0xff]
  %v37 = vld [vmem:[%s0 + $0x14] sm:$0xf]
  %v38 = vld [vmem:[%s0 + $0x18] sm:$0xff]
  %v39 = vld [vmem:[%s0 + $0x20] sm:$0xf]
  %v40 = vld [vmem:[%s0 + $0x24] sm:$0xff]
  %v41 = vld [vmem:[%s0 + $0x2c] sm:$0xf]
  %v42 = vld [vmem:[%s0 + $0x30] sm:$0xff]
  %v43 = vld [vmem:[%s0 + $0x38] sm:$0xf]
  %v44 = vld [vmem:[%s0 + $0x3c] sm:$0xff]
  %v45 = vld [vmem:[%s0 + $0x44] sm:$0xf]
  %v46 = vld [vmem:[%s0 + $0x48] sm:$0xff]
  %v47 = vld [vmem:[%s0 + $0x50] sm:$0xf]
  %v48 = vld [vmem:[%s0 + $0x54] sm:$0xff]
  %v49 = vld [vmem:[%s0 + $0x5c] sm:$0xf]
  %v50 = vld [vmem:[%s1] sm:$0xf]
  %v51 = vld [vmem:[%s1 + $0x4] sm:$0xf]
  %v52 = vld [vmem:[%s1 + $0x8] sm:$0xf]
  %v53 = vld [vmem:[%s1 + $0xc] sm:$0xf]
  %v54 = vld [vmem:[%s1 + $0x10] sm:$0xf]
  %v55 = vld [vmem:[%s1 + $0x14] sm:$0xf]
  %v56 = vld [vmem:[%s1 + $0x18] sm:$0xf]
  %v57 = vld [vmem:[%s1 + $0x1c] sm:$0xf]
  %v58 = vld [vmem:[%s1 + $0x20] sm:$0xf]
  %v59 = vld [vmem:[%s1 + $0x24] sm:$0xf]
  %v60 = vld [vmem:[%s1 + $0x28] sm:$0xf]
  %v61 = vld [vmem:[%s1 + $0x2c] sm:$0xf]
  %v62 = vld [vmem:[%s1 + $0x30] sm:$0xf]
  %v63 = vld [vmem:[%s1 + $0x34] sm:$0xf]
  %v64 = vld [vmem:[%s1 + $0x38] sm:$0xf]
  %v65 = vld [vmem:[%s1 + $0x3c] sm:$0xf]
  %v66 = vld [vmem:[%s1 + $0x40] sm:$0xf]
  %v67 = vld [vmem:[%s1 + $0x44] sm:$0xf]
  %v68 = vld [vmem:[%s1 + $0x48] sm:$0xf]
  %v69 = vld [vmem:[%s1 + $0x4c] sm:$0xf]
  %v70 = vld [vmem:[%s1 + $0x50] sm:$0xf]
  %v71 = vld [vmem:[%s1 + $0x54] sm:$0xf]
  %v72 = vld [vmem:[%s1 + $0x58] sm:$0xf]
  %v73 = vld [vmem:[%s1 + $0x5c] sm:$0xf]
  %v74 = vld [vmem:[%s1 + $0x60] sm:$0xf]
  %v75 = vld [vmem:[%s1 + $0x64] sm:$0xf]
  %v76 = vld [vmem:[%s1 + $0x68] sm:$0xf]
  %v77 = vld [vmem:[%s1 + $0x6c] sm:$0xf]
  %v78 = vld [vmem:[%s1 + $0x70] sm:$0xf]
  %v79 = vld [vmem:[%s1 + $0x74] sm:$0xf]
  %v80 = vld [vmem:[%s1 + $0x78] sm:$0xf]
  %v81 = vld [vmem:[%s1 + $0x7c] sm:$0xf]
  %v82 = vld [vmem:[%s1 + $0x80] sm:$0xf]
  %v83 = vld [vmem:[%s1 + $0x84] sm:$0xf]
  %v84 = vld [vmem:[%s1 + $0x88] sm:$0xf]
  %v85 = vld [vmem:[%s1 + $0x8c] sm:$0xf]
  %v86 = vld [vmem:[%s1 + $0x90] sm:$0xf]
  %v87 = vld [vmem:[%s1 + $0x94] sm:$0xf]
  %v88 = vld [vmem:[%s1 + $0x98] sm:$0xf]
  %v89 = vld [vmem:[%s1 + $0x9c] sm:$0xf]
  %v90 = vld [vmem:[%s1 + $0xa0] sm:$0xf]
  %v91 = vld [vmem:[%s1 + $0xa4] sm:$0xf]
  %v92 = vld [vmem:[%s1 + $0xa8] sm:$0xf]
  %v93 = vld [vmem:[%s1 + $0xac] sm:$0xf]
  %v94 = vld [vmem:[%s1 + $0xb0] sm:$0xf]
  %v95 = vld [vmem:[%s1 + $0xb4] sm:$0xf]
  %v96 = vld [vmem:[%s1 + $0xb8] sm:$0xf]
  %v97 = vld [vmem:[%s1 + $0xbc] sm:$0xf]
  %v114 = vunpack.c.l.b16 %v34
  %v115 = vunpack.c.h.b16 %v34
  %v116 = vunpack.c.l.b16 %v35
  %v117 = vunpack.c.l.b16 %v36
  %v118 = vunpack.c.h.b16 %v36
  %v119 = vunpack.c.l.b16 %v37
  %v120 = vunpack.c.l.b16 %v38
  %v121 = vunpack.c.h.b16 %v38
  %v122 = vunpack.c.l.b16 %v39
  %v123 = vunpack.c.l.b16 %v40
  %v124 = vunpack.c.h.b16 %v40
  %v125 = vunpack.c.l.b16 %v41
  %v126 = vunpack.c.l.b16 %v42
  %v127 = vunpack.c.h.b16 %v42
  %v128 = vunpack.c.l.b16 %v43
  %v129 = vunpack.c.l.b16 %v44
  %v130 = vunpack.c.h.b16 %v44
  %v131 = vunpack.c.l.b16 %v45
  %v132 = vunpack.c.l.b16 %v46
  %v133 = vunpack.c.h.b16 %v46
  %v134 = vunpack.c.l.b16 %v47
  %v135 = vunpack.c.l.b16 %v48
  %v136 = vunpack.c.h.b16 %v48
  %v137 = vunpack.c.l.b16 %v49
  %v138 = vpack.c.b16 %v117, %v114
  %v139 = vpack.c.b16 %v118, %v115
  %v140 = vpack.c.b16 %v119, %v116
  %v141 = vpack.c.b16 %v123, %v120
  %v142 = vpack.c.b16 %v124, %v121
  %v143 = vpack.c.b16 %v125, %v122
  %v144 = vpack.c.b16 %v129, %v126
  %v145 = vpack.c.b16 %v130, %v127
  %v146 = vpack.c.b16 %v131, %v128
  %v147 = vpack.c.b16 %v135, %v132
  %v148 = vpack.c.b16 %v136, %v133
  %v149 = vpack.c.b16 %v137, %v134
  %v210 = vunpack.c.l.b16 %v50
  %v211 = vunpack.c.l.b16 %v51
  %v212 = vunpack.c.l.b16 %v52
  %v213 = vunpack.c.l.b16 %v53
  %v214 = vunpack.c.l.b16 %v54
  %v215 = vunpack.c.l.b16 %v55
  %v216 = vunpack.c.l.b16 %v56
  %v217 = vunpack.c.l.b16 %v57
  %v218 = vunpack.c.l.b16 %v58
  %v219 = vunpack.c.l.b16 %v59
  %v220 = vunpack.c.l.b16 %v60
  %v221 = vunpack.c.l.b16 %v61
  %v222 = vunpack.c.l.b16 %v62
  %v223 = vunpack.c.l.b16 %v63
  %v224 = vunpack.c.l.b16 %v64
  %v225 = vunpack.c.l.b16 %v65
  %v226 = vunpack.c.l.b16 %v66
  %v227 = vunpack.c.l.b16 %v67
  %v228 = vunpack.c.l.b16 %v68
  %v229 = vunpack.c.l.b16 %v69
  %v230 = vunpack.c.l.b16 %v70
  %v231 = vunpack.c.l.b16 %v71
  %v232 = vunpack.c.l.b16 %v72
  %v233 = vunpack.c.l.b16 %v73
  %v234 = vunpack.c.l.b16 %v74
  %v235 = vunpack.c.l.b16 %v75
  %v236 = vunpack.c.l.b16 %v76
  %v237 = vunpack.c.l.b16 %v77
  %v238 = vunpack.c.l.b16 %v78
  %v239 = vunpack.c.l.b16 %v79
  %v240 = vunpack.c.l.b16 %v80
  %v241 = vunpack.c.l.b16 %v81
  %v242 = vunpack.c.l.b16 %v82
  %v243 = vunpack.c.l.b16 %v83
  %v244 = vunpack.c.l.b16 %v84
  %v245 = vunpack.c.l.b16 %v85
  %v246 = vunpack.c.l.b16 %v86
  %v247 = vunpack.c.l.b16 %v87
  %v248 = vunpack.c.l.b16 %v88
  %v249 = vunpack.c.l.b16 %v89
  %v250 = vunpack.c.l.b16 %v90
  %v251 = vunpack.c.l.b16 %v91
  %v252 = vunpack.c.l.b16 %v92
  %v253 = vunpack.c.l.b16 %v93
  %v254 = vunpack.c.l.b16 %v94
  %v255 = vunpack.c.l.b16 %v95
  %v256 = vunpack.c.l.b16 %v96
  %v257 = vunpack.c.l.b16 %v97
  %v258 = vpack.c.b16 %v211, %v210
  %v259 = vpack.c.b16 %v213, %v212
  %v260 = vpack.c.b16 %v215, %v214
  %v261 = vpack.c.b16 %v217, %v216
  %v262 = vpack.c.b16 %v219, %v218
  %v263 = vpack.c.b16 %v221, %v220
  %v264 = vpack.c.b16 %v223, %v222
  %v265 = vpack.c.b16 %v225, %v224
  %v266 = vpack.c.b16 %v227, %v226
  %v267 = vpack.c.b16 %v229, %v228
  %v268 = vpack.c.b16 %v231, %v230
  %v269 = vpack.c.b16 %v233, %v232
  %v270 = vpack.c.b16 %v235, %v234
  %v271 = vpack.c.b16 %v237, %v236
  %v272 = vpack.c.b16 %v239, %v238
  %v273 = vpack.c.b16 %v241, %v240
  %v274 = vpack.c.b16 %v243, %v242
  %v275 = vpack.c.b16 %v245, %v244
  %v276 = vpack.c.b16 %v247, %v246
  %v277 = vpack.c.b16 %v249, %v248
  %v278 = vpack.c.b16 %v251, %v250
  %v279 = vpack.c.b16 %v253, %v252
  %v280 = vpack.c.b16 %v255, %v254
  %v281 = vpack.c.b16 %v257, %v256
  %306 = vmatpush.bf16.msra.mxu0 %v265
  %307 = vmatpush.bf16.msra.mxu0 %v264
  %308 = vmatpush.bf16.msra.mxu0 %v263
  %309 = vmatpush.bf16.msra.mxu0 %v262
  %310 = vmatpush.bf16.msra.mxu0 %v261
  %311 = vmatpush.bf16.msra.mxu0 %v260
  %312 = vmatpush.bf16.msra.mxu0 %v259
  %313 = vmatpush.bf16.msra.mxu0 %v258
  %314 = vmatmul.bf16.gmra.mxu0 %v138
  %v315 = vpop.f32.mrf.mxu0
  %v316 = vadd.f32 0.0, %v315
  %v317 = vpop.f32.mrf.mxu0
  %v318 = vadd.f32 0.0, %v317
  %319 = vmatmul.bf16.gmra.mxu0 %v141
  %v320 = vpop.f32.mrf.mxu0
  %v321 = vadd.f32 0.0, %v320
  %v322 = vpop.f32.mrf.mxu0
  %v323 = vadd.f32 0.0, %v322
  %324 = vmatmul.bf16.gmra.mxu0 %v144
  %v325 = vpop.f32.mrf.mxu0
  %v326 = vadd.f32 0.0, %v325
  %v327 = vpop.f32.mrf.mxu0
  %v328 = vadd.f32 0.0, %v327
  %329 = vmatmul.bf16.gmra.mxu0 %v147
  %v330 = vpop.f32.mrf.mxu0
  %v331 = vadd.f32 0.0, %v330
  %v332 = vpop.f32.mrf.mxu0
  %v333 = vadd.f32 0.0, %v332
  %334 = vdwg.mxu0
  %335 = vmatpush.bf16.msra.mxu0 %v273
  %336 = vmatpush.bf16.msra.mxu0 %v272
  %337 = vmatpush.bf16.msra.mxu0 %v271
  %338 = vmatpush.bf16.msra.mxu0 %v270
  %339 = vmatpush.bf16.msra.mxu0 %v269
  %340 = vmatpush.bf16.msra.mxu0 %v268
  %341 = vmatpush.bf16.msra.mxu0 %v267
  %342 = vmatpush.bf16.msra.mxu0 %v266
  %343 = vmatmul.bf16.gmra.mxu0 %v139
  %v344 = vpop.f32.mrf.mxu0
  %v345 = vadd.f32 %v316, %v344
  %v346 = vpop.f32.mrf.mxu0
  %v347 = vadd.f32 %v318, %v346
  %348 = vmatmul.bf16.gmra.mxu0 %v142
  %v349 = vpop.f32.mrf.mxu0
  %v350 = vadd.f32 %v321, %v349
  %v351 = vpop.f32.mrf.mxu0
  %v352 = vadd.f32 %v323, %v351
  %353 = vmatmul.bf16.gmra.mxu0 %v145
  %v354 = vpop.f32.mrf.mxu0
  %v355 = vadd.f32 %v326, %v354
  %v356 = vpop.f32.mrf.mxu0
  %v357 = vadd.f32 %v328, %v356
  %358 = vmatmul.bf16.gmra.mxu0 %v148
  %v359 = vpop.f32.mrf.mxu0
  %v360 = vadd.f32 %v331, %v359
  %v361 = vpop.f32.mrf.mxu0
  %v362 = vadd.f32 %v333, %v361
  %363 = vdwg.mxu0
  %364 = vmatpush.bf16.msra.mxu0 %v281
  %365 = vmatpush.bf16.msra.mxu0 %v280
  %366 = vmatpush.bf16.msra.mxu0 %v279
  %367 = vmatpush.bf16.msra.mxu0 %v278
  %368 = vmatpush.bf16.msra.mxu0 %v277
  %369 = vmatpush.bf16.msra.mxu0 %v276
  %370 = vmatpush.bf16.msra.mxu0 %v275
  %371 = vmatpush.bf16.msra.mxu0 %v274
  %372 = vmatmul.bf16.gmra.mxu0 %v140
  %v373 = vpop.f32.mrf.mxu0
  %v374 = vadd.f32 %v345, %v373
  %v375 = vpop.f32.mrf.mxu0
  %v376 = vadd.f32 %v347, %v375
  %377 = vmatmul.bf16.gmra.mxu0 %v143
  %v378 = vpop.f32.mrf.mxu0
  %v379 = vadd.f32 %v350, %v378
  %v380 = vpop.f32.mrf.mxu0
  %v381 = vadd.f32 %v352, %v380
  %382 = vmatmul.bf16.gmra.mxu0 %v146
  %v383 = vpop.f32.mrf.mxu0
  %v384 = vadd.f32 %v355, %v383
  %v385 = vpop.f32.mrf.mxu0
  %v386 = vadd.f32 %v357, %v385
  %387 = vmatmul.bf16.gmra.mxu0 %v149
  %v388 = vpop.f32.mrf.mxu0
  %v389 = vadd.f32 %v360, %v388
  %v390 = vpop.f32.mrf.mxu0
  %v391 = vadd.f32 %v362, %v390
  %392 = vdwg.mxu0
  %v393 = vadd.f32 %v26, %v374
  %v394 = vadd.f32 %v27, %v376
  %v395 = vadd.f32 %v28, %v379
  %v396 = vadd.f32 %v29, %v381
  %v397 = vadd.f32 %v30, %v384
  %v398 = vadd.f32 %v31, %v386
  %v399 = vadd.f32 %v32, %v389
  %v400 = vadd.f32 %v33, %v391
  %401 = vst [vmem:[#allocation2] sm:$0xff] %v393
  %402 = vst [vmem:[#allocation2 + $0x8] sm:$0xff] %v394
  %403 = vst [vmem:[#allocation2 + $0x10] sm:$0xff] %v395
  %404 = vst [vmem:[#allocation2 + $0x18] sm:$0xff] %v396
  %405 = vst [vmem:[#allocation2 + $0x20] sm:$0xff] %v397
  %406 = vst [vmem:[#allocation2 + $0x28] sm:$0xff] %v398
  %407 = vst [vmem:[#allocation2 + $0x30] sm:$0xff] %v399
  %408 = vst [vmem:[#allocation2 + $0x38] sm:$0xff] %v400
  // Predicated region
  $region18: #{forward.43} parent=0 // pred_check
    %p409 = pneg %p14
  $region19: #{forward.43} parent=0 // pred_check_branch
    %411 = sbr.rel (%p409) target = $region21
  $region20: #{forward.43} parent=0 // pred_region
    %v412 = vld [vmem:[#allocation2] sm:$0xff]
    %v413 = vld [vmem:[#allocation2 + $0x8] sm:$0xff]
    %v414 = vld [vmem:[#allocation2 + $0x10] sm:$0xff]
    %v415 = vld [vmem:[#allocation2 + $0x18] sm:$0xff]
    %v416 = vld [vmem:[#allocation2 + $0x20] sm:$0xff]
    %v417 = vld [vmem:[#allocation2 + $0x28] sm:$0xff]
    %v418 = vld [vmem:[#allocation2 + $0x30] sm:$0xff]
    %v419 = vld [vmem:[#allocation2 + $0x38] sm:$0xff]
    %v420 = vld [vmem:[%s2] sm:$0x1]
    %v422 = vperm.slane %v420, 0
    %v424 = vadd.f32 %v412, %v422
    %v425 = vadd.f32 %v413, %v422
    %v426 = vadd.f32 %v414, %v422
    %v427 = vadd.f32 %v415, %v422
    %v428 = vadd.f32 %v416, %v422
    %v429 = vadd.f32 %v417, %v422
    %v430 = vadd.f32 %v418, %v422
    %v431 = vadd.f32 %v419, %v422
    %v432 = vmax.f32 %v424, 0.0
    %v433 = vmax.f32 %v425, 0.0
    %v434 = vmax.f32 %v426, 0.0
    %v435 = vmax.f32 %v427, 0.0
    %v436 = vmax.f32 %v428, 0.0
    %v437 = vmax.f32 %v429, 0.0
    %v438 = vmax.f32 %v430, 0.0
    %v439 = vmax.f32 %v431, 0.0
    %440 = vst [vmem:[%s3] sm:$0xff] %v432
    %441 = vst [vmem:[%s3 + $0x8] sm:$0xff] %v433
    %442 = vst [vmem:[%s3 + $0x10] sm:$0xff] %v434
    %443 = vst [vmem:[%s3 + $0x18] sm:$0xff] %v435
    %444 = vst [vmem:[%s3 + $0x20] sm:$0xff] %v436
    %445 = vst [vmem:[%s3 + $0x28] sm:$0xff] %v437
    %446 = vst [vmem:[%s3 + $0x30] sm:$0xff] %v438
    %447 = vst [vmem:[%s3 + $0x38] sm:$0xff] %v439
  $region21: #{forward.43} parent=0 // pred_fallthru
    _
  // Predicated region
  $region22: #{forward.43} parent=0 // pred_check
    _
  $region23: #{forward.43} parent=0 // pred_check_branch
    %449 = sbr.rel (0) target = $region25
  $region24: #{forward.43} parent=0 // pred_region
    _
  $region25: #{forward.43} parent=0 // pred_fallthru
    _
  // Predicated region
  $region26: #{forward.43} parent=0 // pred_check
    _
  $region27: #{forward.43} parent=0 // pred_check_branch
    %451 = sbr.rel (0) target = $region29
  $region28: #{forward.43} parent=0 // pred_region
    _
  $region29: #{forward.43} parent=0 // pred_fallthru
    _

// kernel: forward.42
$region0: #{forward.42}
  #allocation0 [shape = 'u32[]', space=smem, size = 0x4, offset = 0x4, fixed_abs, tag = 'smem constant byte address 0x4 - core index']
  #allocation1 [shape = 'u32[72,128]{1,0:T(1,128)}', space=vmem, size = 0x9000, scoped, tag = 'internal scratch']
  #allocation2 [shape = 'f32[64,128]{1,0:T(8,128)}', space=vmem, size = 0x8000, scoped, tag = 'scratch operand']
  %s0 = inlined_call_operand.vmem [shape: bf16[64,384], index: 0, kind: input, shape index: {}]
  %s1 = inlined_call_operand.vmem [shape: bf16[384,128], index: 1, kind: input, shape index: {}]
  %s2 = inlined_call_operand.vmem [shape: f32[1,128], index: 2, kind: input, shape index: {}]
  %s3 = inlined_call_operand.vmem [shape: f32[64,128], index: 3, kind: input, shape index: {}]
  %s4 = inlined_call_operand.vmem [shape: f32[64,128], index: 4, kind: output, shape index: {}]
  %s5 = sld [smem:[#allocation0]]
  $region34: #{forward.42} parent=0
    _
  %s7 = ssub.s32 1, %s5
  %s8 = scalar_select 0, %s7, %s5
  // Predicated region
  $region2: #{forward.42} parent=0 // pred_check
    _
  $region3: #{forward.42} parent=0 // pred_check_branch
    %10 = sbr.rel (0) target = $region5
  $region4: #{forward.42} parent=0 // pred_region
    _
  $region5: #{forward.42} parent=0 // pred_fallthru
    _
  // Predicated region
  $region6: #{forward.42} parent=0 // pred_check
    _
  $region7: #{forward.42} parent=0 // pred_check_branch
    %12 = sbr.rel (0) target = $region9
  $region8: #{forward.42} parent=0 // pred_region
    _
  $region9: #{forward.42} parent=0 // pred_fallthru
    _
  // Predicated region
  $region10: #{forward.42} parent=0 // pred_check
    _
  $region11: #{forward.42} parent=0 // pred_check_branch
    %14 = sbr.rel (0) target = $region13
  $region12: #{forward.42} parent=0 // pred_region
    _
  $region13: #{forward.42} parent=0 // pred_fallthru
    _
  // Predicated region
  $region14: #{forward.42} parent=0 // pred_check
    _
  $region15: #{forward.42} parent=0 // pred_check_branch
    %16 = sbr.rel (0) target = $region17
  $region16: #{forward.42} parent=0 // pred_region
    _
  $region17: #{forward.42} parent=0 // pred_fallthru
    _
  %p17 = scmp.eq.s32.totalorder 0, 0
  // Predicated region
  $region18: #{forward.42} parent=0 // pred_check
    %p18 = pneg %p17
  $region19: #{forward.42} parent=0 // pred_check_branch
    %20 = sbr.rel (%p18) target = $region21
  $region20: #{forward.42} parent=0 // pred_region
    %21 = vst [vmem:[#allocation2] sm:$0xff] 0.0
    %22 = vst [vmem:[#allocation2 + $0x8] sm:$0xff] 0.0
    %23 = vst [vmem:[#allocation2 + $0x10] sm:$0xff] 0.0
    %24 = vst [vmem:[#allocation2 + $0x18] sm:$0xff] 0.0
    %25 = vst [vmem:[#allocation2 + $0x20] sm:$0xff] 0.0
    %26 = vst [vmem:[#allocation2 + $0x28] sm:$0xff] 0.0
    %27 = vst [vmem:[#allocation2 + $0x30] sm:$0xff] 0.0
    %28 = vst [vmem:[#allocation2 + $0x38] sm:$0xff] 0.0
  $region21: #{forward.42} parent=0 // pred_fallthru
    _
  %v29 = vld [vmem:[#allocation2] sm:$0xff]
  %v30 = vld [vmem:[#allocation2 + $0x8] sm:$0xff]
  %v31 = vld [vmem:[#allocation2 + $0x10] sm:$0xff]
  %v32 = vld [vmem:[#allocation2 + $0x18] sm:$0xff]
  %v33 = vld [vmem:[#allocation2 + $0x20] sm:$0xff]
  %v34 = vld [vmem:[#allocation2 + $0x28] sm:$0xff]
  %v35 = vld [vmem:[#allocation2 + $0x30] sm:$0xff]
  %v36 = vld [vmem:[#allocation2 + $0x38] sm:$0xff]
  %v37 = vld [vmem:[%s0] sm:$0xff]
  %v38 = vld [vmem:[%s0 + $0x8] sm:$0xf]
  %v39 = vld [vmem:[%s0 + $0xc] sm:$0xff]
  %v40 = vld [vmem:[%s0 + $0x14] sm:$0xf]
  %v41 = vld [vmem:[%s0 + $0x18] sm:$0xff]
  %v42 = vld [vmem:[%s0 + $0x20] sm:$0xf]
  %v43 = vld [vmem:[%s0 + $0x24] sm:$0xff]
  %v44 = vld [vmem:[%s0 + $0x2c] sm:$0xf]
  %v45 = vld [vmem:[%s0 + $0x30] sm:$0xff]
  %v46 = vld [vmem:[%s0 + $0x38] sm:$0xf]
  %v47 = vld [vmem:[%s0 + $0x3c] sm:$0xff]
  %v48 = vld [vmem:[%s0 + $0x44] sm:$0xf]
  %v49 = vld [vmem:[%s0 + $0x48] sm:$0xff]
  %v50 = vld [vmem:[%s0 + $0x50] sm:$0xf]
  %v51 = vld [vmem:[%s0 + $0x54] sm:$0xff]
  %v52 = vld [vmem:[%s0 + $0x5c] sm:$0xf]
  %v53 = vld [vmem:[%s1] sm:$0xf]
  %v54 = vld [vmem:[%s1 + $0x4] sm:$0xf]
  %v55 = vld [vmem:[%s1 + $0x8] sm:$0xf]
  %v56 = vld [vmem:[%s1 + $0xc] sm:$0xf]
  %v57 = vld [vmem:[%s1 + $0x10] sm:$0xf]
  %v58 = vld [vmem:[%s1 + $0x14] sm:$0xf]
  %v59 = vld [vmem:[%s1 + $0x18] sm:$0xf]
  %v60 = vld [vmem:[%s1 + $0x1c] sm:$0xf]
  %v61 = vld [vmem:[%s1 + $0x20] sm:$0xf]
  %v62 = vld [vmem:[%s1 + $0x24] sm:$0xf]
  %v63 = vld [vmem:[%s1 + $0x28] sm:$0xf]
  %v64 = vld [vmem:[%s1 + $0x2c] sm:$0xf]
  %v65 = vld [vmem:[%s1 + $0x30] sm:$0xf]
  %v66 = vld [vmem:[%s1 + $0x34] sm:$0xf]
  %v67 = vld [vmem:[%s1 + $0x38] sm:$0xf]
  %v68 = vld [vmem:[%s1 + $0x3c] sm:$0xf]
  %v69 = vld [vmem:[%s1 + $0x40] sm:$0xf]
  %v70 = vld [vmem:[%s1 + $0x44] sm:$0xf]
  %v71 = vld [vmem:[%s1 + $0x48] sm:$0xf]
  %v72 = vld [vmem:[%s1 + $0x4c] sm:$0xf]
  %v73 = vld [vmem:[%s1 + $0x50] sm:$0xf]
  %v74 = vld [vmem:[%s1 + $0x54] sm:$0xf]
  %v75 = vld [vmem:[%s1 + $0x58] sm:$0xf]
  %v76 = vld [vmem:[%s1 + $0x5c] sm:$0xf]
  %v77 = vld [vmem:[%s1 + $0x60] sm:$0xf]
  %v78 = vld [vmem:[%s1 + $0x64] sm:$0xf]
  %v79 = vld [vmem:[%s1 + $0x68] sm:$0xf]
  %v80 = vld [vmem:[%s1 + $0x6c] sm:$0xf]
  %v81 = vld [vmem:[%s1 + $0x70] sm:$0xf]
  %v82 = vld [vmem:[%s1 + $0x74] sm:$0xf]
  %v83 = vld [vmem:[%s1 + $0x78] sm:$0xf]
  %v84 = vld [vmem:[%s1 + $0x7c] sm:$0xf]
  %v85 = vld [vmem:[%s1 + $0x80] sm:$0xf]
  %v86 = vld [vmem:[%s1 + $0x84] sm:$0xf]
  %v87 = vld [vmem:[%s1 + $0x88] sm:$0xf]
  %v88 = vld [vmem:[%s1 + $0x8c] sm:$0xf]
  %v89 = vld [vmem:[%s1 + $0x90] sm:$0xf]
  %v90 = vld [vmem:[%s1 + $0x94] sm:$0xf]
  %v91 = vld [vmem:[%s1 + $0x98] sm:$0xf]
  %v92 = vld [vmem:[%s1 + $0x9c] sm:$0xf]
  %v93 = vld [vmem:[%s1 + $0xa0] sm:$0xf]
  %v94 = vld [vmem:[%s1 + $0xa4] sm:$0xf]
  %v95 = vld [vmem:[%s1 + $0xa8] sm:$0xf]
  %v96 = vld [vmem:[%s1 + $0xac] sm:$0xf]
  %v97 = vld [vmem:[%s1 + $0xb0] sm:$0xf]
  %v98 = vld [vmem:[%s1 + $0xb4] sm:$0xf]
  %v99 = vld [vmem:[%s1 + $0xb8] sm:$0xf]
  %v100 = vld [vmem:[%s1 + $0xbc] sm:$0xf]
  %v117 = vunpack.c.l.b16 %v37
  %v118 = vunpack.c.h.b16 %v37
  %v119 = vunpack.c.l.b16 %v38
  %v120 = vunpack.c.l.b16 %v39
  %v121 = vunpack.c.h.b16 %v39
  %v122 = vunpack.c.l.b16 %v40
  %v123 = vunpack.c.l.b16 %v41
  %v124 = vunpack.c.h.b16 %v41
  %v125 = vunpack.c.l.b16 %v42
  %v126 = vunpack.c.l.b16 %v43
  %v127 = vunpack.c.h.b16 %v43
  %v128 = vunpack.c.l.b16 %v44
  %v129 = vunpack.c.l.b16 %v45
  %v130 = vunpack.c.h.b16 %v45
  %v131 = vunpack.c.l.b16 %v46
  %v132 = vunpack.c.l.b16 %v47
  %v133 = vunpack.c.h.b16 %v47
  %v134 = vunpack.c.l.b16 %v48
  %v135 = vunpack.c.l.b16 %v49
  %v136 = vunpack.c.h.b16 %v49
  %v137 = vunpack.c.l.b16 %v50
  %v138 = vunpack.c.l.b16 %v51
  %v139 = vunpack.c.h.b16 %v51
  %v140 = vunpack.c.l.b16 %v52
  %v141 = vpack.c.b16 %v120, %v117
  %v142 = vpack.c.b16 %v121, %v118
  %v143 = vpack.c.b16 %v122, %v119
  %v144 = vpack.c.b16 %v126, %v123
  %v145 = vpack.c.b16 %v127, %v124
  %v146 = vpack.c.b16 %v128, %v125
  %v147 = vpack.c.b16 %v132, %v129
  %v148 = vpack.c.b16 %v133, %v130
  %v149 = vpack.c.b16 %v134, %v131
  %v150 = vpack.c.b16 %v138, %v135
  %v151 = vpack.c.b16 %v139, %v136
  %v152 = vpack.c.b16 %v140, %v137
  %v213 = vunpack.c.l.b16 %v53
  %v214 = vunpack.c.l.b16 %v54
  %v215 = vunpack.c.l.b16 %v55
  %v216 = vunpack.c.l.b16 %v56
  %v217 = vunpack.c.l.b16 %v57
  %v218 = vunpack.c.l.b16 %v58
  %v219 = vunpack.c.l.b16 %v59
  %v220 = vunpack.c.l.b16 %v60
  %v221 = vunpack.c.l.b16 %v61
  %v222 = vunpack.c.l.b16 %v62
  %v223 = vunpack.c.l.b16 %v63
  %v224 = vunpack.c.l.b16 %v64
  %v225 = vunpack.c.l.b16 %v65
  %v226 = vunpack.c.l.b16 %v66
  %v227 = vunpack.c.l.b16 %v67
  %v228 = vunpack.c.l.b16 %v68
  %v229 = vunpack.c.l.b16 %v69
  %v230 = vunpack.c.l.b16 %v70
  %v231 = vunpack.c.l.b16 %v71
  %v232 = vunpack.c.l.b16 %v72
  %v233 = vunpack.c.l.b16 %v73
  %v234 = vunpack.c.l.b16 %v74
  %v235 = vunpack.c.l.b16 %v75
  %v236 = vunpack.c.l.b16 %v76
  %v237 = vunpack.c.l.b16 %v77
  %v238 = vunpack.c.l.b16 %v78
  %v239 = vunpack.c.l.b16 %v79
  %v240 = vunpack.c.l.b16 %v80
  %v241 = vunpack.c.l.b16 %v81
  %v242 = vunpack.c.l.b16 %v82
  %v243 = vunpack.c.l.b16 %v83
  %v244 = vunpack.c.l.b16 %v84
  %v245 = vunpack.c.l.b16 %v85
  %v246 = vunpack.c.l.b16 %v86
  %v247 = vunpack.c.l.b16 %v87
  %v248 = vunpack.c.l.b16 %v88
  %v249 = vunpack.c.l.b16 %v89
  %v250 = vunpack.c.l.b16 %v90
  %v251 = vunpack.c.l.b16 %v91
  %v252 = vunpack.c.l.b16 %v92
  %v253 = vunpack.c.l.b16 %v93
  %v254 = vunpack.c.l.b16 %v94
  %v255 = vunpack.c.l.b16 %v95
  %v256 = vunpack.c.l.b16 %v96
  %v257 = vunpack.c.l.b16 %v97
  %v258 = vunpack.c.l.b16 %v98
  %v259 = vunpack.c.l.b16 %v99
  %v260 = vunpack.c.l.b16 %v100
  %v261 = vpack.c.b16 %v214, %v213
  %v262 = vpack.c.b16 %v216, %v215
  %v263 = vpack.c.b16 %v218, %v217
  %v264 = vpack.c.b16 %v220, %v219
  %v265 = vpack.c.b16 %v222, %v221
  %v266 = vpack.c.b16 %v224, %v223
  %v267 = vpack.c.b16 %v226, %v225
  %v268 = vpack.c.b16 %v228, %v227
  %v269 = vpack.c.b16 %v230, %v229
  %v270 = vpack.c.b16 %v232, %v231
  %v271 = vpack.c.b16 %v234, %v233
  %v272 = vpack.c.b16 %v236, %v235
  %v273 = vpack.c.b16 %v238, %v237
  %v274 = vpack.c.b16 %v240, %v239
  %v275 = vpack.c.b16 %v242, %v241
  %v276 = vpack.c.b16 %v244, %v243
  %v277 = vpack.c.b16 %v246, %v245
  %v278 = vpack.c.b16 %v248, %v247
  %v279 = vpack.c.b16 %v250, %v249
  %v280 = vpack.c.b16 %v252, %v251
  %v281 = vpack.c.b16 %v254, %v253
  %v282 = vpack.c.b16 %v256, %v255
  %v283 = vpack.c.b16 %v258, %v257
  %v284 = vpack.c.b16 %v260, %v259
  %309 = vmatpush.bf16.msra.mxu0 %v268
  %310 = vmatpush.bf16.msra.mxu0 %v267
  %311 = vmatpush.bf16.msra.mxu0 %v266
  %312 = vmatpush.bf16.msra.mxu0 %v265
  %313 = vmatpush.bf16.msra.mxu0 %v264
  %314 = vmatpush.bf16.msra.mxu0 %v263
  %315 = vmatpush.bf16.msra.mxu0 %v262
  %316 = vmatpush.bf16.msra.mxu0 %v261
  %317 = vmatmul.bf16.gmra.mxu0 %v141
  %v318 = vpop.f32.mrf.mxu0
  %v319 = vadd.f32 0.0, %v318
  %v320 = vpop.f32.mrf.mxu0
  %v321 = vadd.f32 0.0, %v320
  %322 = vmatmul.bf16.gmra.mxu0 %v144
  %v323 = vpop.f32.mrf.mxu0
  %v324 = vadd.f32 0.0, %v323
  %v325 = vpop.f32.mrf.mxu0
  %v326 = vadd.f32 0.0, %v325
  %327 = vmatmul.bf16.gmra.mxu0 %v147
  %v328 = vpop.f32.mrf.mxu0
  %v329 = vadd.f32 0.0, %v328
  %v330 = vpop.f32.mrf.mxu0
  %v331 = vadd.f32 0.0, %v330
  %332 = vmatmul.bf16.gmra.mxu0 %v150
  %v333 = vpop.f32.mrf.mxu0
  %v334 = vadd.f32 0.0, %v333
  %v335 = vpop.f32.mrf.mxu0
  %v336 = vadd.f32 0.0, %v335
  %337 = vdwg.mxu0
  %338 = vmatpush.bf16.msra.mxu0 %v276
  %339 = vmatpush.bf16.msra.mxu0 %v275
  %340 = vmatpush.bf16.msra.mxu0 %v274
  %341 = vmatpush.bf16.msra.mxu0 %v273
  %342 = vmatpush.bf16.msra.mxu0 %v272
  %343 = vmatpush.bf16.msra.mxu0 %v271
  %344 = vmatpush.bf16.msra.mxu0 %v270
  %345 = vmatpush.bf16.msra.mxu0 %v269
  %346 = vmatmul.bf16.gmra.mxu0 %v142
  %v347 = vpop.f32.mrf.mxu0
  %v348 = vadd.f32 %v319, %v347
  %v349 = vpop.f32.mrf.mxu0
  %v350 = vadd.f32 %v321, %v349
  %351 = vmatmul.bf16.gmra.mxu0 %v145
  %v352 = vpop.f32.mrf.mxu0
  %v353 = vadd.f32 %v324, %v352
  %v354 = vpop.f32.mrf.mxu0
  %v355 = vadd.f32 %v326, %v354
  %356 = vmatmul.bf16.gmra.mxu0 %v148
  %v357 = vpop.f32.mrf.mxu0
  %v358 = vadd.f32 %v329, %v357
  %v359 = vpop.f32.mrf.mxu0
  %v360 = vadd.f32 %v331, %v359
  %361 = vmatmul.bf16.gmra.mxu0 %v151
  %v362 = vpop.f32.mrf.mxu0
  %v363 = vadd.f32 %v334, %v362
  %v364 = vpop.f32.mrf.mxu0
  %v365 = vadd.f32 %v336, %v364
  %366 = vdwg.mxu0
  %367 = vmatpush.bf16.msra.mxu0 %v284
  %368 = vmatpush.bf16.msra.mxu0 %v283
  %369 = vmatpush.bf16.msra.mxu0 %v282
  %370 = vmatpush.bf16.msra.mxu0 %v281
  %371 = vmatpush.bf16.msra.mxu0 %v280
  %372 = vmatpush.bf16.msra.mxu0 %v279
  %373 = vmatpush.bf16.msra.mxu0 %v278
  %374 = vmatpush.bf16.msra.mxu0 %v277
  %375 = vmatmul.bf16.gmra.mxu0 %v143
  %v376 = vpop.f32.mrf.mxu0
  %v377 = vadd.f32 %v348, %v376
  %v378 = vpop.f32.mrf.mxu0
  %v379 = vadd.f32 %v350, %v378
  %380 = vmatmul.bf16.gmra.mxu0 %v146
  %v381 = vpop.f32.mrf.mxu0
  %v382 = vadd.f32 %v353, %v381
  %v383 = vpop.f32.mrf.mxu0
  %v384 = vadd.f32 %v355, %v383
  %385 = vmatmul.bf16.gmra.mxu0 %v149
  %v386 = vpop.f32.mrf.mxu0
  %v387 = vadd.f32 %v358, %v386
  %v388 = vpop.f32.mrf.mxu0
  %v389 = vadd.f32 %v360, %v388
  %390 = vmatmul.bf16.gmra.mxu0 %v152
  %v391 = vpop.f32.mrf.mxu0
  %v392 = vadd.f32 %v363, %v391
  %v393 = vpop.f32.mrf.mxu0
  %v394 = vadd.f32 %v365, %v393
  %395 = vdwg.mxu0
  %v396 = vadd.f32 %v29, %v377
  %v397 = vadd.f32 %v30, %v379
  %v398 = vadd.f32 %v31, %v382
  %v399 = vadd.f32 %v32, %v384
  %v400 = vadd.f32 %v33, %v387
  %v401 = vadd.f32 %v34, %v389
  %v402 = vadd.f32 %v35, %v392
  %v403 = vadd.f32 %v36, %v394
  %404 = vst [vmem:[#allocation2] sm:$0xff] %v396
  %405 = vst [vmem:[#allocation2 + $0x8] sm:$0xff] %v397
  %406 = vst [vmem:[#allocation2 + $0x10] sm:$0xff] %v398
  %407 = vst [vmem:[#allocation2 + $0x18] sm:$0xff] %v399
  %408 = vst [vmem:[#allocation2 + $0x20] sm:$0xff] %v400
  %409 = vst [vmem:[#allocation2 + $0x28] sm:$0xff] %v401
  %410 = vst [vmem:[#allocation2 + $0x30] sm:$0xff] %v402
  %411 = vst [vmem:[#allocation2 + $0x38] sm:$0xff] %v403
  // Predicated region
  $region22: #{forward.42} parent=0 // pred_check
    %p412 = pneg %p17
  $region23: #{forward.42} parent=0 // pred_check_branch
    %414 = sbr.rel (%p412) target = $region25
  $region24: #{forward.42} parent=0 // pred_region
    %v415 = vld [vmem:[#allocation2] sm:$0xff]
    %v416 = vld [vmem:[#allocation2 + $0x8] sm:$0xff]
    %v417 = vld [vmem:[#allocation2 + $0x10] sm:$0xff]
    %v418 = vld [vmem:[#allocation2 + $0x18] sm:$0xff]
    %v419 = vld [vmem:[#allocation2 + $0x20] sm:$0xff]
    %v420 = vld [vmem:[#allocation2 + $0x28] sm:$0xff]
    %v421 = vld [vmem:[#allocation2 + $0x30] sm:$0xff]
    %v422 = vld [vmem:[#allocation2 + $0x38] sm:$0xff]
    %v423 = vld [vmem:[%s2] sm:$0x1]
    %v425 = vperm.slane %v423, 0
    %v427 = vadd.f32 %v415, %v425
    %v428 = vadd.f32 %v416, %v425
    %v429 = vadd.f32 %v417, %v425
    %v430 = vadd.f32 %v418, %v425
    %v431 = vadd.f32 %v419, %v425
    %v432 = vadd.f32 %v420, %v425
    %v433 = vadd.f32 %v421, %v425
    %v434 = vadd.f32 %v422, %v425
    %v435 = vld [vmem:[%s3] sm:$0xff]
    %v436 = vld [vmem:[%s3 + $0x8] sm:$0xff]
    %v437 = vld [vmem:[%s3 + $0x10] sm:$0xff]
    %v438 = vld [vmem:[%s3 + $0x18] sm:$0xff]
    %v439 = vld [vmem:[%s3 + $0x20] sm:$0xff]
    %v440 = vld [vmem:[%s3 + $0x28] sm:$0xff]
    %v441 = vld [vmem:[%s3 + $0x30] sm:$0xff]
    %v442 = vld [vmem:[%s3 + $0x38] sm:$0xff]
    %v443 = vadd.f32 %v427, %v435
    %v444 = vadd.f32 %v428, %v436
    %v445 = vadd.f32 %v429, %v437
    %v446 = vadd.f32 %v430, %v438
    %v447 = vadd.f32 %v431, %v439
    %v448 = vadd.f32 %v432, %v440
    %v449 = vadd.f32 %v433, %v441
    %v450 = vadd.f32 %v434, %v442
    %v451 = vmax.f32 %v443, 0.0
    %v452 = vmax.f32 %v444, 0.0
    %v453 = vmax.f32 %v445, 0.0
    %v454 = vmax.f32 %v446, 0.0
    %v455 = vmax.f32 %v447, 0.0
    %v456 = vmax.f32 %v448, 0.0
    %v457 = vmax.f32 %v449, 0.0
    %v458 = vmax.f32 %v450, 0.0
    %459 = vst [vmem:[%s4] sm:$0xff] %v451
    %460 = vst [vmem:[%s4 + $0x8] sm:$0xff] %v452
    %461 = vst [vmem:[%s4 + $0x10] sm:$0xff] %v453
    %462 = vst [vmem:[%s4 + $0x18] sm:$0xff] %v454
    %463 = vst [vmem:[%s4 + $0x20] sm:$0xff] %v455
    %464 = vst [vmem:[%s4 + $0x28] sm:$0xff] %v456
    %465 = vst [vmem:[%s4 + $0x30] sm:$0xff] %v457
    %466 = vst [vmem:[%s4 + $0x38] sm:$0xff] %v458
  $region25: #{forward.42} parent=0 // pred_fallthru
    _
  // Predicated region
  $region26: #{forward.42} parent=0 // pred_check
    _
  $region27: #{forward.42} parent=0 // pred_check_branch
    %468 = sbr.rel (0) target = $region29
  $region28: #{forward.42} parent=0 // pred_region
    _
  $region29: #{forward.42} parent=0 // pred_fallthru
    _
  // Predicated region
  $region30: #{forward.42} parent=0 // pred_check
    _
  $region31: #{forward.42} parent=0 // pred_check_branch
    %470 = sbr.rel (0) target = $region33
  $region32: #{forward.42} parent=0 // pred_region
    _
  $region33: #{forward.42} parent=0 // pred_fallthru
    _

// kernel: forward.45
$region0: #{forward.45}
  #allocation0 [shape = 'u32[]', space=smem, size = 0x4, offset = 0x4, fixed_abs, tag = 'smem constant byte address 0x4 - core index']
  #allocation1 [shape = 'u32[72,128]{1,0:T(1,128)}', space=vmem, size = 0x9000, scoped, tag = 'internal scratch']
  #allocation2 [shape = 'f32[16,256]{1,0:T(8,128)}', space=vmem, size = 0x4000, scoped, tag = 'scratch operand']
  %s0 = inlined_call_operand.vmem [shape: bf16[16,128], index: 0, kind: input, shape index: {}]
  %s1 = inlined_call_operand.vmem [shape: bf16[128,256], index: 1, kind: input, shape index: {}]
  %s2 = inlined_call_operand.vmem [shape: f32[1,256], index: 2, kind: input, shape index: {}]
  %s3 = inlined_call_operand.vmem [shape: f32[16,256], index: 3, kind: output, shape index: {}]
  %s4 = sld [smem:[#allocation0]]
  $region30: #{forward.45} parent=0
    _
  %s6 = ssub.s32 1, %s4
  %s7 = scalar_select 0, %s6, %s4
  // Predicated region
  $region2: #{forward.45} parent=0 // pred_check
    _
  $region3: #{forward.45} parent=0 // pred_check_branch
    %9 = sbr.rel (0) target = $region5
  $region4: #{forward.45} parent=0 // pred_region
    _
  $region5: #{forward.45} parent=0 // pred_fallthru
    _
  // Predicated region
  $region6: #{forward.45} parent=0 // pred_check
    _
  $region7: #{forward.45} parent=0 // pred_check_branch
    %11 = sbr.rel (0) target = $region9
  $region8: #{forward.45} parent=0 // pred_region
    _
  $region9: #{forward.45} parent=0 // pred_fallthru
    _
  // Predicated region
  $region10: #{forward.45} parent=0 // pred_check
    _
  $region11: #{forward.45} parent=0 // pred_check_branch
    %13 = sbr.rel (0) target = $region13
  $region12: #{forward.45} parent=0 // pred_region
    _
  $region13: #{forward.45} parent=0 // pred_fallthru
    _
  %p14 = scmp.eq.s32.totalorder 0, 0
  // Predicated region
  $region14: #{forward.45} parent=0 // pred_check
    %p15 = pneg %p14
  $region15: #{forward.45} parent=0 // pred_check_branch
    %17 = sbr.rel (%p15) target = $region17
  $region16: #{forward.45} parent=0 // pred_region
    %18 = vst [vmem:[#allocation2] sm:$0xff] 0.0
    %19 = vst [vmem:[#allocation2 + $0x8] sm:$0xff] 0.0
    %20 = vst [vmem:[#allocation2 + $0x10] sm:$0xff] 0.0
    %21 = vst [vmem:[#allocation2 + $0x18] sm:$0xff] 0.0
  $region17: #{forward.45} parent=0 // pred_fallthru
    _
  %v22 = vld [vmem:[#allocation2] sm:$0xff]
  %v23 = vld [vmem:[#allocation2 + $0x8] sm:$0xff]
  %v24 = vld [vmem:[#allocation2 + $0x10] sm:$0xff]
  %v25 = vld [vmem:[#allocation2 + $0x18] sm:$0xff]
  %v26 = vld [vmem:[%s0] sm:$0xf]
  %v27 = vld [vmem:[%s0 + $0x4] sm:$0xf]
  %v28 = vld [vmem:[%s1] sm:$0xff]
  %v29 = vld [vmem:[%s1 + $0x8] sm:$0xff]
  %v30 = vld [vmem:[%s1 + $0x10] sm:$0xff]
  %v31 = vld [vmem:[%s1 + $0x18] sm:$0xff]
  %v32 = vld [vmem:[%s1 + $0x20] sm:$0xff]
  %v33 = vld [vmem:[%s1 + $0x28] sm:$0xff]
  %v34 = vld [vmem:[%s1 + $0x30] sm:$0xff]
  %v35 = vld [vmem:[%s1 + $0x38] sm:$0xff]
  %v36 = vld [vmem:[%s1 + $0x40] sm:$0xff]
  %v37 = vld [vmem:[%s1 + $0x48] sm:$0xff]
  %v38 = vld [vmem:[%s1 + $0x50] sm:$0xff]
  %v39 = vld [vmem:[%s1 + $0x58] sm:$0xff]
  %v40 = vld [vmem:[%s1 + $0x60] sm:$0xff]
  %v41 = vld [vmem:[%s1 + $0x68] sm:$0xff]
  %v42 = vld [vmem:[%s1 + $0x70] sm:$0xff]
  %v43 = vld [vmem:[%s1 + $0x78] sm:$0xff]
  %v46 = vunpack.c.l.b16 %v26
  %v47 = vunpack.c.l.b16 %v27
  %v48 = vpack.c.b16 %v47, %v46
  %v66 = vunpack.c.l.b16 %v28
  %v67 = vunpack.c.h.b16 %v28
  %v68 = vunpack.c.l.b16 %v29
  %v69 = vunpack.c.h.b16 %v29
  %v70 = vunpack.c.l.b16 %v30
  %v71 = vunpack.c.h.b16 %v30
  %v72 = vunpack.c.l.b16 %v31
  %v73 = vunpack.c.h.b16 %v31
  %v74 = vunpack.c.l.b16 %v32
  %v75 = vunpack.c.h.b16 %v32
  %v76 = vunpack.c.l.b16 %v33
  %v77 = vunpack.c.h.b16 %v33
  %v78 = vunpack.c.l.b16 %v34
  %v79 = vunpack.c.h.b16 %v34
  %v80 = vunpack.c.l.b16 %v35
  %v81 = vunpack.c.h.b16 %v35
  %v82 = vunpack.c.l.b16 %v36
  %v83 = vunpack.c.h.b16 %v36
  %v84 = vunpack.c.l.b16 %v37
  %v85 = vunpack.c.h.b16 %v37
  %v86 = vunpack.c.l.b16 %v38
  %v87 = vunpack.c.h.b16 %v38
  %v88 = vunpack.c.l.b16 %v39
  %v89 = vunpack.c.h.b16 %v39
  %v90 = vunpack.c.l.b16 %v40
  %v91 = vunpack.c.h.b16 %v40
  %v92 = vunpack.c.l.b16 %v41
  %v93 = vunpack.c.h.b16 %v41
  %v94 = vunpack.c.l.b16 %v42
  %v95 = vunpack.c.h.b16 %v42
  %v96 = vunpack.c.l.b16 %v43
  %v97 = vunpack.c.h.b16 %v43
  %v98 = vpack.c.b16 %v68, %v66
  %v99 = vpack.c.b16 %v69, %v67
  %v100 = vpack.c.b16 %v72, %v70
  %v101 = vpack.c.b16 %v73, %v71
  %v102 = vpack.c.b16 %v76, %v74
  %v103 = vpack.c.b16 %v77, %v75
  %v104 = vpack.c.b16 %v80, %v78
  %v105 = vpack.c.b16 %v81, %v79
  %v106 = vpack.c.b16 %v84, %v82
  %v107 = vpack.c.b16 %v85, %v83
  %v108 = vpack.c.b16 %v88, %v86
  %v109 = vpack.c.b16 %v89, %v87
  %v110 = vpack.c.b16 %v92, %v90
  %v111 = vpack.c.b16 %v93, %v91
  %v112 = vpack.c.b16 %v96, %v94
  %v113 = vpack.c.b16 %v97, %v95
  %130 = vmatpush.bf16.msra.mxu0 %v112
  %131 = vmatpush.bf16.msra.mxu0 %v110
  %132 = vmatpush.bf16.msra.mxu0 %v108
  %133 = vmatpush.bf16.msra.mxu0 %v106
  %134 = vmatpush.bf16.msra.mxu0 %v104
  %135 = vmatpush.bf16.msra.mxu0 %v102
  %136 = vmatpush.bf16.msra.mxu0 %v100
  %137 = vmatpush.bf16.msra.mxu0 %v98
  %138 = vmatmul.bf16.gmra.mxu0 %v48
  %v139 = vpop.f32.mrf.mxu0
  %v140 = vadd.f32 0.0, %v139
  %v141 = vpop.f32.mrf.mxu0
  %v142 = vadd.f32 0.0, %v141
  %143 = vdwg.mxu0
  %144 = vmatpush.bf16.msra.mxu0 %v113
  %145 = vmatpush.bf16.msra.mxu0 %v111
  %146 = vmatpush.bf16.msra.mxu0 %v109
  %147 = vmatpush.bf16.msra.mxu0 %v107
  %148 = vmatpush.bf16.msra.mxu0 %v105
  %149 = vmatpush.bf16.msra.mxu0 %v103
  %150 = vmatpush.bf16.msra.mxu0 %v101
  %151 = vmatpush.bf16.msra.mxu0 %v99
  %152 = vmatmul.bf16.gmra.mxu0 %v48
  %v153 = vpop.f32.mrf.mxu0
  %v154 = vadd.f32 0.0, %v153
  %v155 = vpop.f32.mrf.mxu0
  %v156 = vadd.f32 0.0, %v155
  %157 = vdwg.mxu0
  %v158 = vadd.f32 %v22, %v140
  %v159 = vadd.f32 %v23, %v154
  %v160 = vadd.f32 %v24, %v142
  %v161 = vadd.f32 %v25, %v156
  %162 = vst [vmem:[#allocation2] sm:$0xff] %v158
  %163 = vst [vmem:[#allocation2 + $0x8] sm:$0xff] %v159
  %164 = vst [vmem:[#allocation2 + $0x10] sm:$0xff] %v160
  %165 = vst [vmem:[#allocation2 + $0x18] sm:$0xff] %v161
  // Predicated region
  $region18: #{forward.45} parent=0 // pred_check
    %p166 = pneg %p14
  $region19: #{forward.45} parent=0 // pred_check_branch
    %168 = sbr.rel (%p166) target = $region21
  $region20: #{forward.45} parent=0 // pred_region
    %v169 = vld [vmem:[#allocation2] sm:$0xff]
    %v170 = vld [vmem:[#allocation2 + $0x8] sm:$0xff]
    %v171 = vld [vmem:[#allocation2 + $0x10] sm:$0xff]
    %v172 = vld [vmem:[#allocation2 + $0x18] sm:$0xff]
    %v173 = vld [vmem:[%s2] sm:$0x3]
    %v175 = vperm.slane %v173, 0
    %v176 = vperm.slane %v173, 1
    %v179 = vadd.f32 %v169, %v175
    %v180 = vadd.f32 %v170, %v176
    %v181 = vadd.f32 %v171, %v175
    %v182 = vadd.f32 %v172, %v176
    %183 = vst [vmem:[%s3] sm:$0xff] %v179
    %184 = vst [vmem:[%s3 + $0x8] sm:$0xff] %v180
    %185 = vst [vmem:[%s3 + $0x10] sm:$0xff] %v181
    %186 = vst [vmem:[%s3 + $0x18] sm:$0xff] %v182
  $region21: #{forward.45} parent=0 // pred_fallthru
    _
  // Predicated region
  $region22: #{forward.45} parent=0 // pred_check
    _
  $region23: #{forward.45} parent=0 // pred_check_branch
    %188 = sbr.rel (0) target = $region25
  $region24: #{forward.45} parent=0 // pred_region
    _
  $region25: #{forward.45} parent=0 // pred_fallthru
    _
  // Predicated region
  $region26: #{forward.45} parent=0 // pred_check
    _
  $region27: #{forward.45} parent=0 // pred_check_branch
    %190 = sbr.rel (0) target = $region29
  $region28: #{forward.45} parent=0 // pred_region
    _
  $region29: #{forward.45} parent=0 // pred_fallthru
    _

// kernel: forward.49
$region0: #{forward.49}
  #allocation0 [shape = 'u32[]', space=smem, size = 0x4, offset = 0x4, fixed_abs, tag = 'smem constant byte address 0x4 - core index']
  #allocation1 [shape = 'u32[72,128]{1,0:T(1,128)}', space=vmem, size = 0x9000, scoped, tag = 'internal scratch']
  #allocation2 [shape = 'f32[16,128]{1,0:T(8,128)}', space=vmem, size = 0x2000, scoped, tag = 'scratch operand']
  %s0 = inlined_call_operand.vmem [shape: bf16[16,128], index: 0, kind: input, shape index: {}]
  %s1 = inlined_call_operand.vmem [shape: bf16[128,128], index: 1, kind: input, shape index: {}]
  %s2 = inlined_call_operand.vmem [shape: f32[1,128], index: 2, kind: input, shape index: {}]
  %s3 = inlined_call_operand.hbm [shape: f32[16,128], index: 3, kind: output, shape index: {}]
  %s4 = sld [smem:[#allocation0]]
  $region30: #{forward.49} parent=0
    _
  %s6 = ssub.s32 1, %s4
  %s7 = scalar_select 0, %s6, %s4
  $region1: #{forward.49} parent=0
    #allocation3 [shape = 'u8[8192]{0}', space=vmem, size = 0x2000, scoped, tag = 'output window, operand 0, single buffered']
    #allocation4 [shape = 's32[1]{0}', space=sflag, size = 0x4, scoped, tag = 'scoped memory for forward.49']
    %8 = vsyncpa [#allocation4], 0
    // Predicated region
    $region2: #{forward.49} parent=1 // pred_check
      _
    $region3: #{forward.49} parent=1 // pred_check_branch
      %10 = sbr.rel (0) target = $region5
    $region4: #{forward.49} parent=1 // pred_region
      _
    $region5: #{forward.49} parent=1 // pred_fallthru
      _
    // Predicated region
    $region6: #{forward.49} parent=1 // pred_check
      _
    $region7: #{forward.49} parent=1 // pred_check_branch
      %12 = sbr.rel (0) target = $region9
    $region8: #{forward.49} parent=1 // pred_region
      _
    $region9: #{forward.49} parent=1 // pred_fallthru
      _
    // Predicated region
    $region10: #{forward.49} parent=1 // pred_check
      _
    $region11: #{forward.49} parent=1 // pred_check_branch
      %14 = sbr.rel (0) target = $region13
    $region12: #{forward.49} parent=1 // pred_region
      _
    $region13: #{forward.49} parent=1 // pred_fallthru
      _
    %p15 = scmp.eq.s32.totalorder 0, 0
    // Predicated region
    $region14: #{forward.49} parent=1 // pred_check
      %p16 = pneg %p15
    $region15: #{forward.49} parent=1 // pred_check_branch
      %18 = sbr.rel (%p16) target = $region17
    $region16: #{forward.49} parent=1 // pred_region
      %19 = vst [vmem:[#allocation2] sm:$0xff] 0.0
      %20 = vst [vmem:[#allocation2 + $0x8] sm:$0xff] 0.0
    $region17: #{forward.49} parent=1 // pred_fallthru
      _
    %v21 = vld [vmem:[#allocation2] sm:$0xff]
    %v22 = vld [vmem:[#allocation2 + $0x8] sm:$0xff]
    %v23 = vld [vmem:[%s0] sm:$0xf]
    %v24 = vld [vmem:[%s0 + $0x4] sm:$0xf]
    %v25 = vld [vmem:[%s1] sm:$0xf]
    %v26 = vld [vmem:[%s1 + $0x4] sm:$0xf]
    %v27 = vld [vmem:[%s1 + $0x8] sm:$0xf]
    %v28 = vld [vmem:[%s1 + $0xc] sm:$0xf]
    %v29 = vld [vmem:[%s1 + $0x10] sm:$0xf]
    %v30 = vld [vmem:[%s1 + $0x14] sm:$0xf]
    %v31 = vld [vmem:[%s1 + $0x18] sm:$0xf]
    %v32 = vld [vmem:[%s1 + $0x1c] sm:$0xf]
    %v33 = vld [vmem:[%s1 + $0x20] sm:$0xf]
    %v34 = vld [vmem:[%s1 + $0x24] sm:$0xf]
    %v35 = vld [vmem:[%s1 + $0x28] sm:$0xf]
    %v36 = vld [vmem:[%s1 + $0x2c] sm:$0xf]
    %v37 = vld [vmem:[%s1 + $0x30] sm:$0xf]
    %v38 = vld [vmem:[%s1 + $0x34] sm:$0xf]
    %v39 = vld [vmem:[%s1 + $0x38] sm:$0xf]
    %v40 = vld [vmem:[%s1 + $0x3c] sm:$0xf]
    %v43 = vunpack.c.l.b16 %v23
    %v44 = vunpack.c.l.b16 %v24
    %v45 = vpack.c.b16 %v44, %v43
    %v63 = vunpack.c.l.b16 %v25
    %v64 = vunpack.c.l.b16 %v26
    %v65 = vunpack.c.l.b16 %v27
    %v66 = vunpack.c.l.b16 %v28
    %v67 = vunpack.c.l.b16 %v29
    %v68 = vunpack.c.l.b16 %v30
    %v69 = vunpack.c.l.b16 %v31
    %v70 = vunpack.c.l.b16 %v32
    %v71 = vunpack.c.l.b16 %v33
    %v72 = vunpack.c.l.b16 %v34
    %v73 = vunpack.c.l.b16 %v35
    %v74 = vunpack.c.l.b16 %v36
    %v75 = vunpack.c.l.b16 %v37
    %v76 = vunpack.c.l.b16 %v38
    %v77 = vunpack.c.l.b16 %v39
    %v78 = vunpack.c.l.b16 %v40
    %v79 = vpack.c.b16 %v64, %v63
    %v80 = vpack.c.b16 %v66, %v65
    %v81 = vpack.c.b16 %v68, %v67
    %v82 = vpack.c.b16 %v70, %v69
    %v83 = vpack.c.b16 %v72, %v71
    %v84 = vpack.c.b16 %v74, %v73
    %v85 = vpack.c.b16 %v76, %v75
    %v86 = vpack.c.b16 %v78, %v77
    %95 = vmatpush.bf16.msra.mxu0 %v86
    %96 = vmatpush.bf16.msra.mxu0 %v85
    %97 = vmatpush.bf16.msra.mxu0 %v84
    %98 = vmatpush.bf16.msra.mxu0 %v83
    %99 = vmatpush.bf16.msra.mxu0 %v82
    %100 = vmatpush.bf16.msra.mxu0 %v81
    %101 = vmatpush.bf16.msra.mxu0 %v80
    %102 = vmatpush.bf16.msra.mxu0 %v79
    %103 = vmatmul.bf16.gmra.mxu0 %v45
    %v104 = vpop.f32.mrf.mxu0
    %v105 = vadd.f32 0.0, %v104
    %v106 = vpop.f32.mrf.mxu0
    %v107 = vadd.f32 0.0, %v106
    %108 = vdwg.mxu0
    %v109 = vadd.f32 %v21, %v105
    %v110 = vadd.f32 %v22, %v107
    %111 = vst [vmem:[#allocation2] sm:$0xff] %v109
    %112 = vst [vmem:[#allocation2 + $0x8] sm:$0xff] %v110
    // Predicated region
    $region18: #{forward.49} parent=1 // pred_check
      %p113 = pneg %p15
    $region19: #{forward.49} parent=1 // pred_check_branch
      %115 = sbr.rel (%p113) target = $region21
    $region20: #{forward.49} parent=1 // pred_region
      %v116 = vld [vmem:[#allocation2] sm:$0xff]
      %v117 = vld [vmem:[#allocation2 + $0x8] sm:$0xff]
      %v118 = vld [vmem:[%s2] sm:$0x1]
      %v120 = vperm.slane %v118, 0
      %v122 = vadd.f32 %v116, %v120
      %v123 = vadd.f32 %v117, %v120
      %124 = vst [vmem:[#allocation3] sm:$0xff] %v122
      %125 = vst [vmem:[#allocation3 + $0x8] sm:$0xff] %v123
    $region21: #{forward.49} parent=1 // pred_fallthru
      _
    // Predicated region
    $region22: #{forward.49} parent=1 // pred_check
      _
    $region23: #{forward.49} parent=1 // pred_check_branch
      %127 = sbr.rel (0) target = $region25
    $region24: #{forward.49} parent=1 // pred_region
      %129 = vsyncadd [#allocation4], 0
      %s130 = sshll.u32 [#allocation3], 4
      %s131 = int_to_ptr.vmem [resolvable:$true] %s130
      %s132 = sshll.u32 %s3, 4
      %s133 = int_to_ptr.hbm [resolvable:$true] %s132
      %138 = dma.vmem_to_hbm [thread:$0]  %s131, 256, %s133, [#allocation4], 128, 128, 8
    $region25: #{forward.49} parent=1 // pred_fallthru
      _
    // Predicated region
    $region26: #{forward.49} parent=1 // pred_check
      _
    $region27: #{forward.49} parent=1 // pred_check_branch
      %140 = sbr.rel (0) target = $region29
    $region28: #{forward.49} parent=1 // pred_region
      %142 = dma.done [#allocation4], 256
    $region29: #{forward.49} parent=1 // pred_fallthru
      _
    %143 = vsyncpa [#allocation4], 1

// kernel: forward.46
$region0: #{forward.46}
  #allocation0 [shape = 'u32[]', space=smem, size = 0x4, offset = 0x4, fixed_abs, tag = 'smem constant byte address 0x4 - core index']
  #allocation1 [shape = 'u32[72,128]{1,0:T(1,128)}', space=vmem, size = 0x9000, scoped, tag = 'internal scratch']
  #allocation2 [shape = 'f32[2,64]{1,0:T(2,128)}', space=vmem, size = 0x400, scoped, tag = 'scratch operand']
  #allocation3 [shape = 'f32[2,64]{1,0:T(2,128)}', space=vmem, size = 0x400, scoped, tag = 'scratch operand']
  %s0 = inlined_call_operand.vmem [shape: f32[8,2,128], index: 0, kind: input, shape index: {}]
  %s1 = inlined_call_operand.vmem [shape: f32[8,2,128], index: 1, kind: input, shape index: {}]
  %s2 = inlined_call_operand.vmem [shape: bf16[64,256], index: 2, kind: input, shape index: {}]
  %s3 = inlined_call_operand.vmem [shape: f32[8,2,32], index: 3, kind: output, shape index: {0}]
  %s4 = inlined_call_operand.vmem [shape: f32[8,2,32], index: 4, kind: output, shape index: {1}]
  %5 = xla_tuple %s3, %s4
  %s6 = sld [smem:[#allocation0]]
  $region34: #{forward.46} parent=0
    _
  %s8 = ssub.s32 1, %s6
  %s9 = scalar_select 0, %s8, %s6
  // Predicated region
  $region2: #{forward.46} parent=0 // pred_check
    _
  $region3: #{forward.46} parent=0 // pred_check_branch
    %11 = sbr.rel (0) target = $region5
  $region4: #{forward.46} parent=0 // pred_region
    _
  $region5: #{forward.46} parent=0 // pred_fallthru
    _
  // Predicated region
  $region6: #{forward.46} parent=0 // pred_check
    _
  $region7: #{forward.46} parent=0 // pred_check_branch
    %13 = sbr.rel (0) target = $region9
  $region8: #{forward.46} parent=0 // pred_region
    %s14 = ssub.s32 0, 0
    %s15 = smul.u32 8, %s14
    %p16 = scmp.lt.s32.totalorder %s15, 7
    %s17 = scalar_select %p16, %s15, 7
    %s18 = smul.addr %s17, 2
    %s19 = scalar_lea.vmem %s1, %s18
    %s20 = ssub.s32 0, 0
    %s21 = smul.u32 8, %s20
  $region9: #{forward.46} parent=0 // pred_fallthru
    _
  // Predicated region
  $region10: #{forward.46} parent=0 // pred_check
    _
  $region11: #{forward.46} parent=0 // pred_check_branch
    %23 = sbr.rel (0) target = $region13
  $region12: #{forward.46} parent=0 // pred_region
    _
  $region13: #{forward.46} parent=0 // pred_fallthru
    _
  %s24 = ssub.s32 0, 0
  %s25 = smul.u32 8, %s24
  %p26 = scmp.lt.s32.totalorder %s25, 7
  %s27 = scalar_select %p26, %s25, 7
  %s28 = smul.addr %s27, 2
  %s29 = scalar_lea.vmem %s1, %s28
  %s30 = ssub.s32 0, 0
  %s31 = smul.u32 8, %s30
  %p32 = scmp.lt.s32.totalorder %s31, 7
  %s33 = scalar_select %p32, %s31, 7
  %s34 = smul.addr %s33, 2
  %s35 = scalar_lea.vmem %s4, %s34
  %s36 = ssub.s32 0, 0
  %s37 = smul.u32 8, %s36
  %p38 = scmp.lt.s32.totalorder %s37, 7
  %s39 = scalar_select %p38, %s37, 7
  %s40 = smul.addr %s39, 2
  %s41 = scalar_lea.vmem %s1, %s40
  %s42 = ssub.s32 0, 0
  %s43 = smul.u32 8, %s42
  %s44 = ssub.s32 0, 0
  %s45 = smul.u32 8, %s44
  %p46 = scmp.lt.s32.totalorder %s45, 7
  %s47 = scalar_select %p46, %s45, 7
  %s48 = smul.addr %s47, 2
  %s49 = scalar_lea.vmem %s4, %s48
  %s50 = ssub.s32 0, 0
  %s51 = smul.u32 8, %s50
  %p53 = scmp.eq.s32.totalorder 0, 0
  // Predicated region
  $region14: #{forward.46} parent=0 // pred_check
    %p54 = pneg %p53
  $region15: #{forward.46} parent=0 // pred_check_branch
    %56 = sbr.rel (%p54) target = $region17
  $region16: #{forward.46} parent=0 // pred_region
    %vm57 = vcmask 517120
    %58 = vst.msk [vmem:[#allocation2] sm:$0x3] %vm57, 0.0
    %59 = vst.msk [vmem:[#allocation3] sm:$0x3] %vm57, 0.0
  $region17: #{forward.46} parent=0 // pred_fallthru
    _
  %v60 = vld [vmem:[%s2] sm:$0xff]
  %v61 = vld [vmem:[%s2 + $0x8] sm:$0xff]
  %v62 = vld [vmem:[%s2 + $0x10] sm:$0xff]
  %v63 = vld [vmem:[%s2 + $0x18] sm:$0xff]
  %v64 = vld [vmem:[%s2 + $0x20] sm:$0xff]
  %v65 = vld [vmem:[%s2 + $0x28] sm:$0xff]
  %v66 = vld [vmem:[%s2 + $0x30] sm:$0xff]
  %v67 = vld [vmem:[%s2 + $0x38] sm:$0xff]
  %v68 = vld [vmem:[#allocation2] sm:$0x3]
  %v69 = vpack.c.bf16 %v68, %v68
  %v78 = vunpack.c.l.b16 %v60
  %v79 = vunpack.c.h.b16 %v60
  %v80 = vunpack.c.l.b16 %v61
  %v81 = vunpack.c.h.b16 %v61
  %v82 = vunpack.c.l.b16 %v62
  %v83 = vunpack.c.h.b16 %v62
  %v84 = vunpack.c.l.b16 %v63
  %v85 = vunpack.c.h.b16 %v63
  %v86 = vunpack.c.l.b16 %v64
  %v87 = vunpack.c.h.b16 %v64
  %v88 = vunpack.c.l.b16 %v65
  %v89 = vunpack.c.h.b16 %v65
  %v90 = vunpack.c.l.b16 %v66
  %v91 = vunpack.c.h.b16 %v66
  %v92 = vunpack.c.l.b16 %v67
  %v93 = vunpack.c.h.b16 %v67
  %v94 = vpack.c.b16 %v80, %v78
  %v95 = vpack.c.b16 %v81, %v79
  %v96 = vpack.c.b16 %v84, %v82
  %v97 = vpack.c.b16 %v85, %v83
  %v98 = vpack.c.b16 %v88, %v86
  %v99 = vpack.c.b16 %v89, %v87
  %v100 = vpack.c.b16 %v92, %v90
  %v101 = vpack.c.b16 %v93, %v91
  %vm110 = vcmask 523264
  %v112 = vsel %vm110, %v69, 0
  %114 = vmatpush.bf16.msra.mxu0 0
  %115 = vmatpush.bf16.msra.mxu0 0
  %116 = vmatpush.bf16.msra.mxu0 0
  %117 = vmatpush.bf16.msra.mxu0 0
  %118 = vmatpush.bf16.msra.mxu0 %v100
  %119 = vmatpush.bf16.msra.mxu0 %v98
  %120 = vmatpush.bf16.msra.mxu0 %v96
  %121 = vmatpush.bf16.msra.mxu0 %v94
  %122 = vmatmul.bf16.gmra.mxu0 %v112
  %v123 = vpop.f32.mrf.mxu0
  %v124 = vadd.f32 0.0, %v123
  %v125 = vpop.f32.mrf.mxu0
  %126 = vdwg.mxu0
  %127 = vmatpush.bf16.msra.mxu0 0
  %128 = vmatpush.bf16.msra.mxu0 0
  %129 = vmatpush.bf16.msra.mxu0 0
  %130 = vmatpush.bf16.msra.mxu0 0
  %131 = vmatpush.bf16.msra.mxu0 %v101
  %132 = vmatpush.bf16.msra.mxu0 %v99
  %133 = vmatpush.bf16.msra.mxu0 %v97
  %134 = vmatpush.bf16.msra.mxu0 %v95
  %135 = vmatmul.bf16.gmra.mxu0 %v112
  %v136 = vpop.f32.mrf.mxu0
  %v137 = vadd.f32 0.0, %v136
  %v138 = vpop.f32.mrf.mxu0
  %139 = vdwg.mxu0
  %v140 = vld [vmem:[%s0] sm:$0x3]
  %v141 = vadd.f32 %v140, %v124
  %v142 = vxor.u32 %v141, 2147483648
  %v143 = vmul.f32 %v142, 1.442695
  %v144 = vpow.pop %v143
  %v145 = vadd.f32 %v144, 1.0
  %v146 = vrcp.pop %v145
  %v147 = vmul.f32 %v145, %v146
  %v148 = vsub.f32 1.0, %v147
  %v149 = vmul.f32 %v146, %v148
  %v150 = vadd.f32 %v146, %v149
  %vm151 = vweird.f32 %v145
  %vm152 = vweird.f32 %v146
  %vm153 = vmor %vm151, %vm152
  %v154 = vsel %vm153, %v146, %v150
  %v155 = vand.u32 2147483647, %v145
  %vm156 = vcmp.eq.f32.partialorder %v155, 8.507059e+37
  %v157 = vand.u32 %v145, 2147483648
  %v158 = vor.u32 1.1754944e-38, %v157
  %v159 = vsel %vm156, %v158, %v154
  %v160 = vmul.f32 1.0, %v159
  %v161 = vtanh.pop %v141
  %v162 = vld [vmem:[#allocation3] sm:$0x3]
  %164 = vrot.lane.b32.xlu0 %v162, 32
  %v165 = vpop.permute.xlu0 %164
  %v167 = vmul.f32 %v160, %v165
  %169 = vrot.lane.b32.xlu0 %v161, 64
  %v170 = vpop.permute.xlu0 %169
  %v172 = vmul.f32 %v160, %v170
  %174 = vrot.lane.b32.xlu0 %v172, 32
  %v175 = vpop.permute.xlu0 %174
  %v177 = vadd.f32 %v167, %v175
  %v178 = vtanh.pop %v177
  %180 = vrot.lane.b32.xlu0 %v178, 64
  %v181 = vpop.permute.xlu0 %180
  %v183 = vmul.f32 %v160, %v181
  %s184 = scalar_lea.vmem %s41, 14
  %v185 = vld [vmem:[%s184] sm:$0x3]
  %v186 = vadd.f32 %v185, %v137
  %v187 = vxor.u32 %v186, 2147483648
  %v188 = vmul.f32 %v187, 1.442695
  %v189 = vpow.pop %v188
  %v190 = vadd.f32 %v189, 1.0
  %v191 = vrcp.pop %v190
  %v192 = vmul.f32 %v190, %v191
  %v193 = vsub.f32 1.0, %v192
  %v194 = vmul.f32 %v191, %v193
  %v195 = vadd.f32 %v191, %v194
  %vm196 = vweird.f32 %v190
  %vm197 = vweird.f32 %v191
  %vm198 = vmor %vm196, %vm197
  %v199 = vsel %vm198, %v191, %v195
  %v200 = vand.u32 2147483647, %v190
  %vm201 = vcmp.eq.f32.partialorder %v200, 8.507059e+37
  %v202 = vand.u32 %v190, 2147483648
  %v203 = vor.u32 1.1754944e-38, %v202
  %v204 = vsel %vm201, %v203, %v199
  %v205 = vmul.f32 1.0, %v204
  %v206 = vtanh.pop %v186
  %v207 = vmul.f32 %v205, %v162
  %209 = vrot.lane.b32.xlu0 %v206, 64
  %v210 = vpop.permute.xlu0 %209
  %v212 = vmul.f32 %v205, %v210
  %214 = vrot.lane.b32.xlu0 %v212, 32
  %v215 = vpop.permute.xlu0 %214
  %v217 = vadd.f32 %v207, %v215
  %v218 = vtanh.pop %v217
  %220 = vrot.lane.b32.xlu0 %v218, 64
  %v221 = vpop.permute.xlu0 %220
  %v223 = vmul.f32 %v205, %v221
  %225 = vrot.lane.b32.xlu0 %v183, 32
  %v226 = vpop.permute.xlu0 %225
  %vm228 = vcmask 254976
  %229 = vst.msk [vmem:[#allocation2] sm:$0x3] %vm228, %v226
  %231 = vrot.lane.b32.xlu0 %v223, 64
  %v232 = vpop.permute.xlu0 %231
  %vm234 = vcmask 517376
  %235 = vst.msk [vmem:[#allocation2] sm:$0x3] %vm234, %v232
  %237 = vrot.lane.b32.xlu0 %v177, 96
  %v238 = vpop.permute.xlu0 %237
  %240 = vst.msk [vmem:[#allocation3] sm:$0x3] %vm228, %v238
  %241 = vst.msk [vmem:[#allocation3] sm:$0x3] %vm234, %v217
  %242 = vst.msk [vmem:[%s3] sm:$0x3] %vm228, %v226
  %243 = vrot.lane.b32.xlu0 %v223, 32
  %v244 = vpop.permute.xlu0 %243
  %s246 = scalar_lea.vmem %s49, 14
  %247 = vst.msk [vmem:[%s246] sm:$0x3] %vm228, %v244
  %v248 = vld [vmem:[#allocation2] sm:$0x3]
  %v249 = vpack.c.bf16 %v248, %v248
  %v251 = vsel %vm110, %v249, 0
  %253 = vmatpush.bf16.msra.mxu0 0
  %254 = vmatpush.bf16.msra.mxu0 0
  %255 = vmatpush.bf16.msra.mxu0 0
  %256 = vmatpush.bf16.msra.mxu0 0
  %257 = vmatpush.bf16.msra.mxu0 %v100
  %258 = vmatpush.bf16.msra.mxu0 %v98
  %259 = vmatpush.bf16.msra.mxu0 %v96
  %260 = vmatpush.bf16.msra.mxu0 %v94
  %261 = vmatmul.bf16.gmra.mxu0 %v251
  %v262 = vpop.f32.mrf.mxu0
  %v263 = vadd.f32 0.0, %v262
  %v264 = vpop.f32.mrf.mxu0
  %265 = vdwg.mxu0
  %266 = vmatpush.bf16.msra.mxu0 0
  %267 = vmatpush.bf16.msra.mxu0 0
  %268 = vmatpush.bf16.msra.mxu0 0
  %269 = vmatpush.bf16.msra.mxu0 0
  %270 = vmatpush.bf16.msra.mxu0 %v101
  %271 = vmatpush.bf16.msra.mxu0 %v99
  %272 = vmatpush.bf16.msra.mxu0 %v97
  %273 = vmatpush.bf16.msra.mxu0 %v95
  %274 = vmatmul.bf16.gmra.mxu0 %v251
  %v275 = vpop.f32.mrf.mxu0
  %v276 = vadd.f32 0.0, %v275
  %v277 = vpop.f32.mrf.mxu0
  %278 = vdwg.mxu0
  %s279 = scalar_lea.vmem %s0, 2
  %v280 = vld [vmem:[%s279] sm:$0x3]
  %v281 = vadd.f32 %v280, %v263
  %v282 = vxor.u32 %v281, 2147483648
  %v283 = vmul.f32 %v282, 1.442695
  %v284 = vpow.pop %v283
  %v285 = vadd.f32 %v284, 1.0
  %v286 = vrcp.pop %v285
  %v287 = vmul.f32 %v285, %v286
  %v288 = vsub.f32 1.0, %v287
  %v289 = vmul.f32 %v286, %v288
  %v290 = vadd.f32 %v286, %v289
  %vm291 = vweird.f32 %v285
  %vm292 = vweird.f32 %v286
  %vm293 = vmor %vm291, %vm292
  %v294 = vsel %vm293, %v286, %v290
  %v295 = vand.u32 2147483647, %v285
  %vm296 = vcmp.eq.f32.partialorder %v295, 8.507059e+37
  %v297 = vand.u32 %v285, 2147483648
  %v298 = vor.u32 1.1754944e-38, %v297
  %v299 = vsel %vm296, %v298, %v294
  %v300 = vmul.f32 1.0, %v299
  %v301 = vtanh.pop %v281
  %v302 = vld [vmem:[#allocation3] sm:$0x3]
  %304 = vrot.lane.b32.xlu0 %v302, 32
  %v305 = vpop.permute.xlu0 %304
  %v307 = vmul.f32 %v300, %v305
  %309 = vrot.lane.b32.xlu0 %v301, 64
  %v310 = vpop.permute.xlu0 %309
  %v312 = vmul.f32 %v300, %v310
  %314 = vrot.lane.b32.xlu0 %v312, 32
  %v315 = vpop.permute.xlu0 %314
  %v317 = vadd.f32 %v307, %v315
  %v318 = vtanh.pop %v317
  %320 = vrot.lane.b32.xlu0 %v318, 64
  %v321 = vpop.permute.xlu0 %320
  %v323 = vmul.f32 %v300, %v321
  %s324 = scalar_lea.vmem %s41, 12
  %v325 = vld [vmem:[%s324] sm:$0x3]
  %v326 = vadd.f32 %v325, %v276
  %v327 = vxor.u32 %v326, 2147483648
  %v328 = vmul.f32 %v327, 1.442695
  %v329 = vpow.pop %v328
  %v330 = vadd.f32 %v329, 1.0
  %v331 = vrcp.pop %v330
  %v332 = vmul.f32 %v330, %v331
  %v333 = vsub.f32 1.0, %v332
  %v334 = vmul.f32 %v331, %v333
  %v335 = vadd.f32 %v331, %v334
  %vm336 = vweird.f32 %v330
  %vm337 = vweird.f32 %v331
  %vm338 = vmor %vm336, %vm337
  %v339 = vsel %vm338, %v331, %v335
  %v340 = vand.u32 2147483647, %v330
  %vm341 = vcmp.eq.f32.partialorder %v340, 8.507059e+37
  %v342 = vand.u32 %v330, 2147483648
  %v343 = vor.u32 1.1754944e-38, %v342
  %v344 = vsel %vm341, %v343, %v339
  %v345 = vmul.f32 1.0, %v344
  %v346 = vtanh.pop %v326
  %v347 = vmul.f32 %v345, %v302
  %349 = vrot.lane.b32.xlu0 %v346, 64
  %v350 = vpop.permute.xlu0 %349
  %v352 = vmul.f32 %v345, %v350
  %354 = vrot.lane.b32.xlu0 %v352, 32
  %v355 = vpop.permute.xlu0 %354
  %v357 = vadd.f32 %v347, %v355
  %v358 = vtanh.pop %v357
  %360 = vrot.lane.b32.xlu0 %v358, 64
  %v361 = vpop.permute.xlu0 %360
  %v363 = vmul.f32 %v345, %v361
  %365 = vrot.lane.b32.xlu0 %v323, 32
  %v366 = vpop.permute.xlu0 %365
  %368 = vst.msk [vmem:[#allocation2] sm:$0x3] %vm228, %v366
  %370 = vrot.lane.b32.xlu0 %v363, 64
  %v371 = vpop.permute.xlu0 %370
  %373 = vst.msk [vmem:[#allocation2] sm:$0x3] %vm234, %v371
  %375 = vrot.lane.b32.xlu0 %v317, 96
  %v376 = vpop.permute.xlu0 %375
  %378 = vst.msk [vmem:[#allocation3] sm:$0x3] %vm228, %v376
  %379 = vst.msk [vmem:[#allocation3] sm:$0x3] %vm234, %v357
  %s380 = scalar_lea.vmem %s3, 2
  %381 = vst.msk [vmem:[%s380] sm:$0x3] %vm228, %v366
  %382 = vrot.lane.b32.xlu0 %v363, 32
  %v383 = vpop.permute.xlu0 %382
  %s385 = scalar_lea.vmem %s49, 12
  %386 = vst.msk [vmem:[%s385] sm:$0x3] %vm228, %v383
  %v387 = vld [vmem:[#allocation2] sm:$0x3]
  %v388 = vpack.c.bf16 %v387, %v387
  %v390 = vsel %vm110, %v388, 0
  %392 = vmatpush.bf16.msra.mxu0 0
  %393 = vmatpush.bf16.msra.mxu0 0
  %394 = vmatpush.bf16.msra.mxu0 0
  %395 = vmatpush.bf16.msra.mxu0 0
  %396 = vmatpush.bf16.msra.mxu0 %v100
  %397 = vmatpush.bf16.msra.mxu0 %v98
  %398 = vmatpush.bf16.msra.mxu0 %v96
  %399 = vmatpush.bf16.msra.mxu0 %v94
  %400 = vmatmul.bf16.gmra.mxu0 %v390
  %v401 = vpop.f32.mrf.mxu0
  %v402 = vadd.f32 0.0, %v401
  %v403 = vpop.f32.mrf.mxu0
  %404 = vdwg.mxu0
  %405 = vmatpush.bf16.msra.mxu0 0
  %406 = vmatpush.bf16.msra.mxu0 0
  %407 = vmatpush.bf16.msra.mxu0 0
  %408 = vmatpush.bf16.msra.mxu0 0
  %409 = vmatpush.bf16.msra.mxu0 %v101
  %410 = vmatpush.bf16.msra.mxu0 %v99
  %411 = vmatpush.bf16.msra.mxu0 %v97
  %412 = vmatpush.bf16.msra.mxu0 %v95
  %413 = vmatmul.bf16.gmra.mxu0 %v390
  %v414 = vpop.f32.mrf.mxu0
  %v415 = vadd.f32 0.0, %v414
  %v416 = vpop.f32.mrf.mxu0
  %417 = vdwg.mxu0
  %s418 = scalar_lea.vmem %s0, 4
  %v419 = vld [vmem:[%s418] sm:$0x3]
  %v420 = vadd.f32 %v419, %v402
  %v421 = vxor.u32 %v420, 2147483648
  %v422 = vmul.f32 %v421, 1.442695
  %v423 = vpow.pop %v422
  %v424 = vadd.f32 %v423, 1.0
  %v425 = vrcp.pop %v424
  %v426 = vmul.f32 %v424, %v425
  %v427 = vsub.f32 1.0, %v426
  %v428 = vmul.f32 %v425, %v427
  %v429 = vadd.f32 %v425, %v428
  %vm430 = vweird.f32 %v424
  %vm431 = vweird.f32 %v425
  %vm432 = vmor %vm430, %vm431
  %v433 = vsel %vm432, %v425, %v429
  %v434 = vand.u32 2147483647, %v424
  %vm435 = vcmp.eq.f32.partialorder %v434, 8.507059e+37
  %v436 = vand.u32 %v424, 2147483648
  %v437 = vor.u32 1.1754944e-38, %v436
  %v438 = vsel %vm435, %v437, %v433
  %v439 = vmul.f32 1.0, %v438
  %v440 = vtanh.pop %v420
  %v441 = vld [vmem:[#allocation3] sm:$0x3]
  %443 = vrot.lane.b32.xlu0 %v441, 32
  %v444 = vpop.permute.xlu0 %443
  %v446 = vmul.f32 %v439, %v444
  %448 = vrot.lane.b32.xlu0 %v440, 64
  %v449 = vpop.permute.xlu0 %448
  %v451 = vmul.f32 %v439, %v449
  %453 = vrot.lane.b32.xlu0 %v451, 32
  %v454 = vpop.permute.xlu0 %453
  %v456 = vadd.f32 %v446, %v454
  %v457 = vtanh.pop %v456
  %459 = vrot.lane.b32.xlu0 %v457, 64
  %v460 = vpop.permute.xlu0 %459
  %v462 = vmul.f32 %v439, %v460
  %s463 = scalar_lea.vmem %s41, 10
  %v464 = vld [vmem:[%s463] sm:$0x3]
  %v465 = vadd.f32 %v464, %v415
  %v466 = vxor.u32 %v465, 2147483648
  %v467 = vmul.f32 %v466, 1.442695
  %v468 = vpow.pop %v467
  %v469 = vadd.f32 %v468, 1.0
  %v470 = vrcp.pop %v469
  %v471 = vmul.f32 %v469, %v470
  %v472 = vsub.f32 1.0, %v471
  %v473 = vmul.f32 %v470, %v472
  %v474 = vadd.f32 %v470, %v473
  %vm475 = vweird.f32 %v469
  %vm476 = vweird.f32 %v470
  %vm477 = vmor %vm475, %vm476
  %v478 = vsel %vm477, %v470, %v474
  %v479 = vand.u32 2147483647, %v469
  %vm480 = vcmp.eq.f32.partialorder %v479, 8.507059e+37
  %v481 = vand.u32 %v469, 2147483648
  %v482 = vor.u32 1.1754944e-38, %v481
  %v483 = vsel %vm480, %v482, %v478
  %v484 = vmul.f32 1.0, %v483
  %v485 = vtanh.pop %v465
  %v486 = vmul.f32 %v484, %v441
  %488 = vrot.lane.b32.xlu0 %v485, 64
  %v489 = vpop.permute.xlu0 %488
  %v491 = vmul.f32 %v484, %v489
  %493 = vrot.lane.b32.xlu0 %v491, 32
  %v494 = vpop.permute.xlu0 %493
  %v496 = vadd.f32 %v486, %v494
  %v497 = vtanh.pop %v496
  %499 = vrot.lane.b32.xlu0 %v497, 64
  %v500 = vpop.permute.xlu0 %499
  %v502 = vmul.f32 %v484, %v500
  %504 = vrot.lane.b32.xlu0 %v462, 32
  %v505 = vpop.permute.xlu0 %504
  %507 = vst.msk [vmem:[#allocation2] sm:$0x3] %vm228, %v505
  %509 = vrot.lane.b32.xlu0 %v502, 64
  %v510 = vpop.permute.xlu0 %509
  %512 = vst.msk [vmem:[#allocation2] sm:$0x3] %vm234, %v510
  %514 = vrot.lane.b32.xlu0 %v456, 96
  %v515 = vpop.permute.xlu0 %514
  %517 = vst.msk [vmem:[#allocation3] sm:$0x3] %vm228, %v515
  %518 = vst.msk [vmem:[#allocation3] sm:$0x3] %vm234, %v496
  %s519 = scalar_lea.vmem %s3, 4
  %520 = vst.msk [vmem:[%s519] sm:$0x3] %vm228, %v505
  %521 = vrot.lane.b32.xlu0 %v502, 32
  %v522 = vpop.permute.xlu0 %521
  %s524 = scalar_lea.vmem %s49, 10
  %525 = vst.msk [vmem:[%s524] sm:$0x3] %vm228, %v522
  %v526 = vld [vmem:[#allocation2] sm:$0x3]
  %v527 = vpack.c.bf16 %v526, %v526
  %v529 = vsel %vm110, %v527, 0
  %531 = vmatpush.bf16.msra.mxu0 0
  %532 = vmatpush.bf16.msra.mxu0 0
  %533 = vmatpush.bf16.msra.mxu0 0
  %534 = vmatpush.bf16.msra.mxu0 0
  %535 = vmatpush.bf16.msra.mxu0 %v100
  %536 = vmatpush.bf16.msra.mxu0 %v98
  %537 = vmatpush.bf16.msra.mxu0 %v96
  %538 = vmatpush.bf16.msra.mxu0 %v94
  %539 = vmatmul.bf16.gmra.mxu0 %v529
  %v540 = vpop.f32.mrf.mxu0
  %v541 = vadd.f32 0.0, %v540
  %v542 = vpop.f32.mrf.mxu0
  %543 = vdwg.mxu0
  %544 = vmatpush.bf16.msra.mxu0 0
  %545 = vmatpush.bf16.msra.mxu0 0
  %546 = vmatpush.bf16.msra.mxu0 0
  %547 = vmatpush.bf16.msra.mxu0 0
  %548 = vmatpush.bf16.msra.mxu0 %v101
  %549 = vmatpush.bf16.msra.mxu0 %v99
  %550 = vmatpush.bf16.msra.mxu0 %v97
  %551 = vmatpush.bf16.msra.mxu0 %v95
  %552 = vmatmul.bf16.gmra.mxu0 %v529
  %v553 = vpop.f32.mrf.mxu0
  %v554 = vadd.f32 0.0, %v553
  %v555 = vpop.f32.mrf.mxu0
  %556 = vdwg.mxu0
  %s557 = scalar_lea.vmem %s0, 6
  %v558 = vld [vmem:[%s557] sm:$0x3]
  %v559 = vadd.f32 %v558, %v541
  %v560 = vxor.u32 %v559, 2147483648
  %v561 = vmul.f32 %v560, 1.442695
  %v562 = vpow.pop %v561
  %v563 = vadd.f32 %v562, 1.0
  %v564 = vrcp.pop %v563
  %v565 = vmul.f32 %v563, %v564
  %v566 = vsub.f32 1.0, %v565
  %v567 = vmul.f32 %v564, %v566
  %v568 = vadd.f32 %v564, %v567
  %vm569 = vweird.f32 %v563
  %vm570 = vweird.f32 %v564
  %vm571 = vmor %vm569, %vm570
  %v572 = vsel %vm571, %v564, %v568
  %v573 = vand.u32 2147483647, %v563
  %vm574 = vcmp.eq.f32.partialorder %v573, 8.507059e+37
  %v575 = vand.u32 %v563, 2147483648
  %v576 = vor.u32 1.1754944e-38, %v575
  %v577 = vsel %vm574, %v576, %v572
  %v578 = vmul.f32 1.0, %v577
  %v579 = vtanh.pop %v559
  %v580 = vld [vmem:[#allocation3] sm:$0x3]
  %582 = vrot.lane.b32.xlu0 %v580, 32
  %v583 = vpop.permute.xlu0 %582
  %v585 = vmul.f32 %v578, %v583
  %587 = vrot.lane.b32.xlu0 %v579, 64
  %v588 = vpop.permute.xlu0 %587
  %v590 = vmul.f32 %v578, %v588
  %592 = vrot.lane.b32.xlu0 %v590, 32
  %v593 = vpop.permute.xlu0 %592
  %v595 = vadd.f32 %v585, %v593
  %v596 = vtanh.pop %v595
  %598 = vrot.lane.b32.xlu0 %v596, 64
  %v599 = vpop.permute.xlu0 %598
  %v601 = vmul.f32 %v578, %v599
  %s602 = scalar_lea.vmem %s41, 8
  %v603 = vld [vmem:[%s602] sm:$0x3]
  %v604 = vadd.f32 %v603, %v554
  %v605 = vxor.u32 %v604, 2147483648
  %v606 = vmul.f32 %v605, 1.442695
  %v607 = vpow.pop %v606
  %v608 = vadd.f32 %v607, 1.0
  %v609 = vrcp.pop %v608
  %v610 = vmul.f32 %v608, %v609
  %v611 = vsub.f32 1.0, %v610
  %v612 = vmul.f32 %v609, %v611
  %v613 = vadd.f32 %v609, %v612
  %vm614 = vweird.f32 %v608
  %vm615 = vweird.f32 %v609
  %vm616 = vmor %vm614, %vm615
  %v617 = vsel %vm616, %v609, %v613
  %v618 = vand.u32 2147483647, %v608
  %vm619 = vcmp.eq.f32.partialorder %v618, 8.507059e+37
  %v620 = vand.u32 %v608, 2147483648
  %v621 = vor.u32 1.1754944e-38, %v620
  %v622 = vsel %vm619, %v621, %v617
  %v623 = vmul.f32 1.0, %v622
  %v624 = vtanh.pop %v604
  %v625 = vmul.f32 %v623, %v580
  %627 = vrot.lane.b32.xlu0 %v624, 64
  %v628 = vpop.permute.xlu0 %627
  %v630 = vmul.f32 %v623, %v628
  %632 = vrot.lane.b32.xlu0 %v630, 32
  %v633 = vpop.permute.xlu0 %632
  %v635 = vadd.f32 %v625, %v633
  %v636 = vtanh.pop %v635
  %638 = vrot.lane.b32.xlu0 %v636, 64
  %v639 = vpop.permute.xlu0 %638
  %v641 = vmul.f32 %v623, %v639
  %643 = vrot.lane.b32.xlu0 %v601, 32
  %v644 = vpop.permute.xlu0 %643
  %646 = vst.msk [vmem:[#allocation2] sm:$0x3] %vm228, %v644
  %648 = vrot.lane.b32.xlu0 %v641, 64
  %v649 = vpop.permute.xlu0 %648
  %651 = vst.msk [vmem:[#allocation2] sm:$0x3] %vm234, %v649
  %653 = vrot.lane.b32.xlu0 %v595, 96
  %v654 = vpop.permute.xlu0 %653
  %656 = vst.msk [vmem:[#allocation3] sm:$0x3] %vm228, %v654
  %657 = vst.msk [vmem:[#allocation3] sm:$0x3] %vm234, %v635
  %s658 = scalar_lea.vmem %s3, 6
  %659 = vst.msk [vmem:[%s658] sm:$0x3] %vm228, %v644
  %660 = vrot.lane.b32.xlu0 %v641, 32
  %v661 = vpop.permute.xlu0 %660
  %s663 = scalar_lea.vmem %s49, 8
  %664 = vst.msk [vmem:[%s663] sm:$0x3] %vm228, %v661
  %v665 = vld [vmem:[#allocation2] sm:$0x3]
  %v666 = vpack.c.bf16 %v665, %v665
  %v668 = vsel %vm110, %v666, 0
  %670 = vmatpush.bf16.msra.mxu0 0
  %671 = vmatpush.bf16.msra.mxu0 0
  %672 = vmatpush.bf16.msra.mxu0 0
  %673 = vmatpush.bf16.msra.mxu0 0
  %674 = vmatpush.bf16.msra.mxu0 %v100
  %675 = vmatpush.bf16.msra.mxu0 %v98
  %676 = vmatpush.bf16.msra.mxu0 %v96
  %677 = vmatpush.bf16.msra.mxu0 %v94
  %678 = vmatmul.bf16.gmra.mxu0 %v668
  %v679 = vpop.f32.mrf.mxu0
  %v680 = vadd.f32 0.0, %v679
  %v681 = vpop.f32.mrf.mxu0
  %682 = vdwg.mxu0
  %683 = vmatpush.bf16.msra.mxu0 0
  %684 = vmatpush.bf16.msra.mxu0 0
  %685 = vmatpush.bf16.msra.mxu0 0
  %686 = vmatpush.bf16.msra.mxu0 0
  %687 = vmatpush.bf16.msra.mxu0 %v101
  %688 = vmatpush.bf16.msra.mxu0 %v99
  %689 = vmatpush.bf16.msra.mxu0 %v97
  %690 = vmatpush.bf16.msra.mxu0 %v95
  %691 = vmatmul.bf16.gmra.mxu0 %v668
  %v692 = vpop.f32.mrf.mxu0
  %v693 = vadd.f32 0.0, %v692
  %v694 = vpop.f32.mrf.mxu0
  %695 = vdwg.mxu0
  %s696 = scalar_lea.vmem %s0, 8
  %v697 = vld [vmem:[%s696] sm:$0x3]
  %v698 = vadd.f32 %v697, %v680
  %v699 = vxor.u32 %v698, 2147483648
  %v700 = vmul.f32 %v699, 1.442695
  %v701 = vpow.pop %v700
  %v702 = vadd.f32 %v701, 1.0
  %v703 = vrcp.pop %v702
  %v704 = vmul.f32 %v702, %v703
  %v705 = vsub.f32 1.0, %v704
  %v706 = vmul.f32 %v703, %v705
  %v707 = vadd.f32 %v703, %v706
  %vm708 = vweird.f32 %v702
  %vm709 = vweird.f32 %v703
  %vm710 = vmor %vm708, %vm709
  %v711 = vsel %vm710, %v703, %v707
  %v712 = vand.u32 2147483647, %v702
  %vm713 = vcmp.eq.f32.partialorder %v712, 8.507059e+37
  %v714 = vand.u32 %v702, 2147483648
  %v715 = vor.u32 1.1754944e-38, %v714
  %v716 = vsel %vm713, %v715, %v711
  %v717 = vmul.f32 1.0, %v716
  %v718 = vtanh.pop %v698
  %v719 = vld [vmem:[#allocation3] sm:$0x3]
  %721 = vrot.lane.b32.xlu0 %v719, 32
  %v722 = vpop.permute.xlu0 %721
  %v724 = vmul.f32 %v717, %v722
  %726 = vrot.lane.b32.xlu0 %v718, 64
  %v727 = vpop.permute.xlu0 %726
  %v729 = vmul.f32 %v717, %v727
  %731 = vrot.lane.b32.xlu0 %v729, 32
  %v732 = vpop.permute.xlu0 %731
  %v734 = vadd.f32 %v724, %v732
  %v735 = vtanh.pop %v734
  %737 = vrot.lane.b32.xlu0 %v735, 64
  %v738 = vpop.permute.xlu0 %737
  %v740 = vmul.f32 %v717, %v738
  %s741 = scalar_lea.vmem %s41, 6
  %v742 = vld [vmem:[%s741] sm:$0x3]
  %v743 = vadd.f32 %v742, %v693
  %v744 = vxor.u32 %v743, 2147483648
  %v745 = vmul.f32 %v744, 1.442695
  %v746 = vpow.pop %v745
  %v747 = vadd.f32 %v746, 1.0
  %v748 = vrcp.pop %v747
  %v749 = vmul.f32 %v747, %v748
  %v750 = vsub.f32 1.0, %v749
  %v751 = vmul.f32 %v748, %v750
  %v752 = vadd.f32 %v748, %v751
  %vm753 = vweird.f32 %v747
  %vm754 = vweird.f32 %v748
  %vm755 = vmor %vm753, %vm754
  %v756 = vsel %vm755, %v748, %v752
  %v757 = vand.u32 2147483647, %v747
  %vm758 = vcmp.eq.f32.partialorder %v757, 8.507059e+37
  %v759 = vand.u32 %v747, 2147483648
  %v760 = vor.u32 1.1754944e-38, %v759
  %v761 = vsel %vm758, %v760, %v756
  %v762 = vmul.f32 1.0, %v761
  %v763 = vtanh.pop %v743
  %v764 = vmul.f32 %v762, %v719
  %766 = vrot.lane.b32.xlu0 %v763, 64
  %v767 = vpop.permute.xlu0 %766
  %v769 = vmul.f32 %v762, %v767
  %771 = vrot.lane.b32.xlu0 %v769, 32
  %v772 = vpop.permute.xlu0 %771
  %v774 = vadd.f32 %v764, %v772
  %v775 = vtanh.pop %v774
  %777 = vrot.lane.b32.xlu0 %v775, 64
  %v778 = vpop.permute.xlu0 %777
  %v780 = vmul.f32 %v762, %v778
  %782 = vrot.lane.b32.xlu0 %v740, 32
  %v783 = vpop.permute.xlu0 %782
  %785 = vst.msk [vmem:[#allocation2] sm:$0x3] %vm228, %v783
  %787 = vrot.lane.b32.xlu0 %v780, 64
  %v788 = vpop.permute.xlu0 %787
  %790 = vst.msk [vmem:[#allocation2] sm:$0x3] %vm234, %v788
  %792 = vrot.lane.b32.xlu0 %v734, 96
  %v793 = vpop.permute.xlu0 %792
  %795 = vst.msk [vmem:[#allocation3] sm:$0x3] %vm228, %v793
  %796 = vst.msk [vmem:[#allocation3] sm:$0x3] %vm234, %v774
  %s797 = scalar_lea.vmem %s3, 8
  %798 = vst.msk [vmem:[%s797] sm:$0x3] %vm228, %v783
  %799 = vrot.lane.b32.xlu0 %v780, 32
  %v800 = vpop.permute.xlu0 %799
  %s802 = scalar_lea.vmem %s49, 6
  %803 = vst.msk [vmem:[%s802] sm:$0x3] %vm228, %v800
  %v804 = vld [vmem:[#allocation2] sm:$0x3]
  %v805 = vpack.c.bf16 %v804, %v804
  %v807 = vsel %vm110, %v805, 0
  %809 = vmatpush.bf16.msra.mxu0 0
  %810 = vmatpush.bf16.msra.mxu0 0
  %811 = vmatpush.bf16.msra.mxu0 0
  %812 = vmatpush.bf16.msra.mxu0 0
  %813 = vmatpush.bf16.msra.mxu0 %v100
  %814 = vmatpush.bf16.msra.mxu0 %v98
  %815 = vmatpush.bf16.msra.mxu0 %v96
  %816 = vmatpush.bf16.msra.mxu0 %v94
  %817 = vmatmul.bf16.gmra.mxu0 %v807
  %v818 = vpop.f32.mrf.mxu0
  %v819 = vadd.f32 0.0, %v818
  %v820 = vpop.f32.mrf.mxu0
  %821 = vdwg.mxu0
  %822 = vmatpush.bf16.msra.mxu0 0
  %823 = vmatpush.bf16.msra.mxu0 0
  %824 = vmatpush.bf16.msra.mxu0 0
  %825 = vmatpush.bf16.msra.mxu0 0
  %826 = vmatpush.bf16.msra.mxu0 %v101
  %827 = vmatpush.bf16.msra.mxu0 %v99
  %828 = vmatpush.bf16.msra.mxu0 %v97
  %829 = vmatpush.bf16.msra.mxu0 %v95
  %830 = vmatmul.bf16.gmra.mxu0 %v807
  %v831 = vpop.f32.mrf.mxu0
  %v832 = vadd.f32 0.0, %v831
  %v833 = vpop.f32.mrf.mxu0
  %834 = vdwg.mxu0
  %s835 = scalar_lea.vmem %s0, 10
  %v836 = vld [vmem:[%s835] sm:$0x3]
  %v837 = vadd.f32 %v836, %v819
  %v838 = vxor.u32 %v837, 2147483648
  %v839 = vmul.f32 %v838, 1.442695
  %v840 = vpow.pop %v839
  %v841 = vadd.f32 %v840, 1.0
  %v842 = vrcp.pop %v841
  %v843 = vmul.f32 %v841, %v842
  %v844 = vsub.f32 1.0, %v843
  %v845 = vmul.f32 %v842, %v844
  %v846 = vadd.f32 %v842, %v845
  %vm847 = vweird.f32 %v841
  %vm848 = vweird.f32 %v842
  %vm849 = vmor %vm847, %vm848
  %v850 = vsel %vm849, %v842, %v846
  %v851 = vand.u32 2147483647, %v841
  %vm852 = vcmp.eq.f32.partialorder %v851, 8.507059e+37
  %v853 = vand.u32 %v841, 2147483648
  %v854 = vor.u32 1.1754944e-38, %v853
  %v855 = vsel %vm852, %v854, %v850
  %v856 = vmul.f32 1.0, %v855
  %v857 = vtanh.pop %v837
  %v858 = vld [vmem:[#allocation3] sm:$0x3]
  %860 = vrot.lane.b32.xlu0 %v858, 32
  %v861 = vpop.permute.xlu0 %860
  %v863 = vmul.f32 %v856, %v861
  %865 = vrot.lane.b32.xlu0 %v857, 64
  %v866 = vpop.permute.xlu0 %865
  %v868 = vmul.f32 %v856, %v866
  %870 = vrot.lane.b32.xlu0 %v868, 32
  %v871 = vpop.permute.xlu0 %870
  %v873 = vadd.f32 %v863, %v871
  %v874 = vtanh.pop %v873
  %876 = vrot.lane.b32.xlu0 %v874, 64
  %v877 = vpop.permute.xlu0 %876
  %v879 = vmul.f32 %v856, %v877
  %s880 = scalar_lea.vmem %s41, 4
  %v881 = vld [vmem:[%s880] sm:$0x3]
  %v882 = vadd.f32 %v881, %v832
  %v883 = vxor.u32 %v882, 2147483648
  %v884 = vmul.f32 %v883, 1.442695
  %v885 = vpow.pop %v884
  %v886 = vadd.f32 %v885, 1.0
  %v887 = vrcp.pop %v886
  %v888 = vmul.f32 %v886, %v887
  %v889 = vsub.f32 1.0, %v888
  %v890 = vmul.f32 %v887, %v889
  %v891 = vadd.f32 %v887, %v890
  %vm892 = vweird.f32 %v886
  %vm893 = vweird.f32 %v887
  %vm894 = vmor %vm892, %vm893
  %v895 = vsel %vm894, %v887, %v891
  %v896 = vand.u32 2147483647, %v886
  %vm897 = vcmp.eq.f32.partialorder %v896, 8.507059e+37
  %v898 = vand.u32 %v886, 2147483648
  %v899 = vor.u32 1.1754944e-38, %v898
  %v900 = vsel %vm897, %v899, %v895
  %v901 = vmul.f32 1.0, %v900
  %v902 = vtanh.pop %v882
  %v903 = vmul.f32 %v901, %v858
  %905 = vrot.lane.b32.xlu0 %v902, 64
  %v906 = vpop.permute.xlu0 %905
  %v908 = vmul.f32 %v901, %v906
  %910 = vrot.lane.b32.xlu0 %v908, 32
  %v911 = vpop.permute.xlu0 %910
  %v913 = vadd.f32 %v903, %v911
  %v914 = vtanh.pop %v913
  %916 = vrot.lane.b32.xlu0 %v914, 64
  %v917 = vpop.permute.xlu0 %916
  %v919 = vmul.f32 %v901, %v917
  %921 = vrot.lane.b32.xlu0 %v879, 32
  %v922 = vpop.permute.xlu0 %921
  %924 = vst.msk [vmem:[#allocation2] sm:$0x3] %vm228, %v922
  %926 = vrot.lane.b32.xlu0 %v919, 64
  %v927 = vpop.permute.xlu0 %926
  %929 = vst.msk [vmem:[#allocation2] sm:$0x3] %vm234, %v927
  %931 = vrot.lane.b32.xlu0 %v873, 96
  %v932 = vpop.permute.xlu0 %931
  %934 = vst.msk [vmem:[#allocation3] sm:$0x3] %vm228, %v932
  %935 = vst.msk [vmem:[#allocation3] sm:$0x3] %vm234, %v913
  %s936 = scalar_lea.vmem %s3, 10
  %937 = vst.msk [vmem:[%s936] sm:$0x3] %vm228, %v922
  %938 = vrot.lane.b32.xlu0 %v919, 32
  %v939 = vpop.permute.xlu0 %938
  %s941 = scalar_lea.vmem %s49, 4
  %942 = vst.msk [vmem:[%s941] sm:$0x3] %vm228, %v939
  %v943 = vld [vmem:[#allocation2] sm:$0x3]
  %v944 = vpack.c.bf16 %v943, %v943
  %v946 = vsel %vm110, %v944, 0
  %948 = vmatpush.bf16.msra.mxu0 0
  %949 = vmatpush.bf16.msra.mxu0 0
  %950 = vmatpush.bf16.msra.mxu0 0
  %951 = vmatpush.bf16.msra.mxu0 0
  %952 = vmatpush.bf16.msra.mxu0 %v100
  %953 = vmatpush.bf16.msra.mxu0 %v98
  %954 = vmatpush.bf16.msra.mxu0 %v96
  %955 = vmatpush.bf16.msra.mxu0 %v94
  %956 = vmatmul.bf16.gmra.mxu0 %v946
  %v957 = vpop.f32.mrf.mxu0
  %v958 = vadd.f32 0.0, %v957
  %v959 = vpop.f32.mrf.mxu0
  %960 = vdwg.mxu0
  %961 = vmatpush.bf16.msra.mxu0 0
  %962 = vmatpush.bf16.msra.mxu0 0
  %963 = vmatpush.bf16.msra.mxu0 0
  %964 = vmatpush.bf16.msra.mxu0 0
  %965 = vmatpush.bf16.msra.mxu0 %v101
  %966 = vmatpush.bf16.msra.mxu0 %v99
  %967 = vmatpush.bf16.msra.mxu0 %v97
  %968 = vmatpush.bf16.msra.mxu0 %v95
  %969 = vmatmul.bf16.gmra.mxu0 %v946
  %v970 = vpop.f32.mrf.mxu0
  %v971 = vadd.f32 0.0, %v970
  %v972 = vpop.f32.mrf.mxu0
  %973 = vdwg.mxu0
  %s974 = scalar_lea.vmem %s0, 12
  %v975 = vld [vmem:[%s974] sm:$0x3]
  %v976 = vadd.f32 %v975, %v958
  %v977 = vxor.u32 %v976, 2147483648
  %v978 = vmul.f32 %v977, 1.442695
  %v979 = vpow.pop %v978
  %v980 = vadd.f32 %v979, 1.0
  %v981 = vrcp.pop %v980
  %v982 = vmul.f32 %v980, %v981
  %v983 = vsub.f32 1.0, %v982
  %v984 = vmul.f32 %v981, %v983
  %v985 = vadd.f32 %v981, %v984
  %vm986 = vweird.f32 %v980
  %vm987 = vweird.f32 %v981
  %vm988 = vmor %vm986, %vm987
  %v989 = vsel %vm988, %v981, %v985
  %v990 = vand.u32 2147483647, %v980
  %vm991 = vcmp.eq.f32.partialorder %v990, 8.507059e+37
  %v992 = vand.u32 %v980, 2147483648
  %v993 = vor.u32 1.1754944e-38, %v992
  %v994 = vsel %vm991, %v993, %v989
  %v995 = vmul.f32 1.0, %v994
  %v996 = vtanh.pop %v976
  %v997 = vld [vmem:[#allocation3] sm:$0x3]
  %999 = vrot.lane.b32.xlu0 %v997, 32
  %v1000 = vpop.permute.xlu0 %999
  %v1002 = vmul.f32 %v995, %v1000
  %1004 = vrot.lane.b32.xlu0 %v996, 64
  %v1005 = vpop.permute.xlu0 %1004
  %v1007 = vmul.f32 %v995, %v1005
  %1009 = vrot.lane.b32.xlu0 %v1007, 32
  %v1010 = vpop.permute.xlu0 %1009
  %v1012 = vadd.f32 %v1002, %v1010
  %v1013 = vtanh.pop %v1012
  %1015 = vrot.lane.b32.xlu0 %v1013, 64
  %v1016 = vpop.permute.xlu0 %1015
  %v1018 = vmul.f32 %v995, %v1016
  %s1019 = scalar_lea.vmem %s41, 2
  %v1020 = vld [vmem:[%s1019] sm:$0x3]
  %v1021 = vadd.f32 %v1020, %v971
  %v1022 = vxor.u32 %v1021, 2147483648
  %v1023 = vmul.f32 %v1022, 1.442695
  %v1024 = vpow.pop %v1023
  %v1025 = vadd.f32 %v1024, 1.0
  %v1026 = vrcp.pop %v1025
  %v1027 = vmul.f32 %v1025, %v1026
  %v1028 = vsub.f32 1.0, %v1027
  %v1029 = vmul.f32 %v1026, %v1028
  %v1030 = vadd.f32 %v1026, %v1029
  %vm1031 = vweird.f32 %v1025
  %vm1032 = vweird.f32 %v1026
  %vm1033 = vmor %vm1031, %vm1032
  %v1034 = vsel %vm1033, %v1026, %v1030
  %v1035 = vand.u32 2147483647, %v1025
  %vm1036 = vcmp.eq.f32.partialorder %v1035, 8.507059e+37
  %v1037 = vand.u32 %v1025, 2147483648
  %v1038 = vor.u32 1.1754944e-38, %v1037
  %v1039 = vsel %vm1036, %v1038, %v1034
  %v1040 = vmul.f32 1.0, %v1039
  %v1041 = vtanh.pop %v1021
  %v1042 = vmul.f32 %v1040, %v997
  %1044 = vrot.lane.b32.xlu0 %v1041, 64
  %v1045 = vpop.permute.xlu0 %1044
  %v1047 = vmul.f32 %v1040, %v1045
  %1049 = vrot.lane.b32.xlu0 %v1047, 32
  %v1050 = vpop.permute.xlu0 %1049
  %v1052 = vadd.f32 %v1042, %v1050
  %v1053 = vtanh.pop %v1052
  %1055 = vrot.lane.b32.xlu0 %v1053, 64
  %v1056 = vpop.permute.xlu0 %1055
  %v1058 = vmul.f32 %v1040, %v1056
  %1060 = vrot.lane.b32.xlu0 %v1018, 32
  %v1061 = vpop.permute.xlu0 %1060
  %1063 = vst.msk [vmem:[#allocation2] sm:$0x3] %vm228, %v1061
  %1065 = vrot.lane.b32.xlu0 %v1058, 64
  %v1066 = vpop.permute.xlu0 %1065
  %1068 = vst.msk [vmem:[#allocation2] sm:$0x3] %vm234, %v1066
  %1070 = vrot.lane.b32.xlu0 %v1012, 96
  %v1071 = vpop.permute.xlu0 %1070
  %1073 = vst.msk [vmem:[#allocation3] sm:$0x3] %vm228, %v1071
  %1074 = vst.msk [vmem:[#allocation3] sm:$0x3] %vm234, %v1052
  %s1075 = scalar_lea.vmem %s3, 12
  %1076 = vst.msk [vmem:[%s1075] sm:$0x3] %vm228, %v1061
  %1077 = vrot.lane.b32.xlu0 %v1058, 32
  %v1078 = vpop.permute.xlu0 %1077
  %s1080 = scalar_lea.vmem %s49, 2
  %1081 = vst.msk [vmem:[%s1080] sm:$0x3] %vm228, %v1078
  %v1082 = vld [vmem:[#allocation2] sm:$0x3]
  %v1083 = vpack.c.bf16 %v1082, %v1082
  %v1085 = vsel %vm110, %v1083, 0
  %1087 = vmatpush.bf16.msra.mxu0 0
  %1088 = vmatpush.bf16.msra.mxu0 0
  %1089 = vmatpush.bf16.msra.mxu0 0
  %1090 = vmatpush.bf16.msra.mxu0 0
  %1091 = vmatpush.bf16.msra.mxu0 %v100
  %1092 = vmatpush.bf16.msra.mxu0 %v98
  %1093 = vmatpush.bf16.msra.mxu0 %v96
  %1094 = vmatpush.bf16.msra.mxu0 %v94
  %1095 = vmatmul.bf16.gmra.mxu0 %v1085
  %v1096 = vpop.f32.mrf.mxu0
  %v1097 = vadd.f32 0.0, %v1096
  %v1098 = vpop.f32.mrf.mxu0
  %1099 = vdwg.mxu0
  %1100 = vmatpush.bf16.msra.mxu0 0
  %1101 = vmatpush.bf16.msra.mxu0 0
  %1102 = vmatpush.bf16.msra.mxu0 0
  %1103 = vmatpush.bf16.msra.mxu0 0
  %1104 = vmatpush.bf16.msra.mxu0 %v101
  %1105 = vmatpush.bf16.msra.mxu0 %v99
  %1106 = vmatpush.bf16.msra.mxu0 %v97
  %1107 = vmatpush.bf16.msra.mxu0 %v95
  %1108 = vmatmul.bf16.gmra.mxu0 %v1085
  %v1109 = vpop.f32.mrf.mxu0
  %v1110 = vadd.f32 0.0, %v1109
  %v1111 = vpop.f32.mrf.mxu0
  %1112 = vdwg.mxu0
  %s1113 = scalar_lea.vmem %s0, 14
  %v1114 = vld [vmem:[%s1113] sm:$0x3]
  %v1115 = vadd.f32 %v1114, %v1097
  %v1116 = vxor.u32 %v1115, 2147483648
  %v1117 = vmul.f32 %v1116, 1.442695
  %v1118 = vpow.pop %v1117
  %v1119 = vadd.f32 %v1118, 1.0
  %v1120 = vrcp.pop %v1119
  %v1121 = vmul.f32 %v1119, %v1120
  %v1122 = vsub.f32 1.0, %v1121
  %v1123 = vmul.f32 %v1120, %v1122
  %v1124 = vadd.f32 %v1120, %v1123
  %vm1125 = vweird.f32 %v1119
  %vm1126 = vweird.f32 %v1120
  %vm1127 = vmor %vm1125, %vm1126
  %v1128 = vsel %vm1127, %v1120, %v1124
  %v1129 = vand.u32 2147483647, %v1119
  %vm1130 = vcmp.eq.f32.partialorder %v1129, 8.507059e+37
  %v1131 = vand.u32 %v1119, 2147483648
  %v1132 = vor.u32 1.1754944e-38, %v1131
  %v1133 = vsel %vm1130, %v1132, %v1128
  %v1134 = vmul.f32 1.0, %v1133
  %v1135 = vtanh.pop %v1115
  %v1136 = vld [vmem:[#allocation3] sm:$0x3]
  %1138 = vrot.lane.b32.xlu0 %v1136, 32
  %v1139 = vpop.permute.xlu0 %1138
  %v1141 = vmul.f32 %v1134, %v1139
  %1143 = vrot.lane.b32.xlu0 %v1135, 64
  %v1144 = vpop.permute.xlu0 %1143
  %v1146 = vmul.f32 %v1134, %v1144
  %1148 = vrot.lane.b32.xlu0 %v1146, 32
  %v1149 = vpop.permute.xlu0 %1148
  %v1151 = vadd.f32 %v1141, %v1149
  %v1152 = vtanh.pop %v1151
  %1154 = vrot.lane.b32.xlu0 %v1152, 64
  %v1155 = vpop.permute.xlu0 %1154
  %v1157 = vmul.f32 %v1134, %v1155
  %v1158 = vld [vmem:[%s41] sm:$0x3]
  %v1159 = vadd.f32 %v1158, %v1110
  %v1160 = vxor.u32 %v1159, 2147483648
  %v1161 = vmul.f32 %v1160, 1.442695
  %v1162 = vpow.pop %v1161
  %v1163 = vadd.f32 %v1162, 1.0
  %v1164 = vrcp.pop %v1163
  %v1165 = vmul.f32 %v1163, %v1164
  %v1166 = vsub.f32 1.0, %v1165
  %v1167 = vmul.f32 %v1164, %v1166
  %v1168 = vadd.f32 %v1164, %v1167
  %vm1169 = vweird.f32 %v1163
  %vm1170 = vweird.f32 %v1164
  %vm1171 = vmor %vm1169, %vm1170
  %v1172 = vsel %vm1171, %v1164, %v1168
  %v1173 = vand.u32 2147483647, %v1163
  %vm1174 = vcmp.eq.f32.partialorder %v1173, 8.507059e+37
  %v1175 = vand.u32 %v1163, 2147483648
  %v1176 = vor.u32 1.1754944e-38, %v1175
  %v1177 = vsel %vm1174, %v1176, %v1172
  %v1178 = vmul.f32 1.0, %v1177
  %v1179 = vtanh.pop %v1159
  %v1180 = vmul.f32 %v1178, %v1136
  %1182 = vrot.lane.b32.xlu0 %v1179, 64
  %v1183 = vpop.permute.xlu0 %1182
  %v1185 = vmul.f32 %v1178, %v1183
  %1187 = vrot.lane.b32.xlu0 %v1185, 32
  %v1188 = vpop.permute.xlu0 %1187
  %v1190 = vadd.f32 %v1180, %v1188
  %v1191 = vtanh.pop %v1190
  %1193 = vrot.lane.b32.xlu0 %v1191, 64
  %v1194 = vpop.permute.xlu0 %1193
  %v1196 = vmul.f32 %v1178, %v1194
  %1198 = vrot.lane.b32.xlu0 %v1157, 32
  %v1199 = vpop.permute.xlu0 %1198
  %1201 = vst.msk [vmem:[#allocation2] sm:$0x3] %vm228, %v1199
  %1203 = vrot.lane.b32.xlu0 %v1196, 64
  %v1204 = vpop.permute.xlu0 %1203
  %1206 = vst.msk [vmem:[#allocation2] sm:$0x3] %vm234, %v1204
  %1208 = vrot.lane.b32.xlu0 %v1151, 96
  %v1209 = vpop.permute.xlu0 %1208
  %1211 = vst.msk [vmem:[#allocation3] sm:$0x3] %vm228, %v1209
  %1212 = vst.msk [vmem:[#allocation3] sm:$0x3] %vm234, %v1190
  %s1213 = scalar_lea.vmem %s3, 14
  %1214 = vst.msk [vmem:[%s1213] sm:$0x3] %vm228, %v1199
  %1215 = vrot.lane.b32.xlu0 %v1196, 32
  %v1216 = vpop.permute.xlu0 %1215
  %1218 = vst.msk [vmem:[%s49] sm:$0x3] %vm228, %v1216
  %s1219 = ssub.s32 0, 0
  %s1220 = smul.u32 8, %s1219
  %p1221 = scmp.lt.s32.totalorder %s1220, 7
  %s1222 = scalar_select %p1221, %s1220, 7
  %s1223 = smul.addr %s1222, 2
  %s1224 = scalar_lea.vmem %s4, %s1223
  // Predicated region
  $region18: #{forward.46} parent=0 // pred_check
    _
  $region19: #{forward.46} parent=0 // pred_check_branch
    %1226 = sbr.rel (0) target = $region21
  $region20: #{forward.46} parent=0 // pred_region
    _
  $region21: #{forward.46} parent=0 // pred_fallthru
    _
  // Predicated region
  $region22: #{forward.46} parent=0 // pred_check
    _
  $region23: #{forward.46} parent=0 // pred_check_branch
    %1228 = sbr.rel (0) target = $region25
  $region24: #{forward.46} parent=0 // pred_region
    %s1229 = ssub.s32 0, 0
    %s1230 = smul.u32 8, %s1229
  $region25: #{forward.46} parent=0 // pred_fallthru
    _
  // Predicated region
  $region26: #{forward.46} parent=0 // pred_check
    _
  $region27: #{forward.46} parent=0 // pred_check_branch
    %1232 = sbr.rel (0) target = $region29
  $region28: #{forward.46} parent=0 // pred_region
    _
  $region29: #{forward.46} parent=0 // pred_fallthru
    _
  // Predicated region
  $region30: #{forward.46} parent=0 // pred_check
    _
  $region31: #{forward.46} parent=0 // pred_check_branch
    %1234 = sbr.rel (0) target = $region33
  $region32: #{forward.46} parent=0 // pred_region
    %s1235 = ssub.s32 0, 0
    %s1236 = smul.u32 8, %s1235
    %p1237 = scmp.lt.s32.totalorder %s1236, 7
    %s1238 = scalar_select %p1237, %s1236, 7
    %s1239 = smul.addr %s1238, 2
    %s1240 = scalar_lea.vmem %s4, %s1239
  $region33: #{forward.46} parent=0 // pred_fallthru
    _

</llo_original>
